<compile_context>
chip_gen: v7x
topology: tpu7x:2x2x1
jax: 0.10.0
libtpu: 0.0.40
codegen_flags: <defaults>
</compile_context>

<pallas_src>
import functools

import jax
import jax.numpy as jnp
from jax.experimental import pallas as pl
from jax.experimental.pallas import tpu as pltpu


# ----------------------------- shared epilogue -----------------------------
def _bias_relu_pool(acc, bias, RT, W, Cout):
    # acc: (2*RT*W, Cout) f32 conv result rows; returns pooled (RT, W//2, Cout).
    y = jnp.maximum(acc + bias, 0.0).reshape(RT, 2, W, Cout)
    y = jnp.maximum(y[:, 0], y[:, 1])            # pool rows -> (RT, W, Cout)
    y = y.reshape(RT, W // 2, 2, Cout)
    return jnp.max(y, axis=2)                    # pool cols -> (RT, W//2, Cout)


# --------------- conv1: pre-im2col'd input, matmul+relu+pool kernel ---------------
def _mm_relu_pool_kernel(x_ref, w_ref, b_ref, o_ref, *, RT, W, Ktaps, Cout):
    # x_ref: (1, 2*RT, W, Ktaps) bf16 (9-tap im2col built at trace time)
    # w_ref: (Ktaps, Cout) bf16; b_ref: (1, Cout) f32; o_ref: (1, RT, W//2, Cout) f32
    CR = 2 * RT
    lhs = x_ref[0].reshape(CR * W, Ktaps)                           # bf16
    acc = jnp.dot(lhs, w_ref[...], preferred_element_type=jnp.float32)
    o_ref[0] = _bias_relu_pool(acc, b_ref[...], RT, W, Cout)


def _conv1_row_tile(Ho, W, Ktaps, Cout, budget=16 * 1024 * 1024):
    for rt in (32, 28, 16, 14, 8, 4, 2, 1):
        if Ho % rt:
            continue
        cr = 2 * rt
        est = (2 * cr * W * Ktaps * 2            # bf16 input block, double-buffered
               + 2 * rt * (W // 2) * Cout * 4    # f32 output block, double-buffered
               + cr * W * Ktaps * 2              # bf16 lhs reshape copy
               + cr * W * Cout * 4)              # f32 accumulator
        if est <= budget:
            return rt
    return 1


def conv1_relu_pool(x_nhwc, w_r, b):
    # x: (N, H, W, Cin) f32; w_r: (9*Cin, Cout) bf16; b: (Cout,) f32
    N, H, W, Cin = x_nhwc.shape
    Ktaps, Cout = w_r.shape
    assert H % 2 == 0 and W % 2 == 0
    Ho, Wo = H // 2, W // 2
    RT = _conv1_row_tile(Ho, W, Ktaps, Cout)
    CR = 2 * RT

    # Trace-time full 9-tap im2col in bf16: removes every lane-sparse (3/128)
    # in-kernel shuffle for the Cin=3 layer and bakes SAME zero-padding in.
    xp = jnp.pad(x_nhwc, ((0, 0), (1, 1), (1, 1), (0, 0))).astype(jnp.bfloat16)
    x9 = jnp.concatenate(
        [xp[:, kh:kh + H, kw:kw + W, :] for kh in range(3) for kw in range(3)],
        axis=-1)                                                    # (N, H, W, 9*Cin)

    kern = functools.partial(_mm_relu_pool_kernel, RT=RT, W=W, Ktaps=Ktaps, Cout=Cout)
    return pl.pallas_call(
        kern,
        out_shape=jax.ShapeDtypeStruct((N, Ho, Wo, Cout), jnp.float32),
        grid=(N, Ho // RT),
        in_specs=[
            pl.BlockSpec((1, CR, W, Ktaps), lambda n, i: (n, i, 0, 0)),
            pl.BlockSpec((Ktaps, Cout), lambda n, i: (0, 0)),
            pl.BlockSpec((1, Cout), lambda n, i: (0, 0)),
        ],
        out_specs=pl.BlockSpec((1, RT, Wo, Cout), lambda n, i: (n, i, 0, 0)),
        compiler_params=pltpu.CompilerParams(
            dimension_semantics=("parallel", "parallel"),
            vmem_limit_bytes=48 * 1024 * 1024),
    )(x9, w_r, b.reshape(1, Cout))


# ---------- conv2: fused conv3x3 + bias + relu + pool, in-kernel im2col ----------
def _conv_relu_pool_kernel(xa_ref, xb_ref, w_ref, b_ref, o_ref, *, RT, W, Cin, Cout):
    # xa_ref: (1, 2*RT, W+2, Cin) body rows of the padded image (f32)
    # xb_ref: (1, 2,    W+2, Cin) the following 2 halo rows (f32)
    # w_ref : (9*Cin, Cout) bf16, tap order (kh, kw, cin)
    # o_ref : (1, RT, W//2, Cout) f32
    CR = 2 * RT
    xa = xa_ref[0].astype(jnp.bfloat16)
    xb = xb_ref[0].astype(jnp.bfloat16)
    x = jnp.concatenate([xa, xb], axis=0)                           # (CR+2, W+2, Cin)
    # Merged-K im2col: single dot with K = 9*Cin (fills the 256-deep MXU).
    lhs = jnp.concatenate(
        [x[kh:kh + CR, kw:kw + W, :] for kh in range(3) for kw in range(3)],
        axis=-1).reshape(CR * W, 9 * Cin)                           # bf16
    acc = jnp.dot(lhs, w_ref[...], preferred_element_type=jnp.float32)
    o_ref[0] = _bias_relu_pool(acc, b_ref[...], RT, W, Cout)


def _conv2_row_tile(Ho, W, Cin, Cout, budget=16 * 1024 * 1024):
    for rt in (32, 28, 16, 14, 8, 4, 2, 1):
        if Ho % rt:
            continue
        cr = 2 * rt
        est = (2 * cr * (W + 2) * Cin * 4        # f32 body block, double-buffered
               + 2 * rt * (W // 2) * Cout * 4    # f32 output block, double-buffered
               + (cr + 2) * (W + 2) * Cin * 2    # bf16 row concat
               + cr * W * 9 * Cin * 2            # bf16 im2col lhs
               + cr * W * Cout * 4)              # f32 accumulator
        if est <= budget:
            return rt
    return 1


def conv2_relu_pool(x_nhwc, w_r, b):
    # x: (N, H, W, Cin) f32; w_r: (9*Cin, Cout) bf16; b: (Cout,) f32
    N, H, W, Cin = x_nhwc.shape
    Ktaps, Cout = w_r.shape
    assert H % 2 == 0 and W % 2 == 0
    Ho, Wo = H // 2, W // 2
    RT = _conv2_row_tile(Ho, W, Cin, Cout)
    CR = 2 * RT
    Wp = W + 2

    # TODO(synk): fold the SAME zero-padding into the kernel (pl.when edge handling)
    # to avoid this extra XLA pass over the layer-2 input (matters most on v5e).
    x_pad = jnp.pad(x_nhwc, ((0, 0), (1, 1), (1, 1), (0, 0)))       # (N, H+2, W+2, Cin)

    kern = functools.partial(_conv_relu_pool_kernel, RT=RT, W=W, Cin=Cin, Cout=Cout)
    return pl.pallas_call(
        kern,
        out_shape=jax.ShapeDtypeStruct((N, Ho, Wo, Cout), jnp.float32),
        grid=(N, Ho // RT),
        in_specs=[
            # CR body rows: block index i -> padded rows [i*CR, (i+1)*CR).
            pl.BlockSpec((1, CR, Wp, Cin), lambda n, i: (n, i, 0, 0)),
            # 2-row bottom halo: block size 2, block index (i+1)*RT -> rows
            # [(i+1)*CR, (i+1)*CR+2). Same array, second spec -> stays auto-pipelined.
            pl.BlockSpec((1, 2, Wp, Cin), lambda n, i: (n, (i + 1) * RT, 0, 0)),
            pl.BlockSpec((Ktaps, Cout), lambda n, i: (0, 0)),
            pl.BlockSpec((1, Cout), lambda n, i: (0, 0)),
        ],
        out_specs=pl.BlockSpec((1, RT, Wo, Cout), lambda n, i: (n, i, 0, 0)),
        compiler_params=pltpu.CompilerParams(
            dimension_semantics=("parallel", "parallel"),
            vmem_limit_bytes=48 * 1024 * 1024),
    )(x_pad, x_pad, w_r, b.reshape(1, Cout))


# ------------------- fully connected: lane-dense (K, F) weight -------------------
def _linear_kernel(x_ref, w_ref, b_ref, o_ref, acc_ref):
    @pl.when(pl.program_id(0) == 0)
    def _():
        acc_ref[...] = jnp.zeros_like(acc_ref)

    # Contract over the feature axis of both operands: (N,TF) x (K,TF) -> (N,K).
    acc_ref[...] += jax.lax.dot_general(
        x_ref[...], w_ref[...],
        dimension_numbers=(((1,), (1,)), ((), ())),
        preferred_element_type=jnp.float32)

    @pl.when(pl.program_id(0) == pl.num_programs(0) - 1)
    def _():
        o_ref[...] = acc_ref[...] + b_ref[...]


def _fc_feature_tile(F, N, K, budget=16 * 1024 * 1024):
    # Largest lane-dense feature tile (few grid steps) whose double-buffered
    # x + w blocks stay within the budget.
    steps = 1
    while steps <= 64:
        if F % steps == 0:
            tf = F // steps
            if (steps == 1 or tf % 128 == 0) and 2 * (N + K) * tf * 4 <= budget:
                return tf
        steps *= 2
    return F


def linear(x, w, b):
    # x: (N, F) NHWC-flattened activations; w: (K, F) (NHWC-permuted columns); b: (K,)
    N, F = x.shape
    K = w.shape[0]
    TF = _fc_feature_tile(F, N, K)
    return pl.pallas_call(
        _linear_kernel,
        out_shape=jax.ShapeDtypeStruct((N, K), jnp.float32),
        grid=(F // TF,),
        in_specs=[
            pl.BlockSpec((N, TF), lambda f: (0, f)),
            pl.BlockSpec((K, TF), lambda f: (0, f)),
            pl.BlockSpec((1, K), lambda f: (0, 0)),
        ],
        out_specs=pl.BlockSpec((N, K), lambda f: (0, 0)),
        scratch_shapes=[pltpu.VMEM((N, K), jnp.float32)],
        compiler_params=pltpu.CompilerParams(
            dimension_semantics=("arbitrary",),
            vmem_limit_bytes=48 * 1024 * 1024),
    )(x, w, b.reshape(1, K))


# ----------------------------- full forward pass -----------------------------
def cnn_forward(params, x_nchw):
    # params hold PyTorch-layout weights: conv OIHW, linear (K, F) with NCHW-flatten F.
    cout1, cin1 = params["w1"].shape[0], params["w1"].shape[1]
    cout2, cin2 = params["w2"].shape[0], params["w2"].shape[1]
    # OIHW -> (kh, kw, cin, cout) -> (9*Cin, Cout), cast to bf16 once at trace time.
    w1 = (jnp.transpose(params["w1"], (2, 3, 1, 0))
          .reshape(9 * cin1, cout1).astype(jnp.bfloat16))
    w2 = (jnp.transpose(params["w2"], (2, 3, 1, 0))
          .reshape(9 * cin2, cout2).astype(jnp.bfloat16))

    x = jnp.transpose(x_nchw, (0, 2, 3, 1))                         # NCHW -> NHWC (glue)
    x = conv1_relu_pool(x, w1, params["b1"])
    x = conv2_relu_pool(x, w2, params["b2"])

    N, Hp, Wp, C = x.shape
    xf = x.reshape(N, Hp * Wp * C)                                  # NHWC flatten (free)
    # Permute FC weight columns from NCHW-flatten order (c*Hp*Wp + h*Wp + w) to
    # NHWC-flatten order (h*Wp*C + w*C + c); keep the (K, F) orientation.
    K = params["wfc"].shape[0]
    w_fc = (params["wfc"].reshape(K, C, Hp, Wp)
            .transpose(0, 2, 3, 1).reshape(K, Hp * Wp * C))         # (K, F)
    return linear(xf, w_fc, params["bfc"])


def cnn_reference(params, x_nchw):
    # pure-JAX NCHW reference, mirrors the PyTorch module exactly
    def conv(x, w, b):
        y = jax.lax.conv_general_dilated(
            x, w, window_strides=(1, 1), padding="SAME",
            dimension_numbers=("NCHW", "OIHW", "NCHW"))
        return jax.nn.relu(y + b[None, :, None, None])

    def pool(x):
        return jax.lax.reduce_window(x, -jnp.inf, jax.lax.max,
                                     (1, 1, 2, 2), (1, 1, 2, 2), "VALID")

    x = pool(conv(x_nchw, params["w1"], params["b1"]))
    x = pool(conv(x, params["w2"], params["b2"]))
    x = x.reshape(x.shape[0], -1)
    return x @ params["wfc"].T + params["bfc"]


if __name__ == "__main__":
    num_classes = 2
    N, Cin, H, W = 2, 3, 32, 32          # small spatial size (module assumes 224x224)

    key = jax.random.PRNGKey(0)
    ks = jax.random.split(key, 7)
    x = jax.random.normal(ks[0], (N, Cin, H, W), jnp.float32)

    # Deterministic synthetic parameters in PyTorch layouts.
    # Original module hard-codes fc in_features = 64*56*56 (for 224x224 inputs);
    # here it is derived from the actual spatial size: 64 * (H//4) * (W//4).
    F = 64 * (H // 4) * (W // 4)
    params = {
        "w1": 0.05 * jax.random.normal(ks[1], (32, 3, 3, 3), jnp.float32),    # OIHW
        "b1": 0.05 * jax.random.normal(ks[2], (32,), jnp.float32),
        "w2": 0.05 * jax.random.normal(ks[3], (64, 32, 3, 3), jnp.float32),   # OIHW
        "b2": 0.05 * jax.random.normal(ks[4], (64,), jnp.float32),
        "wfc": 0.01 * jax.random.normal(ks[5], (num_classes, F), jnp.float32),
        "bfc": 0.01 * jax.random.normal(ks[6], (num_classes,), jnp.float32),
    }

    out = jax.block_until_ready(jax.jit(cnn_forward)(params, x))
    assert out.shape == (N, num_classes), out.shape

    ref = cnn_reference(params, x)
    if not jnp.allclose(out, ref, atol=1e-2, rtol=1e-2):
        raise AssertionError(f"mismatch vs reference: max abs diff "
                             f"{jnp.max(jnp.abs(out - ref))}")
    print("KERNEL_OK")
</pallas_src>

<mosaic_0001>
module attributes {stable_mosaic.version = 11 : i64} {
  func.func @_mm_relu_pool_kernel(%arg0: i32, %arg1: i32, %arg2: memref<1x32x32x27xbf16, #tpu.memory_space<vmem>>, %arg3: memref<27x32xbf16, #tpu.memory_space<vmem>>, %arg4: memref<1x32xf32, #tpu.memory_space<vmem>>, %arg5: memref<1x16x16x32xf32, #tpu.memory_space<vmem>>) attributes {dimension_semantics = [#tpu.dimension_semantics<parallel>, #tpu.dimension_semantics<parallel>], iteration_bounds = array<i64: 2, 1>, scalar_prefetch = 0 : i64, scratch_operands = 0 : i64, tpu.core_type = #tpu.core_type<tc>, window_params = [{transform_indices = @transform_0, window_bounds = array<i64: 1, 32, 32, 27>}, {pipeline_mode = #tpu.pipeline_mode<synchronous>, transform_indices = @transform_1, window_bounds = array<i64: 27, 32>}, {pipeline_mode = #tpu.pipeline_mode<synchronous>, transform_indices = @transform_2, window_bounds = array<i64: 1, 32>}, {transform_indices = @transform_3, window_bounds = array<i64: 1, 16, 16, 32>}]} {
    %c0 = arith.constant 0 : index
    %c0_0 = arith.constant 0 : index
    %c0_1 = arith.constant 0 : index
    %c0_2 = arith.constant 0 : index
    %0 = vector.load %arg2[%c0, %c0_0, %c0_1, %c0_2] : memref<1x32x32x27xbf16, #tpu.memory_space<vmem>>, vector<1x32x32x27xbf16>
    %1 = vector.shape_cast %0 : vector<1x32x32x27xbf16> to vector<32x32x27xbf16>
    %2 = vector.shape_cast %1 : vector<32x32x27xbf16> to vector<1024x27xbf16>
    %c0_3 = arith.constant 0 : index
    %c0_4 = arith.constant 0 : index
    %3 = vector.load %arg3[%c0_3, %c0_4] : memref<27x32xbf16, #tpu.memory_space<vmem>>, vector<27x32xbf16>
    %cst = arith.constant dense<0.000000e+00> : vector<1024x32xf32>
    %4 = tpu.matmul %2, %3, %cst {dimension_numbers = #tpu.dot_dimension_numbers<[1], [0], [0], [1], [0, 0, 1, 1], [], []>} : vector<1024x27xbf16>, vector<27x32xbf16>, vector<1024x32xf32> -> vector<1024x32xf32>
    %c0_5 = arith.constant 0 : index
    %c0_6 = arith.constant 0 : index
    %5 = vector.load %arg4[%c0_5, %c0_6] : memref<1x32xf32, #tpu.memory_space<vmem>>, vector<1x32xf32>
    %6 = vector.broadcast %5 : vector<1x32xf32> to vector<1024x32xf32>
    %7 = arith.addf %4, %6 : vector<1024x32xf32>
    %cst_7 = arith.constant 0.000000e+00 : f32
    %8 = vector.broadcast %cst_7 : f32 to vector<1024x32xf32>
    %9 = arith.maximumf %7, %8 : vector<1024x32xf32>
    %10 = vector.shape_cast %9 : vector<1024x32xf32> to vector<16x2x32x32xf32>
    %11 = vector.extract_strided_slice %10 {offsets = [0, 0, 0, 0], sizes = [16, 1, 32, 32], strides = [1, 1, 1, 1]} : vector<16x2x32x32xf32> to vector<16x1x32x32xf32>
    %12 = vector.shape_cast %11 : vector<16x1x32x32xf32> to vector<16x32x32xf32>
    %13 = vector.extract_strided_slice %10 {offsets = [0, 1, 0, 0], sizes = [16, 1, 32, 32], strides = [1, 1, 1, 1]} : vector<16x2x32x32xf32> to vector<16x1x32x32xf32>
    %14 = vector.shape_cast %13 : vector<16x1x32x32xf32> to vector<16x32x32xf32>
    %15 = arith.maximumf %12, %14 : vector<16x32x32xf32>
    %16 = vector.shape_cast %15 : vector<16x32x32xf32> to vector<16x16x2x32xf32>
    %cst_8 = arith.constant dense<0xFF800000> : vector<16x16x32xf32>
    %17 = vector.multi_reduction <maximumf>, %16, %cst_8 [2] : vector<16x16x2x32xf32> to vector<16x16x32xf32>
    %c0_9 = arith.constant 0 : index
    %c0_10 = arith.constant 0 : index
    %c0_11 = arith.constant 0 : index
    %c0_12 = arith.constant 0 : index
    %18 = vector.load %arg5[%c0_9, %c0_10, %c0_11, %c0_12] : memref<1x16x16x32xf32, #tpu.memory_space<vmem>>, vector<1x16x16x32xf32>
    %19 = vector.shape_cast %18 : vector<1x16x16x32xf32> to vector<16x16x32xf32>
    %20 = vector.shape_cast %17 : vector<16x16x32xf32> to vector<1x16x16x32xf32>
    tpu.vector_store %arg5[%c0_9, %c0_10, %c0_11, %c0_12], %20 {strides = array<i32>} : memref<1x16x16x32xf32, #tpu.memory_space<vmem>>, vector<1x16x16x32xf32>,
    return
  }
  func.func @transform_0(%arg0: i32, %arg1: i32) -> (i32, i32, i32, i32) {
    %c0_i32 = arith.constant 0 : i32
    %c0_i32_0 = arith.constant 0 : i32
    %c0_i32_1 = arith.constant 0 : i32
    return %arg0, %arg1, %c0_i32, %c0_i32_0 : i32, i32, i32, i32
  }
  func.func @transform_1(%arg0: i32, %arg1: i32) -> (i32, i32) {
    %c0_i32 = arith.constant 0 : i32
    %c0_i32_0 = arith.constant 0 : i32
    %c0_i32_1 = arith.constant 0 : i32
    return %c0_i32, %c0_i32_0 : i32, i32
  }
  func.func @transform_2(%arg0: i32, %arg1: i32) -> (i32, i32) {
    %c0_i32 = arith.constant 0 : i32
    %c0_i32_0 = arith.constant 0 : i32
    %c0_i32_1 = arith.constant 0 : i32
    return %c0_i32, %c0_i32_0 : i32, i32
  }
  func.func @transform_3(%arg0: i32, %arg1: i32) -> (i32, i32, i32, i32) {
    %c0_i32 = arith.constant 0 : i32
    %c0_i32_0 = arith.constant 0 : i32
    %c0_i32_1 = arith.constant 0 : i32
    return %arg0, %arg1, %c0_i32, %c0_i32_0 : i32, i32, i32, i32
  }
}

module attributes {stable_mosaic.version = 11 : i64} {
  func.func @_conv_relu_pool_kernel(%arg0: i32, %arg1: i32, %arg2: memref<1x16x18x32xf32, #tpu.memory_space<vmem>>, %arg3: memref<1x2x18x32xf32, #tpu.memory_space<vmem>>, %arg4: memref<288x64xbf16, #tpu.memory_space<vmem>>, %arg5: memref<1x64xf32, #tpu.memory_space<vmem>>, %arg6: memref<1x8x8x64xf32, #tpu.memory_space<vmem>>) attributes {dimension_semantics = [#tpu.dimension_semantics<parallel>, #tpu.dimension_semantics<parallel>], iteration_bounds = array<i64: 2, 1>, scalar_prefetch = 0 : i64, scratch_operands = 0 : i64, tpu.core_type = #tpu.core_type<tc>, window_params = [{transform_indices = @transform_0, window_bounds = array<i64: 1, 16, 18, 32>}, {transform_indices = @transform_1, window_bounds = array<i64: 1, 2, 18, 32>}, {pipeline_mode = #tpu.pipeline_mode<synchronous>, transform_indices = @transform_2, window_bounds = array<i64: 288, 64>}, {pipeline_mode = #tpu.pipeline_mode<synchronous>, transform_indices = @transform_3, window_bounds = array<i64: 1, 64>}, {transform_indices = @transform_4, window_bounds = array<i64: 1, 8, 8, 64>}]} {
    %c0 = arith.constant 0 : index
    %c0_0 = arith.constant 0 : index
    %c0_1 = arith.constant 0 : index
    %c0_2 = arith.constant 0 : index
    %0 = vector.load %arg2[%c0, %c0_0, %c0_1, %c0_2] : memref<1x16x18x32xf32, #tpu.memory_space<vmem>>, vector<1x16x18x32xf32>
    %1 = vector.shape_cast %0 : vector<1x16x18x32xf32> to vector<16x18x32xf32>
    %2 = arith.truncf %1 : vector<16x18x32xf32> to vector<16x18x32xbf16>
    %c0_3 = arith.constant 0 : index
    %c0_4 = arith.constant 0 : index
    %c0_5 = arith.constant 0 : index
    %c0_6 = arith.constant 0 : index
    %3 = vector.load %arg3[%c0_3, %c0_4, %c0_5, %c0_6] : memref<1x2x18x32xf32, #tpu.memory_space<vmem>>, vector<1x2x18x32xf32>
    %4 = vector.shape_cast %3 : vector<1x2x18x32xf32> to vector<2x18x32xf32>
    %5 = arith.truncf %4 : vector<2x18x32xf32> to vector<2x18x32xbf16>
    %6 = tpu.concatenate %2, %5 in 0 : vector<16x18x32xbf16>, vector<2x18x32xbf16> -> vector<18x18x32xbf16>
    %7 = vector.extract_strided_slice %6 {offsets = [0, 0, 0], sizes = [16, 16, 32], strides = [1, 1, 1]} : vector<18x18x32xbf16> to vector<16x16x32xbf16>
    %8 = vector.extract_strided_slice %6 {offsets = [0, 1, 0], sizes = [16, 16, 32], strides = [1, 1, 1]} : vector<18x18x32xbf16> to vector<16x16x32xbf16>
    %9 = vector.extract_strided_slice %6 {offsets = [0, 2, 0], sizes = [16, 16, 32], strides = [1, 1, 1]} : vector<18x18x32xbf16> to vector<16x16x32xbf16>
    %10 = vector.extract_strided_slice %6 {offsets = [1, 0, 0], sizes = [16, 16, 32], strides = [1, 1, 1]} : vector<18x18x32xbf16> to vector<16x16x32xbf16>
    %11 = vector.extract_strided_slice %6 {offsets = [1, 1, 0], sizes = [16, 16, 32], strides = [1, 1, 1]} : vector<18x18x32xbf16> to vector<16x16x32xbf16>
    %12 = vector.extract_strided_slice %6 {offsets = [1, 2, 0], sizes = [16, 16, 32], strides = [1, 1, 1]} : vector<18x18x32xbf16> to vector<16x16x32xbf16>
    %13 = vector.extract_strided_slice %6 {offsets = [2, 0, 0], sizes = [16, 16, 32], strides = [1, 1, 1]} : vector<18x18x32xbf16> to vector<16x16x32xbf16>
    %14 = vector.extract_strided_slice %6 {offsets = [2, 1, 0], sizes = [16, 16, 32], strides = [1, 1, 1]} : vector<18x18x32xbf16> to vector<16x16x32xbf16>
    %15 = vector.extract_strided_slice %6 {offsets = [2, 2, 0], sizes = [16, 16, 32], strides = [1, 1, 1]} : vector<18x18x32xbf16> to vector<16x16x32xbf16>
    %16 = tpu.concatenate %7, %8, %9, %10, %11, %12, %13, %14, %15 in 2 : vector<16x16x32xbf16>, vector<16x16x32xbf16>, vector<16x16x32xbf16>, vector<16x16x32xbf16>, vector<16x16x32xbf16>, vector<16x16x32xbf16>, vector<16x16x32xbf16>, vector<16x16x32xbf16>, vector<16x16x32xbf16> -> vector<16x16x288xbf16>
    %17 = vector.shape_cast %16 : vector<16x16x288xbf16> to vector<256x288xbf16>
    %c0_7 = arith.constant 0 : index
    %c0_8 = arith.constant 0 : index
    %18 = vector.load %arg4[%c0_7, %c0_8] : memref<288x64xbf16, #tpu.memory_space<vmem>>, vector<288x64xbf16>
    %cst = arith.constant dense<0.000000e+00> : vector<256x64xf32>
    %19 = tpu.matmul %17, %18, %cst {dimension_numbers = #tpu.dot_dimension_numbers<[1], [0], [0], [1], [0, 0, 1, 1], [], []>} : vector<256x288xbf16>, vector<288x64xbf16>, vector<256x64xf32> -> vector<256x64xf32>
    %c0_9 = arith.constant 0 : index
    %c0_10 = arith.constant 0 : index
    %20 = vector.load %arg5[%c0_9, %c0_10] : memref<1x64xf32, #tpu.memory_space<vmem>>, vector<1x64xf32>
    %21 = vector.broadcast %20 : vector<1x64xf32> to vector<256x64xf32>
    %22 = arith.addf %19, %21 : vector<256x64xf32>
    %cst_11 = arith.constant 0.000000e+00 : f32
    %23 = vector.broadcast %cst_11 : f32 to vector<256x64xf32>
    %24 = arith.maximumf %22, %23 : vector<256x64xf32>
    %25 = vector.shape_cast %24 : vector<256x64xf32> to vector<8x2x16x64xf32>
    %26 = vector.extract_strided_slice %25 {offsets = [0, 0, 0, 0], sizes = [8, 1, 16, 64], strides = [1, 1, 1, 1]} : vector<8x2x16x64xf32> to vector<8x1x16x64xf32>
    %27 = vector.shape_cast %26 : vector<8x1x16x64xf32> to vector<8x16x64xf32>
    %28 = vector.extract_strided_slice %25 {offsets = [0, 1, 0, 0], sizes = [8, 1, 16, 64], strides = [1, 1, 1, 1]} : vector<8x2x16x64xf32> to vector<8x1x16x64xf32>
    %29 = vector.shape_cast %28 : vector<8x1x16x64xf32> to vector<8x16x64xf32>
    %30 = arith.maximumf %27, %29 : vector<8x16x64xf32>
    %31 = vector.shape_cast %30 : vector<8x16x64xf32> to vector<8x8x2x64xf32>
    %cst_12 = arith.constant dense<0xFF800000> : vector<8x8x64xf32>
    %32 = vector.multi_reduction <maximumf>, %31, %cst_12 [2] : vector<8x8x2x64xf32> to vector<8x8x64xf32>
    %c0_13 = arith.constant 0 : index
    %c0_14 = arith.constant 0 : index
    %c0_15 = arith.constant 0 : index
    %c0_16 = arith.constant 0 : index
    %33 = vector.load %arg6[%c0_13, %c0_14, %c0_15, %c0_16] : memref<1x8x8x64xf32, #tpu.memory_space<vmem>>, vector<1x8x8x64xf32>
    %34 = vector.shape_cast %33 : vector<1x8x8x64xf32> to vector<8x8x64xf32>
    %35 = vector.shape_cast %32 : vector<8x8x64xf32> to vector<1x8x8x64xf32>
    tpu.vector_store %arg6[%c0_13, %c0_14, %c0_15, %c0_16], %35 {strides = array<i32>} : memref<1x8x8x64xf32, #tpu.memory_space<vmem>>, vector<1x8x8x64xf32>,
    return
  }
  func.func @transform_0(%arg0: i32, %arg1: i32) -> (i32, i32, i32, i32) {
    %c0_i32 = arith.constant 0 : i32
    %c0_i32_0 = arith.constant 0 : i32
    %c0_i32_1 = arith.constant 0 : i32
    return %arg0, %arg1, %c0_i32, %c0_i32_0 : i32, i32, i32, i32
  }
  func.func @transform_1(%arg0: i32, %arg1: i32) -> (i32, i32, i32, i32) {
    %c1_i32 = arith.constant 1 : i32
    %0 = arith.addi %arg1, %c1_i32 : i32
    %c8_i32 = arith.constant 8 : i32
    %1 = arith.muli %0, %c8_i32 : i32
    %c0_i32 = arith.constant 0 : i32
    %c0_i32_0 = arith.constant 0 : i32
    %c0_i32_1 = arith.constant 0 : i32
    return %arg0, %1, %c0_i32, %c0_i32_0 : i32, i32, i32, i32
  }
  func.func @transform_2(%arg0: i32, %arg1: i32) -> (i32, i32) {
    %c0_i32 = arith.constant 0 : i32
    %c0_i32_0 = arith.constant 0 : i32
    %c0_i32_1 = arith.constant 0 : i32
    return %c0_i32, %c0_i32_0 : i32, i32
  }
  func.func @transform_3(%arg0: i32, %arg1: i32) -> (i32, i32) {
    %c0_i32 = arith.constant 0 : i32
    %c0_i32_0 = arith.constant 0 : i32
    %c0_i32_1 = arith.constant 0 : i32
    return %c0_i32, %c0_i32_0 : i32, i32
  }
  func.func @transform_4(%arg0: i32, %arg1: i32) -> (i32, i32, i32, i32) {
    %c0_i32 = arith.constant 0 : i32
    %c0_i32_0 = arith.constant 0 : i32
    %c0_i32_1 = arith.constant 0 : i32
    return %arg0, %arg1, %c0_i32, %c0_i32_0 : i32, i32, i32, i32
  }
}

module attributes {stable_mosaic.version = 11 : i64} {
  func.func @_linear_kernel(%arg0: i32, %arg1: memref<2x4096xf32, #tpu.memory_space<vmem>>, %arg2: memref<2x4096xf32, #tpu.memory_space<vmem>>, %arg3: memref<1x2xf32, #tpu.memory_space<vmem>>, %arg4: memref<2x2xf32, #tpu.memory_space<vmem>>, %arg5: memref<2x2xf32, #tpu.memory_space<vmem>>) attributes {dimension_semantics = [#tpu.dimension_semantics<arbitrary>], iteration_bounds = array<i64: 1>, scalar_prefetch = 0 : i64, scratch_operands = 1 : i64, tpu.core_type = #tpu.core_type<tc>, window_params = [{transform_indices = @transform_0, window_bounds = array<i64: 2, 4096>}, {transform_indices = @transform_1, window_bounds = array<i64: 2, 4096>}, {pipeline_mode = #tpu.pipeline_mode<synchronous>, transform_indices = @transform_2, window_bounds = array<i64: 1, 2>}, {pipeline_mode = #tpu.pipeline_mode<synchronous>, transform_indices = @transform_3, window_bounds = array<i64: 2, 2>}]} {
    %c0_i32 = arith.constant 0 : i32
    %0 = arith.cmpi eq, %arg0, %c0_i32 : i32
    %1 = arith.extui %0 : i1 to i32
    %c0_i32_0 = arith.constant 0 : i32
    %2 = arith.cmpi ne, %1, %c0_i32_0 : i32
    scf.if %2 {
      %cst_10 = arith.constant 0.000000e+00 : f32
      %12 = vector.broadcast %cst_10 : f32 to vector<2x2xf32>
      %c0_11 = arith.constant 0 : index
      %c0_12 = arith.constant 0 : index
      %13 = vector.load %arg5[%c0_11, %c0_12] : memref<2x2xf32, #tpu.memory_space<vmem>>, vector<2x2xf32>
      tpu.vector_store %arg5[%c0_11, %c0_12], %12 {strides = array<i32>} : memref<2x2xf32, #tpu.memory_space<vmem>>, vector<2x2xf32>,
    } else {
    }
    %c0 = arith.constant 0 : index
    %c0_1 = arith.constant 0 : index
    %3 = vector.load %arg5[%c0, %c0_1] : memref<2x2xf32, #tpu.memory_space<vmem>>, vector<2x2xf32>
    %c0_2 = arith.constant 0 : index
    %c0_3 = arith.constant 0 : index
    %4 = vector.load %arg1[%c0_2, %c0_3] : memref<2x4096xf32, #tpu.memory_space<vmem>>, vector<2x4096xf32>
    %c0_4 = arith.constant 0 : index
    %c0_5 = arith.constant 0 : index
    %5 = vector.load %arg2[%c0_4, %c0_5] : memref<2x4096xf32, #tpu.memory_space<vmem>>, vector<2x4096xf32>
    %cst = arith.constant dense<0.000000e+00> : vector<2x2xf32>
    %6 = tpu.matmul %4, %5, %cst {dimension_numbers = #tpu.dot_dimension_numbers<[1], [1], [0], [0], [0, 0, 1, 0], [], []>} : vector<2x4096xf32>, vector<2x4096xf32>, vector<2x2xf32> -> vector<2x2xf32>
    %7 = arith.addf %3, %6 : vector<2x2xf32>
    %c0_6 = arith.constant 0 : index
    %c0_7 = arith.constant 0 : index
    %8 = vector.load %arg5[%c0_6, %c0_7] : memref<2x2xf32, #tpu.memory_space<vmem>>, vector<2x2xf32>
    tpu.vector_store %arg5[%c0_6, %c0_7], %7 {strides = array<i32>} : memref<2x2xf32, #tpu.memory_space<vmem>>, vector<2x2xf32>,
    %c0_i32_8 = arith.constant 0 : i32
    %9 = arith.cmpi eq, %arg0, %c0_i32_8 : i32
    %10 = arith.extui %9 : i1 to i32
    %c0_i32_9 = arith.constant 0 : i32
    %11 = arith.cmpi ne, %10, %c0_i32_9 : i32
    scf.if %11 {
      %c0_10 = arith.constant 0 : index
      %c0_11 = arith.constant 0 : index
      %12 = vector.load %arg5[%c0_10, %c0_11] : memref<2x2xf32, #tpu.memory_space<vmem>>, vector<2x2xf32>
      %c0_12 = arith.constant 0 : index
      %c0_13 = arith.constant 0 : index
      %13 = vector.load %arg3[%c0_12, %c0_13] : memref<1x2xf32, #tpu.memory_space<vmem>>, vector<1x2xf32>
      %14 = vector.broadcast %13 : vector<1x2xf32> to vector<2x2xf32>
      %15 = arith.addf %12, %14 : vector<2x2xf32>
      %c0_14 = arith.constant 0 : index
      %c0_15 = arith.constant 0 : index
      %16 = vector.load %arg4[%c0_14, %c0_15] : memref<2x2xf32, #tpu.memory_space<vmem>>, vector<2x2xf32>
      tpu.vector_store %arg4[%c0_14, %c0_15], %15 {strides = array<i32>} : memref<2x2xf32, #tpu.memory_space<vmem>>, vector<2x2xf32>,
    } else {
    }
    return
  }
  func.func @transform_0(%arg0: i32) -> (i32, i32) {
    %c0_i32 = arith.constant 0 : i32
    %c0_i32_0 = arith.constant 0 : i32
    return %c0_i32, %arg0 : i32, i32
  }
  func.func @transform_1(%arg0: i32) -> (i32, i32) {
    %c0_i32 = arith.constant 0 : i32
    %c0_i32_0 = arith.constant 0 : i32
    return %c0_i32, %arg0 : i32, i32
  }
  func.func @transform_2(%arg0: i32) -> (i32, i32) {
    %c0_i32 = arith.constant 0 : i32
    %c0_i32_0 = arith.constant 0 : i32
    %c0_i32_1 = arith.constant 0 : i32
    return %c0_i32, %c0_i32_0 : i32, i32
  }
  func.func @transform_3(%arg0: i32) -> (i32, i32) {
    %c0_i32 = arith.constant 0 : i32
    %c0_i32_0 = arith.constant 0 : i32
    %c0_i32_1 = arith.constant 0 : i32
    return %c0_i32, %c0_i32_0 : i32, i32
  }
}

</mosaic_0001>

<llo_original>
// kernel: cnn_forward.3
$region0: #{cnn_forward.3}
  #allocation0 [shape = 'u32[]', space=smem, size = 0x4, offset = 0x4, fixed_abs, tag = 'smem constant byte address 0x4 - core index']
  #allocation1 [shape = 'u32[144,128]{1,0:T(1,128)}', space=vmem, size = 0x12000, scoped, tag = 'internal scratch']
  %s0 = inlined_call_operand.vmem [shape: bf16[2,32,32,27], index: 0, kind: input, shape index: {}]
  %s1 = inlined_call_operand.vmem [shape: bf16[27,32], index: 1, kind: input, shape index: {}]
  %s2 = inlined_call_operand.vmem [shape: f32[1,32], index: 2, kind: input, shape index: {}]
  %s3 = inlined_call_operand.vmem [shape: f32[2,16,16,32], index: 3, kind: output, shape index: {}]
  %s4 = sld [smem:[#allocation0]]
  $region45: #{cnn_forward.3} parent=0
    _
  %s6 = ssub.s32 1, %s4
  %s7 = scalar_select 0, %s6, %s4
  loop: start=0, step=1, limit=4
  $region2: #{cnn_forward.3} parent=0 // loop_pre_header
    _
  $region3: #{cnn_forward.3} parent=0 // loop_header
    %s9 = sphi 0, %s13
    %p10 = scmp.ge.s32.totalorder %s9, 4
    %s16 = sphi 0, %s28
    %s17 = sphi 0, %s24
    %s18 = sphi 0, %s16
    %s19 = sphi 0, %s17
    %s20 = sphi 0, %s18
    %s21 = sphi 0, %s19
    %s33 = sphi 0, %s35
    %s36 = sphi 0, %s33
    %s37 = sphi 0, %s36
    %s53 = sphi 0, %s37
    %s57 = sphi 0, %s57
    %s59 = sphi 0, %s57
    %s60 = sphi 0, %s59
    %s74 = sphi 0, %s60
    %s78 = sphi 0, %s78
    %s80 = sphi 0, %s78
    %s81 = sphi 0, %s80
    %s95 = sphi 0, %s81
    %s103 = sphi 0, %s105
    %s106 = sphi 0, %s103
    %s107 = sphi 0, %s106
    %s123 = sphi 0, %s107
  $region4: #{cnn_forward.3} parent=0 // loop_header_branch
    %12 = sbr.rel (%p10) target = $region8
  $region5: #{cnn_forward.3} parent=0 // loop_body
    %s14 = ssub.s32 %s9, 1
    %s15 = ssub.s32 %s9, 2
    %s22 = sadd.s32 1, %s17
    %p23 = scmp.ge.s32.totalorder %s22, 1
    %s24 = scalar_select %p23, 0, %s22
    %s25 = sadd.s32 1, %s16
    %s26 = scalar_select %p23, %s25, %s16
    %p27 = scmp.ge.s32.totalorder %s26, 2
    %s28 = scalar_select %p27, 0, %s26
    %s29 = ssub.s32 %s16, %s28
    %s30 = ssub.s32 %s17, %s24
    %s31 = sor.u32 %s29, %s30
    %p32 = scmp.eq.s32.totalorder %s31, 0
    %s34 = sadd.s32 %s33, 1
    %s35 = scalar_select %p32, %s33, %s34
    %p38 = pneg %p32
    %p39 = scmp.eq.s32.totalorder %s9, 1
    %p40 = por %p38, %p39
    %p41 = scmp.ne.s32.totalorder %s33, %s36
    %p42 = scmp.eq.s32.totalorder %s9, 0
    %p43 = por %p41, %p42
    %p44 = scmp.ne.s32.totalorder %s33, %s36
    %p45 = scmp.eq.s32.totalorder %s14, 1
    %p46 = por %p44, %p45
    %p47 = scmp.ne.s32.totalorder %s36, %s37
    %p48 = scmp.eq.s32.totalorder %s14, 0
    %p49 = por %p47, %p48
    %p50 = scmp.ne.s32.totalorder %s36, %s37
    %p51 = scmp.eq.s32.totalorder %s15, 1
    %p52 = por %p50, %p51
    %p54 = scmp.ne.s32.totalorder %s37, %s53
    %p55 = scmp.eq.s32.totalorder %s15, 0
    %p56 = por %p54, %p55
    %s58 = sadd.s32 %s57, 1
    %p61 = scmp.eq.s32.totalorder %s9, 1
    %p62 = scmp.ne.s32.totalorder %s57, %s59
    %p63 = scmp.eq.s32.totalorder %s9, 0
    %p64 = por %p62, %p63
    %p65 = scmp.ne.s32.totalorder %s57, %s59
    %p66 = scmp.eq.s32.totalorder %s14, 1
    %p67 = por %p65, %p66
    %p68 = scmp.ne.s32.totalorder %s59, %s60
    %p69 = scmp.eq.s32.totalorder %s14, 0
    %p70 = por %p68, %p69
    %p71 = scmp.ne.s32.totalorder %s59, %s60
    %p72 = scmp.eq.s32.totalorder %s15, 1
    %p73 = por %p71, %p72
    %p75 = scmp.ne.s32.totalorder %s60, %s74
    %p76 = scmp.eq.s32.totalorder %s15, 0
    %p77 = por %p75, %p76
    %s79 = sadd.s32 %s78, 1
    %p82 = scmp.eq.s32.totalorder %s9, 1
    %p83 = scmp.ne.s32.totalorder %s78, %s80
    %p84 = scmp.eq.s32.totalorder %s9, 0
    %p85 = por %p83, %p84
    %p86 = scmp.ne.s32.totalorder %s78, %s80
    %p87 = scmp.eq.s32.totalorder %s14, 1
    %p88 = por %p86, %p87
    %p89 = scmp.ne.s32.totalorder %s80, %s81
    %p90 = scmp.eq.s32.totalorder %s14, 0
    %p91 = por %p89, %p90
    %p92 = scmp.ne.s32.totalorder %s80, %s81
    %p93 = scmp.eq.s32.totalorder %s15, 1
    %p94 = por %p92, %p93
    %p96 = scmp.ne.s32.totalorder %s81, %s95
    %p97 = scmp.eq.s32.totalorder %s15, 0
    %p98 = por %p96, %p97
    %s99 = ssub.s32 %s16, %s28
    %s100 = ssub.s32 %s17, %s24
    %s101 = sor.u32 %s99, %s100
    %p102 = scmp.eq.s32.totalorder %s101, 0
    %s104 = sadd.s32 %s103, 1
    %s105 = scalar_select %p102, %s103, %s104
    %p108 = pneg %p102
    %p109 = scmp.eq.s32.totalorder %s9, 1
    %p110 = por %p108, %p109
    %p111 = scmp.ne.s32.totalorder %s103, %s106
    %p112 = scmp.eq.s32.totalorder %s9, 0
    %p113 = por %p111, %p112
    %p114 = scmp.ne.s32.totalorder %s103, %s106
    %p115 = scmp.eq.s32.totalorder %s14, 1
    %p116 = por %p114, %p115
    %p117 = scmp.ne.s32.totalorder %s106, %s107
    %p118 = scmp.eq.s32.totalorder %s14, 0
    %p119 = por %p117, %p118
    %p120 = scmp.ne.s32.totalorder %s106, %s107
    %p121 = scmp.eq.s32.totalorder %s15, 1
    %p122 = por %p120, %p121
    %p124 = scmp.ne.s32.totalorder %s107, %s123
    %p125 = scmp.eq.s32.totalorder %s15, 0
    %p126 = por %p124, %p125
    %p127 = scmp.le.s32.totalorder 1, %s9
    %p128 = scmp.lt.s32.totalorder %s9, 3
    %p129 = pnand %p127, %p128
    %p130 = pneg %p129
    // Predicated region
    $region9: #{cnn_forward.3} parent=5 // pred_check
      _
    $region10: #{cnn_forward.3} parent=5 // pred_check_branch
      %132 = sbr.rel (%p129) target = $region12
    $region11: #{cnn_forward.3} parent=5 // pred_region
      %s133 = ssub.s32 %s9, 1
      // Predicated region
      $region13: #{cnn_forward.3} parent=11 // pred_check
        %p134 = pneg %p70
      $region14: #{cnn_forward.3} parent=11 // pred_check_branch
        %136 = sbr.rel (%p134) target = $region16
      $region15: #{cnn_forward.3} parent=11 // pred_region
        _
      $region16: #{cnn_forward.3} parent=11 // pred_fallthru
        _
      // Predicated region
      $region17: #{cnn_forward.3} parent=11 // pred_check
        %p137 = pneg %p91
      $region18: #{cnn_forward.3} parent=11 // pred_check_branch
        %139 = sbr.rel (%p137) target = $region20
      $region19: #{cnn_forward.3} parent=11 // pred_region
        _
      $region20: #{cnn_forward.3} parent=11 // pred_fallthru
        _
    $region12: #{cnn_forward.3} parent=5 // pred_fallthru
      _
    %p140 = scmp.lt.s32.totalorder %s9, 2
    // Predicated region
    $region21: #{cnn_forward.3} parent=5 // pred_check
      %p141 = pneg %p140
    $region22: #{cnn_forward.3} parent=5 // pred_check_branch
      %143 = sbr.rel (%p141) target = $region24
    $region23: #{cnn_forward.3} parent=5 // pred_region
      // Predicated region
      $region25: #{cnn_forward.3} parent=23 // pred_check
        %p144 = pneg %p43
      $region26: #{cnn_forward.3} parent=23 // pred_check_branch
        %146 = sbr.rel (%p144) target = $region28
      $region27: #{cnn_forward.3} parent=23 // pred_region
        %s147 = smul.u32 32, %s17
        %p148 = scmp.lt.s32.totalorder %s16, 1
        %s149 = scalar_select %p148, %s16, 1
        %p150 = scmp.lt.s32.totalorder %s147, 31
        %s151 = scalar_select %p150, %s147, 31
        %s152 = smul.addr %s151, 4
        %s153 = smul.addr %s149, 128
        %s154 = sadd.s32 %s152, %s153
        %s155 = smul.addr %s154, 4
        %s156 = scalar_lea.vmem %s0, %s155
        %s157 = smul.u32 32, %s17
      $region28: #{cnn_forward.3} parent=23 // pred_fallthru
        _
    $region24: #{cnn_forward.3} parent=5 // pred_fallthru
      _
    %p158 = scmp.le.s32.totalorder 1, %s9
    %p159 = scmp.lt.s32.totalorder %s9, 3
    %p160 = pnand %p158, %p159
    %p161 = pneg %p160
    // Predicated region
    $region29: #{cnn_forward.3} parent=5 // pred_check
      _
    $region30: #{cnn_forward.3} parent=5 // pred_check_branch
      %163 = sbr.rel (%p160) target = $region32
    $region31: #{cnn_forward.3} parent=5 // pred_region
      %s164 = ssub.s32 %s9, 1
      %s165 = smul.u32 32, %s19
      %p166 = scmp.lt.s32.totalorder %s18, 1
      %s167 = scalar_select %p166, %s18, 1
      %p168 = scmp.lt.s32.totalorder %s165, 31
      %s169 = scalar_select %p168, %s165, 31
      %s170 = smul.addr %s169, 4
      %s171 = smul.addr %s167, 128
      %s172 = sadd.s32 %s170, %s171
      %s173 = smul.addr %s172, 4
      %s174 = scalar_lea.vmem %s0, %s173
      %p175 = pneg %p49
      %p176 = pneg %p46
      %p177 = pneg %p70
      %p178 = pneg %p67
      %p179 = pneg %p91
      %p180 = pneg %p88
      %p181 = pneg %p119
      %p182 = pneg %p116
      %s183 = smul.u32 16, %s19
      %p184 = scmp.lt.s32.totalorder %s18, 1
      %s185 = scalar_select %p184, %s18, 1
      %p186 = scmp.lt.s32.totalorder %s183, 15
      %s187 = scalar_select %p186, %s183, 15
      %s188 = smul.addr %s187, 2
      %s189 = smul.addr %s185, 32
      %s190 = sadd.s32 %s188, %s189
      %s191 = smul.addr %s190, 8
      %s192 = scalar_lea.vmem %s3, %s191
      %s193 = smul.u32 32, %s19
      %p194 = scmp.lt.s32.totalorder %s18, 1
      %s195 = scalar_select %p194, %s18, 1
      %p196 = scmp.lt.s32.totalorder %s193, 31
      %s197 = scalar_select %p196, %s193, 31
      %s198 = smul.addr %s197, 4
      %s199 = smul.addr %s195, 128
      %s200 = sadd.s32 %s198, %s199
      %s201 = smul.addr %s200, 4
      %s202 = scalar_lea.vmem %s0, %s201
      %s203 = smul.u32 32, %s19
      %s204 = smul.u32 16, %s19
      %p205 = scmp.lt.s32.totalorder %s18, 1
      %s206 = scalar_select %p205, %s18, 1
      %p207 = scmp.lt.s32.totalorder %s204, 15
      %s208 = scalar_select %p207, %s204, 15
      %s209 = smul.addr %s208, 2
      %s210 = smul.addr %s206, 32
      %s211 = sadd.s32 %s209, %s210
      %s212 = smul.addr %s211, 8
      %s213 = scalar_lea.vmem %s3, %s212
      %s214 = smul.u32 16, %s19
      %v216 = vld [vmem:[%s202] sm:$0xf]
      %v217 = vld [vmem:[%s202 + $0x4] sm:$0xf]
      %v218 = vld [vmem:[%s202 + $0x8] sm:$0xf]
      %v219 = vld [vmem:[%s202 + $0xc] sm:$0xf]
      %v220 = vld [vmem:[%s202 + $0x10] sm:$0xf]
      %v221 = vld [vmem:[%s202 + $0x14] sm:$0xf]
      %v222 = vld [vmem:[%s202 + $0x18] sm:$0xf]
      %v223 = vld [vmem:[%s202 + $0x1c] sm:$0xf]
      %v224 = vld [vmem:[%s202 + $0x20] sm:$0xf]
      %v225 = vld [vmem:[%s202 + $0x24] sm:$0xf]
      %v226 = vld [vmem:[%s202 + $0x28] sm:$0xf]
      %v227 = vld [vmem:[%s202 + $0x2c] sm:$0xf]
      %v228 = vld [vmem:[%s202 + $0x30] sm:$0xf]
      %v229 = vld [vmem:[%s202 + $0x34] sm:$0xf]
      %v230 = vld [vmem:[%s202 + $0x38] sm:$0xf]
      %v231 = vld [vmem:[%s202 + $0x3c] sm:$0xf]
      %v232 = vld [vmem:[%s202 + $0x40] sm:$0xf]
      %v233 = vld [vmem:[%s202 + $0x44] sm:$0xf]
      %v234 = vld [vmem:[%s202 + $0x48] sm:$0xf]
      %v235 = vld [vmem:[%s202 + $0x4c] sm:$0xf]
      %v236 = vld [vmem:[%s202 + $0x50] sm:$0xf]
      %v237 = vld [vmem:[%s202 + $0x54] sm:$0xf]
      %v238 = vld [vmem:[%s202 + $0x58] sm:$0xf]
      %v239 = vld [vmem:[%s202 + $0x5c] sm:$0xf]
      %v240 = vld [vmem:[%s202 + $0x60] sm:$0xf]
      %v241 = vld [vmem:[%s202 + $0x64] sm:$0xf]
      %v242 = vld [vmem:[%s202 + $0x68] sm:$0xf]
      %v243 = vld [vmem:[%s202 + $0x6c] sm:$0xf]
      %v244 = vld [vmem:[%s202 + $0x70] sm:$0xf]
      %v245 = vld [vmem:[%s202 + $0x74] sm:$0xf]
      %v246 = vld [vmem:[%s202 + $0x78] sm:$0xf]
      %v247 = vld [vmem:[%s202 + $0x7c] sm:$0xf]
      %v248 = vld [vmem:[%s202 + $0x80] sm:$0xf]
      %v249 = vld [vmem:[%s202 + $0x84] sm:$0xf]
      %v250 = vld [vmem:[%s202 + $0x88] sm:$0xf]
      %v251 = vld [vmem:[%s202 + $0x8c] sm:$0xf]
      %v252 = vld [vmem:[%s202 + $0x90] sm:$0xf]
      %v253 = vld [vmem:[%s202 + $0x94] sm:$0xf]
      %v254 = vld [vmem:[%s202 + $0x98] sm:$0xf]
      %v255 = vld [vmem:[%s202 + $0x9c] sm:$0xf]
      %v256 = vld [vmem:[%s202 + $0xa0] sm:$0xf]
      %v257 = vld [vmem:[%s202 + $0xa4] sm:$0xf]
      %v258 = vld [vmem:[%s202 + $0xa8] sm:$0xf]
      %v259 = vld [vmem:[%s202 + $0xac] sm:$0xf]
      %v260 = vld [vmem:[%s202 + $0xb0] sm:$0xf]
      %v261 = vld [vmem:[%s202 + $0xb4] sm:$0xf]
      %v262 = vld [vmem:[%s202 + $0xb8] sm:$0xf]
      %v263 = vld [vmem:[%s202 + $0xbc] sm:$0xf]
      %v264 = vld [vmem:[%s202 + $0xc0] sm:$0xf]
      %v265 = vld [vmem:[%s202 + $0xc4] sm:$0xf]
      %v266 = vld [vmem:[%s202 + $0xc8] sm:$0xf]
      %v267 = vld [vmem:[%s202 + $0xcc] sm:$0xf]
      %v268 = vld [vmem:[%s202 + $0xd0] sm:$0xf]
      %v269 = vld [vmem:[%s202 + $0xd4] sm:$0xf]
      %v270 = vld [vmem:[%s202 + $0xd8] sm:$0xf]
      %v271 = vld [vmem:[%s202 + $0xdc] sm:$0xf]
      %v272 = vld [vmem:[%s202 + $0xe0] sm:$0xf]
      %v273 = vld [vmem:[%s202 + $0xe4] sm:$0xf]
      %v274 = vld [vmem:[%s202 + $0xe8] sm:$0xf]
      %v275 = vld [vmem:[%s202 + $0xec] sm:$0xf]
      %v276 = vld [vmem:[%s202 + $0xf0] sm:$0xf]
      %v277 = vld [vmem:[%s202 + $0xf4] sm:$0xf]
      %v278 = vld [vmem:[%s202 + $0xf8] sm:$0xf]
      %v279 = vld [vmem:[%s202 + $0xfc] sm:$0xf]
      %v280 = vld [vmem:[%s202 + $0x100] sm:$0xf]
      %v281 = vld [vmem:[%s202 + $0x104] sm:$0xf]
      %v282 = vld [vmem:[%s202 + $0x108] sm:$0xf]
      %v283 = vld [vmem:[%s202 + $0x10c] sm:$0xf]
      %v284 = vld [vmem:[%s202 + $0x110] sm:$0xf]
      %v285 = vld [vmem:[%s202 + $0x114] sm:$0xf]
      %v286 = vld [vmem:[%s202 + $0x118] sm:$0xf]
      %v287 = vld [vmem:[%s202 + $0x11c] sm:$0xf]
      %v288 = vld [vmem:[%s202 + $0x120] sm:$0xf]
      %v289 = vld [vmem:[%s202 + $0x124] sm:$0xf]
      %v290 = vld [vmem:[%s202 + $0x128] sm:$0xf]
      %v291 = vld [vmem:[%s202 + $0x12c] sm:$0xf]
      %v292 = vld [vmem:[%s202 + $0x130] sm:$0xf]
      %v293 = vld [vmem:[%s202 + $0x134] sm:$0xf]
      %v294 = vld [vmem:[%s202 + $0x138] sm:$0xf]
      %v295 = vld [vmem:[%s202 + $0x13c] sm:$0xf]
      %v296 = vld [vmem:[%s202 + $0x140] sm:$0xf]
      %v297 = vld [vmem:[%s202 + $0x144] sm:$0xf]
      %v298 = vld [vmem:[%s202 + $0x148] sm:$0xf]
      %v299 = vld [vmem:[%s202 + $0x14c] sm:$0xf]
      %v300 = vld [vmem:[%s202 + $0x150] sm:$0xf]
      %v301 = vld [vmem:[%s202 + $0x154] sm:$0xf]
      %v302 = vld [vmem:[%s202 + $0x158] sm:$0xf]
      %v303 = vld [vmem:[%s202 + $0x15c] sm:$0xf]
      %v304 = vld [vmem:[%s202 + $0x160] sm:$0xf]
      %v305 = vld [vmem:[%s202 + $0x164] sm:$0xf]
      %v306 = vld [vmem:[%s202 + $0x168] sm:$0xf]
      %v307 = vld [vmem:[%s202 + $0x16c] sm:$0xf]
      %v308 = vld [vmem:[%s202 + $0x170] sm:$0xf]
      %v309 = vld [vmem:[%s202 + $0x174] sm:$0xf]
      %v310 = vld [vmem:[%s202 + $0x178] sm:$0xf]
      %v311 = vld [vmem:[%s202 + $0x17c] sm:$0xf]
      %v312 = vld [vmem:[%s202 + $0x180] sm:$0xf]
      %v313 = vld [vmem:[%s202 + $0x184] sm:$0xf]
      %v314 = vld [vmem:[%s202 + $0x188] sm:$0xf]
      %v315 = vld [vmem:[%s202 + $0x18c] sm:$0xf]
      %v316 = vld [vmem:[%s202 + $0x190] sm:$0xf]
      %v317 = vld [vmem:[%s202 + $0x194] sm:$0xf]
      %v318 = vld [vmem:[%s202 + $0x198] sm:$0xf]
      %v319 = vld [vmem:[%s202 + $0x19c] sm:$0xf]
      %v320 = vld [vmem:[%s202 + $0x1a0] sm:$0xf]
      %v321 = vld [vmem:[%s202 + $0x1a4] sm:$0xf]
      %v322 = vld [vmem:[%s202 + $0x1a8] sm:$0xf]
      %v323 = vld [vmem:[%s202 + $0x1ac] sm:$0xf]
      %v324 = vld [vmem:[%s202 + $0x1b0] sm:$0xf]
      %v325 = vld [vmem:[%s202 + $0x1b4] sm:$0xf]
      %v326 = vld [vmem:[%s202 + $0x1b8] sm:$0xf]
      %v327 = vld [vmem:[%s202 + $0x1bc] sm:$0xf]
      %v328 = vld [vmem:[%s202 + $0x1c0] sm:$0xf]
      %v329 = vld [vmem:[%s202 + $0x1c4] sm:$0xf]
      %v330 = vld [vmem:[%s202 + $0x1c8] sm:$0xf]
      %v331 = vld [vmem:[%s202 + $0x1cc] sm:$0xf]
      %v332 = vld [vmem:[%s202 + $0x1d0] sm:$0xf]
      %v333 = vld [vmem:[%s202 + $0x1d4] sm:$0xf]
      %v334 = vld [vmem:[%s202 + $0x1d8] sm:$0xf]
      %v335 = vld [vmem:[%s202 + $0x1dc] sm:$0xf]
      %v336 = vld [vmem:[%s202 + $0x1e0] sm:$0xf]
      %v337 = vld [vmem:[%s202 + $0x1e4] sm:$0xf]
      %v338 = vld [vmem:[%s202 + $0x1e8] sm:$0xf]
      %v339 = vld [vmem:[%s202 + $0x1ec] sm:$0xf]
      %v340 = vld [vmem:[%s202 + $0x1f0] sm:$0xf]
      %v341 = vld [vmem:[%s202 + $0x1f4] sm:$0xf]
      %v342 = vld [vmem:[%s202 + $0x1f8] sm:$0xf]
      %v343 = vld [vmem:[%s202 + $0x1fc] sm:$0xf]
      %v344 = vld [vmem:[%s1] sm:$0xf]
      %v345 = vld [vmem:[%s1 + $0x4] sm:$0xf]
      %v346 = vld [vmem:[%s1 + $0x8] sm:$0xf]
      %v347 = vld [vmem:[%s1 + $0xc] sm:$0x3]
      %v348 = vld [vmem:[%s2] sm:$0x1]
      %v350 = vlaneseq
      %v351 = vshrl.u32 %v350, 7
      %v352 = vsub.s32 0, %v351
      %v353 = vrot.slane %v348, %v352
      %v483 = vunpack.c.l.b16 %v216
      %v484 = vunpack.c.l.b16 %v217
      %v485 = vunpack.c.l.b16 %v218
      %v486 = vunpack.c.l.b16 %v219
      %v487 = vunpack.c.l.b16 %v220
      %v488 = vunpack.c.l.b16 %v221
      %v489 = vunpack.c.l.b16 %v222
      %v490 = vunpack.c.l.b16 %v223
      %v491 = vunpack.c.l.b16 %v224
      %v492 = vunpack.c.l.b16 %v225
      %v493 = vunpack.c.l.b16 %v226
      %v494 = vunpack.c.l.b16 %v227
      %v495 = vunpack.c.l.b16 %v228
      %v496 = vunpack.c.l.b16 %v229
      %v497 = vunpack.c.l.b16 %v230
      %v498 = vunpack.c.l.b16 %v231
      %v499 = vunpack.c.l.b16 %v232
      %v500 = vunpack.c.l.b16 %v233
      %v501 = vunpack.c.l.b16 %v234
      %v502 = vunpack.c.l.b16 %v235
      %v503 = vunpack.c.l.b16 %v236
      %v504 = vunpack.c.l.b16 %v237
      %v505 = vunpack.c.l.b16 %v238
      %v506 = vunpack.c.l.b16 %v239
      %v507 = vunpack.c.l.b16 %v240
      %v508 = vunpack.c.l.b16 %v241
      %v509 = vunpack.c.l.b16 %v242
      %v510 = vunpack.c.l.b16 %v243
      %v511 = vunpack.c.l.b16 %v244
      %v512 = vunpack.c.l.b16 %v245
      %v513 = vunpack.c.l.b16 %v246
      %v514 = vunpack.c.l.b16 %v247
      %v515 = vunpack.c.l.b16 %v248
      %v516 = vunpack.c.l.b16 %v249
      %v517 = vunpack.c.l.b16 %v250
      %v518 = vunpack.c.l.b16 %v251
      %v519 = vunpack.c.l.b16 %v252
      %v520 = vunpack.c.l.b16 %v253
      %v521 = vunpack.c.l.b16 %v254
      %v522 = vunpack.c.l.b16 %v255
      %v523 = vunpack.c.l.b16 %v256
      %v524 = vunpack.c.l.b16 %v257
      %v525 = vunpack.c.l.b16 %v258
      %v526 = vunpack.c.l.b16 %v259
      %v527 = vunpack.c.l.b16 %v260
      %v528 = vunpack.c.l.b16 %v261
      %v529 = vunpack.c.l.b16 %v262
      %v530 = vunpack.c.l.b16 %v263
      %v531 = vunpack.c.l.b16 %v264
      %v532 = vunpack.c.l.b16 %v265
      %v533 = vunpack.c.l.b16 %v266
      %v534 = vunpack.c.l.b16 %v267
      %v535 = vunpack.c.l.b16 %v268
      %v536 = vunpack.c.l.b16 %v269
      %v537 = vunpack.c.l.b16 %v270
      %v538 = vunpack.c.l.b16 %v271
      %v539 = vunpack.c.l.b16 %v272
      %v540 = vunpack.c.l.b16 %v273
      %v541 = vunpack.c.l.b16 %v274
      %v542 = vunpack.c.l.b16 %v275
      %v543 = vunpack.c.l.b16 %v276
      %v544 = vunpack.c.l.b16 %v277
      %v545 = vunpack.c.l.b16 %v278
      %v546 = vunpack.c.l.b16 %v279
      %v547 = vunpack.c.l.b16 %v280
      %v548 = vunpack.c.l.b16 %v281
      %v549 = vunpack.c.l.b16 %v282
      %v550 = vunpack.c.l.b16 %v283
      %v551 = vunpack.c.l.b16 %v284
      %v552 = vunpack.c.l.b16 %v285
      %v553 = vunpack.c.l.b16 %v286
      %v554 = vunpack.c.l.b16 %v287
      %v555 = vunpack.c.l.b16 %v288
      %v556 = vunpack.c.l.b16 %v289
      %v557 = vunpack.c.l.b16 %v290
      %v558 = vunpack.c.l.b16 %v291
      %v559 = vunpack.c.l.b16 %v292
      %v560 = vunpack.c.l.b16 %v293
      %v561 = vunpack.c.l.b16 %v294
      %v562 = vunpack.c.l.b16 %v295
      %v563 = vunpack.c.l.b16 %v296
      %v564 = vunpack.c.l.b16 %v297
      %v565 = vunpack.c.l.b16 %v298
      %v566 = vunpack.c.l.b16 %v299
      %v567 = vunpack.c.l.b16 %v300
      %v568 = vunpack.c.l.b16 %v301
      %v569 = vunpack.c.l.b16 %v302
      %v570 = vunpack.c.l.b16 %v303
      %v571 = vunpack.c.l.b16 %v304
      %v572 = vunpack.c.l.b16 %v305
      %v573 = vunpack.c.l.b16 %v306
      %v574 = vunpack.c.l.b16 %v307
      %v575 = vunpack.c.l.b16 %v308
      %v576 = vunpack.c.l.b16 %v309
      %v577 = vunpack.c.l.b16 %v310
      %v578 = vunpack.c.l.b16 %v311
      %v579 = vunpack.c.l.b16 %v312
      %v580 = vunpack.c.l.b16 %v313
      %v581 = vunpack.c.l.b16 %v314
      %v582 = vunpack.c.l.b16 %v315
      %v583 = vunpack.c.l.b16 %v316
      %v584 = vunpack.c.l.b16 %v317
      %v585 = vunpack.c.l.b16 %v318
      %v586 = vunpack.c.l.b16 %v319
      %v587 = vunpack.c.l.b16 %v320
      %v588 = vunpack.c.l.b16 %v321
      %v589 = vunpack.c.l.b16 %v322
      %v590 = vunpack.c.l.b16 %v323
      %v591 = vunpack.c.l.b16 %v324
      %v592 = vunpack.c.l.b16 %v325
      %v593 = vunpack.c.l.b16 %v326
      %v594 = vunpack.c.l.b16 %v327
      %v595 = vunpack.c.l.b16 %v328
      %v596 = vunpack.c.l.b16 %v329
      %v597 = vunpack.c.l.b16 %v330
      %v598 = vunpack.c.l.b16 %v331
      %v599 = vunpack.c.l.b16 %v332
      %v600 = vunpack.c.l.b16 %v333
      %v601 = vunpack.c.l.b16 %v334
      %v602 = vunpack.c.l.b16 %v335
      %v603 = vunpack.c.l.b16 %v336
      %v604 = vunpack.c.l.b16 %v337
      %v605 = vunpack.c.l.b16 %v338
      %v606 = vunpack.c.l.b16 %v339
      %v607 = vunpack.c.l.b16 %v340
      %v608 = vunpack.c.l.b16 %v341
      %v609 = vunpack.c.l.b16 %v342
      %v610 = vunpack.c.l.b16 %v343
      %v611 = vpack.c.b16 %v484, %v483
      %v612 = vpack.c.b16 %v486, %v485
      %v613 = vpack.c.b16 %v488, %v487
      %v614 = vpack.c.b16 %v490, %v489
      %v615 = vpack.c.b16 %v492, %v491
      %v616 = vpack.c.b16 %v494, %v493
      %v617 = vpack.c.b16 %v496, %v495
      %v618 = vpack.c.b16 %v498, %v497
      %v619 = vpack.c.b16 %v500, %v499
      %v620 = vpack.c.b16 %v502, %v501
      %v621 = vpack.c.b16 %v504, %v503
      %v622 = vpack.c.b16 %v506, %v505
      %v623 = vpack.c.b16 %v508, %v507
      %v624 = vpack.c.b16 %v510, %v509
      %v625 = vpack.c.b16 %v512, %v511
      %v626 = vpack.c.b16 %v514, %v513
      %v627 = vpack.c.b16 %v516, %v515
      %v628 = vpack.c.b16 %v518, %v517
      %v629 = vpack.c.b16 %v520, %v519
      %v630 = vpack.c.b16 %v522, %v521
      %v631 = vpack.c.b16 %v524, %v523
      %v632 = vpack.c.b16 %v526, %v525
      %v633 = vpack.c.b16 %v528, %v527
      %v634 = vpack.c.b16 %v530, %v529
      %v635 = vpack.c.b16 %v532, %v531
      %v636 = vpack.c.b16 %v534, %v533
      %v637 = vpack.c.b16 %v536, %v535
      %v638 = vpack.c.b16 %v538, %v537
      %v639 = vpack.c.b16 %v540, %v539
      %v640 = vpack.c.b16 %v542, %v541
      %v641 = vpack.c.b16 %v544, %v543
      %v642 = vpack.c.b16 %v546, %v545
      %v643 = vpack.c.b16 %v548, %v547
      %v644 = vpack.c.b16 %v550, %v549
      %v645 = vpack.c.b16 %v552, %v551
      %v646 = vpack.c.b16 %v554, %v553
      %v647 = vpack.c.b16 %v556, %v555
      %v648 = vpack.c.b16 %v558, %v557
      %v649 = vpack.c.b16 %v560, %v559
      %v650 = vpack.c.b16 %v562, %v561
      %v651 = vpack.c.b16 %v564, %v563
      %v652 = vpack.c.b16 %v566, %v565
      %v653 = vpack.c.b16 %v568, %v567
      %v654 = vpack.c.b16 %v570, %v569
      %v655 = vpack.c.b16 %v572, %v571
      %v656 = vpack.c.b16 %v574, %v573
      %v657 = vpack.c.b16 %v576, %v575
      %v658 = vpack.c.b16 %v578, %v577
      %v659 = vpack.c.b16 %v580, %v579
      %v660 = vpack.c.b16 %v582, %v581
      %v661 = vpack.c.b16 %v584, %v583
      %v662 = vpack.c.b16 %v586, %v585
      %v663 = vpack.c.b16 %v588, %v587
      %v664 = vpack.c.b16 %v590, %v589
      %v665 = vpack.c.b16 %v592, %v591
      %v666 = vpack.c.b16 %v594, %v593
      %v667 = vpack.c.b16 %v596, %v595
      %v668 = vpack.c.b16 %v598, %v597
      %v669 = vpack.c.b16 %v600, %v599
      %v670 = vpack.c.b16 %v602, %v601
      %v671 = vpack.c.b16 %v604, %v603
      %v672 = vpack.c.b16 %v606, %v605
      %v673 = vpack.c.b16 %v608, %v607
      %v674 = vpack.c.b16 %v610, %v609
      %v679 = vunpack.c.l.b16 %v344
      %v680 = vunpack.c.l.b16 %v345
      %v681 = vunpack.c.l.b16 %v346
      %v682 = vunpack.c.l.b16 %v347
      %v683 = vpack.c.b16 %v680, %v679
      %v684 = vpack.c.b16 %v682, %v681
      %vm686 = vcmask 220160
      %v688 = vsel %vm686, %v611, 0
      %v691 = vsel %vm686, %v612, 0
      %v694 = vsel %vm686, %v613, 0
      %v697 = vsel %vm686, %v614, 0
      %v700 = vsel %vm686, %v615, 0
      %v703 = vsel %vm686, %v616, 0
      %v706 = vsel %vm686, %v617, 0
      %v709 = vsel %vm686, %v618, 0
      %v712 = vsel %vm686, %v619, 0
      %v715 = vsel %vm686, %v620, 0
      %v718 = vsel %vm686, %v621, 0
      %v721 = vsel %vm686, %v622, 0
      %v724 = vsel %vm686, %v623, 0
      %v727 = vsel %vm686, %v624, 0
      %v730 = vsel %vm686, %v625, 0
      %v733 = vsel %vm686, %v626, 0
      %v736 = vsel %vm686, %v627, 0
      %v739 = vsel %vm686, %v628, 0
      %v742 = vsel %vm686, %v629, 0
      %v745 = vsel %vm686, %v630, 0
      %v748 = vsel %vm686, %v631, 0
      %v751 = vsel %vm686, %v632, 0
      %v754 = vsel %vm686, %v633, 0
      %v757 = vsel %vm686, %v634, 0
      %v760 = vsel %vm686, %v635, 0
      %v763 = vsel %vm686, %v636, 0
      %v766 = vsel %vm686, %v637, 0
      %v769 = vsel %vm686, %v638, 0
      %v772 = vsel %vm686, %v639, 0
      %v775 = vsel %vm686, %v640, 0
      %v778 = vsel %vm686, %v641, 0
      %v781 = vsel %vm686, %v642, 0
      %v784 = vsel %vm686, %v643, 0
      %v787 = vsel %vm686, %v644, 0
      %v790 = vsel %vm686, %v645, 0
      %v793 = vsel %vm686, %v646, 0
      %v796 = vsel %vm686, %v647, 0
      %v799 = vsel %vm686, %v648, 0
      %v802 = vsel %vm686, %v649, 0
      %v805 = vsel %vm686, %v650, 0
      %v808 = vsel %vm686, %v651, 0
      %v811 = vsel %vm686, %v652, 0
      %v814 = vsel %vm686, %v653, 0
      %v817 = vsel %vm686, %v654, 0
      %v820 = vsel %vm686, %v655, 0
      %v823 = vsel %vm686, %v656, 0
      %v826 = vsel %vm686, %v657, 0
      %v829 = vsel %vm686, %v658, 0
      %v832 = vsel %vm686, %v659, 0
      %v835 = vsel %vm686, %v660, 0
      %v838 = vsel %vm686, %v661, 0
      %v841 = vsel %vm686, %v662, 0
      %v844 = vsel %vm686, %v663, 0
      %v847 = vsel %vm686, %v664, 0
      %v850 = vsel %vm686, %v665, 0
      %v853 = vsel %vm686, %v666, 0
      %v856 = vsel %vm686, %v667, 0
      %v859 = vsel %vm686, %v668, 0
      %v862 = vsel %vm686, %v669, 0
      %v865 = vsel %vm686, %v670, 0
      %v868 = vsel %vm686, %v671, 0
      %v871 = vsel %vm686, %v672, 0
      %v874 = vsel %vm686, %v673, 0
      %v877 = vsel %vm686, %v674, 0
      %vm879 = vcmask 1044480
      %vm880 = vcmask 1045504
      %v881 = vsel %vm879, 4294967295, 65535
      %v882 = vsel %vm880, %v881, 0
      %v884 = vand.u32 %v684, %v882
      %886 = vmatprep.subr.bf16.mxu0 0
      %887 = vmatpush1.bf16.msra.mxu0 %v683
      %888 = vmatprep.subr.bf16.mxu0 0
      %889 = vmatpush1.bf16.msra.mxu0 %v884
      %890 = vmatprep.subr.bf16.mxu0 0
      %891 = vmatpush1.bf16.msra.mxu0 0
      %892 = vmatprep.subr.bf16.mxu0 0
      %893 = vmatpush1.bf16.msra.mxu0 0
      %894 = vmatprep.subr.bf16.mxu0 0
      %895 = vmatpush1.bf16.msra.mxu0 0
      %896 = vmatprep.subr.bf16.mxu0 0
      %897 = vmatpush1.bf16.msra.mxu0 0
      %898 = vmatprep.subr.bf16.mxu0 0
      %899 = vmatpush1.bf16.msra.mxu0 0
      %900 = vmatprep.subr.bf16.mxu0 0
      %901 = vmatpush1.bf16.msra.mxu0 0
      %902 = vmatprep.subr.bf16.mxu0 0
      %903 = vmatpush1.bf16.msra.mxu0 0
      %904 = vmatprep.subr.bf16.mxu0 0
      %905 = vmatpush1.bf16.msra.mxu0 0
      %906 = vmatprep.subr.bf16.mxu0 0
      %907 = vmatpush1.bf16.msra.mxu0 0
      %908 = vmatprep.subr.bf16.mxu0 0
      %909 = vmatpush1.bf16.msra.mxu0 0
      %910 = vmatprep.subr.bf16.mxu0 0
      %911 = vmatpush1.bf16.msra.mxu0 0
      %912 = vmatprep.subr.bf16.mxu0 0
      %913 = vmatpush1.bf16.msra.mxu0 0
      %914 = vmatprep.subr.bf16.mxu0 0
      %915 = vmatpush1.bf16.msra.mxu0 0
      %916 = vmatprep.subr.bf16.mxu0 0
      %917 = vmatpush1.bf16.msra.mxu0 0
      %918 = vmatprep.mubr.bf16.mxu0 0
      %919 = vmatmul.mubr.bf16.gmra.mrb[0].mxu0 %v688
      %v920 = vpop.f32.mrb[0].mxu0
      %v921 = vadd.f32 %v353, %v920
      %v922 = vpop.f32.mrb[0].mxu0
      %v923 = vpop.f32.mrb[0].mxu0
      %v924 = vadd.f32 %v353, %v923
      %v925 = vpop.f32.mrb[0].mxu0
      %926 = vmatprep.mubr.bf16.mxu0 0
      %927 = vmatmul.mubr.bf16.gmra.mrb[0].mxu0 %v691
      %v928 = vpop.f32.mrb[0].mxu0
      %v929 = vadd.f32 %v353, %v928
      %v930 = vpop.f32.mrb[0].mxu0
      %v931 = vpop.f32.mrb[0].mxu0
      %v932 = vadd.f32 %v353, %v931
      %v933 = vpop.f32.mrb[0].mxu0
      %934 = vmatprep.mubr.bf16.mxu0 0
      %935 = vmatmul.mubr.bf16.gmra.mrb[0].mxu0 %v694
      %v936 = vpop.f32.mrb[0].mxu0
      %v937 = vadd.f32 %v353, %v936
      %v938 = vpop.f32.mrb[0].mxu0
      %v939 = vpop.f32.mrb[0].mxu0
      %v940 = vadd.f32 %v353, %v939
      %v941 = vpop.f32.mrb[0].mxu0
      %942 = vmatprep.mubr.bf16.mxu0 0
      %943 = vmatmul.mubr.bf16.gmra.mrb[0].mxu0 %v697
      %v944 = vpop.f32.mrb[0].mxu0
      %v945 = vadd.f32 %v353, %v944
      %v946 = vpop.f32.mrb[0].mxu0
      %v947 = vpop.f32.mrb[0].mxu0
      %v948 = vadd.f32 %v353, %v947
      %v949 = vpop.f32.mrb[0].mxu0
      %950 = vmatprep.mubr.bf16.mxu0 0
      %951 = vmatmul.mubr.bf16.gmra.mrb[0].mxu0 %v700
      %v952 = vpop.f32.mrb[0].mxu0
      %v953 = vadd.f32 %v353, %v952
      %v954 = vpop.f32.mrb[0].mxu0
      %v955 = vpop.f32.mrb[0].mxu0
      %v956 = vadd.f32 %v353, %v955
      %v957 = vpop.f32.mrb[0].mxu0
      %958 = vmatprep.mubr.bf16.mxu0 0
      %959 = vmatmul.mubr.bf16.gmra.mrb[0].mxu0 %v703
      %v960 = vpop.f32.mrb[0].mxu0
      %v961 = vadd.f32 %v353, %v960
      %v962 = vpop.f32.mrb[0].mxu0
      %v963 = vpop.f32.mrb[0].mxu0
      %v964 = vadd.f32 %v353, %v963
      %v965 = vpop.f32.mrb[0].mxu0
      %966 = vmatprep.mubr.bf16.mxu0 0
      %967 = vmatmul.mubr.bf16.gmra.mrb[0].mxu0 %v706
      %v968 = vpop.f32.mrb[0].mxu0
      %v969 = vadd.f32 %v353, %v968
      %v970 = vpop.f32.mrb[0].mxu0
      %v971 = vpop.f32.mrb[0].mxu0
      %v972 = vadd.f32 %v353, %v971
      %v973 = vpop.f32.mrb[0].mxu0
      %974 = vmatprep.mubr.bf16.mxu0 0
      %975 = vmatmul.mubr.bf16.gmra.mrb[0].mxu0 %v709
      %v976 = vpop.f32.mrb[0].mxu0
      %v977 = vadd.f32 %v353, %v976
      %v978 = vpop.f32.mrb[0].mxu0
      %v979 = vpop.f32.mrb[0].mxu0
      %v980 = vadd.f32 %v353, %v979
      %v981 = vpop.f32.mrb[0].mxu0
      %982 = vmatprep.mubr.bf16.mxu0 0
      %983 = vmatmul.mubr.bf16.gmra.mrb[0].mxu0 %v712
      %v984 = vpop.f32.mrb[0].mxu0
      %v985 = vadd.f32 %v353, %v984
      %v986 = vpop.f32.mrb[0].mxu0
      %v987 = vpop.f32.mrb[0].mxu0
      %v988 = vadd.f32 %v353, %v987
      %v989 = vpop.f32.mrb[0].mxu0
      %990 = vmatprep.mubr.bf16.mxu0 0
      %991 = vmatmul.mubr.bf16.gmra.mrb[0].mxu0 %v715
      %v992 = vpop.f32.mrb[0].mxu0
      %v993 = vadd.f32 %v353, %v992
      %v994 = vpop.f32.mrb[0].mxu0
      %v995 = vpop.f32.mrb[0].mxu0
      %v996 = vadd.f32 %v353, %v995
      %v997 = vpop.f32.mrb[0].mxu0
      %998 = vmatprep.mubr.bf16.mxu0 0
      %999 = vmatmul.mubr.bf16.gmra.mrb[0].mxu0 %v718
      %v1000 = vpop.f32.mrb[0].mxu0
      %v1001 = vadd.f32 %v353, %v1000
      %v1002 = vpop.f32.mrb[0].mxu0
      %v1003 = vpop.f32.mrb[0].mxu0
      %v1004 = vadd.f32 %v353, %v1003
      %v1005 = vpop.f32.mrb[0].mxu0
      %1006 = vmatprep.mubr.bf16.mxu0 0
      %1007 = vmatmul.mubr.bf16.gmra.mrb[0].mxu0 %v721
      %v1008 = vpop.f32.mrb[0].mxu0
      %v1009 = vadd.f32 %v353, %v1008
      %v1010 = vpop.f32.mrb[0].mxu0
      %v1011 = vpop.f32.mrb[0].mxu0
      %v1012 = vadd.f32 %v353, %v1011
      %v1013 = vpop.f32.mrb[0].mxu0
      %1014 = vmatprep.mubr.bf16.mxu0 0
      %1015 = vmatmul.mubr.bf16.gmra.mrb[0].mxu0 %v724
      %v1016 = vpop.f32.mrb[0].mxu0
      %v1017 = vadd.f32 %v353, %v1016
      %v1018 = vpop.f32.mrb[0].mxu0
      %v1019 = vpop.f32.mrb[0].mxu0
      %v1020 = vadd.f32 %v353, %v1019
      %v1021 = vpop.f32.mrb[0].mxu0
      %1022 = vmatprep.mubr.bf16.mxu0 0
      %1023 = vmatmul.mubr.bf16.gmra.mrb[0].mxu0 %v727
      %v1024 = vpop.f32.mrb[0].mxu0
      %v1025 = vadd.f32 %v353, %v1024
      %v1026 = vpop.f32.mrb[0].mxu0
      %v1027 = vpop.f32.mrb[0].mxu0
      %v1028 = vadd.f32 %v353, %v1027
      %v1029 = vpop.f32.mrb[0].mxu0
      %1030 = vmatprep.mubr.bf16.mxu0 0
      %1031 = vmatmul.mubr.bf16.gmra.mrb[0].mxu0 %v730
      %v1032 = vpop.f32.mrb[0].mxu0
      %v1033 = vadd.f32 %v353, %v1032
      %v1034 = vpop.f32.mrb[0].mxu0
      %v1035 = vpop.f32.mrb[0].mxu0
      %v1036 = vadd.f32 %v353, %v1035
      %v1037 = vpop.f32.mrb[0].mxu0
      %1038 = vmatprep.mubr.bf16.mxu0 0
      %1039 = vmatmul.mubr.bf16.gmra.mrb[0].mxu0 %v733
      %v1040 = vpop.f32.mrb[0].mxu0
      %v1041 = vadd.f32 %v353, %v1040
      %v1042 = vpop.f32.mrb[0].mxu0
      %v1043 = vpop.f32.mrb[0].mxu0
      %v1044 = vadd.f32 %v353, %v1043
      %v1045 = vpop.f32.mrb[0].mxu0
      %1046 = vmatprep.mubr.bf16.mxu0 0
      %1047 = vmatmul.mubr.bf16.gmra.mrb[0].mxu0 %v736
      %v1048 = vpop.f32.mrb[0].mxu0
      %v1049 = vadd.f32 %v353, %v1048
      %v1050 = vpop.f32.mrb[0].mxu0
      %v1051 = vpop.f32.mrb[0].mxu0
      %v1052 = vadd.f32 %v353, %v1051
      %v1053 = vpop.f32.mrb[0].mxu0
      %1054 = vmatprep.mubr.bf16.mxu0 0
      %1055 = vmatmul.mubr.bf16.gmra.mrb[0].mxu0 %v739
      %v1056 = vpop.f32.mrb[0].mxu0
      %v1057 = vadd.f32 %v353, %v1056
      %v1058 = vpop.f32.mrb[0].mxu0
      %v1059 = vpop.f32.mrb[0].mxu0
      %v1060 = vadd.f32 %v353, %v1059
      %v1061 = vpop.f32.mrb[0].mxu0
      %1062 = vmatprep.mubr.bf16.mxu0 0
      %1063 = vmatmul.mubr.bf16.gmra.mrb[0].mxu0 %v742
      %v1064 = vpop.f32.mrb[0].mxu0
      %v1065 = vadd.f32 %v353, %v1064
      %v1066 = vpop.f32.mrb[0].mxu0
      %v1067 = vpop.f32.mrb[0].mxu0
      %v1068 = vadd.f32 %v353, %v1067
      %v1069 = vpop.f32.mrb[0].mxu0
      %1070 = vmatprep.mubr.bf16.mxu0 0
      %1071 = vmatmul.mubr.bf16.gmra.mrb[0].mxu0 %v745
      %v1072 = vpop.f32.mrb[0].mxu0
      %v1073 = vadd.f32 %v353, %v1072
      %v1074 = vpop.f32.mrb[0].mxu0
      %v1075 = vpop.f32.mrb[0].mxu0
      %v1076 = vadd.f32 %v353, %v1075
      %v1077 = vpop.f32.mrb[0].mxu0
      %1078 = vmatprep.mubr.bf16.mxu0 0
      %1079 = vmatmul.mubr.bf16.gmra.mrb[0].mxu0 %v748
      %v1080 = vpop.f32.mrb[0].mxu0
      %v1081 = vadd.f32 %v353, %v1080
      %v1082 = vpop.f32.mrb[0].mxu0
      %v1083 = vpop.f32.mrb[0].mxu0
      %v1084 = vadd.f32 %v353, %v1083
      %v1085 = vpop.f32.mrb[0].mxu0
      %1086 = vmatprep.mubr.bf16.mxu0 0
      %1087 = vmatmul.mubr.bf16.gmra.mrb[0].mxu0 %v751
      %v1088 = vpop.f32.mrb[0].mxu0
      %v1089 = vadd.f32 %v353, %v1088
      %v1090 = vpop.f32.mrb[0].mxu0
      %v1091 = vpop.f32.mrb[0].mxu0
      %v1092 = vadd.f32 %v353, %v1091
      %v1093 = vpop.f32.mrb[0].mxu0
      %1094 = vmatprep.mubr.bf16.mxu0 0
      %1095 = vmatmul.mubr.bf16.gmra.mrb[0].mxu0 %v754
      %v1096 = vpop.f32.mrb[0].mxu0
      %v1097 = vadd.f32 %v353, %v1096
      %v1098 = vpop.f32.mrb[0].mxu0
      %v1099 = vpop.f32.mrb[0].mxu0
      %v1100 = vadd.f32 %v353, %v1099
      %v1101 = vpop.f32.mrb[0].mxu0
      %1102 = vmatprep.mubr.bf16.mxu0 0
      %1103 = vmatmul.mubr.bf16.gmra.mrb[0].mxu0 %v757
      %v1104 = vpop.f32.mrb[0].mxu0
      %v1105 = vadd.f32 %v353, %v1104
      %v1106 = vpop.f32.mrb[0].mxu0
      %v1107 = vpop.f32.mrb[0].mxu0
      %v1108 = vadd.f32 %v353, %v1107
      %v1109 = vpop.f32.mrb[0].mxu0
      %1110 = vmatprep.mubr.bf16.mxu0 0
      %1111 = vmatmul.mubr.bf16.gmra.mrb[0].mxu0 %v760
      %v1112 = vpop.f32.mrb[0].mxu0
      %v1113 = vadd.f32 %v353, %v1112
      %v1114 = vpop.f32.mrb[0].mxu0
      %v1115 = vpop.f32.mrb[0].mxu0
      %v1116 = vadd.f32 %v353, %v1115
      %v1117 = vpop.f32.mrb[0].mxu0
      %1118 = vmatprep.mubr.bf16.mxu0 0
      %1119 = vmatmul.mubr.bf16.gmra.mrb[0].mxu0 %v763
      %v1120 = vpop.f32.mrb[0].mxu0
      %v1121 = vadd.f32 %v353, %v1120
      %v1122 = vpop.f32.mrb[0].mxu0
      %v1123 = vpop.f32.mrb[0].mxu0
      %v1124 = vadd.f32 %v353, %v1123
      %v1125 = vpop.f32.mrb[0].mxu0
      %1126 = vmatprep.mubr.bf16.mxu0 0
      %1127 = vmatmul.mubr.bf16.gmra.mrb[0].mxu0 %v766
      %v1128 = vpop.f32.mrb[0].mxu0
      %v1129 = vadd.f32 %v353, %v1128
      %v1130 = vpop.f32.mrb[0].mxu0
      %v1131 = vpop.f32.mrb[0].mxu0
      %v1132 = vadd.f32 %v353, %v1131
      %v1133 = vpop.f32.mrb[0].mxu0
      %1134 = vmatprep.mubr.bf16.mxu0 0
      %1135 = vmatmul.mubr.bf16.gmra.mrb[0].mxu0 %v769
      %v1136 = vpop.f32.mrb[0].mxu0
      %v1137 = vadd.f32 %v353, %v1136
      %v1138 = vpop.f32.mrb[0].mxu0
      %v1139 = vpop.f32.mrb[0].mxu0
      %v1140 = vadd.f32 %v353, %v1139
      %v1141 = vpop.f32.mrb[0].mxu0
      %1142 = vmatprep.mubr.bf16.mxu0 0
      %1143 = vmatmul.mubr.bf16.gmra.mrb[0].mxu0 %v772
      %v1144 = vpop.f32.mrb[0].mxu0
      %v1145 = vadd.f32 %v353, %v1144
      %v1146 = vpop.f32.mrb[0].mxu0
      %v1147 = vpop.f32.mrb[0].mxu0
      %v1148 = vadd.f32 %v353, %v1147
      %v1149 = vpop.f32.mrb[0].mxu0
      %1150 = vmatprep.mubr.bf16.mxu0 0
      %1151 = vmatmul.mubr.bf16.gmra.mrb[0].mxu0 %v775
      %v1152 = vpop.f32.mrb[0].mxu0
      %v1153 = vadd.f32 %v353, %v1152
      %v1154 = vpop.f32.mrb[0].mxu0
      %v1155 = vpop.f32.mrb[0].mxu0
      %v1156 = vadd.f32 %v353, %v1155
      %v1157 = vpop.f32.mrb[0].mxu0
      %1158 = vmatprep.mubr.bf16.mxu0 0
      %1159 = vmatmul.mubr.bf16.gmra.mrb[0].mxu0 %v778
      %v1160 = vpop.f32.mrb[0].mxu0
      %v1161 = vadd.f32 %v353, %v1160
      %v1162 = vpop.f32.mrb[0].mxu0
      %v1163 = vpop.f32.mrb[0].mxu0
      %v1164 = vadd.f32 %v353, %v1163
      %v1165 = vpop.f32.mrb[0].mxu0
      %1166 = vmatprep.mubr.bf16.mxu0 0
      %1167 = vmatmul.mubr.bf16.gmra.mrb[0].mxu0 %v781
      %v1168 = vpop.f32.mrb[0].mxu0
      %v1169 = vadd.f32 %v353, %v1168
      %v1170 = vpop.f32.mrb[0].mxu0
      %v1171 = vpop.f32.mrb[0].mxu0
      %v1172 = vadd.f32 %v353, %v1171
      %v1173 = vpop.f32.mrb[0].mxu0
      %1174 = vmatprep.mubr.bf16.mxu0 0
      %1175 = vmatmul.mubr.bf16.gmra.mrb[0].mxu0 %v784
      %v1176 = vpop.f32.mrb[0].mxu0
      %v1177 = vadd.f32 %v353, %v1176
      %v1178 = vpop.f32.mrb[0].mxu0
      %v1179 = vpop.f32.mrb[0].mxu0
      %v1180 = vadd.f32 %v353, %v1179
      %v1181 = vpop.f32.mrb[0].mxu0
      %1182 = vmatprep.mubr.bf16.mxu0 0
      %1183 = vmatmul.mubr.bf16.gmra.mrb[0].mxu0 %v787
      %v1184 = vpop.f32.mrb[0].mxu0
      %v1185 = vadd.f32 %v353, %v1184
      %v1186 = vpop.f32.mrb[0].mxu0
      %v1187 = vpop.f32.mrb[0].mxu0
      %v1188 = vadd.f32 %v353, %v1187
      %v1189 = vpop.f32.mrb[0].mxu0
      %1190 = vmatprep.mubr.bf16.mxu0 0
      %1191 = vmatmul.mubr.bf16.gmra.mrb[0].mxu0 %v790
      %v1192 = vpop.f32.mrb[0].mxu0
      %v1193 = vadd.f32 %v353, %v1192
      %v1194 = vpop.f32.mrb[0].mxu0
      %v1195 = vpop.f32.mrb[0].mxu0
      %v1196 = vadd.f32 %v353, %v1195
      %v1197 = vpop.f32.mrb[0].mxu0
      %1198 = vmatprep.mubr.bf16.mxu0 0
      %1199 = vmatmul.mubr.bf16.gmra.mrb[0].mxu0 %v793
      %v1200 = vpop.f32.mrb[0].mxu0
      %v1201 = vadd.f32 %v353, %v1200
      %v1202 = vpop.f32.mrb[0].mxu0
      %v1203 = vpop.f32.mrb[0].mxu0
      %v1204 = vadd.f32 %v353, %v1203
      %v1205 = vpop.f32.mrb[0].mxu0
      %1206 = vmatprep.mubr.bf16.mxu0 0
      %1207 = vmatmul.mubr.bf16.gmra.mrb[0].mxu0 %v796
      %v1208 = vpop.f32.mrb[0].mxu0
      %v1209 = vadd.f32 %v353, %v1208
      %v1210 = vpop.f32.mrb[0].mxu0
      %v1211 = vpop.f32.mrb[0].mxu0
      %v1212 = vadd.f32 %v353, %v1211
      %v1213 = vpop.f32.mrb[0].mxu0
      %1214 = vmatprep.mubr.bf16.mxu0 0
      %1215 = vmatmul.mubr.bf16.gmra.mrb[0].mxu0 %v799
      %v1216 = vpop.f32.mrb[0].mxu0
      %v1217 = vadd.f32 %v353, %v1216
      %v1218 = vpop.f32.mrb[0].mxu0
      %v1219 = vpop.f32.mrb[0].mxu0
      %v1220 = vadd.f32 %v353, %v1219
      %v1221 = vpop.f32.mrb[0].mxu0
      %1222 = vmatprep.mubr.bf16.mxu0 0
      %1223 = vmatmul.mubr.bf16.gmra.mrb[0].mxu0 %v802
      %v1224 = vpop.f32.mrb[0].mxu0
      %v1225 = vadd.f32 %v353, %v1224
      %v1226 = vpop.f32.mrb[0].mxu0
      %v1227 = vpop.f32.mrb[0].mxu0
      %v1228 = vadd.f32 %v353, %v1227
      %v1229 = vpop.f32.mrb[0].mxu0
      %1230 = vmatprep.mubr.bf16.mxu0 0
      %1231 = vmatmul.mubr.bf16.gmra.mrb[0].mxu0 %v805
      %v1232 = vpop.f32.mrb[0].mxu0
      %v1233 = vadd.f32 %v353, %v1232
      %v1234 = vpop.f32.mrb[0].mxu0
      %v1235 = vpop.f32.mrb[0].mxu0
      %v1236 = vadd.f32 %v353, %v1235
      %v1237 = vpop.f32.mrb[0].mxu0
      %1238 = vmatprep.mubr.bf16.mxu0 0
      %1239 = vmatmul.mubr.bf16.gmra.mrb[0].mxu0 %v808
      %v1240 = vpop.f32.mrb[0].mxu0
      %v1241 = vadd.f32 %v353, %v1240
      %v1242 = vpop.f32.mrb[0].mxu0
      %v1243 = vpop.f32.mrb[0].mxu0
      %v1244 = vadd.f32 %v353, %v1243
      %v1245 = vpop.f32.mrb[0].mxu0
      %1246 = vmatprep.mubr.bf16.mxu0 0
      %1247 = vmatmul.mubr.bf16.gmra.mrb[0].mxu0 %v811
      %v1248 = vpop.f32.mrb[0].mxu0
      %v1249 = vadd.f32 %v353, %v1248
      %v1250 = vpop.f32.mrb[0].mxu0
      %v1251 = vpop.f32.mrb[0].mxu0
      %v1252 = vadd.f32 %v353, %v1251
      %v1253 = vpop.f32.mrb[0].mxu0
      %1254 = vmatprep.mubr.bf16.mxu0 0
      %1255 = vmatmul.mubr.bf16.gmra.mrb[0].mxu0 %v814
      %v1256 = vpop.f32.mrb[0].mxu0
      %v1257 = vadd.f32 %v353, %v1256
      %v1258 = vpop.f32.mrb[0].mxu0
      %v1259 = vpop.f32.mrb[0].mxu0
      %v1260 = vadd.f32 %v353, %v1259
      %v1261 = vpop.f32.mrb[0].mxu0
      %1262 = vmatprep.mubr.bf16.mxu0 0
      %1263 = vmatmul.mubr.bf16.gmra.mrb[0].mxu0 %v817
      %v1264 = vpop.f32.mrb[0].mxu0
      %v1265 = vadd.f32 %v353, %v1264
      %v1266 = vpop.f32.mrb[0].mxu0
      %v1267 = vpop.f32.mrb[0].mxu0
      %v1268 = vadd.f32 %v353, %v1267
      %v1269 = vpop.f32.mrb[0].mxu0
      %1270 = vmatprep.mubr.bf16.mxu0 0
      %1271 = vmatmul.mubr.bf16.gmra.mrb[0].mxu0 %v820
      %v1272 = vpop.f32.mrb[0].mxu0
      %v1273 = vadd.f32 %v353, %v1272
      %v1274 = vpop.f32.mrb[0].mxu0
      %v1275 = vpop.f32.mrb[0].mxu0
      %v1276 = vadd.f32 %v353, %v1275
      %v1277 = vpop.f32.mrb[0].mxu0
      %1278 = vmatprep.mubr.bf16.mxu0 0
      %1279 = vmatmul.mubr.bf16.gmra.mrb[0].mxu0 %v823
      %v1280 = vpop.f32.mrb[0].mxu0
      %v1281 = vadd.f32 %v353, %v1280
      %v1282 = vpop.f32.mrb[0].mxu0
      %v1283 = vpop.f32.mrb[0].mxu0
      %v1284 = vadd.f32 %v353, %v1283
      %v1285 = vpop.f32.mrb[0].mxu0
      %1286 = vmatprep.mubr.bf16.mxu0 0
      %1287 = vmatmul.mubr.bf16.gmra.mrb[0].mxu0 %v826
      %v1288 = vpop.f32.mrb[0].mxu0
      %v1289 = vadd.f32 %v353, %v1288
      %v1290 = vpop.f32.mrb[0].mxu0
      %v1291 = vpop.f32.mrb[0].mxu0
      %v1292 = vadd.f32 %v353, %v1291
      %v1293 = vpop.f32.mrb[0].mxu0
      %1294 = vmatprep.mubr.bf16.mxu0 0
      %1295 = vmatmul.mubr.bf16.gmra.mrb[0].mxu0 %v829
      %v1296 = vpop.f32.mrb[0].mxu0
      %v1297 = vadd.f32 %v353, %v1296
      %v1298 = vpop.f32.mrb[0].mxu0
      %v1299 = vpop.f32.mrb[0].mxu0
      %v1300 = vadd.f32 %v353, %v1299
      %v1301 = vpop.f32.mrb[0].mxu0
      %1302 = vmatprep.mubr.bf16.mxu0 0
      %1303 = vmatmul.mubr.bf16.gmra.mrb[0].mxu0 %v832
      %v1304 = vpop.f32.mrb[0].mxu0
      %v1305 = vadd.f32 %v353, %v1304
      %v1306 = vpop.f32.mrb[0].mxu0
      %v1307 = vpop.f32.mrb[0].mxu0
      %v1308 = vadd.f32 %v353, %v1307
      %v1309 = vpop.f32.mrb[0].mxu0
      %1310 = vmatprep.mubr.bf16.mxu0 0
      %1311 = vmatmul.mubr.bf16.gmra.mrb[0].mxu0 %v835
      %v1312 = vpop.f32.mrb[0].mxu0
      %v1313 = vadd.f32 %v353, %v1312
      %v1314 = vpop.f32.mrb[0].mxu0
      %v1315 = vpop.f32.mrb[0].mxu0
      %v1316 = vadd.f32 %v353, %v1315
      %v1317 = vpop.f32.mrb[0].mxu0
      %1318 = vmatprep.mubr.bf16.mxu0 0
      %1319 = vmatmul.mubr.bf16.gmra.mrb[0].mxu0 %v838
      %v1320 = vpop.f32.mrb[0].mxu0
      %v1321 = vadd.f32 %v353, %v1320
      %v1322 = vpop.f32.mrb[0].mxu0
      %v1323 = vpop.f32.mrb[0].mxu0
      %v1324 = vadd.f32 %v353, %v1323
      %v1325 = vpop.f32.mrb[0].mxu0
      %1326 = vmatprep.mubr.bf16.mxu0 0
      %1327 = vmatmul.mubr.bf16.gmra.mrb[0].mxu0 %v841
      %v1328 = vpop.f32.mrb[0].mxu0
      %v1329 = vadd.f32 %v353, %v1328
      %v1330 = vpop.f32.mrb[0].mxu0
      %v1331 = vpop.f32.mrb[0].mxu0
      %v1332 = vadd.f32 %v353, %v1331
      %v1333 = vpop.f32.mrb[0].mxu0
      %1334 = vmatprep.mubr.bf16.mxu0 0
      %1335 = vmatmul.mubr.bf16.gmra.mrb[0].mxu0 %v844
      %v1336 = vpop.f32.mrb[0].mxu0
      %v1337 = vadd.f32 %v353, %v1336
      %v1338 = vpop.f32.mrb[0].mxu0
      %v1339 = vpop.f32.mrb[0].mxu0
      %v1340 = vadd.f32 %v353, %v1339
      %v1341 = vpop.f32.mrb[0].mxu0
      %1342 = vmatprep.mubr.bf16.mxu0 0
      %1343 = vmatmul.mubr.bf16.gmra.mrb[0].mxu0 %v847
      %v1344 = vpop.f32.mrb[0].mxu0
      %v1345 = vadd.f32 %v353, %v1344
      %v1346 = vpop.f32.mrb[0].mxu0
      %v1347 = vpop.f32.mrb[0].mxu0
      %v1348 = vadd.f32 %v353, %v1347
      %v1349 = vpop.f32.mrb[0].mxu0
      %1350 = vmatprep.mubr.bf16.mxu0 0
      %1351 = vmatmul.mubr.bf16.gmra.mrb[0].mxu0 %v850
      %v1352 = vpop.f32.mrb[0].mxu0
      %v1353 = vadd.f32 %v353, %v1352
      %v1354 = vpop.f32.mrb[0].mxu0
      %v1355 = vpop.f32.mrb[0].mxu0
      %v1356 = vadd.f32 %v353, %v1355
      %v1357 = vpop.f32.mrb[0].mxu0
      %1358 = vmatprep.mubr.bf16.mxu0 0
      %1359 = vmatmul.mubr.bf16.gmra.mrb[0].mxu0 %v853
      %v1360 = vpop.f32.mrb[0].mxu0
      %v1361 = vadd.f32 %v353, %v1360
      %v1362 = vpop.f32.mrb[0].mxu0
      %v1363 = vpop.f32.mrb[0].mxu0
      %v1364 = vadd.f32 %v353, %v1363
      %v1365 = vpop.f32.mrb[0].mxu0
      %1366 = vmatprep.mubr.bf16.mxu0 0
      %1367 = vmatmul.mubr.bf16.gmra.mrb[0].mxu0 %v856
      %v1368 = vpop.f32.mrb[0].mxu0
      %v1369 = vadd.f32 %v353, %v1368
      %v1370 = vpop.f32.mrb[0].mxu0
      %v1371 = vpop.f32.mrb[0].mxu0
      %v1372 = vadd.f32 %v353, %v1371
      %v1373 = vpop.f32.mrb[0].mxu0
      %1374 = vmatprep.mubr.bf16.mxu0 0
      %1375 = vmatmul.mubr.bf16.gmra.mrb[0].mxu0 %v859
      %v1376 = vpop.f32.mrb[0].mxu0
      %v1377 = vadd.f32 %v353, %v1376
      %v1378 = vpop.f32.mrb[0].mxu0
      %v1379 = vpop.f32.mrb[0].mxu0
      %v1380 = vadd.f32 %v353, %v1379
      %v1381 = vpop.f32.mrb[0].mxu0
      %1382 = vmatprep.mubr.bf16.mxu0 0
      %1383 = vmatmul.mubr.bf16.gmra.mrb[0].mxu0 %v862
      %v1384 = vpop.f32.mrb[0].mxu0
      %v1385 = vadd.f32 %v353, %v1384
      %v1386 = vpop.f32.mrb[0].mxu0
      %v1387 = vpop.f32.mrb[0].mxu0
      %v1388 = vadd.f32 %v353, %v1387
      %v1389 = vpop.f32.mrb[0].mxu0
      %1390 = vmatprep.mubr.bf16.mxu0 0
      %1391 = vmatmul.mubr.bf16.gmra.mrb[0].mxu0 %v865
      %v1392 = vpop.f32.mrb[0].mxu0
      %v1393 = vadd.f32 %v353, %v1392
      %v1394 = vpop.f32.mrb[0].mxu0
      %v1395 = vpop.f32.mrb[0].mxu0
      %v1396 = vadd.f32 %v353, %v1395
      %v1397 = vpop.f32.mrb[0].mxu0
      %1398 = vmatprep.mubr.bf16.mxu0 0
      %1399 = vmatmul.mubr.bf16.gmra.mrb[0].mxu0 %v868
      %v1400 = vpop.f32.mrb[0].mxu0
      %v1401 = vadd.f32 %v353, %v1400
      %v1402 = vpop.f32.mrb[0].mxu0
      %v1403 = vpop.f32.mrb[0].mxu0
      %v1404 = vadd.f32 %v353, %v1403
      %v1405 = vpop.f32.mrb[0].mxu0
      %1406 = vmatprep.mubr.bf16.mxu0 0
      %1407 = vmatmul.mubr.bf16.gmra.mrb[0].mxu0 %v871
      %v1408 = vpop.f32.mrb[0].mxu0
      %v1409 = vadd.f32 %v353, %v1408
      %v1410 = vpop.f32.mrb[0].mxu0
      %v1411 = vpop.f32.mrb[0].mxu0
      %v1412 = vadd.f32 %v353, %v1411
      %v1413 = vpop.f32.mrb[0].mxu0
      %1414 = vmatprep.mubr.bf16.mxu0 0
      %1415 = vmatmul.mubr.bf16.gmra.mrb[0].mxu0 %v874
      %v1416 = vpop.f32.mrb[0].mxu0
      %v1417 = vadd.f32 %v353, %v1416
      %v1418 = vpop.f32.mrb[0].mxu0
      %v1419 = vpop.f32.mrb[0].mxu0
      %v1420 = vadd.f32 %v353, %v1419
      %v1421 = vpop.f32.mrb[0].mxu0
      %1422 = vmatprep.mubr.bf16.mxu0 0
      %1423 = vmatmul.mubr.bf16.gmra.mrb[0].mxu0 %v877
      %v1424 = vpop.f32.mrb[0].mxu0
      %v1425 = vadd.f32 %v353, %v1424
      %v1426 = vpop.f32.mrb[0].mxu0
      %v1427 = vpop.f32.mrb[0].mxu0
      %v1428 = vadd.f32 %v353, %v1427
      %v1429 = vpop.f32.mrb[0].mxu0
      %1430 = vdwg.mxu0
      %v1431 = vmax.f32 %v921, 0.0
      %v1432 = vmax.f32 %v924, 0.0
      %v1433 = vmax.f32 %v929, 0.0
      %v1434 = vmax.f32 %v932, 0.0
      %v1435 = vmax.f32 %v937, 0.0
      %v1436 = vmax.f32 %v940, 0.0
      %v1437 = vmax.f32 %v945, 0.0
      %v1438 = vmax.f32 %v948, 0.0
      %v1439 = vmax.f32 %v953, 0.0
      %v1440 = vmax.f32 %v956, 0.0
      %v1441 = vmax.f32 %v961, 0.0
      %v1442 = vmax.f32 %v964, 0.0
      %v1443 = vmax.f32 %v969, 0.0
      %v1444 = vmax.f32 %v972, 0.0
      %v1445 = vmax.f32 %v977, 0.0
      %v1446 = vmax.f32 %v980, 0.0
      %v1447 = vmax.f32 %v985, 0.0
      %v1448 = vmax.f32 %v988, 0.0
      %v1449 = vmax.f32 %v993, 0.0
      %v1450 = vmax.f32 %v996, 0.0
      %v1451 = vmax.f32 %v1001, 0.0
      %v1452 = vmax.f32 %v1004, 0.0
      %v1453 = vmax.f32 %v1009, 0.0
      %v1454 = vmax.f32 %v1012, 0.0
      %v1455 = vmax.f32 %v1017, 0.0
      %v1456 = vmax.f32 %v1020, 0.0
      %v1457 = vmax.f32 %v1025, 0.0
      %v1458 = vmax.f32 %v1028, 0.0
      %v1459 = vmax.f32 %v1033, 0.0
      %v1460 = vmax.f32 %v1036, 0.0
      %v1461 = vmax.f32 %v1041, 0.0
      %v1462 = vmax.f32 %v1044, 0.0
      %v1463 = vmax.f32 %v1049, 0.0
      %v1464 = vmax.f32 %v1052, 0.0
      %v1465 = vmax.f32 %v1057, 0.0
      %v1466 = vmax.f32 %v1060, 0.0
      %v1467 = vmax.f32 %v1065, 0.0
      %v1468 = vmax.f32 %v1068, 0.0
      %v1469 = vmax.f32 %v1073, 0.0
      %v1470 = vmax.f32 %v1076, 0.0
      %v1471 = vmax.f32 %v1081, 0.0
      %v1472 = vmax.f32 %v1084, 0.0
      %v1473 = vmax.f32 %v1089, 0.0
      %v1474 = vmax.f32 %v1092, 0.0
      %v1475 = vmax.f32 %v1097, 0.0
      %v1476 = vmax.f32 %v1100, 0.0
      %v1477 = vmax.f32 %v1105, 0.0
      %v1478 = vmax.f32 %v1108, 0.0
      %v1479 = vmax.f32 %v1113, 0.0
      %v1480 = vmax.f32 %v1116, 0.0
      %v1481 = vmax.f32 %v1121, 0.0
      %v1482 = vmax.f32 %v1124, 0.0
      %v1483 = vmax.f32 %v1129, 0.0
      %v1484 = vmax.f32 %v1132, 0.0
      %v1485 = vmax.f32 %v1137, 0.0
      %v1486 = vmax.f32 %v1140, 0.0
      %v1487 = vmax.f32 %v1145, 0.0
      %v1488 = vmax.f32 %v1148, 0.0
      %v1489 = vmax.f32 %v1153, 0.0
      %v1490 = vmax.f32 %v1156, 0.0
      %v1491 = vmax.f32 %v1161, 0.0
      %v1492 = vmax.f32 %v1164, 0.0
      %v1493 = vmax.f32 %v1169, 0.0
      %v1494 = vmax.f32 %v1172, 0.0
      %v1495 = vmax.f32 %v1177, 0.0
      %v1496 = vmax.f32 %v1180, 0.0
      %v1497 = vmax.f32 %v1185, 0.0
      %v1498 = vmax.f32 %v1188, 0.0
      %v1499 = vmax.f32 %v1193, 0.0
      %v1500 = vmax.f32 %v1196, 0.0
      %v1501 = vmax.f32 %v1201, 0.0
      %v1502 = vmax.f32 %v1204, 0.0
      %v1503 = vmax.f32 %v1209, 0.0
      %v1504 = vmax.f32 %v1212, 0.0
      %v1505 = vmax.f32 %v1217, 0.0
      %v1506 = vmax.f32 %v1220, 0.0
      %v1507 = vmax.f32 %v1225, 0.0
      %v1508 = vmax.f32 %v1228, 0.0
      %v1509 = vmax.f32 %v1233, 0.0
      %v1510 = vmax.f32 %v1236, 0.0
      %v1511 = vmax.f32 %v1241, 0.0
      %v1512 = vmax.f32 %v1244, 0.0
      %v1513 = vmax.f32 %v1249, 0.0
      %v1514 = vmax.f32 %v1252, 0.0
      %v1515 = vmax.f32 %v1257, 0.0
      %v1516 = vmax.f32 %v1260, 0.0
      %v1517 = vmax.f32 %v1265, 0.0
      %v1518 = vmax.f32 %v1268, 0.0
      %v1519 = vmax.f32 %v1273, 0.0
      %v1520 = vmax.f32 %v1276, 0.0
      %v1521 = vmax.f32 %v1281, 0.0
      %v1522 = vmax.f32 %v1284, 0.0
      %v1523 = vmax.f32 %v1289, 0.0
      %v1524 = vmax.f32 %v1292, 0.0
      %v1525 = vmax.f32 %v1297, 0.0
      %v1526 = vmax.f32 %v1300, 0.0
      %v1527 = vmax.f32 %v1305, 0.0
      %v1528 = vmax.f32 %v1308, 0.0
      %v1529 = vmax.f32 %v1313, 0.0
      %v1530 = vmax.f32 %v1316, 0.0
      %v1531 = vmax.f32 %v1321, 0.0
      %v1532 = vmax.f32 %v1324, 0.0
      %v1533 = vmax.f32 %v1329, 0.0
      %v1534 = vmax.f32 %v1332, 0.0
      %v1535 = vmax.f32 %v1337, 0.0
      %v1536 = vmax.f32 %v1340, 0.0
      %v1537 = vmax.f32 %v1345, 0.0
      %v1538 = vmax.f32 %v1348, 0.0
      %v1539 = vmax.f32 %v1353, 0.0
      %v1540 = vmax.f32 %v1356, 0.0
      %v1541 = vmax.f32 %v1361, 0.0
      %v1542 = vmax.f32 %v1364, 0.0
      %v1543 = vmax.f32 %v1369, 0.0
      %v1544 = vmax.f32 %v1372, 0.0
      %v1545 = vmax.f32 %v1377, 0.0
      %v1546 = vmax.f32 %v1380, 0.0
      %v1547 = vmax.f32 %v1385, 0.0
      %v1548 = vmax.f32 %v1388, 0.0
      %v1549 = vmax.f32 %v1393, 0.0
      %v1550 = vmax.f32 %v1396, 0.0
      %v1551 = vmax.f32 %v1401, 0.0
      %v1552 = vmax.f32 %v1404, 0.0
      %v1553 = vmax.f32 %v1409, 0.0
      %v1554 = vmax.f32 %v1412, 0.0
      %v1555 = vmax.f32 %v1417, 0.0
      %v1556 = vmax.f32 %v1420, 0.0
      %v1557 = vmax.f32 %v1425, 0.0
      %v1558 = vmax.f32 %v1428, 0.0
      %v1559 = vmax.f32 %v1431, %v1435
      %v1560 = vmax.f32 %v1432, %v1436
      %v1561 = vmax.f32 %v1433, %v1437
      %v1562 = vmax.f32 %v1434, %v1438
      %v1563 = vmax.f32 %v1439, %v1443
      %v1564 = vmax.f32 %v1440, %v1444
      %v1565 = vmax.f32 %v1441, %v1445
      %v1566 = vmax.f32 %v1442, %v1446
      %v1567 = vmax.f32 %v1447, %v1451
      %v1568 = vmax.f32 %v1448, %v1452
      %v1569 = vmax.f32 %v1449, %v1453
      %v1570 = vmax.f32 %v1450, %v1454
      %v1571 = vmax.f32 %v1455, %v1459
      %v1572 = vmax.f32 %v1456, %v1460
      %v1573 = vmax.f32 %v1457, %v1461
      %v1574 = vmax.f32 %v1458, %v1462
      %v1575 = vmax.f32 %v1463, %v1467
      %v1576 = vmax.f32 %v1464, %v1468
      %v1577 = vmax.f32 %v1465, %v1469
      %v1578 = vmax.f32 %v1466, %v1470
      %v1579 = vmax.f32 %v1471, %v1475
      %v1580 = vmax.f32 %v1472, %v1476
      %v1581 = vmax.f32 %v1473, %v1477
      %v1582 = vmax.f32 %v1474, %v1478
      %v1583 = vmax.f32 %v1479, %v1483
      %v1584 = vmax.f32 %v1480, %v1484
      %v1585 = vmax.f32 %v1481, %v1485
      %v1586 = vmax.f32 %v1482, %v1486
      %v1587 = vmax.f32 %v1487, %v1491
      %v1588 = vmax.f32 %v1488, %v1492
      %v1589 = vmax.f32 %v1489, %v1493
      %v1590 = vmax.f32 %v1490, %v1494
      %v1591 = vmax.f32 %v1495, %v1499
      %v1592 = vmax.f32 %v1496, %v1500
      %v1593 = vmax.f32 %v1497, %v1501
      %v1594 = vmax.f32 %v1498, %v1502
      %v1595 = vmax.f32 %v1503, %v1507
      %v1596 = vmax.f32 %v1504, %v1508
      %v1597 = vmax.f32 %v1505, %v1509
      %v1598 = vmax.f32 %v1506, %v1510
      %v1599 = vmax.f32 %v1511, %v1515
      %v1600 = vmax.f32 %v1512, %v1516
      %v1601 = vmax.f32 %v1513, %v1517
      %v1602 = vmax.f32 %v1514, %v1518
      %v1603 = vmax.f32 %v1519, %v1523
      %v1604 = vmax.f32 %v1520, %v1524
      %v1605 = vmax.f32 %v1521, %v1525
      %v1606 = vmax.f32 %v1522, %v1526
      %v1607 = vmax.f32 %v1527, %v1531
      %v1608 = vmax.f32 %v1528, %v1532
      %v1609 = vmax.f32 %v1529, %v1533
      %v1610 = vmax.f32 %v1530, %v1534
      %v1611 = vmax.f32 %v1535, %v1539
      %v1612 = vmax.f32 %v1536, %v1540
      %v1613 = vmax.f32 %v1537, %v1541
      %v1614 = vmax.f32 %v1538, %v1542
      %v1615 = vmax.f32 %v1543, %v1547
      %v1616 = vmax.f32 %v1544, %v1548
      %v1617 = vmax.f32 %v1545, %v1549
      %v1618 = vmax.f32 %v1546, %v1550
      %v1619 = vmax.f32 %v1551, %v1555
      %v1620 = vmax.f32 %v1552, %v1556
      %v1621 = vmax.f32 %v1553, %v1557
      %v1622 = vmax.f32 %v1554, %v1558
      %v1687 = vcombine.high %v1559, %v1559
      %v1689 = vunpack.c.l.s4 1983009808
      %v1690 = vunpack.c.0.s8 %v1689
      %v1691 = vlaneseq
      %v1692 = vshrl.u32 %v1691, 7
      %v1693 = vsub.s32 %v1690, %v1692
      %v1694 = vrot.slane %v1559, %v1693
      %v1696 = vunpack.c.l.s4 1983009808
      %v1697 = vunpack.c.0.s8 %v1696
      %v1698 = vlaneseq
      %v1699 = vshrl.u32 %v1698, 7
      %v1700 = vsub.s32 %v1697, %v1699
      %v1701 = vrot.slane %v1687, %v1700
      %v1702 = vcombine.high %v1694, %v1694
      %v1703 = vcombine.high %v1701, %v1701
      %v1704 = vcombine.high %v1560, %v1560
      %v1706 = vunpack.c.l.s4 1983009808
      %v1707 = vunpack.c.0.s8 %v1706
      %v1708 = vlaneseq
      %v1709 = vshrl.u32 %v1708, 7
      %v1710 = vsub.s32 %v1707, %v1709
      %v1711 = vrot.slane %v1560, %v1710
      %v1713 = vunpack.c.l.s4 1983009808
      %v1714 = vunpack.c.0.s8 %v1713
      %v1715 = vlaneseq
      %v1716 = vshrl.u32 %v1715, 7
      %v1717 = vsub.s32 %v1714, %v1716
      %v1718 = vrot.slane %v1704, %v1717
      %v1719 = vcombine.high %v1711, %v1711
      %v1720 = vcombine.high %v1718, %v1718
      %v1721 = vcombine.high %v1561, %v1561
      %v1723 = vunpack.c.l.s4 1983009808
      %v1724 = vunpack.c.0.s8 %v1723
      %v1725 = vlaneseq
      %v1726 = vshrl.u32 %v1725, 7
      %v1727 = vsub.s32 %v1724, %v1726
      %v1728 = vrot.slane %v1561, %v1727
      %v1730 = vunpack.c.l.s4 1983009808
      %v1731 = vunpack.c.0.s8 %v1730
      %v1732 = vlaneseq
      %v1733 = vshrl.u32 %v1732, 7
      %v1734 = vsub.s32 %v1731, %v1733
      %v1735 = vrot.slane %v1721, %v1734
      %v1736 = vcombine.high %v1728, %v1728
      %v1737 = vcombine.high %v1735, %v1735
      %v1738 = vcombine.high %v1562, %v1562
      %v1740 = vunpack.c.l.s4 1983009808
      %v1741 = vunpack.c.0.s8 %v1740
      %v1742 = vlaneseq
      %v1743 = vshrl.u32 %v1742, 7
      %v1744 = vsub.s32 %v1741, %v1743
      %v1745 = vrot.slane %v1562, %v1744
      %v1747 = vunpack.c.l.s4 1983009808
      %v1748 = vunpack.c.0.s8 %v1747
      %v1749 = vlaneseq
      %v1750 = vshrl.u32 %v1749, 7
      %v1751 = vsub.s32 %v1748, %v1750
      %v1752 = vrot.slane %v1738, %v1751
      %v1753 = vcombine.high %v1745, %v1745
      %v1754 = vcombine.high %v1752, %v1752
      %v1755 = vcombine.high %v1563, %v1563
      %v1757 = vunpack.c.l.s4 1983009808
      %v1758 = vunpack.c.0.s8 %v1757
      %v1759 = vlaneseq
      %v1760 = vshrl.u32 %v1759, 7
      %v1761 = vsub.s32 %v1758, %v1760
      %v1762 = vrot.slane %v1563, %v1761
      %v1764 = vunpack.c.l.s4 1983009808
      %v1765 = vunpack.c.0.s8 %v1764
      %v1766 = vlaneseq
      %v1767 = vshrl.u32 %v1766, 7
      %v1768 = vsub.s32 %v1765, %v1767
      %v1769 = vrot.slane %v1755, %v1768
      %v1770 = vcombine.high %v1762, %v1762
      %v1771 = vcombine.high %v1769, %v1769
      %v1772 = vcombine.high %v1564, %v1564
      %v1774 = vunpack.c.l.s4 1983009808
      %v1775 = vunpack.c.0.s8 %v1774
      %v1776 = vlaneseq
      %v1777 = vshrl.u32 %v1776, 7
      %v1778 = vsub.s32 %v1775, %v1777
      %v1779 = vrot.slane %v1564, %v1778
      %v1781 = vunpack.c.l.s4 1983009808
      %v1782 = vunpack.c.0.s8 %v1781
      %v1783 = vlaneseq
      %v1784 = vshrl.u32 %v1783, 7
      %v1785 = vsub.s32 %v1782, %v1784
      %v1786 = vrot.slane %v1772, %v1785
      %v1787 = vcombine.high %v1779, %v1779
      %v1788 = vcombine.high %v1786, %v1786
      %v1789 = vcombine.high %v1565, %v1565
      %v1791 = vunpack.c.l.s4 1983009808
      %v1792 = vunpack.c.0.s8 %v1791
      %v1793 = vlaneseq
      %v1794 = vshrl.u32 %v1793, 7
      %v1795 = vsub.s32 %v1792, %v1794
      %v1796 = vrot.slane %v1565, %v1795
      %v1798 = vunpack.c.l.s4 1983009808
      %v1799 = vunpack.c.0.s8 %v1798
      %v1800 = vlaneseq
      %v1801 = vshrl.u32 %v1800, 7
      %v1802 = vsub.s32 %v1799, %v1801
      %v1803 = vrot.slane %v1789, %v1802
      %v1804 = vcombine.high %v1796, %v1796
      %v1805 = vcombine.high %v1803, %v1803
      %v1806 = vcombine.high %v1566, %v1566
      %v1808 = vunpack.c.l.s4 1983009808
      %v1809 = vunpack.c.0.s8 %v1808
      %v1810 = vlaneseq
      %v1811 = vshrl.u32 %v1810, 7
      %v1812 = vsub.s32 %v1809, %v1811
      %v1813 = vrot.slane %v1566, %v1812
      %v1815 = vunpack.c.l.s4 1983009808
      %v1816 = vunpack.c.0.s8 %v1815
      %v1817 = vlaneseq
      %v1818 = vshrl.u32 %v1817, 7
      %v1819 = vsub.s32 %v1816, %v1818
      %v1820 = vrot.slane %v1806, %v1819
      %v1821 = vcombine.high %v1813, %v1813
      %v1822 = vcombine.high %v1820, %v1820
      %v1823 = vcombine.high %v1567, %v1567
      %v1825 = vunpack.c.l.s4 1983009808
      %v1826 = vunpack.c.0.s8 %v1825
      %v1827 = vlaneseq
      %v1828 = vshrl.u32 %v1827, 7
      %v1829 = vsub.s32 %v1826, %v1828
      %v1830 = vrot.slane %v1567, %v1829
      %v1832 = vunpack.c.l.s4 1983009808
      %v1833 = vunpack.c.0.s8 %v1832
      %v1834 = vlaneseq
      %v1835 = vshrl.u32 %v1834, 7
      %v1836 = vsub.s32 %v1833, %v1835
      %v1837 = vrot.slane %v1823, %v1836
      %v1838 = vcombine.high %v1830, %v1830
      %v1839 = vcombine.high %v1837, %v1837
      %v1840 = vcombine.high %v1568, %v1568
      %v1842 = vunpack.c.l.s4 1983009808
      %v1843 = vunpack.c.0.s8 %v1842
      %v1844 = vlaneseq
      %v1845 = vshrl.u32 %v1844, 7
      %v1846 = vsub.s32 %v1843, %v1845
      %v1847 = vrot.slane %v1568, %v1846
      %v1849 = vunpack.c.l.s4 1983009808
      %v1850 = vunpack.c.0.s8 %v1849
      %v1851 = vlaneseq
      %v1852 = vshrl.u32 %v1851, 7
      %v1853 = vsub.s32 %v1850, %v1852
      %v1854 = vrot.slane %v1840, %v1853
      %v1855 = vcombine.high %v1847, %v1847
      %v1856 = vcombine.high %v1854, %v1854
      %v1857 = vcombine.high %v1569, %v1569
      %v1859 = vunpack.c.l.s4 1983009808
      %v1860 = vunpack.c.0.s8 %v1859
      %v1861 = vlaneseq
      %v1862 = vshrl.u32 %v1861, 7
      %v1863 = vsub.s32 %v1860, %v1862
      %v1864 = vrot.slane %v1569, %v1863
      %v1866 = vunpack.c.l.s4 1983009808
      %v1867 = vunpack.c.0.s8 %v1866
      %v1868 = vlaneseq
      %v1869 = vshrl.u32 %v1868, 7
      %v1870 = vsub.s32 %v1867, %v1869
      %v1871 = vrot.slane %v1857, %v1870
      %v1872 = vcombine.high %v1864, %v1864
      %v1873 = vcombine.high %v1871, %v1871
      %v1874 = vcombine.high %v1570, %v1570
      %v1876 = vunpack.c.l.s4 1983009808
      %v1877 = vunpack.c.0.s8 %v1876
      %v1878 = vlaneseq
      %v1879 = vshrl.u32 %v1878, 7
      %v1880 = vsub.s32 %v1877, %v1879
      %v1881 = vrot.slane %v1570, %v1880
      %v1883 = vunpack.c.l.s4 1983009808
      %v1884 = vunpack.c.0.s8 %v1883
      %v1885 = vlaneseq
      %v1886 = vshrl.u32 %v1885, 7
      %v1887 = vsub.s32 %v1884, %v1886
      %v1888 = vrot.slane %v1874, %v1887
      %v1889 = vcombine.high %v1881, %v1881
      %v1890 = vcombine.high %v1888, %v1888
      %v1891 = vcombine.high %v1571, %v1571
      %v1893 = vunpack.c.l.s4 1983009808
      %v1894 = vunpack.c.0.s8 %v1893
      %v1895 = vlaneseq
      %v1896 = vshrl.u32 %v1895, 7
      %v1897 = vsub.s32 %v1894, %v1896
      %v1898 = vrot.slane %v1571, %v1897
      %v1900 = vunpack.c.l.s4 1983009808
      %v1901 = vunpack.c.0.s8 %v1900
      %v1902 = vlaneseq
      %v1903 = vshrl.u32 %v1902, 7
      %v1904 = vsub.s32 %v1901, %v1903
      %v1905 = vrot.slane %v1891, %v1904
      %v1906 = vcombine.high %v1898, %v1898
      %v1907 = vcombine.high %v1905, %v1905
      %v1908 = vcombine.high %v1572, %v1572
      %v1910 = vunpack.c.l.s4 1983009808
      %v1911 = vunpack.c.0.s8 %v1910
      %v1912 = vlaneseq
      %v1913 = vshrl.u32 %v1912, 7
      %v1914 = vsub.s32 %v1911, %v1913
      %v1915 = vrot.slane %v1572, %v1914
      %v1917 = vunpack.c.l.s4 1983009808
      %v1918 = vunpack.c.0.s8 %v1917
      %v1919 = vlaneseq
      %v1920 = vshrl.u32 %v1919, 7
      %v1921 = vsub.s32 %v1918, %v1920
      %v1922 = vrot.slane %v1908, %v1921
      %v1923 = vcombine.high %v1915, %v1915
      %v1924 = vcombine.high %v1922, %v1922
      %v1925 = vcombine.high %v1573, %v1573
      %v1927 = vunpack.c.l.s4 1983009808
      %v1928 = vunpack.c.0.s8 %v1927
      %v1929 = vlaneseq
      %v1930 = vshrl.u32 %v1929, 7
      %v1931 = vsub.s32 %v1928, %v1930
      %v1932 = vrot.slane %v1573, %v1931
      %v1934 = vunpack.c.l.s4 1983009808
      %v1935 = vunpack.c.0.s8 %v1934
      %v1936 = vlaneseq
      %v1937 = vshrl.u32 %v1936, 7
      %v1938 = vsub.s32 %v1935, %v1937
      %v1939 = vrot.slane %v1925, %v1938
      %v1940 = vcombine.high %v1932, %v1932
      %v1941 = vcombine.high %v1939, %v1939
      %v1942 = vcombine.high %v1574, %v1574
      %v1944 = vunpack.c.l.s4 1983009808
      %v1945 = vunpack.c.0.s8 %v1944
      %v1946 = vlaneseq
      %v1947 = vshrl.u32 %v1946, 7
      %v1948 = vsub.s32 %v1945, %v1947
      %v1949 = vrot.slane %v1574, %v1948
      %v1951 = vunpack.c.l.s4 1983009808
      %v1952 = vunpack.c.0.s8 %v1951
      %v1953 = vlaneseq
      %v1954 = vshrl.u32 %v1953, 7
      %v1955 = vsub.s32 %v1952, %v1954
      %v1956 = vrot.slane %v1942, %v1955
      %v1957 = vcombine.high %v1949, %v1949
      %v1958 = vcombine.high %v1956, %v1956
      %v1959 = vcombine.high %v1575, %v1575
      %v1961 = vunpack.c.l.s4 1983009808
      %v1962 = vunpack.c.0.s8 %v1961
      %v1963 = vlaneseq
      %v1964 = vshrl.u32 %v1963, 7
      %v1965 = vsub.s32 %v1962, %v1964
      %v1966 = vrot.slane %v1575, %v1965
      %v1968 = vunpack.c.l.s4 1983009808
      %v1969 = vunpack.c.0.s8 %v1968
      %v1970 = vlaneseq
      %v1971 = vshrl.u32 %v1970, 7
      %v1972 = vsub.s32 %v1969, %v1971
      %v1973 = vrot.slane %v1959, %v1972
      %v1974 = vcombine.high %v1966, %v1966
      %v1975 = vcombine.high %v1973, %v1973
      %v1976 = vcombine.high %v1576, %v1576
      %v1978 = vunpack.c.l.s4 1983009808
      %v1979 = vunpack.c.0.s8 %v1978
      %v1980 = vlaneseq
      %v1981 = vshrl.u32 %v1980, 7
      %v1982 = vsub.s32 %v1979, %v1981
      %v1983 = vrot.slane %v1576, %v1982
      %v1985 = vunpack.c.l.s4 1983009808
      %v1986 = vunpack.c.0.s8 %v1985
      %v1987 = vlaneseq
      %v1988 = vshrl.u32 %v1987, 7
      %v1989 = vsub.s32 %v1986, %v1988
      %v1990 = vrot.slane %v1976, %v1989
      %v1991 = vcombine.high %v1983, %v1983
      %v1992 = vcombine.high %v1990, %v1990
      %v1993 = vcombine.high %v1577, %v1577
      %v1995 = vunpack.c.l.s4 1983009808
      %v1996 = vunpack.c.0.s8 %v1995
      %v1997 = vlaneseq
      %v1998 = vshrl.u32 %v1997, 7
      %v1999 = vsub.s32 %v1996, %v1998
      %v2000 = vrot.slane %v1577, %v1999
      %v2002 = vunpack.c.l.s4 1983009808
      %v2003 = vunpack.c.0.s8 %v2002
      %v2004 = vlaneseq
      %v2005 = vshrl.u32 %v2004, 7
      %v2006 = vsub.s32 %v2003, %v2005
      %v2007 = vrot.slane %v1993, %v2006
      %v2008 = vcombine.high %v2000, %v2000
      %v2009 = vcombine.high %v2007, %v2007
      %v2010 = vcombine.high %v1578, %v1578
      %v2012 = vunpack.c.l.s4 1983009808
      %v2013 = vunpack.c.0.s8 %v2012
      %v2014 = vlaneseq
      %v2015 = vshrl.u32 %v2014, 7
      %v2016 = vsub.s32 %v2013, %v2015
      %v2017 = vrot.slane %v1578, %v2016
      %v2019 = vunpack.c.l.s4 1983009808
      %v2020 = vunpack.c.0.s8 %v2019
      %v2021 = vlaneseq
      %v2022 = vshrl.u32 %v2021, 7
      %v2023 = vsub.s32 %v2020, %v2022
      %v2024 = vrot.slane %v2010, %v2023
      %v2025 = vcombine.high %v2017, %v2017
      %v2026 = vcombine.high %v2024, %v2024
      %v2027 = vcombine.high %v1579, %v1579
      %v2029 = vunpack.c.l.s4 1983009808
      %v2030 = vunpack.c.0.s8 %v2029
      %v2031 = vlaneseq
      %v2032 = vshrl.u32 %v2031, 7
      %v2033 = vsub.s32 %v2030, %v2032
      %v2034 = vrot.slane %v1579, %v2033
      %v2036 = vunpack.c.l.s4 1983009808
      %v2037 = vunpack.c.0.s8 %v2036
      %v2038 = vlaneseq
      %v2039 = vshrl.u32 %v2038, 7
      %v2040 = vsub.s32 %v2037, %v2039
      %v2041 = vrot.slane %v2027, %v2040
      %v2042 = vcombine.high %v2034, %v2034
      %v2043 = vcombine.high %v2041, %v2041
      %v2044 = vcombine.high %v1580, %v1580
      %v2046 = vunpack.c.l.s4 1983009808
      %v2047 = vunpack.c.0.s8 %v2046
      %v2048 = vlaneseq
      %v2049 = vshrl.u32 %v2048, 7
      %v2050 = vsub.s32 %v2047, %v2049
      %v2051 = vrot.slane %v1580, %v2050
      %v2053 = vunpack.c.l.s4 1983009808
      %v2054 = vunpack.c.0.s8 %v2053
      %v2055 = vlaneseq
      %v2056 = vshrl.u32 %v2055, 7
      %v2057 = vsub.s32 %v2054, %v2056
      %v2058 = vrot.slane %v2044, %v2057
      %v2059 = vcombine.high %v2051, %v2051
      %v2060 = vcombine.high %v2058, %v2058
      %v2061 = vcombine.high %v1581, %v1581
      %v2063 = vunpack.c.l.s4 1983009808
      %v2064 = vunpack.c.0.s8 %v2063
      %v2065 = vlaneseq
      %v2066 = vshrl.u32 %v2065, 7
      %v2067 = vsub.s32 %v2064, %v2066
      %v2068 = vrot.slane %v1581, %v2067
      %v2070 = vunpack.c.l.s4 1983009808
      %v2071 = vunpack.c.0.s8 %v2070
      %v2072 = vlaneseq
      %v2073 = vshrl.u32 %v2072, 7
      %v2074 = vsub.s32 %v2071, %v2073
      %v2075 = vrot.slane %v2061, %v2074
      %v2076 = vcombine.high %v2068, %v2068
      %v2077 = vcombine.high %v2075, %v2075
      %v2078 = vcombine.high %v1582, %v1582
      %v2080 = vunpack.c.l.s4 1983009808
      %v2081 = vunpack.c.0.s8 %v2080
      %v2082 = vlaneseq
      %v2083 = vshrl.u32 %v2082, 7
      %v2084 = vsub.s32 %v2081, %v2083
      %v2085 = vrot.slane %v1582, %v2084
      %v2087 = vunpack.c.l.s4 1983009808
      %v2088 = vunpack.c.0.s8 %v2087
      %v2089 = vlaneseq
      %v2090 = vshrl.u32 %v2089, 7
      %v2091 = vsub.s32 %v2088, %v2090
      %v2092 = vrot.slane %v2078, %v2091
      %v2093 = vcombine.high %v2085, %v2085
      %v2094 = vcombine.high %v2092, %v2092
      %v2095 = vcombine.high %v1583, %v1583
      %v2097 = vunpack.c.l.s4 1983009808
      %v2098 = vunpack.c.0.s8 %v2097
      %v2099 = vlaneseq
      %v2100 = vshrl.u32 %v2099, 7
      %v2101 = vsub.s32 %v2098, %v2100
      %v2102 = vrot.slane %v1583, %v2101
      %v2104 = vunpack.c.l.s4 1983009808
      %v2105 = vunpack.c.0.s8 %v2104
      %v2106 = vlaneseq
      %v2107 = vshrl.u32 %v2106, 7
      %v2108 = vsub.s32 %v2105, %v2107
      %v2109 = vrot.slane %v2095, %v2108
      %v2110 = vcombine.high %v2102, %v2102
      %v2111 = vcombine.high %v2109, %v2109
      %v2112 = vcombine.high %v1584, %v1584
      %v2114 = vunpack.c.l.s4 1983009808
      %v2115 = vunpack.c.0.s8 %v2114
      %v2116 = vlaneseq
      %v2117 = vshrl.u32 %v2116, 7
      %v2118 = vsub.s32 %v2115, %v2117
      %v2119 = vrot.slane %v1584, %v2118
      %v2121 = vunpack.c.l.s4 1983009808
      %v2122 = vunpack.c.0.s8 %v2121
      %v2123 = vlaneseq
      %v2124 = vshrl.u32 %v2123, 7
      %v2125 = vsub.s32 %v2122, %v2124
      %v2126 = vrot.slane %v2112, %v2125
      %v2127 = vcombine.high %v2119, %v2119
      %v2128 = vcombine.high %v2126, %v2126
      %v2129 = vcombine.high %v1585, %v1585
      %v2131 = vunpack.c.l.s4 1983009808
      %v2132 = vunpack.c.0.s8 %v2131
      %v2133 = vlaneseq
      %v2134 = vshrl.u32 %v2133, 7
      %v2135 = vsub.s32 %v2132, %v2134
      %v2136 = vrot.slane %v1585, %v2135
      %v2138 = vunpack.c.l.s4 1983009808
      %v2139 = vunpack.c.0.s8 %v2138
      %v2140 = vlaneseq
      %v2141 = vshrl.u32 %v2140, 7
      %v2142 = vsub.s32 %v2139, %v2141
      %v2143 = vrot.slane %v2129, %v2142
      %v2144 = vcombine.high %v2136, %v2136
      %v2145 = vcombine.high %v2143, %v2143
      %v2146 = vcombine.high %v1586, %v1586
      %v2148 = vunpack.c.l.s4 1983009808
      %v2149 = vunpack.c.0.s8 %v2148
      %v2150 = vlaneseq
      %v2151 = vshrl.u32 %v2150, 7
      %v2152 = vsub.s32 %v2149, %v2151
      %v2153 = vrot.slane %v1586, %v2152
      %v2155 = vunpack.c.l.s4 1983009808
      %v2156 = vunpack.c.0.s8 %v2155
      %v2157 = vlaneseq
      %v2158 = vshrl.u32 %v2157, 7
      %v2159 = vsub.s32 %v2156, %v2158
      %v2160 = vrot.slane %v2146, %v2159
      %v2161 = vcombine.high %v2153, %v2153
      %v2162 = vcombine.high %v2160, %v2160
      %v2163 = vcombine.high %v1587, %v1587
      %v2165 = vunpack.c.l.s4 1983009808
      %v2166 = vunpack.c.0.s8 %v2165
      %v2167 = vlaneseq
      %v2168 = vshrl.u32 %v2167, 7
      %v2169 = vsub.s32 %v2166, %v2168
      %v2170 = vrot.slane %v1587, %v2169
      %v2172 = vunpack.c.l.s4 1983009808
      %v2173 = vunpack.c.0.s8 %v2172
      %v2174 = vlaneseq
      %v2175 = vshrl.u32 %v2174, 7
      %v2176 = vsub.s32 %v2173, %v2175
      %v2177 = vrot.slane %v2163, %v2176
      %v2178 = vcombine.high %v2170, %v2170
      %v2179 = vcombine.high %v2177, %v2177
      %v2180 = vcombine.high %v1588, %v1588
      %v2182 = vunpack.c.l.s4 1983009808
      %v2183 = vunpack.c.0.s8 %v2182
      %v2184 = vlaneseq
      %v2185 = vshrl.u32 %v2184, 7
      %v2186 = vsub.s32 %v2183, %v2185
      %v2187 = vrot.slane %v1588, %v2186
      %v2189 = vunpack.c.l.s4 1983009808
      %v2190 = vunpack.c.0.s8 %v2189
      %v2191 = vlaneseq
      %v2192 = vshrl.u32 %v2191, 7
      %v2193 = vsub.s32 %v2190, %v2192
      %v2194 = vrot.slane %v2180, %v2193
      %v2195 = vcombine.high %v2187, %v2187
      %v2196 = vcombine.high %v2194, %v2194
      %v2197 = vcombine.high %v1589, %v1589
      %v2199 = vunpack.c.l.s4 1983009808
      %v2200 = vunpack.c.0.s8 %v2199
      %v2201 = vlaneseq
      %v2202 = vshrl.u32 %v2201, 7
      %v2203 = vsub.s32 %v2200, %v2202
      %v2204 = vrot.slane %v1589, %v2203
      %v2206 = vunpack.c.l.s4 1983009808
      %v2207 = vunpack.c.0.s8 %v2206
      %v2208 = vlaneseq
      %v2209 = vshrl.u32 %v2208, 7
      %v2210 = vsub.s32 %v2207, %v2209
      %v2211 = vrot.slane %v2197, %v2210
      %v2212 = vcombine.high %v2204, %v2204
      %v2213 = vcombine.high %v2211, %v2211
      %v2214 = vcombine.high %v1590, %v1590
      %v2216 = vunpack.c.l.s4 1983009808
      %v2217 = vunpack.c.0.s8 %v2216
      %v2218 = vlaneseq
      %v2219 = vshrl.u32 %v2218, 7
      %v2220 = vsub.s32 %v2217, %v2219
      %v2221 = vrot.slane %v1590, %v2220
      %v2223 = vunpack.c.l.s4 1983009808
      %v2224 = vunpack.c.0.s8 %v2223
      %v2225 = vlaneseq
      %v2226 = vshrl.u32 %v2225, 7
      %v2227 = vsub.s32 %v2224, %v2226
      %v2228 = vrot.slane %v2214, %v2227
      %v2229 = vcombine.high %v2221, %v2221
      %v2230 = vcombine.high %v2228, %v2228
      %v2231 = vcombine.high %v1591, %v1591
      %v2233 = vunpack.c.l.s4 1983009808
      %v2234 = vunpack.c.0.s8 %v2233
      %v2235 = vlaneseq
      %v2236 = vshrl.u32 %v2235, 7
      %v2237 = vsub.s32 %v2234, %v2236
      %v2238 = vrot.slane %v1591, %v2237
      %v2240 = vunpack.c.l.s4 1983009808
      %v2241 = vunpack.c.0.s8 %v2240
      %v2242 = vlaneseq
      %v2243 = vshrl.u32 %v2242, 7
      %v2244 = vsub.s32 %v2241, %v2243
      %v2245 = vrot.slane %v2231, %v2244
      %v2246 = vcombine.high %v2238, %v2238
      %v2247 = vcombine.high %v2245, %v2245
      %v2248 = vcombine.high %v1592, %v1592
      %v2250 = vunpack.c.l.s4 1983009808
      %v2251 = vunpack.c.0.s8 %v2250
      %v2252 = vlaneseq
      %v2253 = vshrl.u32 %v2252, 7
      %v2254 = vsub.s32 %v2251, %v2253
      %v2255 = vrot.slane %v1592, %v2254
      %v2257 = vunpack.c.l.s4 1983009808
      %v2258 = vunpack.c.0.s8 %v2257
      %v2259 = vlaneseq
      %v2260 = vshrl.u32 %v2259, 7
      %v2261 = vsub.s32 %v2258, %v2260
      %v2262 = vrot.slane %v2248, %v2261
      %v2263 = vcombine.high %v2255, %v2255
      %v2264 = vcombine.high %v2262, %v2262
      %v2265 = vcombine.high %v1593, %v1593
      %v2267 = vunpack.c.l.s4 1983009808
      %v2268 = vunpack.c.0.s8 %v2267
      %v2269 = vlaneseq
      %v2270 = vshrl.u32 %v2269, 7
      %v2271 = vsub.s32 %v2268, %v2270
      %v2272 = vrot.slane %v1593, %v2271
      %v2274 = vunpack.c.l.s4 1983009808
      %v2275 = vunpack.c.0.s8 %v2274
      %v2276 = vlaneseq
      %v2277 = vshrl.u32 %v2276, 7
      %v2278 = vsub.s32 %v2275, %v2277
      %v2279 = vrot.slane %v2265, %v2278
      %v2280 = vcombine.high %v2272, %v2272
      %v2281 = vcombine.high %v2279, %v2279
      %v2282 = vcombine.high %v1594, %v1594
      %v2284 = vunpack.c.l.s4 1983009808
      %v2285 = vunpack.c.0.s8 %v2284
      %v2286 = vlaneseq
      %v2287 = vshrl.u32 %v2286, 7
      %v2288 = vsub.s32 %v2285, %v2287
      %v2289 = vrot.slane %v1594, %v2288
      %v2291 = vunpack.c.l.s4 1983009808
      %v2292 = vunpack.c.0.s8 %v2291
      %v2293 = vlaneseq
      %v2294 = vshrl.u32 %v2293, 7
      %v2295 = vsub.s32 %v2292, %v2294
      %v2296 = vrot.slane %v2282, %v2295
      %v2297 = vcombine.high %v2289, %v2289
      %v2298 = vcombine.high %v2296, %v2296
      %v2299 = vcombine.high %v1595, %v1595
      %v2301 = vunpack.c.l.s4 1983009808
      %v2302 = vunpack.c.0.s8 %v2301
      %v2303 = vlaneseq
      %v2304 = vshrl.u32 %v2303, 7
      %v2305 = vsub.s32 %v2302, %v2304
      %v2306 = vrot.slane %v1595, %v2305
      %v2308 = vunpack.c.l.s4 1983009808
      %v2309 = vunpack.c.0.s8 %v2308
      %v2310 = vlaneseq
      %v2311 = vshrl.u32 %v2310, 7
      %v2312 = vsub.s32 %v2309, %v2311
      %v2313 = vrot.slane %v2299, %v2312
      %v2314 = vcombine.high %v2306, %v2306
      %v2315 = vcombine.high %v2313, %v2313
      %v2316 = vcombine.high %v1596, %v1596
      %v2318 = vunpack.c.l.s4 1983009808
      %v2319 = vunpack.c.0.s8 %v2318
      %v2320 = vlaneseq
      %v2321 = vshrl.u32 %v2320, 7
      %v2322 = vsub.s32 %v2319, %v2321
      %v2323 = vrot.slane %v1596, %v2322
      %v2325 = vunpack.c.l.s4 1983009808
      %v2326 = vunpack.c.0.s8 %v2325
      %v2327 = vlaneseq
      %v2328 = vshrl.u32 %v2327, 7
      %v2329 = vsub.s32 %v2326, %v2328
      %v2330 = vrot.slane %v2316, %v2329
      %v2331 = vcombine.high %v2323, %v2323
      %v2332 = vcombine.high %v2330, %v2330
      %v2333 = vcombine.high %v1597, %v1597
      %v2335 = vunpack.c.l.s4 1983009808
      %v2336 = vunpack.c.0.s8 %v2335
      %v2337 = vlaneseq
      %v2338 = vshrl.u32 %v2337, 7
      %v2339 = vsub.s32 %v2336, %v2338
      %v2340 = vrot.slane %v1597, %v2339
      %v2342 = vunpack.c.l.s4 1983009808
      %v2343 = vunpack.c.0.s8 %v2342
      %v2344 = vlaneseq
      %v2345 = vshrl.u32 %v2344, 7
      %v2346 = vsub.s32 %v2343, %v2345
      %v2347 = vrot.slane %v2333, %v2346
      %v2348 = vcombine.high %v2340, %v2340
      %v2349 = vcombine.high %v2347, %v2347
      %v2350 = vcombine.high %v1598, %v1598
      %v2352 = vunpack.c.l.s4 1983009808
      %v2353 = vunpack.c.0.s8 %v2352
      %v2354 = vlaneseq
      %v2355 = vshrl.u32 %v2354, 7
      %v2356 = vsub.s32 %v2353, %v2355
      %v2357 = vrot.slane %v1598, %v2356
      %v2359 = vunpack.c.l.s4 1983009808
      %v2360 = vunpack.c.0.s8 %v2359
      %v2361 = vlaneseq
      %v2362 = vshrl.u32 %v2361, 7
      %v2363 = vsub.s32 %v2360, %v2362
      %v2364 = vrot.slane %v2350, %v2363
      %v2365 = vcombine.high %v2357, %v2357
      %v2366 = vcombine.high %v2364, %v2364
      %v2367 = vcombine.high %v1599, %v1599
      %v2369 = vunpack.c.l.s4 1983009808
      %v2370 = vunpack.c.0.s8 %v2369
      %v2371 = vlaneseq
      %v2372 = vshrl.u32 %v2371, 7
      %v2373 = vsub.s32 %v2370, %v2372
      %v2374 = vrot.slane %v1599, %v2373
      %v2376 = vunpack.c.l.s4 1983009808
      %v2377 = vunpack.c.0.s8 %v2376
      %v2378 = vlaneseq
      %v2379 = vshrl.u32 %v2378, 7
      %v2380 = vsub.s32 %v2377, %v2379
      %v2381 = vrot.slane %v2367, %v2380
      %v2382 = vcombine.high %v2374, %v2374
      %v2383 = vcombine.high %v2381, %v2381
      %v2384 = vcombine.high %v1600, %v1600
      %v2386 = vunpack.c.l.s4 1983009808
      %v2387 = vunpack.c.0.s8 %v2386
      %v2388 = vlaneseq
      %v2389 = vshrl.u32 %v2388, 7
      %v2390 = vsub.s32 %v2387, %v2389
      %v2391 = vrot.slane %v1600, %v2390
      %v2393 = vunpack.c.l.s4 1983009808
      %v2394 = vunpack.c.0.s8 %v2393
      %v2395 = vlaneseq
      %v2396 = vshrl.u32 %v2395, 7
      %v2397 = vsub.s32 %v2394, %v2396
      %v2398 = vrot.slane %v2384, %v2397
      %v2399 = vcombine.high %v2391, %v2391
      %v2400 = vcombine.high %v2398, %v2398
      %v2401 = vcombine.high %v1601, %v1601
      %v2403 = vunpack.c.l.s4 1983009808
      %v2404 = vunpack.c.0.s8 %v2403
      %v2405 = vlaneseq
      %v2406 = vshrl.u32 %v2405, 7
      %v2407 = vsub.s32 %v2404, %v2406
      %v2408 = vrot.slane %v1601, %v2407
      %v2410 = vunpack.c.l.s4 1983009808
      %v2411 = vunpack.c.0.s8 %v2410
      %v2412 = vlaneseq
      %v2413 = vshrl.u32 %v2412, 7
      %v2414 = vsub.s32 %v2411, %v2413
      %v2415 = vrot.slane %v2401, %v2414
      %v2416 = vcombine.high %v2408, %v2408
      %v2417 = vcombine.high %v2415, %v2415
      %v2418 = vcombine.high %v1602, %v1602
      %v2420 = vunpack.c.l.s4 1983009808
      %v2421 = vunpack.c.0.s8 %v2420
      %v2422 = vlaneseq
      %v2423 = vshrl.u32 %v2422, 7
      %v2424 = vsub.s32 %v2421, %v2423
      %v2425 = vrot.slane %v1602, %v2424
      %v2427 = vunpack.c.l.s4 1983009808
      %v2428 = vunpack.c.0.s8 %v2427
      %v2429 = vlaneseq
      %v2430 = vshrl.u32 %v2429, 7
      %v2431 = vsub.s32 %v2428, %v2430
      %v2432 = vrot.slane %v2418, %v2431
      %v2433 = vcombine.high %v2425, %v2425
      %v2434 = vcombine.high %v2432, %v2432
      %v2435 = vcombine.high %v1603, %v1603
      %v2437 = vunpack.c.l.s4 1983009808
      %v2438 = vunpack.c.0.s8 %v2437
      %v2439 = vlaneseq
      %v2440 = vshrl.u32 %v2439, 7
      %v2441 = vsub.s32 %v2438, %v2440
      %v2442 = vrot.slane %v1603, %v2441
      %v2444 = vunpack.c.l.s4 1983009808
      %v2445 = vunpack.c.0.s8 %v2444
      %v2446 = vlaneseq
      %v2447 = vshrl.u32 %v2446, 7
      %v2448 = vsub.s32 %v2445, %v2447
      %v2449 = vrot.slane %v2435, %v2448
      %v2450 = vcombine.high %v2442, %v2442
      %v2451 = vcombine.high %v2449, %v2449
      %v2452 = vcombine.high %v1604, %v1604
      %v2454 = vunpack.c.l.s4 1983009808
      %v2455 = vunpack.c.0.s8 %v2454
      %v2456 = vlaneseq
      %v2457 = vshrl.u32 %v2456, 7
      %v2458 = vsub.s32 %v2455, %v2457
      %v2459 = vrot.slane %v1604, %v2458
      %v2461 = vunpack.c.l.s4 1983009808
      %v2462 = vunpack.c.0.s8 %v2461
      %v2463 = vlaneseq
      %v2464 = vshrl.u32 %v2463, 7
      %v2465 = vsub.s32 %v2462, %v2464
      %v2466 = vrot.slane %v2452, %v2465
      %v2467 = vcombine.high %v2459, %v2459
      %v2468 = vcombine.high %v2466, %v2466
      %v2469 = vcombine.high %v1605, %v1605
      %v2471 = vunpack.c.l.s4 1983009808
      %v2472 = vunpack.c.0.s8 %v2471
      %v2473 = vlaneseq
      %v2474 = vshrl.u32 %v2473, 7
      %v2475 = vsub.s32 %v2472, %v2474
      %v2476 = vrot.slane %v1605, %v2475
      %v2478 = vunpack.c.l.s4 1983009808
      %v2479 = vunpack.c.0.s8 %v2478
      %v2480 = vlaneseq
      %v2481 = vshrl.u32 %v2480, 7
      %v2482 = vsub.s32 %v2479, %v2481
      %v2483 = vrot.slane %v2469, %v2482
      %v2484 = vcombine.high %v2476, %v2476
      %v2485 = vcombine.high %v2483, %v2483
      %v2486 = vcombine.high %v1606, %v1606
      %v2488 = vunpack.c.l.s4 1983009808
      %v2489 = vunpack.c.0.s8 %v2488
      %v2490 = vlaneseq
      %v2491 = vshrl.u32 %v2490, 7
      %v2492 = vsub.s32 %v2489, %v2491
      %v2493 = vrot.slane %v1606, %v2492
      %v2495 = vunpack.c.l.s4 1983009808
      %v2496 = vunpack.c.0.s8 %v2495
      %v2497 = vlaneseq
      %v2498 = vshrl.u32 %v2497, 7
      %v2499 = vsub.s32 %v2496, %v2498
      %v2500 = vrot.slane %v2486, %v2499
      %v2501 = vcombine.high %v2493, %v2493
      %v2502 = vcombine.high %v2500, %v2500
      %v2503 = vcombine.high %v1607, %v1607
      %v2505 = vunpack.c.l.s4 1983009808
      %v2506 = vunpack.c.0.s8 %v2505
      %v2507 = vlaneseq
      %v2508 = vshrl.u32 %v2507, 7
      %v2509 = vsub.s32 %v2506, %v2508
      %v2510 = vrot.slane %v1607, %v2509
      %v2512 = vunpack.c.l.s4 1983009808
      %v2513 = vunpack.c.0.s8 %v2512
      %v2514 = vlaneseq
      %v2515 = vshrl.u32 %v2514, 7
      %v2516 = vsub.s32 %v2513, %v2515
      %v2517 = vrot.slane %v2503, %v2516
      %v2518 = vcombine.high %v2510, %v2510
      %v2519 = vcombine.high %v2517, %v2517
      %v2520 = vcombine.high %v1608, %v1608
      %v2522 = vunpack.c.l.s4 1983009808
      %v2523 = vunpack.c.0.s8 %v2522
      %v2524 = vlaneseq
      %v2525 = vshrl.u32 %v2524, 7
      %v2526 = vsub.s32 %v2523, %v2525
      %v2527 = vrot.slane %v1608, %v2526
      %v2529 = vunpack.c.l.s4 1983009808
      %v2530 = vunpack.c.0.s8 %v2529
      %v2531 = vlaneseq
      %v2532 = vshrl.u32 %v2531, 7
      %v2533 = vsub.s32 %v2530, %v2532
      %v2534 = vrot.slane %v2520, %v2533
      %v2535 = vcombine.high %v2527, %v2527
      %v2536 = vcombine.high %v2534, %v2534
      %v2537 = vcombine.high %v1609, %v1609
      %v2539 = vunpack.c.l.s4 1983009808
      %v2540 = vunpack.c.0.s8 %v2539
      %v2541 = vlaneseq
      %v2542 = vshrl.u32 %v2541, 7
      %v2543 = vsub.s32 %v2540, %v2542
      %v2544 = vrot.slane %v1609, %v2543
      %v2546 = vunpack.c.l.s4 1983009808
      %v2547 = vunpack.c.0.s8 %v2546
      %v2548 = vlaneseq
      %v2549 = vshrl.u32 %v2548, 7
      %v2550 = vsub.s32 %v2547, %v2549
      %v2551 = vrot.slane %v2537, %v2550
      %v2552 = vcombine.high %v2544, %v2544
      %v2553 = vcombine.high %v2551, %v2551
      %v2554 = vcombine.high %v1610, %v1610
      %v2556 = vunpack.c.l.s4 1983009808
      %v2557 = vunpack.c.0.s8 %v2556
      %v2558 = vlaneseq
      %v2559 = vshrl.u32 %v2558, 7
      %v2560 = vsub.s32 %v2557, %v2559
      %v2561 = vrot.slane %v1610, %v2560
      %v2563 = vunpack.c.l.s4 1983009808
      %v2564 = vunpack.c.0.s8 %v2563
      %v2565 = vlaneseq
      %v2566 = vshrl.u32 %v2565, 7
      %v2567 = vsub.s32 %v2564, %v2566
      %v2568 = vrot.slane %v2554, %v2567
      %v2569 = vcombine.high %v2561, %v2561
      %v2570 = vcombine.high %v2568, %v2568
      %v2571 = vcombine.high %v1611, %v1611
      %v2573 = vunpack.c.l.s4 1983009808
      %v2574 = vunpack.c.0.s8 %v2573
      %v2575 = vlaneseq
      %v2576 = vshrl.u32 %v2575, 7
      %v2577 = vsub.s32 %v2574, %v2576
      %v2578 = vrot.slane %v1611, %v2577
      %v2580 = vunpack.c.l.s4 1983009808
      %v2581 = vunpack.c.0.s8 %v2580
      %v2582 = vlaneseq
      %v2583 = vshrl.u32 %v2582, 7
      %v2584 = vsub.s32 %v2581, %v2583
      %v2585 = vrot.slane %v2571, %v2584
      %v2586 = vcombine.high %v2578, %v2578
      %v2587 = vcombine.high %v2585, %v2585
      %v2588 = vcombine.high %v1612, %v1612
      %v2590 = vunpack.c.l.s4 1983009808
      %v2591 = vunpack.c.0.s8 %v2590
      %v2592 = vlaneseq
      %v2593 = vshrl.u32 %v2592, 7
      %v2594 = vsub.s32 %v2591, %v2593
      %v2595 = vrot.slane %v1612, %v2594
      %v2597 = vunpack.c.l.s4 1983009808
      %v2598 = vunpack.c.0.s8 %v2597
      %v2599 = vlaneseq
      %v2600 = vshrl.u32 %v2599, 7
      %v2601 = vsub.s32 %v2598, %v2600
      %v2602 = vrot.slane %v2588, %v2601
      %v2603 = vcombine.high %v2595, %v2595
      %v2604 = vcombine.high %v2602, %v2602
      %v2605 = vcombine.high %v1613, %v1613
      %v2607 = vunpack.c.l.s4 1983009808
      %v2608 = vunpack.c.0.s8 %v2607
      %v2609 = vlaneseq
      %v2610 = vshrl.u32 %v2609, 7
      %v2611 = vsub.s32 %v2608, %v2610
      %v2612 = vrot.slane %v1613, %v2611
      %v2614 = vunpack.c.l.s4 1983009808
      %v2615 = vunpack.c.0.s8 %v2614
      %v2616 = vlaneseq
      %v2617 = vshrl.u32 %v2616, 7
      %v2618 = vsub.s32 %v2615, %v2617
      %v2619 = vrot.slane %v2605, %v2618
      %v2620 = vcombine.high %v2612, %v2612
      %v2621 = vcombine.high %v2619, %v2619
      %v2622 = vcombine.high %v1614, %v1614
      %v2624 = vunpack.c.l.s4 1983009808
      %v2625 = vunpack.c.0.s8 %v2624
      %v2626 = vlaneseq
      %v2627 = vshrl.u32 %v2626, 7
      %v2628 = vsub.s32 %v2625, %v2627
      %v2629 = vrot.slane %v1614, %v2628
      %v2631 = vunpack.c.l.s4 1983009808
      %v2632 = vunpack.c.0.s8 %v2631
      %v2633 = vlaneseq
      %v2634 = vshrl.u32 %v2633, 7
      %v2635 = vsub.s32 %v2632, %v2634
      %v2636 = vrot.slane %v2622, %v2635
      %v2637 = vcombine.high %v2629, %v2629
      %v2638 = vcombine.high %v2636, %v2636
      %v2639 = vcombine.high %v1615, %v1615
      %v2641 = vunpack.c.l.s4 1983009808
      %v2642 = vunpack.c.0.s8 %v2641
      %v2643 = vlaneseq
      %v2644 = vshrl.u32 %v2643, 7
      %v2645 = vsub.s32 %v2642, %v2644
      %v2646 = vrot.slane %v1615, %v2645
      %v2648 = vunpack.c.l.s4 1983009808
      %v2649 = vunpack.c.0.s8 %v2648
      %v2650 = vlaneseq
      %v2651 = vshrl.u32 %v2650, 7
      %v2652 = vsub.s32 %v2649, %v2651
      %v2653 = vrot.slane %v2639, %v2652
      %v2654 = vcombine.high %v2646, %v2646
      %v2655 = vcombine.high %v2653, %v2653
      %v2656 = vcombine.high %v1616, %v1616
      %v2658 = vunpack.c.l.s4 1983009808
      %v2659 = vunpack.c.0.s8 %v2658
      %v2660 = vlaneseq
      %v2661 = vshrl.u32 %v2660, 7
      %v2662 = vsub.s32 %v2659, %v2661
      %v2663 = vrot.slane %v1616, %v2662
      %v2665 = vunpack.c.l.s4 1983009808
      %v2666 = vunpack.c.0.s8 %v2665
      %v2667 = vlaneseq
      %v2668 = vshrl.u32 %v2667, 7
      %v2669 = vsub.s32 %v2666, %v2668
      %v2670 = vrot.slane %v2656, %v2669
      %v2671 = vcombine.high %v2663, %v2663
      %v2672 = vcombine.high %v2670, %v2670
      %v2673 = vcombine.high %v1617, %v1617
      %v2675 = vunpack.c.l.s4 1983009808
      %v2676 = vunpack.c.0.s8 %v2675
      %v2677 = vlaneseq
      %v2678 = vshrl.u32 %v2677, 7
      %v2679 = vsub.s32 %v2676, %v2678
      %v2680 = vrot.slane %v1617, %v2679
      %v2682 = vunpack.c.l.s4 1983009808
      %v2683 = vunpack.c.0.s8 %v2682
      %v2684 = vlaneseq
      %v2685 = vshrl.u32 %v2684, 7
      %v2686 = vsub.s32 %v2683, %v2685
      %v2687 = vrot.slane %v2673, %v2686
      %v2688 = vcombine.high %v2680, %v2680
      %v2689 = vcombine.high %v2687, %v2687
      %v2690 = vcombine.high %v1618, %v1618
      %v2692 = vunpack.c.l.s4 1983009808
      %v2693 = vunpack.c.0.s8 %v2692
      %v2694 = vlaneseq
      %v2695 = vshrl.u32 %v2694, 7
      %v2696 = vsub.s32 %v2693, %v2695
      %v2697 = vrot.slane %v1618, %v2696
      %v2699 = vunpack.c.l.s4 1983009808
      %v2700 = vunpack.c.0.s8 %v2699
      %v2701 = vlaneseq
      %v2702 = vshrl.u32 %v2701, 7
      %v2703 = vsub.s32 %v2700, %v2702
      %v2704 = vrot.slane %v2690, %v2703
      %v2705 = vcombine.high %v2697, %v2697
      %v2706 = vcombine.high %v2704, %v2704
      %v2707 = vcombine.high %v1619, %v1619
      %v2709 = vunpack.c.l.s4 1983009808
      %v2710 = vunpack.c.0.s8 %v2709
      %v2711 = vlaneseq
      %v2712 = vshrl.u32 %v2711, 7
      %v2713 = vsub.s32 %v2710, %v2712
      %v2714 = vrot.slane %v1619, %v2713
      %v2716 = vunpack.c.l.s4 1983009808
      %v2717 = vunpack.c.0.s8 %v2716
      %v2718 = vlaneseq
      %v2719 = vshrl.u32 %v2718, 7
      %v2720 = vsub.s32 %v2717, %v2719
      %v2721 = vrot.slane %v2707, %v2720
      %v2722 = vcombine.high %v2714, %v2714
      %v2723 = vcombine.high %v2721, %v2721
      %v2724 = vcombine.high %v1620, %v1620
      %v2726 = vunpack.c.l.s4 1983009808
      %v2727 = vunpack.c.0.s8 %v2726
      %v2728 = vlaneseq
      %v2729 = vshrl.u32 %v2728, 7
      %v2730 = vsub.s32 %v2727, %v2729
      %v2731 = vrot.slane %v1620, %v2730
      %v2733 = vunpack.c.l.s4 1983009808
      %v2734 = vunpack.c.0.s8 %v2733
      %v2735 = vlaneseq
      %v2736 = vshrl.u32 %v2735, 7
      %v2737 = vsub.s32 %v2734, %v2736
      %v2738 = vrot.slane %v2724, %v2737
      %v2739 = vcombine.high %v2731, %v2731
      %v2740 = vcombine.high %v2738, %v2738
      %v2741 = vcombine.high %v1621, %v1621
      %v2743 = vunpack.c.l.s4 1983009808
      %v2744 = vunpack.c.0.s8 %v2743
      %v2745 = vlaneseq
      %v2746 = vshrl.u32 %v2745, 7
      %v2747 = vsub.s32 %v2744, %v2746
      %v2748 = vrot.slane %v1621, %v2747
      %v2750 = vunpack.c.l.s4 1983009808
      %v2751 = vunpack.c.0.s8 %v2750
      %v2752 = vlaneseq
      %v2753 = vshrl.u32 %v2752, 7
      %v2754 = vsub.s32 %v2751, %v2753
      %v2755 = vrot.slane %v2741, %v2754
      %v2756 = vcombine.high %v2748, %v2748
      %v2757 = vcombine.high %v2755, %v2755
      %v2758 = vcombine.high %v1622, %v1622
      %v2760 = vunpack.c.l.s4 1983009808
      %v2761 = vunpack.c.0.s8 %v2760
      %v2762 = vlaneseq
      %v2763 = vshrl.u32 %v2762, 7
      %v2764 = vsub.s32 %v2761, %v2763
      %v2765 = vrot.slane %v1622, %v2764
      %v2767 = vunpack.c.l.s4 1983009808
      %v2768 = vunpack.c.0.s8 %v2767
      %v2769 = vlaneseq
      %v2770 = vshrl.u32 %v2769, 7
      %v2771 = vsub.s32 %v2768, %v2770
      %v2772 = vrot.slane %v2758, %v2771
      %v2773 = vcombine.high %v2765, %v2765
      %v2774 = vcombine.high %v2772, %v2772
      %vm3031 = vcmask 254976
      %v3032 = vsel %vm3031, %v1694, -inf
      %v3033 = vrot.slane %v3032, 4
      %v3034 = vmax.f32 %v3032, %v3033
      %v3035 = vrot.slane %v3034, 2
      %v3036 = vmax.f32 %v3034, %v3035
      %v3037 = vrot.slane %v3036, 1
      %v3038 = vmax.f32 %v3036, %v3037
      %v3039 = vsel %vm3031, %v1702, -inf
      %v3040 = vrot.slane %v3039, 4
      %v3041 = vmax.f32 %v3039, %v3040
      %v3042 = vrot.slane %v3041, 2
      %v3043 = vmax.f32 %v3041, %v3042
      %v3044 = vrot.slane %v3043, 1
      %v3045 = vmax.f32 %v3043, %v3044
      %v3046 = vsel %vm3031, %v1701, -inf
      %v3047 = vrot.slane %v3046, 4
      %v3048 = vmax.f32 %v3046, %v3047
      %v3049 = vrot.slane %v3048, 2
      %v3050 = vmax.f32 %v3048, %v3049
      %v3051 = vrot.slane %v3050, 1
      %v3052 = vmax.f32 %v3050, %v3051
      %v3053 = vsel %vm3031, %v1703, -inf
      %v3054 = vrot.slane %v3053, 4
      %v3055 = vmax.f32 %v3053, %v3054
      %v3056 = vrot.slane %v3055, 2
      %v3057 = vmax.f32 %v3055, %v3056
      %v3058 = vrot.slane %v3057, 1
      %v3059 = vmax.f32 %v3057, %v3058
      %v3060 = vsel %vm3031, %v1711, -inf
      %v3061 = vrot.slane %v3060, 4
      %v3062 = vmax.f32 %v3060, %v3061
      %v3063 = vrot.slane %v3062, 2
      %v3064 = vmax.f32 %v3062, %v3063
      %v3065 = vrot.slane %v3064, 1
      %v3066 = vmax.f32 %v3064, %v3065
      %v3067 = vsel %vm3031, %v1719, -inf
      %v3068 = vrot.slane %v3067, 4
      %v3069 = vmax.f32 %v3067, %v3068
      %v3070 = vrot.slane %v3069, 2
      %v3071 = vmax.f32 %v3069, %v3070
      %v3072 = vrot.slane %v3071, 1
      %v3073 = vmax.f32 %v3071, %v3072
      %v3074 = vsel %vm3031, %v1718, -inf
      %v3075 = vrot.slane %v3074, 4
      %v3076 = vmax.f32 %v3074, %v3075
      %v3077 = vrot.slane %v3076, 2
      %v3078 = vmax.f32 %v3076, %v3077
      %v3079 = vrot.slane %v3078, 1
      %v3080 = vmax.f32 %v3078, %v3079
      %v3081 = vsel %vm3031, %v1720, -inf
      %v3082 = vrot.slane %v3081, 4
      %v3083 = vmax.f32 %v3081, %v3082
      %v3084 = vrot.slane %v3083, 2
      %v3085 = vmax.f32 %v3083, %v3084
      %v3086 = vrot.slane %v3085, 1
      %v3087 = vmax.f32 %v3085, %v3086
      %v3088 = vsel %vm3031, %v1728, -inf
      %v3089 = vrot.slane %v3088, 4
      %v3090 = vmax.f32 %v3088, %v3089
      %v3091 = vrot.slane %v3090, 2
      %v3092 = vmax.f32 %v3090, %v3091
      %v3093 = vrot.slane %v3092, 1
      %v3094 = vmax.f32 %v3092, %v3093
      %v3095 = vsel %vm3031, %v1736, -inf
      %v3096 = vrot.slane %v3095, 4
      %v3097 = vmax.f32 %v3095, %v3096
      %v3098 = vrot.slane %v3097, 2
      %v3099 = vmax.f32 %v3097, %v3098
      %v3100 = vrot.slane %v3099, 1
      %v3101 = vmax.f32 %v3099, %v3100
      %v3102 = vsel %vm3031, %v1735, -inf
      %v3103 = vrot.slane %v3102, 4
      %v3104 = vmax.f32 %v3102, %v3103
      %v3105 = vrot.slane %v3104, 2
      %v3106 = vmax.f32 %v3104, %v3105
      %v3107 = vrot.slane %v3106, 1
      %v3108 = vmax.f32 %v3106, %v3107
      %v3109 = vsel %vm3031, %v1737, -inf
      %v3110 = vrot.slane %v3109, 4
      %v3111 = vmax.f32 %v3109, %v3110
      %v3112 = vrot.slane %v3111, 2
      %v3113 = vmax.f32 %v3111, %v3112
      %v3114 = vrot.slane %v3113, 1
      %v3115 = vmax.f32 %v3113, %v3114
      %v3116 = vsel %vm3031, %v1745, -inf
      %v3117 = vrot.slane %v3116, 4
      %v3118 = vmax.f32 %v3116, %v3117
      %v3119 = vrot.slane %v3118, 2
      %v3120 = vmax.f32 %v3118, %v3119
      %v3121 = vrot.slane %v3120, 1
      %v3122 = vmax.f32 %v3120, %v3121
      %v3123 = vsel %vm3031, %v1753, -inf
      %v3124 = vrot.slane %v3123, 4
      %v3125 = vmax.f32 %v3123, %v3124
      %v3126 = vrot.slane %v3125, 2
      %v3127 = vmax.f32 %v3125, %v3126
      %v3128 = vrot.slane %v3127, 1
      %v3129 = vmax.f32 %v3127, %v3128
      %v3130 = vsel %vm3031, %v1752, -inf
      %v3131 = vrot.slane %v3130, 4
      %v3132 = vmax.f32 %v3130, %v3131
      %v3133 = vrot.slane %v3132, 2
      %v3134 = vmax.f32 %v3132, %v3133
      %v3135 = vrot.slane %v3134, 1
      %v3136 = vmax.f32 %v3134, %v3135
      %v3137 = vsel %vm3031, %v1754, -inf
      %v3138 = vrot.slane %v3137, 4
      %v3139 = vmax.f32 %v3137, %v3138
      %v3140 = vrot.slane %v3139, 2
      %v3141 = vmax.f32 %v3139, %v3140
      %v3142 = vrot.slane %v3141, 1
      %v3143 = vmax.f32 %v3141, %v3142
      %v3144 = vsel %vm3031, %v1762, -inf
      %v3145 = vrot.slane %v3144, 4
      %v3146 = vmax.f32 %v3144, %v3145
      %v3147 = vrot.slane %v3146, 2
      %v3148 = vmax.f32 %v3146, %v3147
      %v3149 = vrot.slane %v3148, 1
      %v3150 = vmax.f32 %v3148, %v3149
      %v3151 = vsel %vm3031, %v1770, -inf
      %v3152 = vrot.slane %v3151, 4
      %v3153 = vmax.f32 %v3151, %v3152
      %v3154 = vrot.slane %v3153, 2
      %v3155 = vmax.f32 %v3153, %v3154
      %v3156 = vrot.slane %v3155, 1
      %v3157 = vmax.f32 %v3155, %v3156
      %v3158 = vsel %vm3031, %v1769, -inf
      %v3159 = vrot.slane %v3158, 4
      %v3160 = vmax.f32 %v3158, %v3159
      %v3161 = vrot.slane %v3160, 2
      %v3162 = vmax.f32 %v3160, %v3161
      %v3163 = vrot.slane %v3162, 1
      %v3164 = vmax.f32 %v3162, %v3163
      %v3165 = vsel %vm3031, %v1771, -inf
      %v3166 = vrot.slane %v3165, 4
      %v3167 = vmax.f32 %v3165, %v3166
      %v3168 = vrot.slane %v3167, 2
      %v3169 = vmax.f32 %v3167, %v3168
      %v3170 = vrot.slane %v3169, 1
      %v3171 = vmax.f32 %v3169, %v3170
      %v3172 = vsel %vm3031, %v1779, -inf
      %v3173 = vrot.slane %v3172, 4
      %v3174 = vmax.f32 %v3172, %v3173
      %v3175 = vrot.slane %v3174, 2
      %v3176 = vmax.f32 %v3174, %v3175
      %v3177 = vrot.slane %v3176, 1
      %v3178 = vmax.f32 %v3176, %v3177
      %v3179 = vsel %vm3031, %v1787, -inf
      %v3180 = vrot.slane %v3179, 4
      %v3181 = vmax.f32 %v3179, %v3180
      %v3182 = vrot.slane %v3181, 2
      %v3183 = vmax.f32 %v3181, %v3182
      %v3184 = vrot.slane %v3183, 1
      %v3185 = vmax.f32 %v3183, %v3184
      %v3186 = vsel %vm3031, %v1786, -inf
      %v3187 = vrot.slane %v3186, 4
      %v3188 = vmax.f32 %v3186, %v3187
      %v3189 = vrot.slane %v3188, 2
      %v3190 = vmax.f32 %v3188, %v3189
      %v3191 = vrot.slane %v3190, 1
      %v3192 = vmax.f32 %v3190, %v3191
      %v3193 = vsel %vm3031, %v1788, -inf
      %v3194 = vrot.slane %v3193, 4
      %v3195 = vmax.f32 %v3193, %v3194
      %v3196 = vrot.slane %v3195, 2
      %v3197 = vmax.f32 %v3195, %v3196
      %v3198 = vrot.slane %v3197, 1
      %v3199 = vmax.f32 %v3197, %v3198
      %v3200 = vsel %vm3031, %v1796, -inf
      %v3201 = vrot.slane %v3200, 4
      %v3202 = vmax.f32 %v3200, %v3201
      %v3203 = vrot.slane %v3202, 2
      %v3204 = vmax.f32 %v3202, %v3203
      %v3205 = vrot.slane %v3204, 1
      %v3206 = vmax.f32 %v3204, %v3205
      %v3207 = vsel %vm3031, %v1804, -inf
      %v3208 = vrot.slane %v3207, 4
      %v3209 = vmax.f32 %v3207, %v3208
      %v3210 = vrot.slane %v3209, 2
      %v3211 = vmax.f32 %v3209, %v3210
      %v3212 = vrot.slane %v3211, 1
      %v3213 = vmax.f32 %v3211, %v3212
      %v3214 = vsel %vm3031, %v1803, -inf
      %v3215 = vrot.slane %v3214, 4
      %v3216 = vmax.f32 %v3214, %v3215
      %v3217 = vrot.slane %v3216, 2
      %v3218 = vmax.f32 %v3216, %v3217
      %v3219 = vrot.slane %v3218, 1
      %v3220 = vmax.f32 %v3218, %v3219
      %v3221 = vsel %vm3031, %v1805, -inf
      %v3222 = vrot.slane %v3221, 4
      %v3223 = vmax.f32 %v3221, %v3222
      %v3224 = vrot.slane %v3223, 2
      %v3225 = vmax.f32 %v3223, %v3224
      %v3226 = vrot.slane %v3225, 1
      %v3227 = vmax.f32 %v3225, %v3226
      %v3228 = vsel %vm3031, %v1813, -inf
      %v3229 = vrot.slane %v3228, 4
      %v3230 = vmax.f32 %v3228, %v3229
      %v3231 = vrot.slane %v3230, 2
      %v3232 = vmax.f32 %v3230, %v3231
      %v3233 = vrot.slane %v3232, 1
      %v3234 = vmax.f32 %v3232, %v3233
      %v3235 = vsel %vm3031, %v1821, -inf
      %v3236 = vrot.slane %v3235, 4
      %v3237 = vmax.f32 %v3235, %v3236
      %v3238 = vrot.slane %v3237, 2
      %v3239 = vmax.f32 %v3237, %v3238
      %v3240 = vrot.slane %v3239, 1
      %v3241 = vmax.f32 %v3239, %v3240
      %v3242 = vsel %vm3031, %v1820, -inf
      %v3243 = vrot.slane %v3242, 4
      %v3244 = vmax.f32 %v3242, %v3243
      %v3245 = vrot.slane %v3244, 2
      %v3246 = vmax.f32 %v3244, %v3245
      %v3247 = vrot.slane %v3246, 1
      %v3248 = vmax.f32 %v3246, %v3247
      %v3249 = vsel %vm3031, %v1822, -inf
      %v3250 = vrot.slane %v3249, 4
      %v3251 = vmax.f32 %v3249, %v3250
      %v3252 = vrot.slane %v3251, 2
      %v3253 = vmax.f32 %v3251, %v3252
      %v3254 = vrot.slane %v3253, 1
      %v3255 = vmax.f32 %v3253, %v3254
      %v3256 = vsel %vm3031, %v1830, -inf
      %v3257 = vrot.slane %v3256, 4
      %v3258 = vmax.f32 %v3256, %v3257
      %v3259 = vrot.slane %v3258, 2
      %v3260 = vmax.f32 %v3258, %v3259
      %v3261 = vrot.slane %v3260, 1
      %v3262 = vmax.f32 %v3260, %v3261
      %v3263 = vsel %vm3031, %v1838, -inf
      %v3264 = vrot.slane %v3263, 4
      %v3265 = vmax.f32 %v3263, %v3264
      %v3266 = vrot.slane %v3265, 2
      %v3267 = vmax.f32 %v3265, %v3266
      %v3268 = vrot.slane %v3267, 1
      %v3269 = vmax.f32 %v3267, %v3268
      %v3270 = vsel %vm3031, %v1837, -inf
      %v3271 = vrot.slane %v3270, 4
      %v3272 = vmax.f32 %v3270, %v3271
      %v3273 = vrot.slane %v3272, 2
      %v3274 = vmax.f32 %v3272, %v3273
      %v3275 = vrot.slane %v3274, 1
      %v3276 = vmax.f32 %v3274, %v3275
      %v3277 = vsel %vm3031, %v1839, -inf
      %v3278 = vrot.slane %v3277, 4
      %v3279 = vmax.f32 %v3277, %v3278
      %v3280 = vrot.slane %v3279, 2
      %v3281 = vmax.f32 %v3279, %v3280
      %v3282 = vrot.slane %v3281, 1
      %v3283 = vmax.f32 %v3281, %v3282
      %v3284 = vsel %vm3031, %v1847, -inf
      %v3285 = vrot.slane %v3284, 4
      %v3286 = vmax.f32 %v3284, %v3285
      %v3287 = vrot.slane %v3286, 2
      %v3288 = vmax.f32 %v3286, %v3287
      %v3289 = vrot.slane %v3288, 1
      %v3290 = vmax.f32 %v3288, %v3289
      %v3291 = vsel %vm3031, %v1855, -inf
      %v3292 = vrot.slane %v3291, 4
      %v3293 = vmax.f32 %v3291, %v3292
      %v3294 = vrot.slane %v3293, 2
      %v3295 = vmax.f32 %v3293, %v3294
      %v3296 = vrot.slane %v3295, 1
      %v3297 = vmax.f32 %v3295, %v3296
      %v3298 = vsel %vm3031, %v1854, -inf
      %v3299 = vrot.slane %v3298, 4
      %v3300 = vmax.f32 %v3298, %v3299
      %v3301 = vrot.slane %v3300, 2
      %v3302 = vmax.f32 %v3300, %v3301
      %v3303 = vrot.slane %v3302, 1
      %v3304 = vmax.f32 %v3302, %v3303
      %v3305 = vsel %vm3031, %v1856, -inf
      %v3306 = vrot.slane %v3305, 4
      %v3307 = vmax.f32 %v3305, %v3306
      %v3308 = vrot.slane %v3307, 2
      %v3309 = vmax.f32 %v3307, %v3308
      %v3310 = vrot.slane %v3309, 1
      %v3311 = vmax.f32 %v3309, %v3310
      %v3312 = vsel %vm3031, %v1864, -inf
      %v3313 = vrot.slane %v3312, 4
      %v3314 = vmax.f32 %v3312, %v3313
      %v3315 = vrot.slane %v3314, 2
      %v3316 = vmax.f32 %v3314, %v3315
      %v3317 = vrot.slane %v3316, 1
      %v3318 = vmax.f32 %v3316, %v3317
      %v3319 = vsel %vm3031, %v1872, -inf
      %v3320 = vrot.slane %v3319, 4
      %v3321 = vmax.f32 %v3319, %v3320
      %v3322 = vrot.slane %v3321, 2
      %v3323 = vmax.f32 %v3321, %v3322
      %v3324 = vrot.slane %v3323, 1
      %v3325 = vmax.f32 %v3323, %v3324
      %v3326 = vsel %vm3031, %v1871, -inf
      %v3327 = vrot.slane %v3326, 4
      %v3328 = vmax.f32 %v3326, %v3327
      %v3329 = vrot.slane %v3328, 2
      %v3330 = vmax.f32 %v3328, %v3329
      %v3331 = vrot.slane %v3330, 1
      %v3332 = vmax.f32 %v3330, %v3331
      %v3333 = vsel %vm3031, %v1873, -inf
      %v3334 = vrot.slane %v3333, 4
      %v3335 = vmax.f32 %v3333, %v3334
      %v3336 = vrot.slane %v3335, 2
      %v3337 = vmax.f32 %v3335, %v3336
      %v3338 = vrot.slane %v3337, 1
      %v3339 = vmax.f32 %v3337, %v3338
      %v3340 = vsel %vm3031, %v1881, -inf
      %v3341 = vrot.slane %v3340, 4
      %v3342 = vmax.f32 %v3340, %v3341
      %v3343 = vrot.slane %v3342, 2
      %v3344 = vmax.f32 %v3342, %v3343
      %v3345 = vrot.slane %v3344, 1
      %v3346 = vmax.f32 %v3344, %v3345
      %v3347 = vsel %vm3031, %v1889, -inf
      %v3348 = vrot.slane %v3347, 4
      %v3349 = vmax.f32 %v3347, %v3348
      %v3350 = vrot.slane %v3349, 2
      %v3351 = vmax.f32 %v3349, %v3350
      %v3352 = vrot.slane %v3351, 1
      %v3353 = vmax.f32 %v3351, %v3352
      %v3354 = vsel %vm3031, %v1888, -inf
      %v3355 = vrot.slane %v3354, 4
      %v3356 = vmax.f32 %v3354, %v3355
      %v3357 = vrot.slane %v3356, 2
      %v3358 = vmax.f32 %v3356, %v3357
      %v3359 = vrot.slane %v3358, 1
      %v3360 = vmax.f32 %v3358, %v3359
      %v3361 = vsel %vm3031, %v1890, -inf
      %v3362 = vrot.slane %v3361, 4
      %v3363 = vmax.f32 %v3361, %v3362
      %v3364 = vrot.slane %v3363, 2
      %v3365 = vmax.f32 %v3363, %v3364
      %v3366 = vrot.slane %v3365, 1
      %v3367 = vmax.f32 %v3365, %v3366
      %v3368 = vsel %vm3031, %v1898, -inf
      %v3369 = vrot.slane %v3368, 4
      %v3370 = vmax.f32 %v3368, %v3369
      %v3371 = vrot.slane %v3370, 2
      %v3372 = vmax.f32 %v3370, %v3371
      %v3373 = vrot.slane %v3372, 1
      %v3374 = vmax.f32 %v3372, %v3373
      %v3375 = vsel %vm3031, %v1906, -inf
      %v3376 = vrot.slane %v3375, 4
      %v3377 = vmax.f32 %v3375, %v3376
      %v3378 = vrot.slane %v3377, 2
      %v3379 = vmax.f32 %v3377, %v3378
      %v3380 = vrot.slane %v3379, 1
      %v3381 = vmax.f32 %v3379, %v3380
      %v3382 = vsel %vm3031, %v1905, -inf
      %v3383 = vrot.slane %v3382, 4
      %v3384 = vmax.f32 %v3382, %v3383
      %v3385 = vrot.slane %v3384, 2
      %v3386 = vmax.f32 %v3384, %v3385
      %v3387 = vrot.slane %v3386, 1
      %v3388 = vmax.f32 %v3386, %v3387
      %v3389 = vsel %vm3031, %v1907, -inf
      %v3390 = vrot.slane %v3389, 4
      %v3391 = vmax.f32 %v3389, %v3390
      %v3392 = vrot.slane %v3391, 2
      %v3393 = vmax.f32 %v3391, %v3392
      %v3394 = vrot.slane %v3393, 1
      %v3395 = vmax.f32 %v3393, %v3394
      %v3396 = vsel %vm3031, %v1915, -inf
      %v3397 = vrot.slane %v3396, 4
      %v3398 = vmax.f32 %v3396, %v3397
      %v3399 = vrot.slane %v3398, 2
      %v3400 = vmax.f32 %v3398, %v3399
      %v3401 = vrot.slane %v3400, 1
      %v3402 = vmax.f32 %v3400, %v3401
      %v3403 = vsel %vm3031, %v1923, -inf
      %v3404 = vrot.slane %v3403, 4
      %v3405 = vmax.f32 %v3403, %v3404
      %v3406 = vrot.slane %v3405, 2
      %v3407 = vmax.f32 %v3405, %v3406
      %v3408 = vrot.slane %v3407, 1
      %v3409 = vmax.f32 %v3407, %v3408
      %v3410 = vsel %vm3031, %v1922, -inf
      %v3411 = vrot.slane %v3410, 4
      %v3412 = vmax.f32 %v3410, %v3411
      %v3413 = vrot.slane %v3412, 2
      %v3414 = vmax.f32 %v3412, %v3413
      %v3415 = vrot.slane %v3414, 1
      %v3416 = vmax.f32 %v3414, %v3415
      %v3417 = vsel %vm3031, %v1924, -inf
      %v3418 = vrot.slane %v3417, 4
      %v3419 = vmax.f32 %v3417, %v3418
      %v3420 = vrot.slane %v3419, 2
      %v3421 = vmax.f32 %v3419, %v3420
      %v3422 = vrot.slane %v3421, 1
      %v3423 = vmax.f32 %v3421, %v3422
      %v3424 = vsel %vm3031, %v1932, -inf
      %v3425 = vrot.slane %v3424, 4
      %v3426 = vmax.f32 %v3424, %v3425
      %v3427 = vrot.slane %v3426, 2
      %v3428 = vmax.f32 %v3426, %v3427
      %v3429 = vrot.slane %v3428, 1
      %v3430 = vmax.f32 %v3428, %v3429
      %v3431 = vsel %vm3031, %v1940, -inf
      %v3432 = vrot.slane %v3431, 4
      %v3433 = vmax.f32 %v3431, %v3432
      %v3434 = vrot.slane %v3433, 2
      %v3435 = vmax.f32 %v3433, %v3434
      %v3436 = vrot.slane %v3435, 1
      %v3437 = vmax.f32 %v3435, %v3436
      %v3438 = vsel %vm3031, %v1939, -inf
      %v3439 = vrot.slane %v3438, 4
      %v3440 = vmax.f32 %v3438, %v3439
      %v3441 = vrot.slane %v3440, 2
      %v3442 = vmax.f32 %v3440, %v3441
      %v3443 = vrot.slane %v3442, 1
      %v3444 = vmax.f32 %v3442, %v3443
      %v3445 = vsel %vm3031, %v1941, -inf
      %v3446 = vrot.slane %v3445, 4
      %v3447 = vmax.f32 %v3445, %v3446
      %v3448 = vrot.slane %v3447, 2
      %v3449 = vmax.f32 %v3447, %v3448
      %v3450 = vrot.slane %v3449, 1
      %v3451 = vmax.f32 %v3449, %v3450
      %v3452 = vsel %vm3031, %v1949, -inf
      %v3453 = vrot.slane %v3452, 4
      %v3454 = vmax.f32 %v3452, %v3453
      %v3455 = vrot.slane %v3454, 2
      %v3456 = vmax.f32 %v3454, %v3455
      %v3457 = vrot.slane %v3456, 1
      %v3458 = vmax.f32 %v3456, %v3457
      %v3459 = vsel %vm3031, %v1957, -inf
      %v3460 = vrot.slane %v3459, 4
      %v3461 = vmax.f32 %v3459, %v3460
      %v3462 = vrot.slane %v3461, 2
      %v3463 = vmax.f32 %v3461, %v3462
      %v3464 = vrot.slane %v3463, 1
      %v3465 = vmax.f32 %v3463, %v3464
      %v3466 = vsel %vm3031, %v1956, -inf
      %v3467 = vrot.slane %v3466, 4
      %v3468 = vmax.f32 %v3466, %v3467
      %v3469 = vrot.slane %v3468, 2
      %v3470 = vmax.f32 %v3468, %v3469
      %v3471 = vrot.slane %v3470, 1
      %v3472 = vmax.f32 %v3470, %v3471
      %v3473 = vsel %vm3031, %v1958, -inf
      %v3474 = vrot.slane %v3473, 4
      %v3475 = vmax.f32 %v3473, %v3474
      %v3476 = vrot.slane %v3475, 2
      %v3477 = vmax.f32 %v3475, %v3476
      %v3478 = vrot.slane %v3477, 1
      %v3479 = vmax.f32 %v3477, %v3478
      %v3480 = vsel %vm3031, %v1966, -inf
      %v3481 = vrot.slane %v3480, 4
      %v3482 = vmax.f32 %v3480, %v3481
      %v3483 = vrot.slane %v3482, 2
      %v3484 = vmax.f32 %v3482, %v3483
      %v3485 = vrot.slane %v3484, 1
      %v3486 = vmax.f32 %v3484, %v3485
      %v3487 = vsel %vm3031, %v1974, -inf
      %v3488 = vrot.slane %v3487, 4
      %v3489 = vmax.f32 %v3487, %v3488
      %v3490 = vrot.slane %v3489, 2
      %v3491 = vmax.f32 %v3489, %v3490
      %v3492 = vrot.slane %v3491, 1
      %v3493 = vmax.f32 %v3491, %v3492
      %v3494 = vsel %vm3031, %v1973, -inf
      %v3495 = vrot.slane %v3494, 4
      %v3496 = vmax.f32 %v3494, %v3495
      %v3497 = vrot.slane %v3496, 2
      %v3498 = vmax.f32 %v3496, %v3497
      %v3499 = vrot.slane %v3498, 1
      %v3500 = vmax.f32 %v3498, %v3499
      %v3501 = vsel %vm3031, %v1975, -inf
      %v3502 = vrot.slane %v3501, 4
      %v3503 = vmax.f32 %v3501, %v3502
      %v3504 = vrot.slane %v3503, 2
      %v3505 = vmax.f32 %v3503, %v3504
      %v3506 = vrot.slane %v3505, 1
      %v3507 = vmax.f32 %v3505, %v3506
      %v3508 = vsel %vm3031, %v1983, -inf
      %v3509 = vrot.slane %v3508, 4
      %v3510 = vmax.f32 %v3508, %v3509
      %v3511 = vrot.slane %v3510, 2
      %v3512 = vmax.f32 %v3510, %v3511
      %v3513 = vrot.slane %v3512, 1
      %v3514 = vmax.f32 %v3512, %v3513
      %v3515 = vsel %vm3031, %v1991, -inf
      %v3516 = vrot.slane %v3515, 4
      %v3517 = vmax.f32 %v3515, %v3516
      %v3518 = vrot.slane %v3517, 2
      %v3519 = vmax.f32 %v3517, %v3518
      %v3520 = vrot.slane %v3519, 1
      %v3521 = vmax.f32 %v3519, %v3520
      %v3522 = vsel %vm3031, %v1990, -inf
      %v3523 = vrot.slane %v3522, 4
      %v3524 = vmax.f32 %v3522, %v3523
      %v3525 = vrot.slane %v3524, 2
      %v3526 = vmax.f32 %v3524, %v3525
      %v3527 = vrot.slane %v3526, 1
      %v3528 = vmax.f32 %v3526, %v3527
      %v3529 = vsel %vm3031, %v1992, -inf
      %v3530 = vrot.slane %v3529, 4
      %v3531 = vmax.f32 %v3529, %v3530
      %v3532 = vrot.slane %v3531, 2
      %v3533 = vmax.f32 %v3531, %v3532
      %v3534 = vrot.slane %v3533, 1
      %v3535 = vmax.f32 %v3533, %v3534
      %v3536 = vsel %vm3031, %v2000, -inf
      %v3537 = vrot.slane %v3536, 4
      %v3538 = vmax.f32 %v3536, %v3537
      %v3539 = vrot.slane %v3538, 2
      %v3540 = vmax.f32 %v3538, %v3539
      %v3541 = vrot.slane %v3540, 1
      %v3542 = vmax.f32 %v3540, %v3541
      %v3543 = vsel %vm3031, %v2008, -inf
      %v3544 = vrot.slane %v3543, 4
      %v3545 = vmax.f32 %v3543, %v3544
      %v3546 = vrot.slane %v3545, 2
      %v3547 = vmax.f32 %v3545, %v3546
      %v3548 = vrot.slane %v3547, 1
      %v3549 = vmax.f32 %v3547, %v3548
      %v3550 = vsel %vm3031, %v2007, -inf
      %v3551 = vrot.slane %v3550, 4
      %v3552 = vmax.f32 %v3550, %v3551
      %v3553 = vrot.slane %v3552, 2
      %v3554 = vmax.f32 %v3552, %v3553
      %v3555 = vrot.slane %v3554, 1
      %v3556 = vmax.f32 %v3554, %v3555
      %v3557 = vsel %vm3031, %v2009, -inf
      %v3558 = vrot.slane %v3557, 4
      %v3559 = vmax.f32 %v3557, %v3558
      %v3560 = vrot.slane %v3559, 2
      %v3561 = vmax.f32 %v3559, %v3560
      %v3562 = vrot.slane %v3561, 1
      %v3563 = vmax.f32 %v3561, %v3562
      %v3564 = vsel %vm3031, %v2017, -inf
      %v3565 = vrot.slane %v3564, 4
      %v3566 = vmax.f32 %v3564, %v3565
      %v3567 = vrot.slane %v3566, 2
      %v3568 = vmax.f32 %v3566, %v3567
      %v3569 = vrot.slane %v3568, 1
      %v3570 = vmax.f32 %v3568, %v3569
      %v3571 = vsel %vm3031, %v2025, -inf
      %v3572 = vrot.slane %v3571, 4
      %v3573 = vmax.f32 %v3571, %v3572
      %v3574 = vrot.slane %v3573, 2
      %v3575 = vmax.f32 %v3573, %v3574
      %v3576 = vrot.slane %v3575, 1
      %v3577 = vmax.f32 %v3575, %v3576
      %v3578 = vsel %vm3031, %v2024, -inf
      %v3579 = vrot.slane %v3578, 4
      %v3580 = vmax.f32 %v3578, %v3579
      %v3581 = vrot.slane %v3580, 2
      %v3582 = vmax.f32 %v3580, %v3581
      %v3583 = vrot.slane %v3582, 1
      %v3584 = vmax.f32 %v3582, %v3583
      %v3585 = vsel %vm3031, %v2026, -inf
      %v3586 = vrot.slane %v3585, 4
      %v3587 = vmax.f32 %v3585, %v3586
      %v3588 = vrot.slane %v3587, 2
      %v3589 = vmax.f32 %v3587, %v3588
      %v3590 = vrot.slane %v3589, 1
      %v3591 = vmax.f32 %v3589, %v3590
      %v3592 = vsel %vm3031, %v2034, -inf
      %v3593 = vrot.slane %v3592, 4
      %v3594 = vmax.f32 %v3592, %v3593
      %v3595 = vrot.slane %v3594, 2
      %v3596 = vmax.f32 %v3594, %v3595
      %v3597 = vrot.slane %v3596, 1
      %v3598 = vmax.f32 %v3596, %v3597
      %v3599 = vsel %vm3031, %v2042, -inf
      %v3600 = vrot.slane %v3599, 4
      %v3601 = vmax.f32 %v3599, %v3600
      %v3602 = vrot.slane %v3601, 2
      %v3603 = vmax.f32 %v3601, %v3602
      %v3604 = vrot.slane %v3603, 1
      %v3605 = vmax.f32 %v3603, %v3604
      %v3606 = vsel %vm3031, %v2041, -inf
      %v3607 = vrot.slane %v3606, 4
      %v3608 = vmax.f32 %v3606, %v3607
      %v3609 = vrot.slane %v3608, 2
      %v3610 = vmax.f32 %v3608, %v3609
      %v3611 = vrot.slane %v3610, 1
      %v3612 = vmax.f32 %v3610, %v3611
      %v3613 = vsel %vm3031, %v2043, -inf
      %v3614 = vrot.slane %v3613, 4
      %v3615 = vmax.f32 %v3613, %v3614
      %v3616 = vrot.slane %v3615, 2
      %v3617 = vmax.f32 %v3615, %v3616
      %v3618 = vrot.slane %v3617, 1
      %v3619 = vmax.f32 %v3617, %v3618
      %v3620 = vsel %vm3031, %v2051, -inf
      %v3621 = vrot.slane %v3620, 4
      %v3622 = vmax.f32 %v3620, %v3621
      %v3623 = vrot.slane %v3622, 2
      %v3624 = vmax.f32 %v3622, %v3623
      %v3625 = vrot.slane %v3624, 1
      %v3626 = vmax.f32 %v3624, %v3625
      %v3627 = vsel %vm3031, %v2059, -inf
      %v3628 = vrot.slane %v3627, 4
      %v3629 = vmax.f32 %v3627, %v3628
      %v3630 = vrot.slane %v3629, 2
      %v3631 = vmax.f32 %v3629, %v3630
      %v3632 = vrot.slane %v3631, 1
      %v3633 = vmax.f32 %v3631, %v3632
      %v3634 = vsel %vm3031, %v2058, -inf
      %v3635 = vrot.slane %v3634, 4
      %v3636 = vmax.f32 %v3634, %v3635
      %v3637 = vrot.slane %v3636, 2
      %v3638 = vmax.f32 %v3636, %v3637
      %v3639 = vrot.slane %v3638, 1
      %v3640 = vmax.f32 %v3638, %v3639
      %v3641 = vsel %vm3031, %v2060, -inf
      %v3642 = vrot.slane %v3641, 4
      %v3643 = vmax.f32 %v3641, %v3642
      %v3644 = vrot.slane %v3643, 2
      %v3645 = vmax.f32 %v3643, %v3644
      %v3646 = vrot.slane %v3645, 1
      %v3647 = vmax.f32 %v3645, %v3646
      %v3648 = vsel %vm3031, %v2068, -inf
      %v3649 = vrot.slane %v3648, 4
      %v3650 = vmax.f32 %v3648, %v3649
      %v3651 = vrot.slane %v3650, 2
      %v3652 = vmax.f32 %v3650, %v3651
      %v3653 = vrot.slane %v3652, 1
      %v3654 = vmax.f32 %v3652, %v3653
      %v3655 = vsel %vm3031, %v2076, -inf
      %v3656 = vrot.slane %v3655, 4
      %v3657 = vmax.f32 %v3655, %v3656
      %v3658 = vrot.slane %v3657, 2
      %v3659 = vmax.f32 %v3657, %v3658
      %v3660 = vrot.slane %v3659, 1
      %v3661 = vmax.f32 %v3659, %v3660
      %v3662 = vsel %vm3031, %v2075, -inf
      %v3663 = vrot.slane %v3662, 4
      %v3664 = vmax.f32 %v3662, %v3663
      %v3665 = vrot.slane %v3664, 2
      %v3666 = vmax.f32 %v3664, %v3665
      %v3667 = vrot.slane %v3666, 1
      %v3668 = vmax.f32 %v3666, %v3667
      %v3669 = vsel %vm3031, %v2077, -inf
      %v3670 = vrot.slane %v3669, 4
      %v3671 = vmax.f32 %v3669, %v3670
      %v3672 = vrot.slane %v3671, 2
      %v3673 = vmax.f32 %v3671, %v3672
      %v3674 = vrot.slane %v3673, 1
      %v3675 = vmax.f32 %v3673, %v3674
      %v3676 = vsel %vm3031, %v2085, -inf
      %v3677 = vrot.slane %v3676, 4
      %v3678 = vmax.f32 %v3676, %v3677
      %v3679 = vrot.slane %v3678, 2
      %v3680 = vmax.f32 %v3678, %v3679
      %v3681 = vrot.slane %v3680, 1
      %v3682 = vmax.f32 %v3680, %v3681
      %v3683 = vsel %vm3031, %v2093, -inf
      %v3684 = vrot.slane %v3683, 4
      %v3685 = vmax.f32 %v3683, %v3684
      %v3686 = vrot.slane %v3685, 2
      %v3687 = vmax.f32 %v3685, %v3686
      %v3688 = vrot.slane %v3687, 1
      %v3689 = vmax.f32 %v3687, %v3688
      %v3690 = vsel %vm3031, %v2092, -inf
      %v3691 = vrot.slane %v3690, 4
      %v3692 = vmax.f32 %v3690, %v3691
      %v3693 = vrot.slane %v3692, 2
      %v3694 = vmax.f32 %v3692, %v3693
      %v3695 = vrot.slane %v3694, 1
      %v3696 = vmax.f32 %v3694, %v3695
      %v3697 = vsel %vm3031, %v2094, -inf
      %v3698 = vrot.slane %v3697, 4
      %v3699 = vmax.f32 %v3697, %v3698
      %v3700 = vrot.slane %v3699, 2
      %v3701 = vmax.f32 %v3699, %v3700
      %v3702 = vrot.slane %v3701, 1
      %v3703 = vmax.f32 %v3701, %v3702
      %v3704 = vsel %vm3031, %v2102, -inf
      %v3705 = vrot.slane %v3704, 4
      %v3706 = vmax.f32 %v3704, %v3705
      %v3707 = vrot.slane %v3706, 2
      %v3708 = vmax.f32 %v3706, %v3707
      %v3709 = vrot.slane %v3708, 1
      %v3710 = vmax.f32 %v3708, %v3709
      %v3711 = vsel %vm3031, %v2110, -inf
      %v3712 = vrot.slane %v3711, 4
      %v3713 = vmax.f32 %v3711, %v3712
      %v3714 = vrot.slane %v3713, 2
      %v3715 = vmax.f32 %v3713, %v3714
      %v3716 = vrot.slane %v3715, 1
      %v3717 = vmax.f32 %v3715, %v3716
      %v3718 = vsel %vm3031, %v2109, -inf
      %v3719 = vrot.slane %v3718, 4
      %v3720 = vmax.f32 %v3718, %v3719
      %v3721 = vrot.slane %v3720, 2
      %v3722 = vmax.f32 %v3720, %v3721
      %v3723 = vrot.slane %v3722, 1
      %v3724 = vmax.f32 %v3722, %v3723
      %v3725 = vsel %vm3031, %v2111, -inf
      %v3726 = vrot.slane %v3725, 4
      %v3727 = vmax.f32 %v3725, %v3726
      %v3728 = vrot.slane %v3727, 2
      %v3729 = vmax.f32 %v3727, %v3728
      %v3730 = vrot.slane %v3729, 1
      %v3731 = vmax.f32 %v3729, %v3730
      %v3732 = vsel %vm3031, %v2119, -inf
      %v3733 = vrot.slane %v3732, 4
      %v3734 = vmax.f32 %v3732, %v3733
      %v3735 = vrot.slane %v3734, 2
      %v3736 = vmax.f32 %v3734, %v3735
      %v3737 = vrot.slane %v3736, 1
      %v3738 = vmax.f32 %v3736, %v3737
      %v3739 = vsel %vm3031, %v2127, -inf
      %v3740 = vrot.slane %v3739, 4
      %v3741 = vmax.f32 %v3739, %v3740
      %v3742 = vrot.slane %v3741, 2
      %v3743 = vmax.f32 %v3741, %v3742
      %v3744 = vrot.slane %v3743, 1
      %v3745 = vmax.f32 %v3743, %v3744
      %v3746 = vsel %vm3031, %v2126, -inf
      %v3747 = vrot.slane %v3746, 4
      %v3748 = vmax.f32 %v3746, %v3747
      %v3749 = vrot.slane %v3748, 2
      %v3750 = vmax.f32 %v3748, %v3749
      %v3751 = vrot.slane %v3750, 1
      %v3752 = vmax.f32 %v3750, %v3751
      %v3753 = vsel %vm3031, %v2128, -inf
      %v3754 = vrot.slane %v3753, 4
      %v3755 = vmax.f32 %v3753, %v3754
      %v3756 = vrot.slane %v3755, 2
      %v3757 = vmax.f32 %v3755, %v3756
      %v3758 = vrot.slane %v3757, 1
      %v3759 = vmax.f32 %v3757, %v3758
      %v3760 = vsel %vm3031, %v2136, -inf
      %v3761 = vrot.slane %v3760, 4
      %v3762 = vmax.f32 %v3760, %v3761
      %v3763 = vrot.slane %v3762, 2
      %v3764 = vmax.f32 %v3762, %v3763
      %v3765 = vrot.slane %v3764, 1
      %v3766 = vmax.f32 %v3764, %v3765
      %v3767 = vsel %vm3031, %v2144, -inf
      %v3768 = vrot.slane %v3767, 4
      %v3769 = vmax.f32 %v3767, %v3768
      %v3770 = vrot.slane %v3769, 2
      %v3771 = vmax.f32 %v3769, %v3770
      %v3772 = vrot.slane %v3771, 1
      %v3773 = vmax.f32 %v3771, %v3772
      %v3774 = vsel %vm3031, %v2143, -inf
      %v3775 = vrot.slane %v3774, 4
      %v3776 = vmax.f32 %v3774, %v3775
      %v3777 = vrot.slane %v3776, 2
      %v3778 = vmax.f32 %v3776, %v3777
      %v3779 = vrot.slane %v3778, 1
      %v3780 = vmax.f32 %v3778, %v3779
      %v3781 = vsel %vm3031, %v2145, -inf
      %v3782 = vrot.slane %v3781, 4
      %v3783 = vmax.f32 %v3781, %v3782
      %v3784 = vrot.slane %v3783, 2
      %v3785 = vmax.f32 %v3783, %v3784
      %v3786 = vrot.slane %v3785, 1
      %v3787 = vmax.f32 %v3785, %v3786
      %v3788 = vsel %vm3031, %v2153, -inf
      %v3789 = vrot.slane %v3788, 4
      %v3790 = vmax.f32 %v3788, %v3789
      %v3791 = vrot.slane %v3790, 2
      %v3792 = vmax.f32 %v3790, %v3791
      %v3793 = vrot.slane %v3792, 1
      %v3794 = vmax.f32 %v3792, %v3793
      %v3795 = vsel %vm3031, %v2161, -inf
      %v3796 = vrot.slane %v3795, 4
      %v3797 = vmax.f32 %v3795, %v3796
      %v3798 = vrot.slane %v3797, 2
      %v3799 = vmax.f32 %v3797, %v3798
      %v3800 = vrot.slane %v3799, 1
      %v3801 = vmax.f32 %v3799, %v3800
      %v3802 = vsel %vm3031, %v2160, -inf
      %v3803 = vrot.slane %v3802, 4
      %v3804 = vmax.f32 %v3802, %v3803
      %v3805 = vrot.slane %v3804, 2
      %v3806 = vmax.f32 %v3804, %v3805
      %v3807 = vrot.slane %v3806, 1
      %v3808 = vmax.f32 %v3806, %v3807
      %v3809 = vsel %vm3031, %v2162, -inf
      %v3810 = vrot.slane %v3809, 4
      %v3811 = vmax.f32 %v3809, %v3810
      %v3812 = vrot.slane %v3811, 2
      %v3813 = vmax.f32 %v3811, %v3812
      %v3814 = vrot.slane %v3813, 1
      %v3815 = vmax.f32 %v3813, %v3814
      %v3816 = vsel %vm3031, %v2170, -inf
      %v3817 = vrot.slane %v3816, 4
      %v3818 = vmax.f32 %v3816, %v3817
      %v3819 = vrot.slane %v3818, 2
      %v3820 = vmax.f32 %v3818, %v3819
      %v3821 = vrot.slane %v3820, 1
      %v3822 = vmax.f32 %v3820, %v3821
      %v3823 = vsel %vm3031, %v2178, -inf
      %v3824 = vrot.slane %v3823, 4
      %v3825 = vmax.f32 %v3823, %v3824
      %v3826 = vrot.slane %v3825, 2
      %v3827 = vmax.f32 %v3825, %v3826
      %v3828 = vrot.slane %v3827, 1
      %v3829 = vmax.f32 %v3827, %v3828
      %v3830 = vsel %vm3031, %v2177, -inf
      %v3831 = vrot.slane %v3830, 4
      %v3832 = vmax.f32 %v3830, %v3831
      %v3833 = vrot.slane %v3832, 2
      %v3834 = vmax.f32 %v3832, %v3833
      %v3835 = vrot.slane %v3834, 1
      %v3836 = vmax.f32 %v3834, %v3835
      %v3837 = vsel %vm3031, %v2179, -inf
      %v3838 = vrot.slane %v3837, 4
      %v3839 = vmax.f32 %v3837, %v3838
      %v3840 = vrot.slane %v3839, 2
      %v3841 = vmax.f32 %v3839, %v3840
      %v3842 = vrot.slane %v3841, 1
      %v3843 = vmax.f32 %v3841, %v3842
      %v3844 = vsel %vm3031, %v2187, -inf
      %v3845 = vrot.slane %v3844, 4
      %v3846 = vmax.f32 %v3844, %v3845
      %v3847 = vrot.slane %v3846, 2
      %v3848 = vmax.f32 %v3846, %v3847
      %v3849 = vrot.slane %v3848, 1
      %v3850 = vmax.f32 %v3848, %v3849
      %v3851 = vsel %vm3031, %v2195, -inf
      %v3852 = vrot.slane %v3851, 4
      %v3853 = vmax.f32 %v3851, %v3852
      %v3854 = vrot.slane %v3853, 2
      %v3855 = vmax.f32 %v3853, %v3854
      %v3856 = vrot.slane %v3855, 1
      %v3857 = vmax.f32 %v3855, %v3856
      %v3858 = vsel %vm3031, %v2194, -inf
      %v3859 = vrot.slane %v3858, 4
      %v3860 = vmax.f32 %v3858, %v3859
      %v3861 = vrot.slane %v3860, 2
      %v3862 = vmax.f32 %v3860, %v3861
      %v3863 = vrot.slane %v3862, 1
      %v3864 = vmax.f32 %v3862, %v3863
      %v3865 = vsel %vm3031, %v2196, -inf
      %v3866 = vrot.slane %v3865, 4
      %v3867 = vmax.f32 %v3865, %v3866
      %v3868 = vrot.slane %v3867, 2
      %v3869 = vmax.f32 %v3867, %v3868
      %v3870 = vrot.slane %v3869, 1
      %v3871 = vmax.f32 %v3869, %v3870
      %v3872 = vsel %vm3031, %v2204, -inf
      %v3873 = vrot.slane %v3872, 4
      %v3874 = vmax.f32 %v3872, %v3873
      %v3875 = vrot.slane %v3874, 2
      %v3876 = vmax.f32 %v3874, %v3875
      %v3877 = vrot.slane %v3876, 1
      %v3878 = vmax.f32 %v3876, %v3877
      %v3879 = vsel %vm3031, %v2212, -inf
      %v3880 = vrot.slane %v3879, 4
      %v3881 = vmax.f32 %v3879, %v3880
      %v3882 = vrot.slane %v3881, 2
      %v3883 = vmax.f32 %v3881, %v3882
      %v3884 = vrot.slane %v3883, 1
      %v3885 = vmax.f32 %v3883, %v3884
      %v3886 = vsel %vm3031, %v2211, -inf
      %v3887 = vrot.slane %v3886, 4
      %v3888 = vmax.f32 %v3886, %v3887
      %v3889 = vrot.slane %v3888, 2
      %v3890 = vmax.f32 %v3888, %v3889
      %v3891 = vrot.slane %v3890, 1
      %v3892 = vmax.f32 %v3890, %v3891
      %v3893 = vsel %vm3031, %v2213, -inf
      %v3894 = vrot.slane %v3893, 4
      %v3895 = vmax.f32 %v3893, %v3894
      %v3896 = vrot.slane %v3895, 2
      %v3897 = vmax.f32 %v3895, %v3896
      %v3898 = vrot.slane %v3897, 1
      %v3899 = vmax.f32 %v3897, %v3898
      %v3900 = vsel %vm3031, %v2221, -inf
      %v3901 = vrot.slane %v3900, 4
      %v3902 = vmax.f32 %v3900, %v3901
      %v3903 = vrot.slane %v3902, 2
      %v3904 = vmax.f32 %v3902, %v3903
      %v3905 = vrot.slane %v3904, 1
      %v3906 = vmax.f32 %v3904, %v3905
      %v3907 = vsel %vm3031, %v2229, -inf
      %v3908 = vrot.slane %v3907, 4
      %v3909 = vmax.f32 %v3907, %v3908
      %v3910 = vrot.slane %v3909, 2
      %v3911 = vmax.f32 %v3909, %v3910
      %v3912 = vrot.slane %v3911, 1
      %v3913 = vmax.f32 %v3911, %v3912
      %v3914 = vsel %vm3031, %v2228, -inf
      %v3915 = vrot.slane %v3914, 4
      %v3916 = vmax.f32 %v3914, %v3915
      %v3917 = vrot.slane %v3916, 2
      %v3918 = vmax.f32 %v3916, %v3917
      %v3919 = vrot.slane %v3918, 1
      %v3920 = vmax.f32 %v3918, %v3919
      %v3921 = vsel %vm3031, %v2230, -inf
      %v3922 = vrot.slane %v3921, 4
      %v3923 = vmax.f32 %v3921, %v3922
      %v3924 = vrot.slane %v3923, 2
      %v3925 = vmax.f32 %v3923, %v3924
      %v3926 = vrot.slane %v3925, 1
      %v3927 = vmax.f32 %v3925, %v3926
      %v3928 = vsel %vm3031, %v2238, -inf
      %v3929 = vrot.slane %v3928, 4
      %v3930 = vmax.f32 %v3928, %v3929
      %v3931 = vrot.slane %v3930, 2
      %v3932 = vmax.f32 %v3930, %v3931
      %v3933 = vrot.slane %v3932, 1
      %v3934 = vmax.f32 %v3932, %v3933
      %v3935 = vsel %vm3031, %v2246, -inf
      %v3936 = vrot.slane %v3935, 4
      %v3937 = vmax.f32 %v3935, %v3936
      %v3938 = vrot.slane %v3937, 2
      %v3939 = vmax.f32 %v3937, %v3938
      %v3940 = vrot.slane %v3939, 1
      %v3941 = vmax.f32 %v3939, %v3940
      %v3942 = vsel %vm3031, %v2245, -inf
      %v3943 = vrot.slane %v3942, 4
      %v3944 = vmax.f32 %v3942, %v3943
      %v3945 = vrot.slane %v3944, 2
      %v3946 = vmax.f32 %v3944, %v3945
      %v3947 = vrot.slane %v3946, 1
      %v3948 = vmax.f32 %v3946, %v3947
      %v3949 = vsel %vm3031, %v2247, -inf
      %v3950 = vrot.slane %v3949, 4
      %v3951 = vmax.f32 %v3949, %v3950
      %v3952 = vrot.slane %v3951, 2
      %v3953 = vmax.f32 %v3951, %v3952
      %v3954 = vrot.slane %v3953, 1
      %v3955 = vmax.f32 %v3953, %v3954
      %v3956 = vsel %vm3031, %v2255, -inf
      %v3957 = vrot.slane %v3956, 4
      %v3958 = vmax.f32 %v3956, %v3957
      %v3959 = vrot.slane %v3958, 2
      %v3960 = vmax.f32 %v3958, %v3959
      %v3961 = vrot.slane %v3960, 1
      %v3962 = vmax.f32 %v3960, %v3961
      %v3963 = vsel %vm3031, %v2263, -inf
      %v3964 = vrot.slane %v3963, 4
      %v3965 = vmax.f32 %v3963, %v3964
      %v3966 = vrot.slane %v3965, 2
      %v3967 = vmax.f32 %v3965, %v3966
      %v3968 = vrot.slane %v3967, 1
      %v3969 = vmax.f32 %v3967, %v3968
      %v3970 = vsel %vm3031, %v2262, -inf
      %v3971 = vrot.slane %v3970, 4
      %v3972 = vmax.f32 %v3970, %v3971
      %v3973 = vrot.slane %v3972, 2
      %v3974 = vmax.f32 %v3972, %v3973
      %v3975 = vrot.slane %v3974, 1
      %v3976 = vmax.f32 %v3974, %v3975
      %v3977 = vsel %vm3031, %v2264, -inf
      %v3978 = vrot.slane %v3977, 4
      %v3979 = vmax.f32 %v3977, %v3978
      %v3980 = vrot.slane %v3979, 2
      %v3981 = vmax.f32 %v3979, %v3980
      %v3982 = vrot.slane %v3981, 1
      %v3983 = vmax.f32 %v3981, %v3982
      %v3984 = vsel %vm3031, %v2272, -inf
      %v3985 = vrot.slane %v3984, 4
      %v3986 = vmax.f32 %v3984, %v3985
      %v3987 = vrot.slane %v3986, 2
      %v3988 = vmax.f32 %v3986, %v3987
      %v3989 = vrot.slane %v3988, 1
      %v3990 = vmax.f32 %v3988, %v3989
      %v3991 = vsel %vm3031, %v2280, -inf
      %v3992 = vrot.slane %v3991, 4
      %v3993 = vmax.f32 %v3991, %v3992
      %v3994 = vrot.slane %v3993, 2
      %v3995 = vmax.f32 %v3993, %v3994
      %v3996 = vrot.slane %v3995, 1
      %v3997 = vmax.f32 %v3995, %v3996
      %v3998 = vsel %vm3031, %v2279, -inf
      %v3999 = vrot.slane %v3998, 4
      %v4000 = vmax.f32 %v3998, %v3999
      %v4001 = vrot.slane %v4000, 2
      %v4002 = vmax.f32 %v4000, %v4001
      %v4003 = vrot.slane %v4002, 1
      %v4004 = vmax.f32 %v4002, %v4003
      %v4005 = vsel %vm3031, %v2281, -inf
      %v4006 = vrot.slane %v4005, 4
      %v4007 = vmax.f32 %v4005, %v4006
      %v4008 = vrot.slane %v4007, 2
      %v4009 = vmax.f32 %v4007, %v4008
      %v4010 = vrot.slane %v4009, 1
      %v4011 = vmax.f32 %v4009, %v4010
      %v4012 = vsel %vm3031, %v2289, -inf
      %v4013 = vrot.slane %v4012, 4
      %v4014 = vmax.f32 %v4012, %v4013
      %v4015 = vrot.slane %v4014, 2
      %v4016 = vmax.f32 %v4014, %v4015
      %v4017 = vrot.slane %v4016, 1
      %v4018 = vmax.f32 %v4016, %v4017
      %v4019 = vsel %vm3031, %v2297, -inf
      %v4020 = vrot.slane %v4019, 4
      %v4021 = vmax.f32 %v4019, %v4020
      %v4022 = vrot.slane %v4021, 2
      %v4023 = vmax.f32 %v4021, %v4022
      %v4024 = vrot.slane %v4023, 1
      %v4025 = vmax.f32 %v4023, %v4024
      %v4026 = vsel %vm3031, %v2296, -inf
      %v4027 = vrot.slane %v4026, 4
      %v4028 = vmax.f32 %v4026, %v4027
      %v4029 = vrot.slane %v4028, 2
      %v4030 = vmax.f32 %v4028, %v4029
      %v4031 = vrot.slane %v4030, 1
      %v4032 = vmax.f32 %v4030, %v4031
      %v4033 = vsel %vm3031, %v2298, -inf
      %v4034 = vrot.slane %v4033, 4
      %v4035 = vmax.f32 %v4033, %v4034
      %v4036 = vrot.slane %v4035, 2
      %v4037 = vmax.f32 %v4035, %v4036
      %v4038 = vrot.slane %v4037, 1
      %v4039 = vmax.f32 %v4037, %v4038
      %v4040 = vsel %vm3031, %v2306, -inf
      %v4041 = vrot.slane %v4040, 4
      %v4042 = vmax.f32 %v4040, %v4041
      %v4043 = vrot.slane %v4042, 2
      %v4044 = vmax.f32 %v4042, %v4043
      %v4045 = vrot.slane %v4044, 1
      %v4046 = vmax.f32 %v4044, %v4045
      %v4047 = vsel %vm3031, %v2314, -inf
      %v4048 = vrot.slane %v4047, 4
      %v4049 = vmax.f32 %v4047, %v4048
      %v4050 = vrot.slane %v4049, 2
      %v4051 = vmax.f32 %v4049, %v4050
      %v4052 = vrot.slane %v4051, 1
      %v4053 = vmax.f32 %v4051, %v4052
      %v4054 = vsel %vm3031, %v2313, -inf
      %v4055 = vrot.slane %v4054, 4
      %v4056 = vmax.f32 %v4054, %v4055
      %v4057 = vrot.slane %v4056, 2
      %v4058 = vmax.f32 %v4056, %v4057
      %v4059 = vrot.slane %v4058, 1
      %v4060 = vmax.f32 %v4058, %v4059
      %v4061 = vsel %vm3031, %v2315, -inf
      %v4062 = vrot.slane %v4061, 4
      %v4063 = vmax.f32 %v4061, %v4062
      %v4064 = vrot.slane %v4063, 2
      %v4065 = vmax.f32 %v4063, %v4064
      %v4066 = vrot.slane %v4065, 1
      %v4067 = vmax.f32 %v4065, %v4066
      %v4068 = vsel %vm3031, %v2323, -inf
      %v4069 = vrot.slane %v4068, 4
      %v4070 = vmax.f32 %v4068, %v4069
      %v4071 = vrot.slane %v4070, 2
      %v4072 = vmax.f32 %v4070, %v4071
      %v4073 = vrot.slane %v4072, 1
      %v4074 = vmax.f32 %v4072, %v4073
      %v4075 = vsel %vm3031, %v2331, -inf
      %v4076 = vrot.slane %v4075, 4
      %v4077 = vmax.f32 %v4075, %v4076
      %v4078 = vrot.slane %v4077, 2
      %v4079 = vmax.f32 %v4077, %v4078
      %v4080 = vrot.slane %v4079, 1
      %v4081 = vmax.f32 %v4079, %v4080
      %v4082 = vsel %vm3031, %v2330, -inf
      %v4083 = vrot.slane %v4082, 4
      %v4084 = vmax.f32 %v4082, %v4083
      %v4085 = vrot.slane %v4084, 2
      %v4086 = vmax.f32 %v4084, %v4085
      %v4087 = vrot.slane %v4086, 1
      %v4088 = vmax.f32 %v4086, %v4087
      %v4089 = vsel %vm3031, %v2332, -inf
      %v4090 = vrot.slane %v4089, 4
      %v4091 = vmax.f32 %v4089, %v4090
      %v4092 = vrot.slane %v4091, 2
      %v4093 = vmax.f32 %v4091, %v4092
      %v4094 = vrot.slane %v4093, 1
      %v4095 = vmax.f32 %v4093, %v4094
      %v4096 = vsel %vm3031, %v2340, -inf
      %v4097 = vrot.slane %v4096, 4
      %v4098 = vmax.f32 %v4096, %v4097
      %v4099 = vrot.slane %v4098, 2
      %v4100 = vmax.f32 %v4098, %v4099
      %v4101 = vrot.slane %v4100, 1
      %v4102 = vmax.f32 %v4100, %v4101
      %v4103 = vsel %vm3031, %v2348, -inf
      %v4104 = vrot.slane %v4103, 4
      %v4105 = vmax.f32 %v4103, %v4104
      %v4106 = vrot.slane %v4105, 2
      %v4107 = vmax.f32 %v4105, %v4106
      %v4108 = vrot.slane %v4107, 1
      %v4109 = vmax.f32 %v4107, %v4108
      %v4110 = vsel %vm3031, %v2347, -inf
      %v4111 = vrot.slane %v4110, 4
      %v4112 = vmax.f32 %v4110, %v4111
      %v4113 = vrot.slane %v4112, 2
      %v4114 = vmax.f32 %v4112, %v4113
      %v4115 = vrot.slane %v4114, 1
      %v4116 = vmax.f32 %v4114, %v4115
      %v4117 = vsel %vm3031, %v2349, -inf
      %v4118 = vrot.slane %v4117, 4
      %v4119 = vmax.f32 %v4117, %v4118
      %v4120 = vrot.slane %v4119, 2
      %v4121 = vmax.f32 %v4119, %v4120
      %v4122 = vrot.slane %v4121, 1
      %v4123 = vmax.f32 %v4121, %v4122
      %v4124 = vsel %vm3031, %v2357, -inf
      %v4125 = vrot.slane %v4124, 4
      %v4126 = vmax.f32 %v4124, %v4125
      %v4127 = vrot.slane %v4126, 2
      %v4128 = vmax.f32 %v4126, %v4127
      %v4129 = vrot.slane %v4128, 1
      %v4130 = vmax.f32 %v4128, %v4129
      %v4131 = vsel %vm3031, %v2365, -inf
      %v4132 = vrot.slane %v4131, 4
      %v4133 = vmax.f32 %v4131, %v4132
      %v4134 = vrot.slane %v4133, 2
      %v4135 = vmax.f32 %v4133, %v4134
      %v4136 = vrot.slane %v4135, 1
      %v4137 = vmax.f32 %v4135, %v4136
      %v4138 = vsel %vm3031, %v2364, -inf
      %v4139 = vrot.slane %v4138, 4
      %v4140 = vmax.f32 %v4138, %v4139
      %v4141 = vrot.slane %v4140, 2
      %v4142 = vmax.f32 %v4140, %v4141
      %v4143 = vrot.slane %v4142, 1
      %v4144 = vmax.f32 %v4142, %v4143
      %v4145 = vsel %vm3031, %v2366, -inf
      %v4146 = vrot.slane %v4145, 4
      %v4147 = vmax.f32 %v4145, %v4146
      %v4148 = vrot.slane %v4147, 2
      %v4149 = vmax.f32 %v4147, %v4148
      %v4150 = vrot.slane %v4149, 1
      %v4151 = vmax.f32 %v4149, %v4150
      %v4152 = vsel %vm3031, %v2374, -inf
      %v4153 = vrot.slane %v4152, 4
      %v4154 = vmax.f32 %v4152, %v4153
      %v4155 = vrot.slane %v4154, 2
      %v4156 = vmax.f32 %v4154, %v4155
      %v4157 = vrot.slane %v4156, 1
      %v4158 = vmax.f32 %v4156, %v4157
      %v4159 = vsel %vm3031, %v2382, -inf
      %v4160 = vrot.slane %v4159, 4
      %v4161 = vmax.f32 %v4159, %v4160
      %v4162 = vrot.slane %v4161, 2
      %v4163 = vmax.f32 %v4161, %v4162
      %v4164 = vrot.slane %v4163, 1
      %v4165 = vmax.f32 %v4163, %v4164
      %v4166 = vsel %vm3031, %v2381, -inf
      %v4167 = vrot.slane %v4166, 4
      %v4168 = vmax.f32 %v4166, %v4167
      %v4169 = vrot.slane %v4168, 2
      %v4170 = vmax.f32 %v4168, %v4169
      %v4171 = vrot.slane %v4170, 1
      %v4172 = vmax.f32 %v4170, %v4171
      %v4173 = vsel %vm3031, %v2383, -inf
      %v4174 = vrot.slane %v4173, 4
      %v4175 = vmax.f32 %v4173, %v4174
      %v4176 = vrot.slane %v4175, 2
      %v4177 = vmax.f32 %v4175, %v4176
      %v4178 = vrot.slane %v4177, 1
      %v4179 = vmax.f32 %v4177, %v4178
      %v4180 = vsel %vm3031, %v2391, -inf
      %v4181 = vrot.slane %v4180, 4
      %v4182 = vmax.f32 %v4180, %v4181
      %v4183 = vrot.slane %v4182, 2
      %v4184 = vmax.f32 %v4182, %v4183
      %v4185 = vrot.slane %v4184, 1
      %v4186 = vmax.f32 %v4184, %v4185
      %v4187 = vsel %vm3031, %v2399, -inf
      %v4188 = vrot.slane %v4187, 4
      %v4189 = vmax.f32 %v4187, %v4188
      %v4190 = vrot.slane %v4189, 2
      %v4191 = vmax.f32 %v4189, %v4190
      %v4192 = vrot.slane %v4191, 1
      %v4193 = vmax.f32 %v4191, %v4192
      %v4194 = vsel %vm3031, %v2398, -inf
      %v4195 = vrot.slane %v4194, 4
      %v4196 = vmax.f32 %v4194, %v4195
      %v4197 = vrot.slane %v4196, 2
      %v4198 = vmax.f32 %v4196, %v4197
      %v4199 = vrot.slane %v4198, 1
      %v4200 = vmax.f32 %v4198, %v4199
      %v4201 = vsel %vm3031, %v2400, -inf
      %v4202 = vrot.slane %v4201, 4
      %v4203 = vmax.f32 %v4201, %v4202
      %v4204 = vrot.slane %v4203, 2
      %v4205 = vmax.f32 %v4203, %v4204
      %v4206 = vrot.slane %v4205, 1
      %v4207 = vmax.f32 %v4205, %v4206
      %v4208 = vsel %vm3031, %v2408, -inf
      %v4209 = vrot.slane %v4208, 4
      %v4210 = vmax.f32 %v4208, %v4209
      %v4211 = vrot.slane %v4210, 2
      %v4212 = vmax.f32 %v4210, %v4211
      %v4213 = vrot.slane %v4212, 1
      %v4214 = vmax.f32 %v4212, %v4213
      %v4215 = vsel %vm3031, %v2416, -inf
      %v4216 = vrot.slane %v4215, 4
      %v4217 = vmax.f32 %v4215, %v4216
      %v4218 = vrot.slane %v4217, 2
      %v4219 = vmax.f32 %v4217, %v4218
      %v4220 = vrot.slane %v4219, 1
      %v4221 = vmax.f32 %v4219, %v4220
      %v4222 = vsel %vm3031, %v2415, -inf
      %v4223 = vrot.slane %v4222, 4
      %v4224 = vmax.f32 %v4222, %v4223
      %v4225 = vrot.slane %v4224, 2
      %v4226 = vmax.f32 %v4224, %v4225
      %v4227 = vrot.slane %v4226, 1
      %v4228 = vmax.f32 %v4226, %v4227
      %v4229 = vsel %vm3031, %v2417, -inf
      %v4230 = vrot.slane %v4229, 4
      %v4231 = vmax.f32 %v4229, %v4230
      %v4232 = vrot.slane %v4231, 2
      %v4233 = vmax.f32 %v4231, %v4232
      %v4234 = vrot.slane %v4233, 1
      %v4235 = vmax.f32 %v4233, %v4234
      %v4236 = vsel %vm3031, %v2425, -inf
      %v4237 = vrot.slane %v4236, 4
      %v4238 = vmax.f32 %v4236, %v4237
      %v4239 = vrot.slane %v4238, 2
      %v4240 = vmax.f32 %v4238, %v4239
      %v4241 = vrot.slane %v4240, 1
      %v4242 = vmax.f32 %v4240, %v4241
      %v4243 = vsel %vm3031, %v2433, -inf
      %v4244 = vrot.slane %v4243, 4
      %v4245 = vmax.f32 %v4243, %v4244
      %v4246 = vrot.slane %v4245, 2
      %v4247 = vmax.f32 %v4245, %v4246
      %v4248 = vrot.slane %v4247, 1
      %v4249 = vmax.f32 %v4247, %v4248
      %v4250 = vsel %vm3031, %v2432, -inf
      %v4251 = vrot.slane %v4250, 4
      %v4252 = vmax.f32 %v4250, %v4251
      %v4253 = vrot.slane %v4252, 2
      %v4254 = vmax.f32 %v4252, %v4253
      %v4255 = vrot.slane %v4254, 1
      %v4256 = vmax.f32 %v4254, %v4255
      %v4257 = vsel %vm3031, %v2434, -inf
      %v4258 = vrot.slane %v4257, 4
      %v4259 = vmax.f32 %v4257, %v4258
      %v4260 = vrot.slane %v4259, 2
      %v4261 = vmax.f32 %v4259, %v4260
      %v4262 = vrot.slane %v4261, 1
      %v4263 = vmax.f32 %v4261, %v4262
      %v4264 = vsel %vm3031, %v2442, -inf
      %v4265 = vrot.slane %v4264, 4
      %v4266 = vmax.f32 %v4264, %v4265
      %v4267 = vrot.slane %v4266, 2
      %v4268 = vmax.f32 %v4266, %v4267
      %v4269 = vrot.slane %v4268, 1
      %v4270 = vmax.f32 %v4268, %v4269
      %v4271 = vsel %vm3031, %v2450, -inf
      %v4272 = vrot.slane %v4271, 4
      %v4273 = vmax.f32 %v4271, %v4272
      %v4274 = vrot.slane %v4273, 2
      %v4275 = vmax.f32 %v4273, %v4274
      %v4276 = vrot.slane %v4275, 1
      %v4277 = vmax.f32 %v4275, %v4276
      %v4278 = vsel %vm3031, %v2449, -inf
      %v4279 = vrot.slane %v4278, 4
      %v4280 = vmax.f32 %v4278, %v4279
      %v4281 = vrot.slane %v4280, 2
      %v4282 = vmax.f32 %v4280, %v4281
      %v4283 = vrot.slane %v4282, 1
      %v4284 = vmax.f32 %v4282, %v4283
      %v4285 = vsel %vm3031, %v2451, -inf
      %v4286 = vrot.slane %v4285, 4
      %v4287 = vmax.f32 %v4285, %v4286
      %v4288 = vrot.slane %v4287, 2
      %v4289 = vmax.f32 %v4287, %v4288
      %v4290 = vrot.slane %v4289, 1
      %v4291 = vmax.f32 %v4289, %v4290
      %v4292 = vsel %vm3031, %v2459, -inf
      %v4293 = vrot.slane %v4292, 4
      %v4294 = vmax.f32 %v4292, %v4293
      %v4295 = vrot.slane %v4294, 2
      %v4296 = vmax.f32 %v4294, %v4295
      %v4297 = vrot.slane %v4296, 1
      %v4298 = vmax.f32 %v4296, %v4297
      %v4299 = vsel %vm3031, %v2467, -inf
      %v4300 = vrot.slane %v4299, 4
      %v4301 = vmax.f32 %v4299, %v4300
      %v4302 = vrot.slane %v4301, 2
      %v4303 = vmax.f32 %v4301, %v4302
      %v4304 = vrot.slane %v4303, 1
      %v4305 = vmax.f32 %v4303, %v4304
      %v4306 = vsel %vm3031, %v2466, -inf
      %v4307 = vrot.slane %v4306, 4
      %v4308 = vmax.f32 %v4306, %v4307
      %v4309 = vrot.slane %v4308, 2
      %v4310 = vmax.f32 %v4308, %v4309
      %v4311 = vrot.slane %v4310, 1
      %v4312 = vmax.f32 %v4310, %v4311
      %v4313 = vsel %vm3031, %v2468, -inf
      %v4314 = vrot.slane %v4313, 4
      %v4315 = vmax.f32 %v4313, %v4314
      %v4316 = vrot.slane %v4315, 2
      %v4317 = vmax.f32 %v4315, %v4316
      %v4318 = vrot.slane %v4317, 1
      %v4319 = vmax.f32 %v4317, %v4318
      %v4320 = vsel %vm3031, %v2476, -inf
      %v4321 = vrot.slane %v4320, 4
      %v4322 = vmax.f32 %v4320, %v4321
      %v4323 = vrot.slane %v4322, 2
      %v4324 = vmax.f32 %v4322, %v4323
      %v4325 = vrot.slane %v4324, 1
      %v4326 = vmax.f32 %v4324, %v4325
      %v4327 = vsel %vm3031, %v2484, -inf
      %v4328 = vrot.slane %v4327, 4
      %v4329 = vmax.f32 %v4327, %v4328
      %v4330 = vrot.slane %v4329, 2
      %v4331 = vmax.f32 %v4329, %v4330
      %v4332 = vrot.slane %v4331, 1
      %v4333 = vmax.f32 %v4331, %v4332
      %v4334 = vsel %vm3031, %v2483, -inf
      %v4335 = vrot.slane %v4334, 4
      %v4336 = vmax.f32 %v4334, %v4335
      %v4337 = vrot.slane %v4336, 2
      %v4338 = vmax.f32 %v4336, %v4337
      %v4339 = vrot.slane %v4338, 1
      %v4340 = vmax.f32 %v4338, %v4339
      %v4341 = vsel %vm3031, %v2485, -inf
      %v4342 = vrot.slane %v4341, 4
      %v4343 = vmax.f32 %v4341, %v4342
      %v4344 = vrot.slane %v4343, 2
      %v4345 = vmax.f32 %v4343, %v4344
      %v4346 = vrot.slane %v4345, 1
      %v4347 = vmax.f32 %v4345, %v4346
      %v4348 = vsel %vm3031, %v2493, -inf
      %v4349 = vrot.slane %v4348, 4
      %v4350 = vmax.f32 %v4348, %v4349
      %v4351 = vrot.slane %v4350, 2
      %v4352 = vmax.f32 %v4350, %v4351
      %v4353 = vrot.slane %v4352, 1
      %v4354 = vmax.f32 %v4352, %v4353
      %v4355 = vsel %vm3031, %v2501, -inf
      %v4356 = vrot.slane %v4355, 4
      %v4357 = vmax.f32 %v4355, %v4356
      %v4358 = vrot.slane %v4357, 2
      %v4359 = vmax.f32 %v4357, %v4358
      %v4360 = vrot.slane %v4359, 1
      %v4361 = vmax.f32 %v4359, %v4360
      %v4362 = vsel %vm3031, %v2500, -inf
      %v4363 = vrot.slane %v4362, 4
      %v4364 = vmax.f32 %v4362, %v4363
      %v4365 = vrot.slane %v4364, 2
      %v4366 = vmax.f32 %v4364, %v4365
      %v4367 = vrot.slane %v4366, 1
      %v4368 = vmax.f32 %v4366, %v4367
      %v4369 = vsel %vm3031, %v2502, -inf
      %v4370 = vrot.slane %v4369, 4
      %v4371 = vmax.f32 %v4369, %v4370
      %v4372 = vrot.slane %v4371, 2
      %v4373 = vmax.f32 %v4371, %v4372
      %v4374 = vrot.slane %v4373, 1
      %v4375 = vmax.f32 %v4373, %v4374
      %v4376 = vsel %vm3031, %v2510, -inf
      %v4377 = vrot.slane %v4376, 4
      %v4378 = vmax.f32 %v4376, %v4377
      %v4379 = vrot.slane %v4378, 2
      %v4380 = vmax.f32 %v4378, %v4379
      %v4381 = vrot.slane %v4380, 1
      %v4382 = vmax.f32 %v4380, %v4381
      %v4383 = vsel %vm3031, %v2518, -inf
      %v4384 = vrot.slane %v4383, 4
      %v4385 = vmax.f32 %v4383, %v4384
      %v4386 = vrot.slane %v4385, 2
      %v4387 = vmax.f32 %v4385, %v4386
      %v4388 = vrot.slane %v4387, 1
      %v4389 = vmax.f32 %v4387, %v4388
      %v4390 = vsel %vm3031, %v2517, -inf
      %v4391 = vrot.slane %v4390, 4
      %v4392 = vmax.f32 %v4390, %v4391
      %v4393 = vrot.slane %v4392, 2
      %v4394 = vmax.f32 %v4392, %v4393
      %v4395 = vrot.slane %v4394, 1
      %v4396 = vmax.f32 %v4394, %v4395
      %v4397 = vsel %vm3031, %v2519, -inf
      %v4398 = vrot.slane %v4397, 4
      %v4399 = vmax.f32 %v4397, %v4398
      %v4400 = vrot.slane %v4399, 2
      %v4401 = vmax.f32 %v4399, %v4400
      %v4402 = vrot.slane %v4401, 1
      %v4403 = vmax.f32 %v4401, %v4402
      %v4404 = vsel %vm3031, %v2527, -inf
      %v4405 = vrot.slane %v4404, 4
      %v4406 = vmax.f32 %v4404, %v4405
      %v4407 = vrot.slane %v4406, 2
      %v4408 = vmax.f32 %v4406, %v4407
      %v4409 = vrot.slane %v4408, 1
      %v4410 = vmax.f32 %v4408, %v4409
      %v4411 = vsel %vm3031, %v2535, -inf
      %v4412 = vrot.slane %v4411, 4
      %v4413 = vmax.f32 %v4411, %v4412
      %v4414 = vrot.slane %v4413, 2
      %v4415 = vmax.f32 %v4413, %v4414
      %v4416 = vrot.slane %v4415, 1
      %v4417 = vmax.f32 %v4415, %v4416
      %v4418 = vsel %vm3031, %v2534, -inf
      %v4419 = vrot.slane %v4418, 4
      %v4420 = vmax.f32 %v4418, %v4419
      %v4421 = vrot.slane %v4420, 2
      %v4422 = vmax.f32 %v4420, %v4421
      %v4423 = vrot.slane %v4422, 1
      %v4424 = vmax.f32 %v4422, %v4423
      %v4425 = vsel %vm3031, %v2536, -inf
      %v4426 = vrot.slane %v4425, 4
      %v4427 = vmax.f32 %v4425, %v4426
      %v4428 = vrot.slane %v4427, 2
      %v4429 = vmax.f32 %v4427, %v4428
      %v4430 = vrot.slane %v4429, 1
      %v4431 = vmax.f32 %v4429, %v4430
      %v4432 = vsel %vm3031, %v2544, -inf
      %v4433 = vrot.slane %v4432, 4
      %v4434 = vmax.f32 %v4432, %v4433
      %v4435 = vrot.slane %v4434, 2
      %v4436 = vmax.f32 %v4434, %v4435
      %v4437 = vrot.slane %v4436, 1
      %v4438 = vmax.f32 %v4436, %v4437
      %v4439 = vsel %vm3031, %v2552, -inf
      %v4440 = vrot.slane %v4439, 4
      %v4441 = vmax.f32 %v4439, %v4440
      %v4442 = vrot.slane %v4441, 2
      %v4443 = vmax.f32 %v4441, %v4442
      %v4444 = vrot.slane %v4443, 1
      %v4445 = vmax.f32 %v4443, %v4444
      %v4446 = vsel %vm3031, %v2551, -inf
      %v4447 = vrot.slane %v4446, 4
      %v4448 = vmax.f32 %v4446, %v4447
      %v4449 = vrot.slane %v4448, 2
      %v4450 = vmax.f32 %v4448, %v4449
      %v4451 = vrot.slane %v4450, 1
      %v4452 = vmax.f32 %v4450, %v4451
      %v4453 = vsel %vm3031, %v2553, -inf
      %v4454 = vrot.slane %v4453, 4
      %v4455 = vmax.f32 %v4453, %v4454
      %v4456 = vrot.slane %v4455, 2
      %v4457 = vmax.f32 %v4455, %v4456
      %v4458 = vrot.slane %v4457, 1
      %v4459 = vmax.f32 %v4457, %v4458
      %v4460 = vsel %vm3031, %v2561, -inf
      %v4461 = vrot.slane %v4460, 4
      %v4462 = vmax.f32 %v4460, %v4461
      %v4463 = vrot.slane %v4462, 2
      %v4464 = vmax.f32 %v4462, %v4463
      %v4465 = vrot.slane %v4464, 1
      %v4466 = vmax.f32 %v4464, %v4465
      %v4467 = vsel %vm3031, %v2569, -inf
      %v4468 = vrot.slane %v4467, 4
      %v4469 = vmax.f32 %v4467, %v4468
      %v4470 = vrot.slane %v4469, 2
      %v4471 = vmax.f32 %v4469, %v4470
      %v4472 = vrot.slane %v4471, 1
      %v4473 = vmax.f32 %v4471, %v4472
      %v4474 = vsel %vm3031, %v2568, -inf
      %v4475 = vrot.slane %v4474, 4
      %v4476 = vmax.f32 %v4474, %v4475
      %v4477 = vrot.slane %v4476, 2
      %v4478 = vmax.f32 %v4476, %v4477
      %v4479 = vrot.slane %v4478, 1
      %v4480 = vmax.f32 %v4478, %v4479
      %v4481 = vsel %vm3031, %v2570, -inf
      %v4482 = vrot.slane %v4481, 4
      %v4483 = vmax.f32 %v4481, %v4482
      %v4484 = vrot.slane %v4483, 2
      %v4485 = vmax.f32 %v4483, %v4484
      %v4486 = vrot.slane %v4485, 1
      %v4487 = vmax.f32 %v4485, %v4486
      %v4488 = vsel %vm3031, %v2578, -inf
      %v4489 = vrot.slane %v4488, 4
      %v4490 = vmax.f32 %v4488, %v4489
      %v4491 = vrot.slane %v4490, 2
      %v4492 = vmax.f32 %v4490, %v4491
      %v4493 = vrot.slane %v4492, 1
      %v4494 = vmax.f32 %v4492, %v4493
      %v4495 = vsel %vm3031, %v2586, -inf
      %v4496 = vrot.slane %v4495, 4
      %v4497 = vmax.f32 %v4495, %v4496
      %v4498 = vrot.slane %v4497, 2
      %v4499 = vmax.f32 %v4497, %v4498
      %v4500 = vrot.slane %v4499, 1
      %v4501 = vmax.f32 %v4499, %v4500
      %v4502 = vsel %vm3031, %v2585, -inf
      %v4503 = vrot.slane %v4502, 4
      %v4504 = vmax.f32 %v4502, %v4503
      %v4505 = vrot.slane %v4504, 2
      %v4506 = vmax.f32 %v4504, %v4505
      %v4507 = vrot.slane %v4506, 1
      %v4508 = vmax.f32 %v4506, %v4507
      %v4509 = vsel %vm3031, %v2587, -inf
      %v4510 = vrot.slane %v4509, 4
      %v4511 = vmax.f32 %v4509, %v4510
      %v4512 = vrot.slane %v4511, 2
      %v4513 = vmax.f32 %v4511, %v4512
      %v4514 = vrot.slane %v4513, 1
      %v4515 = vmax.f32 %v4513, %v4514
      %v4516 = vsel %vm3031, %v2595, -inf
      %v4517 = vrot.slane %v4516, 4
      %v4518 = vmax.f32 %v4516, %v4517
      %v4519 = vrot.slane %v4518, 2
      %v4520 = vmax.f32 %v4518, %v4519
      %v4521 = vrot.slane %v4520, 1
      %v4522 = vmax.f32 %v4520, %v4521
      %v4523 = vsel %vm3031, %v2603, -inf
      %v4524 = vrot.slane %v4523, 4
      %v4525 = vmax.f32 %v4523, %v4524
      %v4526 = vrot.slane %v4525, 2
      %v4527 = vmax.f32 %v4525, %v4526
      %v4528 = vrot.slane %v4527, 1
      %v4529 = vmax.f32 %v4527, %v4528
      %v4530 = vsel %vm3031, %v2602, -inf
      %v4531 = vrot.slane %v4530, 4
      %v4532 = vmax.f32 %v4530, %v4531
      %v4533 = vrot.slane %v4532, 2
      %v4534 = vmax.f32 %v4532, %v4533
      %v4535 = vrot.slane %v4534, 1
      %v4536 = vmax.f32 %v4534, %v4535
      %v4537 = vsel %vm3031, %v2604, -inf
      %v4538 = vrot.slane %v4537, 4
      %v4539 = vmax.f32 %v4537, %v4538
      %v4540 = vrot.slane %v4539, 2
      %v4541 = vmax.f32 %v4539, %v4540
      %v4542 = vrot.slane %v4541, 1
      %v4543 = vmax.f32 %v4541, %v4542
      %v4544 = vsel %vm3031, %v2612, -inf
      %v4545 = vrot.slane %v4544, 4
      %v4546 = vmax.f32 %v4544, %v4545
      %v4547 = vrot.slane %v4546, 2
      %v4548 = vmax.f32 %v4546, %v4547
      %v4549 = vrot.slane %v4548, 1
      %v4550 = vmax.f32 %v4548, %v4549
      %v4551 = vsel %vm3031, %v2620, -inf
      %v4552 = vrot.slane %v4551, 4
      %v4553 = vmax.f32 %v4551, %v4552
      %v4554 = vrot.slane %v4553, 2
      %v4555 = vmax.f32 %v4553, %v4554
      %v4556 = vrot.slane %v4555, 1
      %v4557 = vmax.f32 %v4555, %v4556
      %v4558 = vsel %vm3031, %v2619, -inf
      %v4559 = vrot.slane %v4558, 4
      %v4560 = vmax.f32 %v4558, %v4559
      %v4561 = vrot.slane %v4560, 2
      %v4562 = vmax.f32 %v4560, %v4561
      %v4563 = vrot.slane %v4562, 1
      %v4564 = vmax.f32 %v4562, %v4563
      %v4565 = vsel %vm3031, %v2621, -inf
      %v4566 = vrot.slane %v4565, 4
      %v4567 = vmax.f32 %v4565, %v4566
      %v4568 = vrot.slane %v4567, 2
      %v4569 = vmax.f32 %v4567, %v4568
      %v4570 = vrot.slane %v4569, 1
      %v4571 = vmax.f32 %v4569, %v4570
      %v4572 = vsel %vm3031, %v2629, -inf
      %v4573 = vrot.slane %v4572, 4
      %v4574 = vmax.f32 %v4572, %v4573
      %v4575 = vrot.slane %v4574, 2
      %v4576 = vmax.f32 %v4574, %v4575
      %v4577 = vrot.slane %v4576, 1
      %v4578 = vmax.f32 %v4576, %v4577
      %v4579 = vsel %vm3031, %v2637, -inf
      %v4580 = vrot.slane %v4579, 4
      %v4581 = vmax.f32 %v4579, %v4580
      %v4582 = vrot.slane %v4581, 2
      %v4583 = vmax.f32 %v4581, %v4582
      %v4584 = vrot.slane %v4583, 1
      %v4585 = vmax.f32 %v4583, %v4584
      %v4586 = vsel %vm3031, %v2636, -inf
      %v4587 = vrot.slane %v4586, 4
      %v4588 = vmax.f32 %v4586, %v4587
      %v4589 = vrot.slane %v4588, 2
      %v4590 = vmax.f32 %v4588, %v4589
      %v4591 = vrot.slane %v4590, 1
      %v4592 = vmax.f32 %v4590, %v4591
      %v4593 = vsel %vm3031, %v2638, -inf
      %v4594 = vrot.slane %v4593, 4
      %v4595 = vmax.f32 %v4593, %v4594
      %v4596 = vrot.slane %v4595, 2
      %v4597 = vmax.f32 %v4595, %v4596
      %v4598 = vrot.slane %v4597, 1
      %v4599 = vmax.f32 %v4597, %v4598
      %v4600 = vsel %vm3031, %v2646, -inf
      %v4601 = vrot.slane %v4600, 4
      %v4602 = vmax.f32 %v4600, %v4601
      %v4603 = vrot.slane %v4602, 2
      %v4604 = vmax.f32 %v4602, %v4603
      %v4605 = vrot.slane %v4604, 1
      %v4606 = vmax.f32 %v4604, %v4605
      %v4607 = vsel %vm3031, %v2654, -inf
      %v4608 = vrot.slane %v4607, 4
      %v4609 = vmax.f32 %v4607, %v4608
      %v4610 = vrot.slane %v4609, 2
      %v4611 = vmax.f32 %v4609, %v4610
      %v4612 = vrot.slane %v4611, 1
      %v4613 = vmax.f32 %v4611, %v4612
      %v4614 = vsel %vm3031, %v2653, -inf
      %v4615 = vrot.slane %v4614, 4
      %v4616 = vmax.f32 %v4614, %v4615
      %v4617 = vrot.slane %v4616, 2
      %v4618 = vmax.f32 %v4616, %v4617
      %v4619 = vrot.slane %v4618, 1
      %v4620 = vmax.f32 %v4618, %v4619
      %v4621 = vsel %vm3031, %v2655, -inf
      %v4622 = vrot.slane %v4621, 4
      %v4623 = vmax.f32 %v4621, %v4622
      %v4624 = vrot.slane %v4623, 2
      %v4625 = vmax.f32 %v4623, %v4624
      %v4626 = vrot.slane %v4625, 1
      %v4627 = vmax.f32 %v4625, %v4626
      %v4628 = vsel %vm3031, %v2663, -inf
      %v4629 = vrot.slane %v4628, 4
      %v4630 = vmax.f32 %v4628, %v4629
      %v4631 = vrot.slane %v4630, 2
      %v4632 = vmax.f32 %v4630, %v4631
      %v4633 = vrot.slane %v4632, 1
      %v4634 = vmax.f32 %v4632, %v4633
      %v4635 = vsel %vm3031, %v2671, -inf
      %v4636 = vrot.slane %v4635, 4
      %v4637 = vmax.f32 %v4635, %v4636
      %v4638 = vrot.slane %v4637, 2
      %v4639 = vmax.f32 %v4637, %v4638
      %v4640 = vrot.slane %v4639, 1
      %v4641 = vmax.f32 %v4639, %v4640
      %v4642 = vsel %vm3031, %v2670, -inf
      %v4643 = vrot.slane %v4642, 4
      %v4644 = vmax.f32 %v4642, %v4643
      %v4645 = vrot.slane %v4644, 2
      %v4646 = vmax.f32 %v4644, %v4645
      %v4647 = vrot.slane %v4646, 1
      %v4648 = vmax.f32 %v4646, %v4647
      %v4649 = vsel %vm3031, %v2672, -inf
      %v4650 = vrot.slane %v4649, 4
      %v4651 = vmax.f32 %v4649, %v4650
      %v4652 = vrot.slane %v4651, 2
      %v4653 = vmax.f32 %v4651, %v4652
      %v4654 = vrot.slane %v4653, 1
      %v4655 = vmax.f32 %v4653, %v4654
      %v4656 = vsel %vm3031, %v2680, -inf
      %v4657 = vrot.slane %v4656, 4
      %v4658 = vmax.f32 %v4656, %v4657
      %v4659 = vrot.slane %v4658, 2
      %v4660 = vmax.f32 %v4658, %v4659
      %v4661 = vrot.slane %v4660, 1
      %v4662 = vmax.f32 %v4660, %v4661
      %v4663 = vsel %vm3031, %v2688, -inf
      %v4664 = vrot.slane %v4663, 4
      %v4665 = vmax.f32 %v4663, %v4664
      %v4666 = vrot.slane %v4665, 2
      %v4667 = vmax.f32 %v4665, %v4666
      %v4668 = vrot.slane %v4667, 1
      %v4669 = vmax.f32 %v4667, %v4668
      %v4670 = vsel %vm3031, %v2687, -inf
      %v4671 = vrot.slane %v4670, 4
      %v4672 = vmax.f32 %v4670, %v4671
      %v4673 = vrot.slane %v4672, 2
      %v4674 = vmax.f32 %v4672, %v4673
      %v4675 = vrot.slane %v4674, 1
      %v4676 = vmax.f32 %v4674, %v4675
      %v4677 = vsel %vm3031, %v2689, -inf
      %v4678 = vrot.slane %v4677, 4
      %v4679 = vmax.f32 %v4677, %v4678
      %v4680 = vrot.slane %v4679, 2
      %v4681 = vmax.f32 %v4679, %v4680
      %v4682 = vrot.slane %v4681, 1
      %v4683 = vmax.f32 %v4681, %v4682
      %v4684 = vsel %vm3031, %v2697, -inf
      %v4685 = vrot.slane %v4684, 4
      %v4686 = vmax.f32 %v4684, %v4685
      %v4687 = vrot.slane %v4686, 2
      %v4688 = vmax.f32 %v4686, %v4687
      %v4689 = vrot.slane %v4688, 1
      %v4690 = vmax.f32 %v4688, %v4689
      %v4691 = vsel %vm3031, %v2705, -inf
      %v4692 = vrot.slane %v4691, 4
      %v4693 = vmax.f32 %v4691, %v4692
      %v4694 = vrot.slane %v4693, 2
      %v4695 = vmax.f32 %v4693, %v4694
      %v4696 = vrot.slane %v4695, 1
      %v4697 = vmax.f32 %v4695, %v4696
      %v4698 = vsel %vm3031, %v2704, -inf
      %v4699 = vrot.slane %v4698, 4
      %v4700 = vmax.f32 %v4698, %v4699
      %v4701 = vrot.slane %v4700, 2
      %v4702 = vmax.f32 %v4700, %v4701
      %v4703 = vrot.slane %v4702, 1
      %v4704 = vmax.f32 %v4702, %v4703
      %v4705 = vsel %vm3031, %v2706, -inf
      %v4706 = vrot.slane %v4705, 4
      %v4707 = vmax.f32 %v4705, %v4706
      %v4708 = vrot.slane %v4707, 2
      %v4709 = vmax.f32 %v4707, %v4708
      %v4710 = vrot.slane %v4709, 1
      %v4711 = vmax.f32 %v4709, %v4710
      %v4712 = vsel %vm3031, %v2714, -inf
      %v4713 = vrot.slane %v4712, 4
      %v4714 = vmax.f32 %v4712, %v4713
      %v4715 = vrot.slane %v4714, 2
      %v4716 = vmax.f32 %v4714, %v4715
      %v4717 = vrot.slane %v4716, 1
      %v4718 = vmax.f32 %v4716, %v4717
      %v4719 = vsel %vm3031, %v2722, -inf
      %v4720 = vrot.slane %v4719, 4
      %v4721 = vmax.f32 %v4719, %v4720
      %v4722 = vrot.slane %v4721, 2
      %v4723 = vmax.f32 %v4721, %v4722
      %v4724 = vrot.slane %v4723, 1
      %v4725 = vmax.f32 %v4723, %v4724
      %v4726 = vsel %vm3031, %v2721, -inf
      %v4727 = vrot.slane %v4726, 4
      %v4728 = vmax.f32 %v4726, %v4727
      %v4729 = vrot.slane %v4728, 2
      %v4730 = vmax.f32 %v4728, %v4729
      %v4731 = vrot.slane %v4730, 1
      %v4732 = vmax.f32 %v4730, %v4731
      %v4733 = vsel %vm3031, %v2723, -inf
      %v4734 = vrot.slane %v4733, 4
      %v4735 = vmax.f32 %v4733, %v4734
      %v4736 = vrot.slane %v4735, 2
      %v4737 = vmax.f32 %v4735, %v4736
      %v4738 = vrot.slane %v4737, 1
      %v4739 = vmax.f32 %v4737, %v4738
      %v4740 = vsel %vm3031, %v2731, -inf
      %v4741 = vrot.slane %v4740, 4
      %v4742 = vmax.f32 %v4740, %v4741
      %v4743 = vrot.slane %v4742, 2
      %v4744 = vmax.f32 %v4742, %v4743
      %v4745 = vrot.slane %v4744, 1
      %v4746 = vmax.f32 %v4744, %v4745
      %v4747 = vsel %vm3031, %v2739, -inf
      %v4748 = vrot.slane %v4747, 4
      %v4749 = vmax.f32 %v4747, %v4748
      %v4750 = vrot.slane %v4749, 2
      %v4751 = vmax.f32 %v4749, %v4750
      %v4752 = vrot.slane %v4751, 1
      %v4753 = vmax.f32 %v4751, %v4752
      %v4754 = vsel %vm3031, %v2738, -inf
      %v4755 = vrot.slane %v4754, 4
      %v4756 = vmax.f32 %v4754, %v4755
      %v4757 = vrot.slane %v4756, 2
      %v4758 = vmax.f32 %v4756, %v4757
      %v4759 = vrot.slane %v4758, 1
      %v4760 = vmax.f32 %v4758, %v4759
      %v4761 = vsel %vm3031, %v2740, -inf
      %v4762 = vrot.slane %v4761, 4
      %v4763 = vmax.f32 %v4761, %v4762
      %v4764 = vrot.slane %v4763, 2
      %v4765 = vmax.f32 %v4763, %v4764
      %v4766 = vrot.slane %v4765, 1
      %v4767 = vmax.f32 %v4765, %v4766
      %v4768 = vsel %vm3031, %v2748, -inf
      %v4769 = vrot.slane %v4768, 4
      %v4770 = vmax.f32 %v4768, %v4769
      %v4771 = vrot.slane %v4770, 2
      %v4772 = vmax.f32 %v4770, %v4771
      %v4773 = vrot.slane %v4772, 1
      %v4774 = vmax.f32 %v4772, %v4773
      %v4775 = vsel %vm3031, %v2756, -inf
      %v4776 = vrot.slane %v4775, 4
      %v4777 = vmax.f32 %v4775, %v4776
      %v4778 = vrot.slane %v4777, 2
      %v4779 = vmax.f32 %v4777, %v4778
      %v4780 = vrot.slane %v4779, 1
      %v4781 = vmax.f32 %v4779, %v4780
      %v4782 = vsel %vm3031, %v2755, -inf
      %v4783 = vrot.slane %v4782, 4
      %v4784 = vmax.f32 %v4782, %v4783
      %v4785 = vrot.slane %v4784, 2
      %v4786 = vmax.f32 %v4784, %v4785
      %v4787 = vrot.slane %v4786, 1
      %v4788 = vmax.f32 %v4786, %v4787
      %v4789 = vsel %vm3031, %v2757, -inf
      %v4790 = vrot.slane %v4789, 4
      %v4791 = vmax.f32 %v4789, %v4790
      %v4792 = vrot.slane %v4791, 2
      %v4793 = vmax.f32 %v4791, %v4792
      %v4794 = vrot.slane %v4793, 1
      %v4795 = vmax.f32 %v4793, %v4794
      %v4796 = vsel %vm3031, %v2765, -inf
      %v4797 = vrot.slane %v4796, 4
      %v4798 = vmax.f32 %v4796, %v4797
      %v4799 = vrot.slane %v4798, 2
      %v4800 = vmax.f32 %v4798, %v4799
      %v4801 = vrot.slane %v4800, 1
      %v4802 = vmax.f32 %v4800, %v4801
      %v4803 = vsel %vm3031, %v2773, -inf
      %v4804 = vrot.slane %v4803, 4
      %v4805 = vmax.f32 %v4803, %v4804
      %v4806 = vrot.slane %v4805, 2
      %v4807 = vmax.f32 %v4805, %v4806
      %v4808 = vrot.slane %v4807, 1
      %v4809 = vmax.f32 %v4807, %v4808
      %v4810 = vsel %vm3031, %v2772, -inf
      %v4811 = vrot.slane %v4810, 4
      %v4812 = vmax.f32 %v4810, %v4811
      %v4813 = vrot.slane %v4812, 2
      %v4814 = vmax.f32 %v4812, %v4813
      %v4815 = vrot.slane %v4814, 1
      %v4816 = vmax.f32 %v4814, %v4815
      %v4817 = vsel %vm3031, %v2774, -inf
      %v4818 = vrot.slane %v4817, 4
      %v4819 = vmax.f32 %v4817, %v4818
      %v4820 = vrot.slane %v4819, 2
      %v4821 = vmax.f32 %v4819, %v4820
      %v4822 = vrot.slane %v4821, 1
      %v4823 = vmax.f32 %v4821, %v4822
      %vm5080 = vcmask 1041409
      %v5081 = vsel %vm5080, %v3045, %v3038
      %vm5082 = vcmask 1042434
      %v5083 = vsel %vm5082, %v3052, %v5081
      %vm5084 = vcmask 1043459
      %v5085 = vsel %vm5084, %v3059, %v5083
      %vm5086 = vcmask 1044484
      %v5087 = vsel %vm5086, %v3066, %v5085
      %vm5088 = vcmask 1045509
      %v5089 = vsel %vm5088, %v3073, %v5087
      %vm5090 = vcmask 1046534
      %v5091 = vsel %vm5090, %v3080, %v5089
      %vm5092 = vcmask 1047559
      %v5093 = vsel %vm5092, %v3087, %v5091
      %v5094 = vsel %vm5080, %v3101, %v3094
      %v5095 = vsel %vm5082, %v3108, %v5094
      %v5096 = vsel %vm5084, %v3115, %v5095
      %v5097 = vsel %vm5086, %v3122, %v5096
      %v5098 = vsel %vm5088, %v3129, %v5097
      %v5099 = vsel %vm5090, %v3136, %v5098
      %v5100 = vsel %vm5092, %v3143, %v5099
      %v5101 = vsel %vm5080, %v3157, %v3150
      %v5102 = vsel %vm5082, %v3164, %v5101
      %v5103 = vsel %vm5084, %v3171, %v5102
      %v5104 = vsel %vm5086, %v3178, %v5103
      %v5105 = vsel %vm5088, %v3185, %v5104
      %v5106 = vsel %vm5090, %v3192, %v5105
      %v5107 = vsel %vm5092, %v3199, %v5106
      %v5108 = vsel %vm5080, %v3213, %v3206
      %v5109 = vsel %vm5082, %v3220, %v5108
      %v5110 = vsel %vm5084, %v3227, %v5109
      %v5111 = vsel %vm5086, %v3234, %v5110
      %v5112 = vsel %vm5088, %v3241, %v5111
      %v5113 = vsel %vm5090, %v3248, %v5112
      %v5114 = vsel %vm5092, %v3255, %v5113
      %v5115 = vsel %vm5080, %v3269, %v3262
      %v5116 = vsel %vm5082, %v3276, %v5115
      %v5117 = vsel %vm5084, %v3283, %v5116
      %v5118 = vsel %vm5086, %v3290, %v5117
      %v5119 = vsel %vm5088, %v3297, %v5118
      %v5120 = vsel %vm5090, %v3304, %v5119
      %v5121 = vsel %vm5092, %v3311, %v5120
      %v5122 = vsel %vm5080, %v3325, %v3318
      %v5123 = vsel %vm5082, %v3332, %v5122
      %v5124 = vsel %vm5084, %v3339, %v5123
      %v5125 = vsel %vm5086, %v3346, %v5124
      %v5126 = vsel %vm5088, %v3353, %v5125
      %v5127 = vsel %vm5090, %v3360, %v5126
      %v5128 = vsel %vm5092, %v3367, %v5127
      %v5129 = vsel %vm5080, %v3381, %v3374
      %v5130 = vsel %vm5082, %v3388, %v5129
      %v5131 = vsel %vm5084, %v3395, %v5130
      %v5132 = vsel %vm5086, %v3402, %v5131
      %v5133 = vsel %vm5088, %v3409, %v5132
      %v5134 = vsel %vm5090, %v3416, %v5133
      %v5135 = vsel %vm5092, %v3423, %v5134
      %v5136 = vsel %vm5080, %v3437, %v3430
      %v5137 = vsel %vm5082, %v3444, %v5136
      %v5138 = vsel %vm5084, %v3451, %v5137
      %v5139 = vsel %vm5086, %v3458, %v5138
      %v5140 = vsel %vm5088, %v3465, %v5139
      %v5141 = vsel %vm5090, %v3472, %v5140
      %v5142 = vsel %vm5092, %v3479, %v5141
      %v5143 = vsel %vm5080, %v3493, %v3486
      %v5144 = vsel %vm5082, %v3500, %v5143
      %v5145 = vsel %vm5084, %v3507, %v5144
      %v5146 = vsel %vm5086, %v3514, %v5145
      %v5147 = vsel %vm5088, %v3521, %v5146
      %v5148 = vsel %vm5090, %v3528, %v5147
      %v5149 = vsel %vm5092, %v3535, %v5148
      %v5150 = vsel %vm5080, %v3549, %v3542
      %v5151 = vsel %vm5082, %v3556, %v5150
      %v5152 = vsel %vm5084, %v3563, %v5151
      %v5153 = vsel %vm5086, %v3570, %v5152
      %v5154 = vsel %vm5088, %v3577, %v5153
      %v5155 = vsel %vm5090, %v3584, %v5154
      %v5156 = vsel %vm5092, %v3591, %v5155
      %v5157 = vsel %vm5080, %v3605, %v3598
      %v5158 = vsel %vm5082, %v3612, %v5157
      %v5159 = vsel %vm5084, %v3619, %v5158
      %v5160 = vsel %vm5086, %v3626, %v5159
      %v5161 = vsel %vm5088, %v3633, %v5160
      %v5162 = vsel %vm5090, %v3640, %v5161
      %v5163 = vsel %vm5092, %v3647, %v5162
      %v5164 = vsel %vm5080, %v3661, %v3654
      %v5165 = vsel %vm5082, %v3668, %v5164
      %v5166 = vsel %vm5084, %v3675, %v5165
      %v5167 = vsel %vm5086, %v3682, %v5166
      %v5168 = vsel %vm5088, %v3689, %v5167
      %v5169 = vsel %vm5090, %v3696, %v5168
      %v5170 = vsel %vm5092, %v3703, %v5169
      %v5171 = vsel %vm5080, %v3717, %v3710
      %v5172 = vsel %vm5082, %v3724, %v5171
      %v5173 = vsel %vm5084, %v3731, %v5172
      %v5174 = vsel %vm5086, %v3738, %v5173
      %v5175 = vsel %vm5088, %v3745, %v5174
      %v5176 = vsel %vm5090, %v3752, %v5175
      %v5177 = vsel %vm5092, %v3759, %v5176
      %v5178 = vsel %vm5080, %v3773, %v3766
      %v5179 = vsel %vm5082, %v3780, %v5178
      %v5180 = vsel %vm5084, %v3787, %v5179
      %v5181 = vsel %vm5086, %v3794, %v5180
      %v5182 = vsel %vm5088, %v3801, %v5181
      %v5183 = vsel %vm5090, %v3808, %v5182
      %v5184 = vsel %vm5092, %v3815, %v5183
      %v5185 = vsel %vm5080, %v3829, %v3822
      %v5186 = vsel %vm5082, %v3836, %v5185
      %v5187 = vsel %vm5084, %v3843, %v5186
      %v5188 = vsel %vm5086, %v3850, %v5187
      %v5189 = vsel %vm5088, %v3857, %v5188
      %v5190 = vsel %vm5090, %v3864, %v5189
      %v5191 = vsel %vm5092, %v3871, %v5190
      %v5192 = vsel %vm5080, %v3885, %v3878
      %v5193 = vsel %vm5082, %v3892, %v5192
      %v5194 = vsel %vm5084, %v3899, %v5193
      %v5195 = vsel %vm5086, %v3906, %v5194
      %v5196 = vsel %vm5088, %v3913, %v5195
      %v5197 = vsel %vm5090, %v3920, %v5196
      %v5198 = vsel %vm5092, %v3927, %v5197
      %v5199 = vsel %vm5080, %v3941, %v3934
      %v5200 = vsel %vm5082, %v3948, %v5199
      %v5201 = vsel %vm5084, %v3955, %v5200
      %v5202 = vsel %vm5086, %v3962, %v5201
      %v5203 = vsel %vm5088, %v3969, %v5202
      %v5204 = vsel %vm5090, %v3976, %v5203
      %v5205 = vsel %vm5092, %v3983, %v5204
      %v5206 = vsel %vm5080, %v3997, %v3990
      %v5207 = vsel %vm5082, %v4004, %v5206
      %v5208 = vsel %vm5084, %v4011, %v5207
      %v5209 = vsel %vm5086, %v4018, %v5208
      %v5210 = vsel %vm5088, %v4025, %v5209
      %v5211 = vsel %vm5090, %v4032, %v5210
      %v5212 = vsel %vm5092, %v4039, %v5211
      %v5213 = vsel %vm5080, %v4053, %v4046
      %v5214 = vsel %vm5082, %v4060, %v5213
      %v5215 = vsel %vm5084, %v4067, %v5214
      %v5216 = vsel %vm5086, %v4074, %v5215
      %v5217 = vsel %vm5088, %v4081, %v5216
      %v5218 = vsel %vm5090, %v4088, %v5217
      %v5219 = vsel %vm5092, %v4095, %v5218
      %v5220 = vsel %vm5080, %v4109, %v4102
      %v5221 = vsel %vm5082, %v4116, %v5220
      %v5222 = vsel %vm5084, %v4123, %v5221
      %v5223 = vsel %vm5086, %v4130, %v5222
      %v5224 = vsel %vm5088, %v4137, %v5223
      %v5225 = vsel %vm5090, %v4144, %v5224
      %v5226 = vsel %vm5092, %v4151, %v5225
      %v5227 = vsel %vm5080, %v4165, %v4158
      %v5228 = vsel %vm5082, %v4172, %v5227
      %v5229 = vsel %vm5084, %v4179, %v5228
      %v5230 = vsel %vm5086, %v4186, %v5229
      %v5231 = vsel %vm5088, %v4193, %v5230
      %v5232 = vsel %vm5090, %v4200, %v5231
      %v5233 = vsel %vm5092, %v4207, %v5232
      %v5234 = vsel %vm5080, %v4221, %v4214
      %v5235 = vsel %vm5082, %v4228, %v5234
      %v5236 = vsel %vm5084, %v4235, %v5235
      %v5237 = vsel %vm5086, %v4242, %v5236
      %v5238 = vsel %vm5088, %v4249, %v5237
      %v5239 = vsel %vm5090, %v4256, %v5238
      %v5240 = vsel %vm5092, %v4263, %v5239
      %v5241 = vsel %vm5080, %v4277, %v4270
      %v5242 = vsel %vm5082, %v4284, %v5241
      %v5243 = vsel %vm5084, %v4291, %v5242
      %v5244 = vsel %vm5086, %v4298, %v5243
      %v5245 = vsel %vm5088, %v4305, %v5244
      %v5246 = vsel %vm5090, %v4312, %v5245
      %v5247 = vsel %vm5092, %v4319, %v5246
      %v5248 = vsel %vm5080, %v4333, %v4326
      %v5249 = vsel %vm5082, %v4340, %v5248
      %v5250 = vsel %vm5084, %v4347, %v5249
      %v5251 = vsel %vm5086, %v4354, %v5250
      %v5252 = vsel %vm5088, %v4361, %v5251
      %v5253 = vsel %vm5090, %v4368, %v5252
      %v5254 = vsel %vm5092, %v4375, %v5253
      %v5255 = vsel %vm5080, %v4389, %v4382
      %v5256 = vsel %vm5082, %v4396, %v5255
      %v5257 = vsel %vm5084, %v4403, %v5256
      %v5258 = vsel %vm5086, %v4410, %v5257
      %v5259 = vsel %vm5088, %v4417, %v5258
      %v5260 = vsel %vm5090, %v4424, %v5259
      %v5261 = vsel %vm5092, %v4431, %v5260
      %v5262 = vsel %vm5080, %v4445, %v4438
      %v5263 = vsel %vm5082, %v4452, %v5262
      %v5264 = vsel %vm5084, %v4459, %v5263
      %v5265 = vsel %vm5086, %v4466, %v5264
      %v5266 = vsel %vm5088, %v4473, %v5265
      %v5267 = vsel %vm5090, %v4480, %v5266
      %v5268 = vsel %vm5092, %v4487, %v5267
      %v5269 = vsel %vm5080, %v4501, %v4494
      %v5270 = vsel %vm5082, %v4508, %v5269
      %v5271 = vsel %vm5084, %v4515, %v5270
      %v5272 = vsel %vm5086, %v4522, %v5271
      %v5273 = vsel %vm5088, %v4529, %v5272
      %v5274 = vsel %vm5090, %v4536, %v5273
      %v5275 = vsel %vm5092, %v4543, %v5274
      %v5276 = vsel %vm5080, %v4557, %v4550
      %v5277 = vsel %vm5082, %v4564, %v5276
      %v5278 = vsel %vm5084, %v4571, %v5277
      %v5279 = vsel %vm5086, %v4578, %v5278
      %v5280 = vsel %vm5088, %v4585, %v5279
      %v5281 = vsel %vm5090, %v4592, %v5280
      %v5282 = vsel %vm5092, %v4599, %v5281
      %v5283 = vsel %vm5080, %v4613, %v4606
      %v5284 = vsel %vm5082, %v4620, %v5283
      %v5285 = vsel %vm5084, %v4627, %v5284
      %v5286 = vsel %vm5086, %v4634, %v5285
      %v5287 = vsel %vm5088, %v4641, %v5286
      %v5288 = vsel %vm5090, %v4648, %v5287
      %v5289 = vsel %vm5092, %v4655, %v5288
      %v5290 = vsel %vm5080, %v4669, %v4662
      %v5291 = vsel %vm5082, %v4676, %v5290
      %v5292 = vsel %vm5084, %v4683, %v5291
      %v5293 = vsel %vm5086, %v4690, %v5292
      %v5294 = vsel %vm5088, %v4697, %v5293
      %v5295 = vsel %vm5090, %v4704, %v5294
      %v5296 = vsel %vm5092, %v4711, %v5295
      %v5297 = vsel %vm5080, %v4725, %v4718
      %v5298 = vsel %vm5082, %v4732, %v5297
      %v5299 = vsel %vm5084, %v4739, %v5298
      %v5300 = vsel %vm5086, %v4746, %v5299
      %v5301 = vsel %vm5088, %v4753, %v5300
      %v5302 = vsel %vm5090, %v4760, %v5301
      %v5303 = vsel %vm5092, %v4767, %v5302
      %v5304 = vsel %vm5080, %v4781, %v4774
      %v5305 = vsel %vm5082, %v4788, %v5304
      %v5306 = vsel %vm5084, %v4795, %v5305
      %v5307 = vsel %vm5086, %v4802, %v5306
      %v5308 = vsel %vm5088, %v4809, %v5307
      %v5309 = vsel %vm5090, %v4816, %v5308
      %v5310 = vsel %vm5092, %v4823, %v5309
      %vm5343 = vcmask 261120
      %5344 = vst.msk [vmem:[%s213] sm:$0xff] %vm5343, %v5093
      %5345 = vst.msk [vmem:[%s213 + $0x8] sm:$0xff] %vm5343, %v5100
      %5346 = vst.msk [vmem:[%s213 + $0x10] sm:$0xff] %vm5343, %v5107
      %5347 = vst.msk [vmem:[%s213 + $0x18] sm:$0xff] %vm5343, %v5114
      %5348 = vst.msk [vmem:[%s213 + $0x20] sm:$0xff] %vm5343, %v5121
      %5349 = vst.msk [vmem:[%s213 + $0x28] sm:$0xff] %vm5343, %v5128
      %5350 = vst.msk [vmem:[%s213 + $0x30] sm:$0xff] %vm5343, %v5135
      %5351 = vst.msk [vmem:[%s213 + $0x38] sm:$0xff] %vm5343, %v5142
      %5352 = vst.msk [vmem:[%s213 + $0x40] sm:$0xff] %vm5343, %v5149
      %5353 = vst.msk [vmem:[%s213 + $0x48] sm:$0xff] %vm5343, %v5156
      %5354 = vst.msk [vmem:[%s213 + $0x50] sm:$0xff] %vm5343, %v5163
      %5355 = vst.msk [vmem:[%s213 + $0x58] sm:$0xff] %vm5343, %v5170
      %5356 = vst.msk [vmem:[%s213 + $0x60] sm:$0xff] %vm5343, %v5177
      %5357 = vst.msk [vmem:[%s213 + $0x68] sm:$0xff] %vm5343, %v5184
      %5358 = vst.msk [vmem:[%s213 + $0x70] sm:$0xff] %vm5343, %v5191
      %5359 = vst.msk [vmem:[%s213 + $0x78] sm:$0xff] %vm5343, %v5198
      %5360 = vst.msk [vmem:[%s213 + $0x80] sm:$0xff] %vm5343, %v5205
      %5361 = vst.msk [vmem:[%s213 + $0x88] sm:$0xff] %vm5343, %v5212
      %5362 = vst.msk [vmem:[%s213 + $0x90] sm:$0xff] %vm5343, %v5219
      %5363 = vst.msk [vmem:[%s213 + $0x98] sm:$0xff] %vm5343, %v5226
      %5364 = vst.msk [vmem:[%s213 + $0xa0] sm:$0xff] %vm5343, %v5233
      %5365 = vst.msk [vmem:[%s213 + $0xa8] sm:$0xff] %vm5343, %v5240
      %5366 = vst.msk [vmem:[%s213 + $0xb0] sm:$0xff] %vm5343, %v5247
      %5367 = vst.msk [vmem:[%s213 + $0xb8] sm:$0xff] %vm5343, %v5254
      %5368 = vst.msk [vmem:[%s213 + $0xc0] sm:$0xff] %vm5343, %v5261
      %5369 = vst.msk [vmem:[%s213 + $0xc8] sm:$0xff] %vm5343, %v5268
      %5370 = vst.msk [vmem:[%s213 + $0xd0] sm:$0xff] %vm5343, %v5275
      %5371 = vst.msk [vmem:[%s213 + $0xd8] sm:$0xff] %vm5343, %v5282
      %5372 = vst.msk [vmem:[%s213 + $0xe0] sm:$0xff] %vm5343, %v5289
      %5373 = vst.msk [vmem:[%s213 + $0xe8] sm:$0xff] %vm5343, %v5296
      %5374 = vst.msk [vmem:[%s213 + $0xf0] sm:$0xff] %vm5343, %v5303
      %5375 = vst.msk [vmem:[%s213 + $0xf8] sm:$0xff] %vm5343, %v5310
      %s5376 = smul.u32 16, %s19
      %p5377 = scmp.lt.s32.totalorder %s18, 1
      %s5378 = scalar_select %p5377, %s18, 1
      %p5379 = scmp.lt.s32.totalorder %s5376, 15
      %s5380 = scalar_select %p5379, %s5376, 15
      %s5381 = smul.addr %s5380, 2
      %s5382 = smul.addr %s5378, 32
      %s5383 = sadd.s32 %s5381, %s5382
      %s5384 = smul.addr %s5383, 8
      %s5385 = scalar_lea.vmem %s3, %s5384
      // Predicated region
      $region33: #{cnn_forward.3} parent=31 // pred_check
        %p5386 = pneg %p116
      $region34: #{cnn_forward.3} parent=31 // pred_check_branch
        %5388 = sbr.rel (%p5386) target = $region36
      $region35: #{cnn_forward.3} parent=31 // pred_region
        %s5389 = smul.u32 16, %s19
      $region36: #{cnn_forward.3} parent=31 // pred_fallthru
        _
    $region32: #{cnn_forward.3} parent=5 // pred_fallthru
      _
    %p5390 = scmp.le.s32.totalorder 2, %s9
    // Predicated region
    $region37: #{cnn_forward.3} parent=5 // pred_check
      %p5391 = pneg %p5390
    $region38: #{cnn_forward.3} parent=5 // pred_check_branch
      %5393 = sbr.rel (%p5391) target = $region40
    $region39: #{cnn_forward.3} parent=5 // pred_region
      %s5394 = ssub.s32 %s9, 2
      // Predicated region
      $region41: #{cnn_forward.3} parent=39 // pred_check
        %p5395 = pneg %p122
      $region42: #{cnn_forward.3} parent=39 // pred_check_branch
        %5397 = sbr.rel (%p5395) target = $region44
      $region43: #{cnn_forward.3} parent=39 // pred_region
        %s5398 = smul.u32 16, %s21
        %p5399 = scmp.lt.s32.totalorder %s20, 1
        %s5400 = scalar_select %p5399, %s20, 1
        %p5401 = scmp.lt.s32.totalorder %s5398, 15
        %s5402 = scalar_select %p5401, %s5398, 15
        %s5403 = smul.addr %s5402, 2
        %s5404 = smul.addr %s5400, 32
        %s5405 = sadd.s32 %s5403, %s5404
        %s5406 = smul.addr %s5405, 8
        %s5407 = scalar_lea.vmem %s3, %s5406
      $region44: #{cnn_forward.3} parent=39 // pred_fallthru
        _
    $region40: #{cnn_forward.3} parent=5 // pred_fallthru
      _
  $region6: #{cnn_forward.3} parent=0 // loop_footer
    %s13 = sadd.s32 1, %s9
  $region7: #{cnn_forward.3} parent=0 // loop_footer_branch
    %8 = sbr.rel target = $region3
  $region8: #{cnn_forward.3} parent=0 // loop_exit
    _

// kernel: cnn_forward.4
$region0: #{cnn_forward.4}
  #allocation0 [shape = 'u32[]', space=smem, size = 0x4, offset = 0x4, fixed_abs, tag = 'smem constant byte address 0x4 - core index']
  #allocation1 [shape = 'u32[144,128]{1,0:T(1,128)}', space=vmem, size = 0x12000, scoped, tag = 'internal scratch']
  %s0 = inlined_call_operand.vmem [shape: f32[2,18,18,32], index: 0, kind: input, shape index: {}, may-alias: {0,1}]
  %s1 = inlined_call_operand.vmem [shape: f32[2,18,18,32], index: 1, kind: input, shape index: {}, may-alias: {0,1}]
  %s2 = inlined_call_operand.vmem [shape: bf16[288,64], index: 2, kind: input, shape index: {}]
  %s3 = inlined_call_operand.vmem [shape: f32[1,64], index: 3, kind: input, shape index: {}]
  %s4 = inlined_call_operand.vmem [shape: f32[2,8,8,64], index: 4, kind: output, shape index: {}]
  %s5 = sld [smem:[#allocation0]]
  $region49: #{cnn_forward.4} parent=0
    _
  %s7 = ssub.s32 1, %s5
  %s8 = scalar_select 0, %s7, %s5
  loop: start=0, step=1, limit=4
  $region2: #{cnn_forward.4} parent=0 // loop_pre_header
    _
  $region3: #{cnn_forward.4} parent=0 // loop_header
    %s10 = sphi 0, %s14
    %p11 = scmp.ge.s32.totalorder %s10, 4
    %s17 = sphi 0, %s29
    %s18 = sphi 0, %s25
    %s19 = sphi 0, %s17
    %s20 = sphi 0, %s18
    %s21 = sphi 0, %s19
    %s22 = sphi 0, %s20
    %s34 = sphi 0, %s36
    %s37 = sphi 0, %s34
    %s38 = sphi 0, %s37
    %s54 = sphi 0, %s38
    %s66 = sphi 0, %s68
    %s69 = sphi 0, %s66
    %s70 = sphi 0, %s69
    %s86 = sphi 0, %s70
    %s90 = sphi 0, %s90
    %s92 = sphi 0, %s90
    %s93 = sphi 0, %s92
    %s107 = sphi 0, %s93
    %s111 = sphi 0, %s111
    %s113 = sphi 0, %s111
    %s114 = sphi 0, %s113
    %s128 = sphi 0, %s114
    %s136 = sphi 0, %s138
    %s139 = sphi 0, %s136
    %s140 = sphi 0, %s139
    %s156 = sphi 0, %s140
  $region4: #{cnn_forward.4} parent=0 // loop_header_branch
    %13 = sbr.rel (%p11) target = $region8
  $region5: #{cnn_forward.4} parent=0 // loop_body
    %s15 = ssub.s32 %s10, 1
    %s16 = ssub.s32 %s10, 2
    %s23 = sadd.s32 1, %s18
    %p24 = scmp.ge.s32.totalorder %s23, 1
    %s25 = scalar_select %p24, 0, %s23
    %s26 = sadd.s32 1, %s17
    %s27 = scalar_select %p24, %s26, %s17
    %p28 = scmp.ge.s32.totalorder %s27, 2
    %s29 = scalar_select %p28, 0, %s27
    %s30 = ssub.s32 %s17, %s29
    %s31 = ssub.s32 %s18, %s25
    %s32 = sor.u32 %s30, %s31
    %p33 = scmp.eq.s32.totalorder %s32, 0
    %s35 = sadd.s32 %s34, 1
    %s36 = scalar_select %p33, %s34, %s35
    %p39 = pneg %p33
    %p40 = scmp.eq.s32.totalorder %s10, 1
    %p41 = por %p39, %p40
    %p42 = scmp.ne.s32.totalorder %s34, %s37
    %p43 = scmp.eq.s32.totalorder %s10, 0
    %p44 = por %p42, %p43
    %p45 = scmp.ne.s32.totalorder %s34, %s37
    %p46 = scmp.eq.s32.totalorder %s15, 1
    %p47 = por %p45, %p46
    %p48 = scmp.ne.s32.totalorder %s37, %s38
    %p49 = scmp.eq.s32.totalorder %s15, 0
    %p50 = por %p48, %p49
    %p51 = scmp.ne.s32.totalorder %s37, %s38
    %p52 = scmp.eq.s32.totalorder %s16, 1
    %p53 = por %p51, %p52
    %p55 = scmp.ne.s32.totalorder %s38, %s54
    %p56 = scmp.eq.s32.totalorder %s16, 0
    %p57 = por %p55, %p56
    %s58 = sadd.s32 %s18, 1
    %s59 = smul.u32 %s58, 8
    %s60 = sadd.s32 %s25, 1
    %s61 = smul.u32 %s60, 8
    %s62 = ssub.s32 %s17, %s29
    %s63 = ssub.s32 %s59, %s61
    %s64 = sor.u32 %s62, %s63
    %p65 = scmp.eq.s32.totalorder %s64, 0
    %s67 = sadd.s32 %s66, 1
    %s68 = scalar_select %p65, %s66, %s67
    %p71 = pneg %p65
    %p72 = scmp.eq.s32.totalorder %s10, 1
    %p73 = por %p71, %p72
    %p74 = scmp.ne.s32.totalorder %s66, %s69
    %p75 = scmp.eq.s32.totalorder %s10, 0
    %p76 = por %p74, %p75
    %p77 = scmp.ne.s32.totalorder %s66, %s69
    %p78 = scmp.eq.s32.totalorder %s15, 1
    %p79 = por %p77, %p78
    %p80 = scmp.ne.s32.totalorder %s69, %s70
    %p81 = scmp.eq.s32.totalorder %s15, 0
    %p82 = por %p80, %p81
    %p83 = scmp.ne.s32.totalorder %s69, %s70
    %p84 = scmp.eq.s32.totalorder %s16, 1
    %p85 = por %p83, %p84
    %p87 = scmp.ne.s32.totalorder %s70, %s86
    %p88 = scmp.eq.s32.totalorder %s16, 0
    %p89 = por %p87, %p88
    %s91 = sadd.s32 %s90, 1
    %p94 = scmp.eq.s32.totalorder %s10, 1
    %p95 = scmp.ne.s32.totalorder %s90, %s92
    %p96 = scmp.eq.s32.totalorder %s10, 0
    %p97 = por %p95, %p96
    %p98 = scmp.ne.s32.totalorder %s90, %s92
    %p99 = scmp.eq.s32.totalorder %s15, 1
    %p100 = por %p98, %p99
    %p101 = scmp.ne.s32.totalorder %s92, %s93
    %p102 = scmp.eq.s32.totalorder %s15, 0
    %p103 = por %p101, %p102
    %p104 = scmp.ne.s32.totalorder %s92, %s93
    %p105 = scmp.eq.s32.totalorder %s16, 1
    %p106 = por %p104, %p105
    %p108 = scmp.ne.s32.totalorder %s93, %s107
    %p109 = scmp.eq.s32.totalorder %s16, 0
    %p110 = por %p108, %p109
    %s112 = sadd.s32 %s111, 1
    %p115 = scmp.eq.s32.totalorder %s10, 1
    %p116 = scmp.ne.s32.totalorder %s111, %s113
    %p117 = scmp.eq.s32.totalorder %s10, 0
    %p118 = por %p116, %p117
    %p119 = scmp.ne.s32.totalorder %s111, %s113
    %p120 = scmp.eq.s32.totalorder %s15, 1
    %p121 = por %p119, %p120
    %p122 = scmp.ne.s32.totalorder %s113, %s114
    %p123 = scmp.eq.s32.totalorder %s15, 0
    %p124 = por %p122, %p123
    %p125 = scmp.ne.s32.totalorder %s113, %s114
    %p126 = scmp.eq.s32.totalorder %s16, 1
    %p127 = por %p125, %p126
    %p129 = scmp.ne.s32.totalorder %s114, %s128
    %p130 = scmp.eq.s32.totalorder %s16, 0
    %p131 = por %p129, %p130
    %s132 = ssub.s32 %s17, %s29
    %s133 = ssub.s32 %s18, %s25
    %s134 = sor.u32 %s132, %s133
    %p135 = scmp.eq.s32.totalorder %s134, 0
    %s137 = sadd.s32 %s136, 1
    %s138 = scalar_select %p135, %s136, %s137
    %p141 = pneg %p135
    %p142 = scmp.eq.s32.totalorder %s10, 1
    %p143 = por %p141, %p142
    %p144 = scmp.ne.s32.totalorder %s136, %s139
    %p145 = scmp.eq.s32.totalorder %s10, 0
    %p146 = por %p144, %p145
    %p147 = scmp.ne.s32.totalorder %s136, %s139
    %p148 = scmp.eq.s32.totalorder %s15, 1
    %p149 = por %p147, %p148
    %p150 = scmp.ne.s32.totalorder %s139, %s140
    %p151 = scmp.eq.s32.totalorder %s15, 0
    %p152 = por %p150, %p151
    %p153 = scmp.ne.s32.totalorder %s139, %s140
    %p154 = scmp.eq.s32.totalorder %s16, 1
    %p155 = por %p153, %p154
    %p157 = scmp.ne.s32.totalorder %s140, %s156
    %p158 = scmp.eq.s32.totalorder %s16, 0
    %p159 = por %p157, %p158
    %p160 = scmp.le.s32.totalorder 1, %s10
    %p161 = scmp.lt.s32.totalorder %s10, 3
    %p162 = pnand %p160, %p161
    %p163 = pneg %p162
    // Predicated region
    $region9: #{cnn_forward.4} parent=5 // pred_check
      _
    $region10: #{cnn_forward.4} parent=5 // pred_check_branch
      %165 = sbr.rel (%p162) target = $region12
    $region11: #{cnn_forward.4} parent=5 // pred_region
      %s166 = ssub.s32 %s10, 1
      // Predicated region
      $region13: #{cnn_forward.4} parent=11 // pred_check
        %p167 = pneg %p103
      $region14: #{cnn_forward.4} parent=11 // pred_check_branch
        %169 = sbr.rel (%p167) target = $region16
      $region15: #{cnn_forward.4} parent=11 // pred_region
        _
      $region16: #{cnn_forward.4} parent=11 // pred_fallthru
        _
      // Predicated region
      $region17: #{cnn_forward.4} parent=11 // pred_check
        %p170 = pneg %p124
      $region18: #{cnn_forward.4} parent=11 // pred_check_branch
        %172 = sbr.rel (%p170) target = $region20
      $region19: #{cnn_forward.4} parent=11 // pred_region
        _
      $region20: #{cnn_forward.4} parent=11 // pred_fallthru
        _
    $region12: #{cnn_forward.4} parent=5 // pred_fallthru
      _
    %p173 = scmp.lt.s32.totalorder %s10, 2
    // Predicated region
    $region21: #{cnn_forward.4} parent=5 // pred_check
      %p174 = pneg %p173
    $region22: #{cnn_forward.4} parent=5 // pred_check_branch
      %176 = sbr.rel (%p174) target = $region24
    $region23: #{cnn_forward.4} parent=5 // pred_region
      // Predicated region
      $region25: #{cnn_forward.4} parent=23 // pred_check
        %p177 = pneg %p44
      $region26: #{cnn_forward.4} parent=23 // pred_check_branch
        %179 = sbr.rel (%p177) target = $region28
      $region27: #{cnn_forward.4} parent=23 // pred_region
        %s180 = smul.u32 16, %s18
        %s181 = ssub.s32 18, %s180
        %p182 = scmp.lt.s32.totalorder %s181, 16
        %s183 = scalar_select %p182, %s181, 16
        %s184 = smul.u32 128, %s183
        %s185 = smul.u32 %s184, 3
        %p186 = scmp.lt.s32.totalorder %s17, 1
        %s187 = scalar_select %p186, %s17, 1
        %p188 = scmp.lt.s32.totalorder %s180, 17
        %s189 = scalar_select %p188, %s180, 17
        %s190 = smul.addr %s189, 3
        %s191 = smul.addr %s187, 54
        %s192 = sadd.s32 %s190, %s191
        %s193 = smul.addr %s192, 8
        %s194 = scalar_lea.vmem %s0, %s193
        %s195 = smul.u32 16, %s18
        %s196 = ssub.s32 18, %s195
        %p197 = scmp.lt.s32.totalorder %s196, 16
        %s198 = scalar_select %p197, %s196, 16
        %s199 = smul.u32 128, %s198
        %s200 = smul.u32 %s199, 3
      $region28: #{cnn_forward.4} parent=23 // pred_fallthru
        _
      // Predicated region
      $region29: #{cnn_forward.4} parent=23 // pred_check
        %p201 = pneg %p76
      $region30: #{cnn_forward.4} parent=23 // pred_check_branch
        %203 = sbr.rel (%p201) target = $region32
      $region31: #{cnn_forward.4} parent=23 // pred_region
        %s204 = sadd.s32 %s18, 1
        %s205 = smul.u32 %s204, 8
        %s206 = smul.u32 2, %s205
        %p207 = scmp.lt.s32.totalorder %s17, 1
        %s208 = scalar_select %p207, %s17, 1
        %p209 = scmp.lt.s32.totalorder %s206, 17
        %s210 = scalar_select %p209, %s206, 17
        %s211 = smul.addr %s210, 3
        %s212 = smul.addr %s208, 54
        %s213 = sadd.s32 %s211, %s212
        %s214 = smul.addr %s213, 8
        %s215 = scalar_lea.vmem %s1, %s214
        %s216 = sadd.s32 %s18, 1
        %s217 = smul.u32 %s216, 8
        %s218 = smul.u32 2, %s217
      $region32: #{cnn_forward.4} parent=23 // pred_fallthru
        _
    $region24: #{cnn_forward.4} parent=5 // pred_fallthru
      _
    %p219 = scmp.le.s32.totalorder 1, %s10
    %p220 = scmp.lt.s32.totalorder %s10, 3
    %p221 = pnand %p219, %p220
    %p222 = pneg %p221
    // Predicated region
    $region33: #{cnn_forward.4} parent=5 // pred_check
      _
    $region34: #{cnn_forward.4} parent=5 // pred_check_branch
      %224 = sbr.rel (%p221) target = $region36
    $region35: #{cnn_forward.4} parent=5 // pred_region
      %s225 = ssub.s32 %s10, 1
      %s226 = smul.u32 16, %s20
      %s227 = ssub.s32 18, %s226
      %p228 = scmp.lt.s32.totalorder %s227, 16
      %s229 = scalar_select %p228, %s227, 16
      %s230 = smul.u32 128, %s229
      %s231 = smul.u32 %s230, 3
      %p232 = scmp.lt.s32.totalorder %s19, 1
      %s233 = scalar_select %p232, %s19, 1
      %p234 = scmp.lt.s32.totalorder %s226, 17
      %s235 = scalar_select %p234, %s226, 17
      %s236 = smul.addr %s235, 3
      %s237 = smul.addr %s233, 54
      %s238 = sadd.s32 %s236, %s237
      %s239 = smul.addr %s238, 8
      %s240 = scalar_lea.vmem %s0, %s239
      %p241 = pneg %p50
      %p242 = pneg %p47
      %s243 = sadd.s32 %s20, 1
      %s244 = smul.u32 %s243, 8
      %s245 = smul.u32 2, %s244
      %p246 = scmp.lt.s32.totalorder %s19, 1
      %s247 = scalar_select %p246, %s19, 1
      %p248 = scmp.lt.s32.totalorder %s245, 17
      %s249 = scalar_select %p248, %s245, 17
      %s250 = smul.addr %s249, 3
      %s251 = smul.addr %s247, 54
      %s252 = sadd.s32 %s250, %s251
      %s253 = smul.addr %s252, 8
      %s254 = scalar_lea.vmem %s1, %s253
      %p255 = pneg %p82
      %p256 = pneg %p79
      %p257 = pneg %p103
      %p258 = pneg %p100
      %p259 = pneg %p124
      %p260 = pneg %p121
      %p261 = pneg %p152
      %p262 = pneg %p149
      %s263 = smul.u32 8, %s20
      %p264 = scmp.lt.s32.totalorder %s19, 1
      %s265 = scalar_select %p264, %s19, 1
      %p266 = scmp.lt.s32.totalorder %s263, 7
      %s267 = scalar_select %p266, %s263, 7
      %s268 = smul.addr %s265, 8
      %s269 = sadd.s32 %s267, %s268
      %s270 = smul.addr %s269, 8
      %s271 = scalar_lea.vmem %s4, %s270
      %s272 = smul.u32 16, %s20
      %s273 = ssub.s32 18, %s272
      %p274 = scmp.lt.s32.totalorder %s273, 16
      %s275 = scalar_select %p274, %s273, 16
      %s276 = smul.u32 128, %s275
      %s277 = smul.u32 %s276, 3
      %p278 = scmp.lt.s32.totalorder %s19, 1
      %s279 = scalar_select %p278, %s19, 1
      %p280 = scmp.lt.s32.totalorder %s272, 17
      %s281 = scalar_select %p280, %s272, 17
      %s282 = smul.addr %s281, 3
      %s283 = smul.addr %s279, 54
      %s284 = sadd.s32 %s282, %s283
      %s285 = smul.addr %s284, 8
      %s286 = scalar_lea.vmem %s0, %s285
      %s287 = smul.u32 16, %s20
      %s288 = ssub.s32 18, %s287
      %p289 = scmp.lt.s32.totalorder %s288, 16
      %s290 = scalar_select %p289, %s288, 16
      %s291 = smul.u32 128, %s290
      %s292 = smul.u32 %s291, 3
      %s293 = sadd.s32 %s20, 1
      %s294 = smul.u32 %s293, 8
      %s295 = smul.u32 2, %s294
      %p296 = scmp.lt.s32.totalorder %s19, 1
      %s297 = scalar_select %p296, %s19, 1
      %p298 = scmp.lt.s32.totalorder %s295, 17
      %s299 = scalar_select %p298, %s295, 17
      %s300 = smul.addr %s299, 3
      %s301 = smul.addr %s297, 54
      %s302 = sadd.s32 %s300, %s301
      %s303 = smul.addr %s302, 8
      %s304 = scalar_lea.vmem %s1, %s303
      %s305 = sadd.s32 %s20, 1
      %s306 = smul.u32 %s305, 8
      %s307 = smul.u32 2, %s306
      %s308 = smul.u32 8, %s20
      %p309 = scmp.lt.s32.totalorder %s19, 1
      %s310 = scalar_select %p309, %s19, 1
      %p311 = scmp.lt.s32.totalorder %s308, 7
      %s312 = scalar_select %p311, %s308, 7
      %s313 = smul.addr %s310, 8
      %s314 = sadd.s32 %s312, %s313
      %s315 = smul.addr %s314, 8
      %s316 = scalar_lea.vmem %s4, %s315
      %s317 = smul.u32 8, %s20
      %v319 = vld [vmem:[%s286] sm:$0xff]
      %v320 = vld [vmem:[%s286 + $0x8] sm:$0xff]
      %v321 = vld [vmem:[%s286 + $0x10] sm:$0x3]
      %v322 = vld [vmem:[%s286 + $0x18] sm:$0xff]
      %v323 = vld [vmem:[%s286 + $0x20] sm:$0xff]
      %v324 = vld [vmem:[%s286 + $0x28] sm:$0x3]
      %v325 = vld [vmem:[%s286 + $0x30] sm:$0xff]
      %v326 = vld [vmem:[%s286 + $0x38] sm:$0xff]
      %v327 = vld [vmem:[%s286 + $0x40] sm:$0x3]
      %v328 = vld [vmem:[%s286 + $0x48] sm:$0xff]
      %v329 = vld [vmem:[%s286 + $0x50] sm:$0xff]
      %v330 = vld [vmem:[%s286 + $0x58] sm:$0x3]
      %v331 = vld [vmem:[%s286 + $0x60] sm:$0xff]
      %v332 = vld [vmem:[%s286 + $0x68] sm:$0xff]
      %v333 = vld [vmem:[%s286 + $0x70] sm:$0x3]
      %v334 = vld [vmem:[%s286 + $0x78] sm:$0xff]
      %v335 = vld [vmem:[%s286 + $0x80] sm:$0xff]
      %v336 = vld [vmem:[%s286 + $0x88] sm:$0x3]
      %v337 = vld [vmem:[%s286 + $0x90] sm:$0xff]
      %v338 = vld [vmem:[%s286 + $0x98] sm:$0xff]
      %v339 = vld [vmem:[%s286 + $0xa0] sm:$0x3]
      %v340 = vld [vmem:[%s286 + $0xa8] sm:$0xff]
      %v341 = vld [vmem:[%s286 + $0xb0] sm:$0xff]
      %v342 = vld [vmem:[%s286 + $0xb8] sm:$0x3]
      %v343 = vld [vmem:[%s286 + $0xc0] sm:$0xff]
      %v344 = vld [vmem:[%s286 + $0xc8] sm:$0xff]
      %v345 = vld [vmem:[%s286 + $0xd0] sm:$0x3]
      %v346 = vld [vmem:[%s286 + $0xd8] sm:$0xff]
      %v347 = vld [vmem:[%s286 + $0xe0] sm:$0xff]
      %v348 = vld [vmem:[%s286 + $0xe8] sm:$0x3]
      %v349 = vld [vmem:[%s286 + $0xf0] sm:$0xff]
      %v350 = vld [vmem:[%s286 + $0xf8] sm:$0xff]
      %v351 = vld [vmem:[%s286 + $0x100] sm:$0x3]
      %v352 = vld [vmem:[%s286 + $0x108] sm:$0xff]
      %v353 = vld [vmem:[%s286 + $0x110] sm:$0xff]
      %v354 = vld [vmem:[%s286 + $0x118] sm:$0x3]
      %v355 = vld [vmem:[%s286 + $0x120] sm:$0xff]
      %v356 = vld [vmem:[%s286 + $0x128] sm:$0xff]
      %v357 = vld [vmem:[%s286 + $0x130] sm:$0x3]
      %v358 = vld [vmem:[%s286 + $0x138] sm:$0xff]
      %v359 = vld [vmem:[%s286 + $0x140] sm:$0xff]
      %v360 = vld [vmem:[%s286 + $0x148] sm:$0x3]
      %v361 = vld [vmem:[%s286 + $0x150] sm:$0xff]
      %v362 = vld [vmem:[%s286 + $0x158] sm:$0xff]
      %v363 = vld [vmem:[%s286 + $0x160] sm:$0x3]
      %v364 = vld [vmem:[%s286 + $0x168] sm:$0xff]
      %v365 = vld [vmem:[%s286 + $0x170] sm:$0xff]
      %v366 = vld [vmem:[%s286 + $0x178] sm:$0x3]
      %v367 = vpack.c.bf16 %v320, %v319
      %v368 = vpack.c.bf16 %v321, %v321
      %v369 = vpack.c.bf16 %v323, %v322
      %v370 = vpack.c.bf16 %v324, %v324
      %v371 = vpack.c.bf16 %v326, %v325
      %v372 = vpack.c.bf16 %v327, %v327
      %v373 = vpack.c.bf16 %v329, %v328
      %v374 = vpack.c.bf16 %v330, %v330
      %v375 = vpack.c.bf16 %v332, %v331
      %v376 = vpack.c.bf16 %v333, %v333
      %v377 = vpack.c.bf16 %v335, %v334
      %v378 = vpack.c.bf16 %v336, %v336
      %v379 = vpack.c.bf16 %v338, %v337
      %v380 = vpack.c.bf16 %v339, %v339
      %v381 = vpack.c.bf16 %v341, %v340
      %v382 = vpack.c.bf16 %v342, %v342
      %v383 = vpack.c.bf16 %v344, %v343
      %v384 = vpack.c.bf16 %v345, %v345
      %v385 = vpack.c.bf16 %v347, %v346
      %v386 = vpack.c.bf16 %v348, %v348
      %v387 = vpack.c.bf16 %v350, %v349
      %v388 = vpack.c.bf16 %v351, %v351
      %v389 = vpack.c.bf16 %v353, %v352
      %v390 = vpack.c.bf16 %v354, %v354
      %v391 = vpack.c.bf16 %v356, %v355
      %v392 = vpack.c.bf16 %v357, %v357
      %v393 = vpack.c.bf16 %v359, %v358
      %v394 = vpack.c.bf16 %v360, %v360
      %v395 = vpack.c.bf16 %v362, %v361
      %v396 = vpack.c.bf16 %v363, %v363
      %v397 = vpack.c.bf16 %v365, %v364
      %v398 = vpack.c.bf16 %v366, %v366
      %v399 = vld [vmem:[%s304] sm:$0xff]
      %v400 = vld [vmem:[%s304 + $0x8] sm:$0xff]
      %v401 = vld [vmem:[%s304 + $0x10] sm:$0x3]
      %v402 = vld [vmem:[%s304 + $0x18] sm:$0xff]
      %v403 = vld [vmem:[%s304 + $0x20] sm:$0xff]
      %v404 = vld [vmem:[%s304 + $0x28] sm:$0x3]
      %v405 = vpack.c.bf16 %v400, %v399
      %v406 = vpack.c.bf16 %v401, %v401
      %v407 = vpack.c.bf16 %v403, %v402
      %v408 = vpack.c.bf16 %v404, %v404
      %vm409 = vsmask.f32 7424
      %v411 = vshrl.u32 %v367, 16
      %v413 = vshll.u32 %v367, 16
      %v415 = vrot.slane %v413, 1
      %v416 = vor.u32 %v411, %v415
      %v418 = vshll.u32 %v368, 16
      %v420 = vrot.slane %v418, 1
      %v421 = vsel %vm409, %v416, %v420
      %v423 = vshrl.u32 %v369, 16
      %v425 = vshll.u32 %v369, 16
      %v427 = vrot.slane %v425, 1
      %v428 = vor.u32 %v423, %v427
      %v430 = vshll.u32 %v370, 16
      %v432 = vrot.slane %v430, 1
      %v433 = vsel %vm409, %v428, %v432
      %v435 = vshrl.u32 %v371, 16
      %v437 = vshll.u32 %v371, 16
      %v439 = vrot.slane %v437, 1
      %v440 = vor.u32 %v435, %v439
      %v442 = vshll.u32 %v372, 16
      %v444 = vrot.slane %v442, 1
      %v445 = vsel %vm409, %v440, %v444
      %v447 = vshrl.u32 %v373, 16
      %v449 = vshll.u32 %v373, 16
      %v451 = vrot.slane %v449, 1
      %v452 = vor.u32 %v447, %v451
      %v454 = vshll.u32 %v374, 16
      %v456 = vrot.slane %v454, 1
      %v457 = vsel %vm409, %v452, %v456
      %v459 = vshrl.u32 %v375, 16
      %v461 = vshll.u32 %v375, 16
      %v463 = vrot.slane %v461, 1
      %v464 = vor.u32 %v459, %v463
      %v466 = vshll.u32 %v376, 16
      %v468 = vrot.slane %v466, 1
      %v469 = vsel %vm409, %v464, %v468
      %v471 = vshrl.u32 %v377, 16
      %v473 = vshll.u32 %v377, 16
      %v475 = vrot.slane %v473, 1
      %v476 = vor.u32 %v471, %v475
      %v478 = vshll.u32 %v378, 16
      %v480 = vrot.slane %v478, 1
      %v481 = vsel %vm409, %v476, %v480
      %v483 = vshrl.u32 %v379, 16
      %v485 = vshll.u32 %v379, 16
      %v487 = vrot.slane %v485, 1
      %v488 = vor.u32 %v483, %v487
      %v490 = vshll.u32 %v380, 16
      %v492 = vrot.slane %v490, 1
      %v493 = vsel %vm409, %v488, %v492
      %v495 = vshrl.u32 %v381, 16
      %v497 = vshll.u32 %v381, 16
      %v499 = vrot.slane %v497, 1
      %v500 = vor.u32 %v495, %v499
      %v502 = vshll.u32 %v382, 16
      %v504 = vrot.slane %v502, 1
      %v505 = vsel %vm409, %v500, %v504
      %v507 = vshrl.u32 %v383, 16
      %v509 = vshll.u32 %v383, 16
      %v511 = vrot.slane %v509, 1
      %v512 = vor.u32 %v507, %v511
      %v514 = vshll.u32 %v384, 16
      %v516 = vrot.slane %v514, 1
      %v517 = vsel %vm409, %v512, %v516
      %v519 = vshrl.u32 %v385, 16
      %v521 = vshll.u32 %v385, 16
      %v523 = vrot.slane %v521, 1
      %v524 = vor.u32 %v519, %v523
      %v526 = vshll.u32 %v386, 16
      %v528 = vrot.slane %v526, 1
      %v529 = vsel %vm409, %v524, %v528
      %v531 = vshrl.u32 %v387, 16
      %v533 = vshll.u32 %v387, 16
      %v535 = vrot.slane %v533, 1
      %v536 = vor.u32 %v531, %v535
      %v538 = vshll.u32 %v388, 16
      %v540 = vrot.slane %v538, 1
      %v541 = vsel %vm409, %v536, %v540
      %v543 = vshrl.u32 %v389, 16
      %v545 = vshll.u32 %v389, 16
      %v547 = vrot.slane %v545, 1
      %v548 = vor.u32 %v543, %v547
      %v550 = vshll.u32 %v390, 16
      %v552 = vrot.slane %v550, 1
      %v553 = vsel %vm409, %v548, %v552
      %v555 = vshrl.u32 %v391, 16
      %v557 = vshll.u32 %v391, 16
      %v559 = vrot.slane %v557, 1
      %v560 = vor.u32 %v555, %v559
      %v562 = vshll.u32 %v392, 16
      %v564 = vrot.slane %v562, 1
      %v565 = vsel %vm409, %v560, %v564
      %v567 = vshrl.u32 %v393, 16
      %v569 = vshll.u32 %v393, 16
      %v571 = vrot.slane %v569, 1
      %v572 = vor.u32 %v567, %v571
      %v574 = vshll.u32 %v394, 16
      %v576 = vrot.slane %v574, 1
      %v577 = vsel %vm409, %v572, %v576
      %v579 = vshrl.u32 %v395, 16
      %v581 = vshll.u32 %v395, 16
      %v583 = vrot.slane %v581, 1
      %v584 = vor.u32 %v579, %v583
      %v586 = vshll.u32 %v396, 16
      %v588 = vrot.slane %v586, 1
      %v589 = vsel %vm409, %v584, %v588
      %v591 = vshrl.u32 %v397, 16
      %v593 = vshll.u32 %v397, 16
      %v595 = vrot.slane %v593, 1
      %v596 = vor.u32 %v591, %v595
      %v598 = vshll.u32 %v398, 16
      %v600 = vrot.slane %v598, 1
      %v601 = vsel %vm409, %v596, %v600
      %602 = vrot.lane.b32.xlu0 %v421, 32
      %v603 = vpop.permute.xlu0 %602
      %604 = vrot.lane.b32.xlu0 %v433, 32
      %v605 = vpop.permute.xlu0 %604
      %606 = vrot.lane.b32.xlu0 %v445, 32
      %v607 = vpop.permute.xlu0 %606
      %608 = vrot.lane.b32.xlu0 %v457, 32
      %v609 = vpop.permute.xlu0 %608
      %610 = vrot.lane.b32.xlu0 %v469, 32
      %v611 = vpop.permute.xlu0 %610
      %612 = vrot.lane.b32.xlu0 %v481, 32
      %v613 = vpop.permute.xlu0 %612
      %614 = vrot.lane.b32.xlu0 %v493, 32
      %v615 = vpop.permute.xlu0 %614
      %616 = vrot.lane.b32.xlu0 %v505, 32
      %v617 = vpop.permute.xlu0 %616
      %618 = vrot.lane.b32.xlu0 %v517, 32
      %v619 = vpop.permute.xlu0 %618
      %620 = vrot.lane.b32.xlu0 %v529, 32
      %v621 = vpop.permute.xlu0 %620
      %622 = vrot.lane.b32.xlu0 %v541, 32
      %v623 = vpop.permute.xlu0 %622
      %624 = vrot.lane.b32.xlu0 %v553, 32
      %v625 = vpop.permute.xlu0 %624
      %626 = vrot.lane.b32.xlu0 %v565, 32
      %v627 = vpop.permute.xlu0 %626
      %628 = vrot.lane.b32.xlu0 %v577, 32
      %v629 = vpop.permute.xlu0 %628
      %630 = vrot.lane.b32.xlu0 %v589, 32
      %v631 = vpop.permute.xlu0 %630
      %632 = vrot.lane.b32.xlu0 %v601, 32
      %v633 = vpop.permute.xlu0 %632
      %vm666 = vcmask 1046528
      %v667 = vrot.slane %v367, 1
      %v668 = vrot.slane %v368, 1
      %v669 = vsel %vm666, %v667, %v668
      %v670 = vrot.slane %v369, 1
      %v671 = vrot.slane %v370, 1
      %v672 = vsel %vm666, %v670, %v671
      %v673 = vrot.slane %v371, 1
      %v674 = vrot.slane %v372, 1
      %v675 = vsel %vm666, %v673, %v674
      %v676 = vrot.slane %v373, 1
      %v677 = vrot.slane %v374, 1
      %v678 = vsel %vm666, %v676, %v677
      %v679 = vrot.slane %v375, 1
      %v680 = vrot.slane %v376, 1
      %v681 = vsel %vm666, %v679, %v680
      %v682 = vrot.slane %v377, 1
      %v683 = vrot.slane %v378, 1
      %v684 = vsel %vm666, %v682, %v683
      %v685 = vrot.slane %v379, 1
      %v686 = vrot.slane %v380, 1
      %v687 = vsel %vm666, %v685, %v686
      %v688 = vrot.slane %v381, 1
      %v689 = vrot.slane %v382, 1
      %v690 = vsel %vm666, %v688, %v689
      %v691 = vrot.slane %v383, 1
      %v692 = vrot.slane %v384, 1
      %v693 = vsel %vm666, %v691, %v692
      %v694 = vrot.slane %v385, 1
      %v695 = vrot.slane %v386, 1
      %v696 = vsel %vm666, %v694, %v695
      %v697 = vrot.slane %v387, 1
      %v698 = vrot.slane %v388, 1
      %v699 = vsel %vm666, %v697, %v698
      %v700 = vrot.slane %v389, 1
      %v701 = vrot.slane %v390, 1
      %v702 = vsel %vm666, %v700, %v701
      %v703 = vrot.slane %v391, 1
      %v704 = vrot.slane %v392, 1
      %v705 = vsel %vm666, %v703, %v704
      %v706 = vrot.slane %v393, 1
      %v707 = vrot.slane %v394, 1
      %v708 = vsel %vm666, %v706, %v707
      %v709 = vrot.slane %v395, 1
      %v710 = vrot.slane %v396, 1
      %v711 = vsel %vm666, %v709, %v710
      %v712 = vrot.slane %v397, 1
      %v713 = vrot.slane %v398, 1
      %v714 = vsel %vm666, %v712, %v713
      %715 = vrot.lane.b32.xlu0 %v669, 64
      %v716 = vpop.permute.xlu0 %715
      %717 = vrot.lane.b32.xlu0 %v672, 64
      %v718 = vpop.permute.xlu0 %717
      %719 = vrot.lane.b32.xlu0 %v675, 64
      %v720 = vpop.permute.xlu0 %719
      %721 = vrot.lane.b32.xlu0 %v678, 64
      %v722 = vpop.permute.xlu0 %721
      %723 = vrot.lane.b32.xlu0 %v681, 64
      %v724 = vpop.permute.xlu0 %723
      %725 = vrot.lane.b32.xlu0 %v684, 64
      %v726 = vpop.permute.xlu0 %725
      %727 = vrot.lane.b32.xlu0 %v687, 64
      %v728 = vpop.permute.xlu0 %727
      %729 = vrot.lane.b32.xlu0 %v690, 64
      %v730 = vpop.permute.xlu0 %729
      %731 = vrot.lane.b32.xlu0 %v693, 64
      %v732 = vpop.permute.xlu0 %731
      %733 = vrot.lane.b32.xlu0 %v696, 64
      %v734 = vpop.permute.xlu0 %733
      %735 = vrot.lane.b32.xlu0 %v699, 64
      %v736 = vpop.permute.xlu0 %735
      %737 = vrot.lane.b32.xlu0 %v702, 64
      %v738 = vpop.permute.xlu0 %737
      %739 = vrot.lane.b32.xlu0 %v705, 64
      %v740 = vpop.permute.xlu0 %739
      %741 = vrot.lane.b32.xlu0 %v708, 64
      %v742 = vpop.permute.xlu0 %741
      %743 = vrot.lane.b32.xlu0 %v711, 64
      %v744 = vpop.permute.xlu0 %743
      %745 = vrot.lane.b32.xlu0 %v714, 64
      %v746 = vpop.permute.xlu0 %745
      %748 = vrot.lane.b32.xlu0 %v369, 96
      %v749 = vpop.permute.xlu0 %748
      %750 = vrot.lane.b32.xlu0 %v371, 96
      %v751 = vpop.permute.xlu0 %750
      %752 = vrot.lane.b32.xlu0 %v373, 96
      %v753 = vpop.permute.xlu0 %752
      %754 = vrot.lane.b32.xlu0 %v375, 96
      %v755 = vpop.permute.xlu0 %754
      %756 = vrot.lane.b32.xlu0 %v377, 96
      %v757 = vpop.permute.xlu0 %756
      %758 = vrot.lane.b32.xlu0 %v379, 96
      %v759 = vpop.permute.xlu0 %758
      %760 = vrot.lane.b32.xlu0 %v381, 96
      %v761 = vpop.permute.xlu0 %760
      %762 = vrot.lane.b32.xlu0 %v383, 96
      %v763 = vpop.permute.xlu0 %762
      %764 = vrot.lane.b32.xlu0 %v385, 96
      %v765 = vpop.permute.xlu0 %764
      %766 = vrot.lane.b32.xlu0 %v387, 96
      %v767 = vpop.permute.xlu0 %766
      %768 = vrot.lane.b32.xlu0 %v389, 96
      %v769 = vpop.permute.xlu0 %768
      %770 = vrot.lane.b32.xlu0 %v391, 96
      %v771 = vpop.permute.xlu0 %770
      %772 = vrot.lane.b32.xlu0 %v393, 96
      %v773 = vpop.permute.xlu0 %772
      %774 = vrot.lane.b32.xlu0 %v395, 96
      %v775 = vpop.permute.xlu0 %774
      %776 = vrot.lane.b32.xlu0 %v397, 96
      %v777 = vpop.permute.xlu0 %776
      %778 = vrot.lane.b32.xlu0 %v405, 96
      %v779 = vpop.permute.xlu0 %778
      %v781 = vshrl.u32 %v405, 16
      %v783 = vshll.u32 %v405, 16
      %v785 = vrot.slane %v783, 1
      %v786 = vor.u32 %v781, %v785
      %v788 = vshll.u32 %v406, 16
      %v790 = vrot.slane %v788, 1
      %v791 = vsel %vm409, %v786, %v790
      %v793 = vrot.slane %v405, 1
      %v794 = vrot.slane %v406, 1
      %v795 = vsel %vm666, %v793, %v794
      %796 = vrot.lane.b32.xlu0 %v672, 32
      %v797 = vpop.permute.xlu0 %796
      %798 = vrot.lane.b32.xlu0 %v675, 32
      %v799 = vpop.permute.xlu0 %798
      %800 = vrot.lane.b32.xlu0 %v678, 32
      %v801 = vpop.permute.xlu0 %800
      %802 = vrot.lane.b32.xlu0 %v681, 32
      %v803 = vpop.permute.xlu0 %802
      %804 = vrot.lane.b32.xlu0 %v684, 32
      %v805 = vpop.permute.xlu0 %804
      %806 = vrot.lane.b32.xlu0 %v687, 32
      %v807 = vpop.permute.xlu0 %806
      %808 = vrot.lane.b32.xlu0 %v690, 32
      %v809 = vpop.permute.xlu0 %808
      %810 = vrot.lane.b32.xlu0 %v693, 32
      %v811 = vpop.permute.xlu0 %810
      %812 = vrot.lane.b32.xlu0 %v696, 32
      %v813 = vpop.permute.xlu0 %812
      %814 = vrot.lane.b32.xlu0 %v699, 32
      %v815 = vpop.permute.xlu0 %814
      %816 = vrot.lane.b32.xlu0 %v702, 32
      %v817 = vpop.permute.xlu0 %816
      %818 = vrot.lane.b32.xlu0 %v705, 32
      %v819 = vpop.permute.xlu0 %818
      %820 = vrot.lane.b32.xlu0 %v708, 32
      %v821 = vpop.permute.xlu0 %820
      %822 = vrot.lane.b32.xlu0 %v711, 32
      %v823 = vpop.permute.xlu0 %822
      %824 = vrot.lane.b32.xlu0 %v714, 32
      %v825 = vpop.permute.xlu0 %824
      %826 = vrot.lane.b32.xlu0 %v795, 32
      %v827 = vpop.permute.xlu0 %826
      %829 = vrot.lane.b32.xlu0 %v371, 64
      %v830 = vpop.permute.xlu0 %829
      %831 = vrot.lane.b32.xlu0 %v373, 64
      %v832 = vpop.permute.xlu0 %831
      %833 = vrot.lane.b32.xlu0 %v375, 64
      %v834 = vpop.permute.xlu0 %833
      %835 = vrot.lane.b32.xlu0 %v377, 64
      %v836 = vpop.permute.xlu0 %835
      %837 = vrot.lane.b32.xlu0 %v379, 64
      %v838 = vpop.permute.xlu0 %837
      %839 = vrot.lane.b32.xlu0 %v381, 64
      %v840 = vpop.permute.xlu0 %839
      %841 = vrot.lane.b32.xlu0 %v383, 64
      %v842 = vpop.permute.xlu0 %841
      %843 = vrot.lane.b32.xlu0 %v385, 64
      %v844 = vpop.permute.xlu0 %843
      %845 = vrot.lane.b32.xlu0 %v387, 64
      %v846 = vpop.permute.xlu0 %845
      %847 = vrot.lane.b32.xlu0 %v389, 64
      %v848 = vpop.permute.xlu0 %847
      %849 = vrot.lane.b32.xlu0 %v391, 64
      %v850 = vpop.permute.xlu0 %849
      %851 = vrot.lane.b32.xlu0 %v393, 64
      %v852 = vpop.permute.xlu0 %851
      %853 = vrot.lane.b32.xlu0 %v395, 64
      %v854 = vpop.permute.xlu0 %853
      %855 = vrot.lane.b32.xlu0 %v397, 64
      %v856 = vpop.permute.xlu0 %855
      %857 = vrot.lane.b32.xlu0 %v405, 64
      %v858 = vpop.permute.xlu0 %857
      %859 = vrot.lane.b32.xlu0 %v407, 64
      %v860 = vpop.permute.xlu0 %859
      %v862 = vshrl.u32 %v407, 16
      %v864 = vshll.u32 %v407, 16
      %v866 = vrot.slane %v864, 1
      %v867 = vor.u32 %v862, %v866
      %v869 = vshll.u32 %v408, 16
      %v871 = vrot.slane %v869, 1
      %v872 = vsel %vm409, %v867, %v871
      %873 = vrot.lane.b32.xlu0 %v445, 96
      %v874 = vpop.permute.xlu0 %873
      %875 = vrot.lane.b32.xlu0 %v457, 96
      %v876 = vpop.permute.xlu0 %875
      %877 = vrot.lane.b32.xlu0 %v469, 96
      %v878 = vpop.permute.xlu0 %877
      %879 = vrot.lane.b32.xlu0 %v481, 96
      %v880 = vpop.permute.xlu0 %879
      %881 = vrot.lane.b32.xlu0 %v493, 96
      %v882 = vpop.permute.xlu0 %881
      %883 = vrot.lane.b32.xlu0 %v505, 96
      %v884 = vpop.permute.xlu0 %883
      %885 = vrot.lane.b32.xlu0 %v517, 96
      %v886 = vpop.permute.xlu0 %885
      %887 = vrot.lane.b32.xlu0 %v529, 96
      %v888 = vpop.permute.xlu0 %887
      %889 = vrot.lane.b32.xlu0 %v541, 96
      %v890 = vpop.permute.xlu0 %889
      %891 = vrot.lane.b32.xlu0 %v553, 96
      %v892 = vpop.permute.xlu0 %891
      %893 = vrot.lane.b32.xlu0 %v565, 96
      %v894 = vpop.permute.xlu0 %893
      %895 = vrot.lane.b32.xlu0 %v577, 96
      %v896 = vpop.permute.xlu0 %895
      %897 = vrot.lane.b32.xlu0 %v589, 96
      %v898 = vpop.permute.xlu0 %897
      %899 = vrot.lane.b32.xlu0 %v601, 96
      %v900 = vpop.permute.xlu0 %899
      %901 = vrot.lane.b32.xlu0 %v791, 96
      %v902 = vpop.permute.xlu0 %901
      %903 = vrot.lane.b32.xlu0 %v872, 96
      %v904 = vpop.permute.xlu0 %903
      %v906 = vrot.slane %v407, 1
      %v907 = vrot.slane %v408, 1
      %v908 = vsel %vm666, %v906, %v907
      %vm909 = vcmask 261120
      %v911 = vsel %vm909, %v367, %v603
      %v913 = vsel %vm909, %v369, %v605
      %v915 = vsel %vm909, %v371, %v607
      %v917 = vsel %vm909, %v373, %v609
      %v919 = vsel %vm909, %v375, %v611
      %v921 = vsel %vm909, %v377, %v613
      %v923 = vsel %vm909, %v379, %v615
      %v925 = vsel %vm909, %v381, %v617
      %v927 = vsel %vm909, %v383, %v619
      %v929 = vsel %vm909, %v385, %v621
      %v931 = vsel %vm909, %v387, %v623
      %v933 = vsel %vm909, %v389, %v625
      %v935 = vsel %vm909, %v391, %v627
      %v937 = vsel %vm909, %v393, %v629
      %v939 = vsel %vm909, %v395, %v631
      %v941 = vsel %vm909, %v397, %v633
      %vm942 = vcmask 523264
      %v944 = vsel %vm942, %v911, %v716
      %v946 = vsel %vm942, %v913, %v718
      %v948 = vsel %vm942, %v915, %v720
      %v950 = vsel %vm942, %v917, %v722
      %v952 = vsel %vm942, %v919, %v724
      %v954 = vsel %vm942, %v921, %v726
      %v956 = vsel %vm942, %v923, %v728
      %v958 = vsel %vm942, %v925, %v730
      %v960 = vsel %vm942, %v927, %v732
      %v962 = vsel %vm942, %v929, %v734
      %v964 = vsel %vm942, %v931, %v736
      %v966 = vsel %vm942, %v933, %v738
      %v968 = vsel %vm942, %v935, %v740
      %v970 = vsel %vm942, %v937, %v742
      %v972 = vsel %vm942, %v939, %v744
      %v974 = vsel %vm942, %v941, %v746
      %vm975 = vcmask 785408
      %v977 = vsel %vm975, %v944, %v749
      %v980 = vsel %vm975, %v946, %v751
      %v983 = vsel %vm975, %v948, %v753
      %v986 = vsel %vm975, %v950, %v755
      %v989 = vsel %vm975, %v952, %v757
      %v992 = vsel %vm975, %v954, %v759
      %v995 = vsel %vm975, %v956, %v761
      %v998 = vsel %vm975, %v958, %v763
      %v1001 = vsel %vm975, %v960, %v765
      %v1004 = vsel %vm975, %v962, %v767
      %v1007 = vsel %vm975, %v964, %v769
      %v1010 = vsel %vm975, %v966, %v771
      %v1013 = vsel %vm975, %v968, %v773
      %v1016 = vsel %vm975, %v970, %v775
      %v1019 = vsel %vm975, %v972, %v777
      %v1022 = vsel %vm975, %v974, %v779
      %v1026 = vsel %vm909, %v433, %v797
      %v1029 = vsel %vm909, %v445, %v799
      %v1032 = vsel %vm909, %v457, %v801
      %v1035 = vsel %vm909, %v469, %v803
      %v1038 = vsel %vm909, %v481, %v805
      %v1041 = vsel %vm909, %v493, %v807
      %v1044 = vsel %vm909, %v505, %v809
      %v1047 = vsel %vm909, %v517, %v811
      %v1050 = vsel %vm909, %v529, %v813
      %v1053 = vsel %vm909, %v541, %v815
      %v1056 = vsel %vm909, %v553, %v817
      %v1059 = vsel %vm909, %v565, %v819
      %v1062 = vsel %vm909, %v577, %v821
      %v1065 = vsel %vm909, %v589, %v823
      %v1068 = vsel %vm909, %v601, %v825
      %v1071 = vsel %vm909, %v791, %v827
      %v1073 = vsel %vm942, %v1026, %v830
      %v1075 = vsel %vm942, %v1029, %v832
      %v1077 = vsel %vm942, %v1032, %v834
      %v1079 = vsel %vm942, %v1035, %v836
      %v1081 = vsel %vm942, %v1038, %v838
      %v1083 = vsel %vm942, %v1041, %v840
      %v1085 = vsel %vm942, %v1044, %v842
      %v1087 = vsel %vm942, %v1047, %v844
      %v1089 = vsel %vm942, %v1050, %v846
      %v1091 = vsel %vm942, %v1053, %v848
      %v1093 = vsel %vm942, %v1056, %v850
      %v1095 = vsel %vm942, %v1059, %v852
      %v1097 = vsel %vm942, %v1062, %v854
      %v1099 = vsel %vm942, %v1065, %v856
      %v1101 = vsel %vm942, %v1068, %v858
      %v1103 = vsel %vm942, %v1071, %v860
      %v1105 = vsel %vm975, %v1073, %v874
      %v1108 = vsel %vm975, %v1075, %v876
      %v1111 = vsel %vm975, %v1077, %v878
      %v1114 = vsel %vm975, %v1079, %v880
      %v1117 = vsel %vm975, %v1081, %v882
      %v1120 = vsel %vm975, %v1083, %v884
      %v1123 = vsel %vm975, %v1085, %v886
      %v1126 = vsel %vm975, %v1087, %v888
      %v1129 = vsel %vm975, %v1089, %v890
      %v1132 = vsel %vm975, %v1091, %v892
      %v1135 = vsel %vm975, %v1093, %v894
      %v1138 = vsel %vm975, %v1095, %v896
      %v1141 = vsel %vm975, %v1097, %v898
      %v1144 = vsel %vm975, %v1099, %v900
      %v1147 = vsel %vm975, %v1101, %v902
      %v1150 = vsel %vm975, %v1103, %v904
      %v1152 = vld [vmem:[%s2] sm:$0xf]
      %v1153 = vld [vmem:[%s2 + $0x4] sm:$0xf]
      %v1154 = vld [vmem:[%s2 + $0x8] sm:$0xf]
      %v1155 = vld [vmem:[%s2 + $0xc] sm:$0xf]
      %v1156 = vld [vmem:[%s2 + $0x10] sm:$0xf]
      %v1157 = vld [vmem:[%s2 + $0x14] sm:$0xf]
      %v1158 = vld [vmem:[%s2 + $0x18] sm:$0xf]
      %v1159 = vld [vmem:[%s2 + $0x1c] sm:$0xf]
      %v1160 = vld [vmem:[%s2 + $0x20] sm:$0xf]
      %v1161 = vld [vmem:[%s2 + $0x24] sm:$0xf]
      %v1162 = vld [vmem:[%s2 + $0x28] sm:$0xf]
      %v1163 = vld [vmem:[%s2 + $0x2c] sm:$0xf]
      %v1164 = vld [vmem:[%s2 + $0x30] sm:$0xf]
      %v1165 = vld [vmem:[%s2 + $0x34] sm:$0xf]
      %v1166 = vld [vmem:[%s2 + $0x38] sm:$0xf]
      %v1167 = vld [vmem:[%s2 + $0x3c] sm:$0xf]
      %v1168 = vld [vmem:[%s2 + $0x40] sm:$0xf]
      %v1169 = vld [vmem:[%s2 + $0x44] sm:$0xf]
      %v1170 = vld [vmem:[%s2 + $0x48] sm:$0xf]
      %v1171 = vld [vmem:[%s2 + $0x4c] sm:$0xf]
      %v1172 = vld [vmem:[%s2 + $0x50] sm:$0xf]
      %v1173 = vld [vmem:[%s2 + $0x54] sm:$0xf]
      %v1174 = vld [vmem:[%s2 + $0x58] sm:$0xf]
      %v1175 = vld [vmem:[%s2 + $0x5c] sm:$0xf]
      %v1176 = vld [vmem:[%s2 + $0x60] sm:$0xf]
      %v1177 = vld [vmem:[%s2 + $0x64] sm:$0xf]
      %v1178 = vld [vmem:[%s2 + $0x68] sm:$0xf]
      %v1179 = vld [vmem:[%s2 + $0x6c] sm:$0xf]
      %v1180 = vld [vmem:[%s2 + $0x70] sm:$0xf]
      %v1181 = vld [vmem:[%s2 + $0x74] sm:$0xf]
      %v1182 = vld [vmem:[%s2 + $0x78] sm:$0xf]
      %v1183 = vld [vmem:[%s2 + $0x7c] sm:$0xf]
      %v1184 = vld [vmem:[%s2 + $0x80] sm:$0xf]
      %v1185 = vld [vmem:[%s2 + $0x84] sm:$0xf]
      %v1186 = vld [vmem:[%s2 + $0x88] sm:$0xf]
      %v1187 = vld [vmem:[%s2 + $0x8c] sm:$0xf]
      %v1188 = vld [vmem:[%s3] sm:$0x1]
      %v1190 = vlaneseq
      %v1191 = vshrl.u32 %v1190, 7
      %v1192 = vsub.s32 0, %v1191
      %v1193 = vrot.slane %v1188, %v1192
      %v1231 = vunpack.c.l.b16 %v1152
      %v1232 = vunpack.c.l.b16 %v1153
      %v1233 = vunpack.c.l.b16 %v1154
      %v1234 = vunpack.c.l.b16 %v1155
      %v1235 = vunpack.c.l.b16 %v1156
      %v1236 = vunpack.c.l.b16 %v1157
      %v1237 = vunpack.c.l.b16 %v1158
      %v1238 = vunpack.c.l.b16 %v1159
      %v1239 = vunpack.c.l.b16 %v1160
      %v1240 = vunpack.c.l.b16 %v1161
      %v1241 = vunpack.c.l.b16 %v1162
      %v1242 = vunpack.c.l.b16 %v1163
      %v1243 = vunpack.c.l.b16 %v1164
      %v1244 = vunpack.c.l.b16 %v1165
      %v1245 = vunpack.c.l.b16 %v1166
      %v1246 = vunpack.c.l.b16 %v1167
      %v1247 = vunpack.c.l.b16 %v1168
      %v1248 = vunpack.c.l.b16 %v1169
      %v1249 = vunpack.c.l.b16 %v1170
      %v1250 = vunpack.c.l.b16 %v1171
      %v1251 = vunpack.c.l.b16 %v1172
      %v1252 = vunpack.c.l.b16 %v1173
      %v1253 = vunpack.c.l.b16 %v1174
      %v1254 = vunpack.c.l.b16 %v1175
      %v1255 = vunpack.c.l.b16 %v1176
      %v1256 = vunpack.c.l.b16 %v1177
      %v1257 = vunpack.c.l.b16 %v1178
      %v1258 = vunpack.c.l.b16 %v1179
      %v1259 = vunpack.c.l.b16 %v1180
      %v1260 = vunpack.c.l.b16 %v1181
      %v1261 = vunpack.c.l.b16 %v1182
      %v1262 = vunpack.c.l.b16 %v1183
      %v1263 = vunpack.c.l.b16 %v1184
      %v1264 = vunpack.c.l.b16 %v1185
      %v1265 = vunpack.c.l.b16 %v1186
      %v1266 = vunpack.c.l.b16 %v1187
      %v1267 = vpack.c.b16 %v1232, %v1231
      %v1268 = vpack.c.b16 %v1234, %v1233
      %v1269 = vpack.c.b16 %v1236, %v1235
      %v1270 = vpack.c.b16 %v1238, %v1237
      %v1271 = vpack.c.b16 %v1240, %v1239
      %v1272 = vpack.c.b16 %v1242, %v1241
      %v1273 = vpack.c.b16 %v1244, %v1243
      %v1274 = vpack.c.b16 %v1246, %v1245
      %v1275 = vpack.c.b16 %v1248, %v1247
      %v1276 = vpack.c.b16 %v1250, %v1249
      %v1277 = vpack.c.b16 %v1252, %v1251
      %v1278 = vpack.c.b16 %v1254, %v1253
      %v1279 = vpack.c.b16 %v1256, %v1255
      %v1280 = vpack.c.b16 %v1258, %v1257
      %v1281 = vpack.c.b16 %v1260, %v1259
      %v1282 = vpack.c.b16 %v1262, %v1261
      %v1283 = vpack.c.b16 %v1264, %v1263
      %v1284 = vpack.c.b16 %v1266, %v1265
      %v1304 = vsel %vm909, %v675, 0
      %v1307 = vsel %vm909, %v678, 0
      %v1310 = vsel %vm909, %v681, 0
      %v1313 = vsel %vm909, %v684, 0
      %v1316 = vsel %vm909, %v687, 0
      %v1319 = vsel %vm909, %v690, 0
      %v1322 = vsel %vm909, %v693, 0
      %v1325 = vsel %vm909, %v696, 0
      %v1328 = vsel %vm909, %v699, 0
      %v1331 = vsel %vm909, %v702, 0
      %v1334 = vsel %vm909, %v705, 0
      %v1337 = vsel %vm909, %v708, 0
      %v1340 = vsel %vm909, %v711, 0
      %v1343 = vsel %vm909, %v714, 0
      %v1346 = vsel %vm909, %v795, 0
      %v1349 = vsel %vm909, %v908, 0
      %1351 = vmatprep.subr.bf16.mxu0 0
      %1352 = vmatpush1.bf16.msra.mxu0 %v1267
      %1353 = vmatprep.subr.bf16.mxu0 0
      %1354 = vmatpush1.bf16.msra.mxu0 %v1268
      %1355 = vmatprep.subr.bf16.mxu0 0
      %1356 = vmatpush1.bf16.msra.mxu0 %v1269
      %1357 = vmatprep.subr.bf16.mxu0 0
      %1358 = vmatpush1.bf16.msra.mxu0 %v1270
      %1359 = vmatprep.subr.bf16.mxu0 0
      %1360 = vmatpush1.bf16.msra.mxu0 %v1271
      %1361 = vmatprep.subr.bf16.mxu0 0
      %1362 = vmatpush1.bf16.msra.mxu0 %v1272
      %1363 = vmatprep.subr.bf16.mxu0 0
      %1364 = vmatpush1.bf16.msra.mxu0 %v1273
      %1365 = vmatprep.subr.bf16.mxu0 0
      %1366 = vmatpush1.bf16.msra.mxu0 %v1274
      %1367 = vmatprep.subr.bf16.mxu0 0
      %1368 = vmatpush1.bf16.msra.mxu0 %v1275
      %1369 = vmatprep.subr.bf16.mxu0 0
      %1370 = vmatpush1.bf16.msra.mxu0 %v1276
      %1371 = vmatprep.subr.bf16.mxu0 0
      %1372 = vmatpush1.bf16.msra.mxu0 %v1277
      %1373 = vmatprep.subr.bf16.mxu0 0
      %1374 = vmatpush1.bf16.msra.mxu0 %v1278
      %1375 = vmatprep.subr.bf16.mxu0 0
      %1376 = vmatpush1.bf16.msra.mxu0 %v1279
      %1377 = vmatprep.subr.bf16.mxu0 0
      %1378 = vmatpush1.bf16.msra.mxu0 %v1280
      %1379 = vmatprep.subr.bf16.mxu0 0
      %1380 = vmatpush1.bf16.msra.mxu0 %v1281
      %1381 = vmatprep.subr.bf16.mxu0 0
      %1382 = vmatpush1.bf16.msra.mxu0 %v1282
      %1383 = vmatprep.mubr.bf16.mxu0 %v1105
      %1384 = vmatmul.mubr.bf16.gmra.mrb[0].mxu0 %v977
      %v1385 = vpop.f32.mrb[0].mxu0
      %v1386 = vadd.f32 %v1193, %v1385
      %v1387 = vpop.f32.mrb[0].mxu0
      %v1388 = vpop.f32.mrb[0].mxu0
      %v1389 = vadd.f32 %v1193, %v1388
      %v1390 = vpop.f32.mrb[0].mxu0
      %1391 = vmatprep.mubr.bf16.mxu0 %v1108
      %1392 = vmatmul.mubr.bf16.gmra.mrb[0].mxu0 %v980
      %v1393 = vpop.f32.mrb[0].mxu0
      %v1394 = vadd.f32 %v1193, %v1393
      %v1395 = vpop.f32.mrb[0].mxu0
      %v1396 = vpop.f32.mrb[0].mxu0
      %v1397 = vadd.f32 %v1193, %v1396
      %v1398 = vpop.f32.mrb[0].mxu0
      %1399 = vmatprep.mubr.bf16.mxu0 %v1111
      %1400 = vmatmul.mubr.bf16.gmra.mrb[0].mxu0 %v983
      %v1401 = vpop.f32.mrb[0].mxu0
      %v1402 = vadd.f32 %v1193, %v1401
      %v1403 = vpop.f32.mrb[0].mxu0
      %v1404 = vpop.f32.mrb[0].mxu0
      %v1405 = vadd.f32 %v1193, %v1404
      %v1406 = vpop.f32.mrb[0].mxu0
      %1407 = vmatprep.mubr.bf16.mxu0 %v1114
      %1408 = vmatmul.mubr.bf16.gmra.mrb[0].mxu0 %v986
      %v1409 = vpop.f32.mrb[0].mxu0
      %v1410 = vadd.f32 %v1193, %v1409
      %v1411 = vpop.f32.mrb[0].mxu0
      %v1412 = vpop.f32.mrb[0].mxu0
      %v1413 = vadd.f32 %v1193, %v1412
      %v1414 = vpop.f32.mrb[0].mxu0
      %1415 = vmatprep.mubr.bf16.mxu0 %v1117
      %1416 = vmatmul.mubr.bf16.gmra.mrb[0].mxu0 %v989
      %v1417 = vpop.f32.mrb[0].mxu0
      %v1418 = vadd.f32 %v1193, %v1417
      %v1419 = vpop.f32.mrb[0].mxu0
      %v1420 = vpop.f32.mrb[0].mxu0
      %v1421 = vadd.f32 %v1193, %v1420
      %v1422 = vpop.f32.mrb[0].mxu0
      %1423 = vmatprep.mubr.bf16.mxu0 %v1120
      %1424 = vmatmul.mubr.bf16.gmra.mrb[0].mxu0 %v992
      %v1425 = vpop.f32.mrb[0].mxu0
      %v1426 = vadd.f32 %v1193, %v1425
      %v1427 = vpop.f32.mrb[0].mxu0
      %v1428 = vpop.f32.mrb[0].mxu0
      %v1429 = vadd.f32 %v1193, %v1428
      %v1430 = vpop.f32.mrb[0].mxu0
      %1431 = vmatprep.mubr.bf16.mxu0 %v1123
      %1432 = vmatmul.mubr.bf16.gmra.mrb[0].mxu0 %v995
      %v1433 = vpop.f32.mrb[0].mxu0
      %v1434 = vadd.f32 %v1193, %v1433
      %v1435 = vpop.f32.mrb[0].mxu0
      %v1436 = vpop.f32.mrb[0].mxu0
      %v1437 = vadd.f32 %v1193, %v1436
      %v1438 = vpop.f32.mrb[0].mxu0
      %1439 = vmatprep.mubr.bf16.mxu0 %v1126
      %1440 = vmatmul.mubr.bf16.gmra.mrb[0].mxu0 %v998
      %v1441 = vpop.f32.mrb[0].mxu0
      %v1442 = vadd.f32 %v1193, %v1441
      %v1443 = vpop.f32.mrb[0].mxu0
      %v1444 = vpop.f32.mrb[0].mxu0
      %v1445 = vadd.f32 %v1193, %v1444
      %v1446 = vpop.f32.mrb[0].mxu0
      %1447 = vmatprep.mubr.bf16.mxu0 %v1129
      %1448 = vmatmul.mubr.bf16.gmra.mrb[0].mxu0 %v1001
      %v1449 = vpop.f32.mrb[0].mxu0
      %v1450 = vadd.f32 %v1193, %v1449
      %v1451 = vpop.f32.mrb[0].mxu0
      %v1452 = vpop.f32.mrb[0].mxu0
      %v1453 = vadd.f32 %v1193, %v1452
      %v1454 = vpop.f32.mrb[0].mxu0
      %1455 = vmatprep.mubr.bf16.mxu0 %v1132
      %1456 = vmatmul.mubr.bf16.gmra.mrb[0].mxu0 %v1004
      %v1457 = vpop.f32.mrb[0].mxu0
      %v1458 = vadd.f32 %v1193, %v1457
      %v1459 = vpop.f32.mrb[0].mxu0
      %v1460 = vpop.f32.mrb[0].mxu0
      %v1461 = vadd.f32 %v1193, %v1460
      %v1462 = vpop.f32.mrb[0].mxu0
      %1463 = vmatprep.mubr.bf16.mxu0 %v1135
      %1464 = vmatmul.mubr.bf16.gmra.mrb[0].mxu0 %v1007
      %v1465 = vpop.f32.mrb[0].mxu0
      %v1466 = vadd.f32 %v1193, %v1465
      %v1467 = vpop.f32.mrb[0].mxu0
      %v1468 = vpop.f32.mrb[0].mxu0
      %v1469 = vadd.f32 %v1193, %v1468
      %v1470 = vpop.f32.mrb[0].mxu0
      %1471 = vmatprep.mubr.bf16.mxu0 %v1138
      %1472 = vmatmul.mubr.bf16.gmra.mrb[0].mxu0 %v1010
      %v1473 = vpop.f32.mrb[0].mxu0
      %v1474 = vadd.f32 %v1193, %v1473
      %v1475 = vpop.f32.mrb[0].mxu0
      %v1476 = vpop.f32.mrb[0].mxu0
      %v1477 = vadd.f32 %v1193, %v1476
      %v1478 = vpop.f32.mrb[0].mxu0
      %1479 = vmatprep.mubr.bf16.mxu0 %v1141
      %1480 = vmatmul.mubr.bf16.gmra.mrb[0].mxu0 %v1013
      %v1481 = vpop.f32.mrb[0].mxu0
      %v1482 = vadd.f32 %v1193, %v1481
      %v1483 = vpop.f32.mrb[0].mxu0
      %v1484 = vpop.f32.mrb[0].mxu0
      %v1485 = vadd.f32 %v1193, %v1484
      %v1486 = vpop.f32.mrb[0].mxu0
      %1487 = vmatprep.mubr.bf16.mxu0 %v1144
      %1488 = vmatmul.mubr.bf16.gmra.mrb[0].mxu0 %v1016
      %v1489 = vpop.f32.mrb[0].mxu0
      %v1490 = vadd.f32 %v1193, %v1489
      %v1491 = vpop.f32.mrb[0].mxu0
      %v1492 = vpop.f32.mrb[0].mxu0
      %v1493 = vadd.f32 %v1193, %v1492
      %v1494 = vpop.f32.mrb[0].mxu0
      %1495 = vmatprep.mubr.bf16.mxu0 %v1147
      %1496 = vmatmul.mubr.bf16.gmra.mrb[0].mxu0 %v1019
      %v1497 = vpop.f32.mrb[0].mxu0
      %v1498 = vadd.f32 %v1193, %v1497
      %v1499 = vpop.f32.mrb[0].mxu0
      %v1500 = vpop.f32.mrb[0].mxu0
      %v1501 = vadd.f32 %v1193, %v1500
      %v1502 = vpop.f32.mrb[0].mxu0
      %1503 = vmatprep.mubr.bf16.mxu0 %v1150
      %1504 = vmatmul.mubr.bf16.gmra.mrb[0].mxu0 %v1022
      %v1505 = vpop.f32.mrb[0].mxu0
      %v1506 = vadd.f32 %v1193, %v1505
      %v1507 = vpop.f32.mrb[0].mxu0
      %v1508 = vpop.f32.mrb[0].mxu0
      %v1509 = vadd.f32 %v1193, %v1508
      %v1510 = vpop.f32.mrb[0].mxu0
      %1511 = vdwg.mxu0
      %1512 = vmatprep.subr.bf16.mxu0 0
      %1513 = vmatpush1.bf16.msra.mxu0 %v1283
      %1514 = vmatprep.subr.bf16.mxu0 0
      %1515 = vmatpush1.bf16.msra.mxu0 %v1284
      %1516 = vmatprep.subr.bf16.mxu0 0
      %1517 = vmatpush1.bf16.msra.mxu0 0
      %1518 = vmatprep.subr.bf16.mxu0 0
      %1519 = vmatpush1.bf16.msra.mxu0 0
      %1520 = vmatprep.subr.bf16.mxu0 0
      %1521 = vmatpush1.bf16.msra.mxu0 0
      %1522 = vmatprep.subr.bf16.mxu0 0
      %1523 = vmatpush1.bf16.msra.mxu0 0
      %1524 = vmatprep.subr.bf16.mxu0 0
      %1525 = vmatpush1.bf16.msra.mxu0 0
      %1526 = vmatprep.subr.bf16.mxu0 0
      %1527 = vmatpush1.bf16.msra.mxu0 0
      %1528 = vmatprep.subr.bf16.mxu0 0
      %1529 = vmatpush1.bf16.msra.mxu0 0
      %1530 = vmatprep.subr.bf16.mxu0 0
      %1531 = vmatpush1.bf16.msra.mxu0 0
      %1532 = vmatprep.subr.bf16.mxu0 0
      %1533 = vmatpush1.bf16.msra.mxu0 0
      %1534 = vmatprep.subr.bf16.mxu0 0
      %1535 = vmatpush1.bf16.msra.mxu0 0
      %1536 = vmatprep.subr.bf16.mxu0 0
      %1537 = vmatpush1.bf16.msra.mxu0 0
      %1538 = vmatprep.subr.bf16.mxu0 0
      %1539 = vmatpush1.bf16.msra.mxu0 0
      %1540 = vmatprep.subr.bf16.mxu0 0
      %1541 = vmatpush1.bf16.msra.mxu0 0
      %1542 = vmatprep.subr.bf16.mxu0 0
      %1543 = vmatpush1.bf16.msra.mxu0 0
      %1544 = vmatprep.mubr.bf16.mxu0 0
      %1545 = vmatmul.mubr.bf16.gmra.mrb[0].mxu0 %v1304
      %v1546 = vpop.f32.mrb[0].mxu0
      %v1547 = vadd.f32 %v1386, %v1546
      %v1548 = vpop.f32.mrb[0].mxu0
      %v1549 = vpop.f32.mrb[0].mxu0
      %v1550 = vadd.f32 %v1389, %v1549
      %v1551 = vpop.f32.mrb[0].mxu0
      %1552 = vmatprep.mubr.bf16.mxu0 0
      %1553 = vmatmul.mubr.bf16.gmra.mrb[0].mxu0 %v1307
      %v1554 = vpop.f32.mrb[0].mxu0
      %v1555 = vadd.f32 %v1394, %v1554
      %v1556 = vpop.f32.mrb[0].mxu0
      %v1557 = vpop.f32.mrb[0].mxu0
      %v1558 = vadd.f32 %v1397, %v1557
      %v1559 = vpop.f32.mrb[0].mxu0
      %1560 = vmatprep.mubr.bf16.mxu0 0
      %1561 = vmatmul.mubr.bf16.gmra.mrb[0].mxu0 %v1310
      %v1562 = vpop.f32.mrb[0].mxu0
      %v1563 = vadd.f32 %v1402, %v1562
      %v1564 = vpop.f32.mrb[0].mxu0
      %v1565 = vpop.f32.mrb[0].mxu0
      %v1566 = vadd.f32 %v1405, %v1565
      %v1567 = vpop.f32.mrb[0].mxu0
      %1568 = vmatprep.mubr.bf16.mxu0 0
      %1569 = vmatmul.mubr.bf16.gmra.mrb[0].mxu0 %v1313
      %v1570 = vpop.f32.mrb[0].mxu0
      %v1571 = vadd.f32 %v1410, %v1570
      %v1572 = vpop.f32.mrb[0].mxu0
      %v1573 = vpop.f32.mrb[0].mxu0
      %v1574 = vadd.f32 %v1413, %v1573
      %v1575 = vpop.f32.mrb[0].mxu0
      %1576 = vmatprep.mubr.bf16.mxu0 0
      %1577 = vmatmul.mubr.bf16.gmra.mrb[0].mxu0 %v1316
      %v1578 = vpop.f32.mrb[0].mxu0
      %v1579 = vadd.f32 %v1418, %v1578
      %v1580 = vpop.f32.mrb[0].mxu0
      %v1581 = vpop.f32.mrb[0].mxu0
      %v1582 = vadd.f32 %v1421, %v1581
      %v1583 = vpop.f32.mrb[0].mxu0
      %1584 = vmatprep.mubr.bf16.mxu0 0
      %1585 = vmatmul.mubr.bf16.gmra.mrb[0].mxu0 %v1319
      %v1586 = vpop.f32.mrb[0].mxu0
      %v1587 = vadd.f32 %v1426, %v1586
      %v1588 = vpop.f32.mrb[0].mxu0
      %v1589 = vpop.f32.mrb[0].mxu0
      %v1590 = vadd.f32 %v1429, %v1589
      %v1591 = vpop.f32.mrb[0].mxu0
      %1592 = vmatprep.mubr.bf16.mxu0 0
      %1593 = vmatmul.mubr.bf16.gmra.mrb[0].mxu0 %v1322
      %v1594 = vpop.f32.mrb[0].mxu0
      %v1595 = vadd.f32 %v1434, %v1594
      %v1596 = vpop.f32.mrb[0].mxu0
      %v1597 = vpop.f32.mrb[0].mxu0
      %v1598 = vadd.f32 %v1437, %v1597
      %v1599 = vpop.f32.mrb[0].mxu0
      %1600 = vmatprep.mubr.bf16.mxu0 0
      %1601 = vmatmul.mubr.bf16.gmra.mrb[0].mxu0 %v1325
      %v1602 = vpop.f32.mrb[0].mxu0
      %v1603 = vadd.f32 %v1442, %v1602
      %v1604 = vpop.f32.mrb[0].mxu0
      %v1605 = vpop.f32.mrb[0].mxu0
      %v1606 = vadd.f32 %v1445, %v1605
      %v1607 = vpop.f32.mrb[0].mxu0
      %1608 = vmatprep.mubr.bf16.mxu0 0
      %1609 = vmatmul.mubr.bf16.gmra.mrb[0].mxu0 %v1328
      %v1610 = vpop.f32.mrb[0].mxu0
      %v1611 = vadd.f32 %v1450, %v1610
      %v1612 = vpop.f32.mrb[0].mxu0
      %v1613 = vpop.f32.mrb[0].mxu0
      %v1614 = vadd.f32 %v1453, %v1613
      %v1615 = vpop.f32.mrb[0].mxu0
      %1616 = vmatprep.mubr.bf16.mxu0 0
      %1617 = vmatmul.mubr.bf16.gmra.mrb[0].mxu0 %v1331
      %v1618 = vpop.f32.mrb[0].mxu0
      %v1619 = vadd.f32 %v1458, %v1618
      %v1620 = vpop.f32.mrb[0].mxu0
      %v1621 = vpop.f32.mrb[0].mxu0
      %v1622 = vadd.f32 %v1461, %v1621
      %v1623 = vpop.f32.mrb[0].mxu0
      %1624 = vmatprep.mubr.bf16.mxu0 0
      %1625 = vmatmul.mubr.bf16.gmra.mrb[0].mxu0 %v1334
      %v1626 = vpop.f32.mrb[0].mxu0
      %v1627 = vadd.f32 %v1466, %v1626
      %v1628 = vpop.f32.mrb[0].mxu0
      %v1629 = vpop.f32.mrb[0].mxu0
      %v1630 = vadd.f32 %v1469, %v1629
      %v1631 = vpop.f32.mrb[0].mxu0
      %1632 = vmatprep.mubr.bf16.mxu0 0
      %1633 = vmatmul.mubr.bf16.gmra.mrb[0].mxu0 %v1337
      %v1634 = vpop.f32.mrb[0].mxu0
      %v1635 = vadd.f32 %v1474, %v1634
      %v1636 = vpop.f32.mrb[0].mxu0
      %v1637 = vpop.f32.mrb[0].mxu0
      %v1638 = vadd.f32 %v1477, %v1637
      %v1639 = vpop.f32.mrb[0].mxu0
      %1640 = vmatprep.mubr.bf16.mxu0 0
      %1641 = vmatmul.mubr.bf16.gmra.mrb[0].mxu0 %v1340
      %v1642 = vpop.f32.mrb[0].mxu0
      %v1643 = vadd.f32 %v1482, %v1642
      %v1644 = vpop.f32.mrb[0].mxu0
      %v1645 = vpop.f32.mrb[0].mxu0
      %v1646 = vadd.f32 %v1485, %v1645
      %v1647 = vpop.f32.mrb[0].mxu0
      %1648 = vmatprep.mubr.bf16.mxu0 0
      %1649 = vmatmul.mubr.bf16.gmra.mrb[0].mxu0 %v1343
      %v1650 = vpop.f32.mrb[0].mxu0
      %v1651 = vadd.f32 %v1490, %v1650
      %v1652 = vpop.f32.mrb[0].mxu0
      %v1653 = vpop.f32.mrb[0].mxu0
      %v1654 = vadd.f32 %v1493, %v1653
      %v1655 = vpop.f32.mrb[0].mxu0
      %1656 = vmatprep.mubr.bf16.mxu0 0
      %1657 = vmatmul.mubr.bf16.gmra.mrb[0].mxu0 %v1346
      %v1658 = vpop.f32.mrb[0].mxu0
      %v1659 = vadd.f32 %v1498, %v1658
      %v1660 = vpop.f32.mrb[0].mxu0
      %v1661 = vpop.f32.mrb[0].mxu0
      %v1662 = vadd.f32 %v1501, %v1661
      %v1663 = vpop.f32.mrb[0].mxu0
      %1664 = vmatprep.mubr.bf16.mxu0 0
      %1665 = vmatmul.mubr.bf16.gmra.mrb[0].mxu0 %v1349
      %v1666 = vpop.f32.mrb[0].mxu0
      %v1667 = vadd.f32 %v1506, %v1666
      %v1668 = vpop.f32.mrb[0].mxu0
      %v1669 = vpop.f32.mrb[0].mxu0
      %v1670 = vadd.f32 %v1509, %v1669
      %v1671 = vpop.f32.mrb[0].mxu0
      %1672 = vdwg.mxu0
      %v1673 = vmax.f32 %v1547, 0.0
      %v1674 = vmax.f32 %v1550, 0.0
      %v1675 = vmax.f32 %v1555, 0.0
      %v1676 = vmax.f32 %v1558, 0.0
      %v1677 = vmax.f32 %v1563, 0.0
      %v1678 = vmax.f32 %v1566, 0.0
      %v1679 = vmax.f32 %v1571, 0.0
      %v1680 = vmax.f32 %v1574, 0.0
      %v1681 = vmax.f32 %v1579, 0.0
      %v1682 = vmax.f32 %v1582, 0.0
      %v1683 = vmax.f32 %v1587, 0.0
      %v1684 = vmax.f32 %v1590, 0.0
      %v1685 = vmax.f32 %v1595, 0.0
      %v1686 = vmax.f32 %v1598, 0.0
      %v1687 = vmax.f32 %v1603, 0.0
      %v1688 = vmax.f32 %v1606, 0.0
      %v1689 = vmax.f32 %v1611, 0.0
      %v1690 = vmax.f32 %v1614, 0.0
      %v1691 = vmax.f32 %v1619, 0.0
      %v1692 = vmax.f32 %v1622, 0.0
      %v1693 = vmax.f32 %v1627, 0.0
      %v1694 = vmax.f32 %v1630, 0.0
      %v1695 = vmax.f32 %v1635, 0.0
      %v1696 = vmax.f32 %v1638, 0.0
      %v1697 = vmax.f32 %v1643, 0.0
      %v1698 = vmax.f32 %v1646, 0.0
      %v1699 = vmax.f32 %v1651, 0.0
      %v1700 = vmax.f32 %v1654, 0.0
      %v1701 = vmax.f32 %v1659, 0.0
      %v1702 = vmax.f32 %v1662, 0.0
      %v1703 = vmax.f32 %v1667, 0.0
      %v1704 = vmax.f32 %v1670, 0.0
      %v1705 = vmax.f32 %v1673, %v1675
      %v1706 = vmax.f32 %v1674, %v1676
      %v1707 = vmax.f32 %v1677, %v1679
      %v1708 = vmax.f32 %v1678, %v1680
      %v1709 = vmax.f32 %v1681, %v1683
      %v1710 = vmax.f32 %v1682, %v1684
      %v1711 = vmax.f32 %v1685, %v1687
      %v1712 = vmax.f32 %v1686, %v1688
      %v1713 = vmax.f32 %v1689, %v1691
      %v1714 = vmax.f32 %v1690, %v1692
      %v1715 = vmax.f32 %v1693, %v1695
      %v1716 = vmax.f32 %v1694, %v1696
      %v1717 = vmax.f32 %v1697, %v1699
      %v1718 = vmax.f32 %v1698, %v1700
      %v1719 = vmax.f32 %v1701, %v1703
      %v1720 = vmax.f32 %v1702, %v1704
      %v1737 = vcombine.high %v1705, %v1705
      %v1739 = vunpack.c.l.s4 1983009808
      %v1740 = vunpack.c.0.s8 %v1739
      %v1741 = vlaneseq
      %v1742 = vshrl.u32 %v1741, 7
      %v1743 = vsub.s32 %v1740, %v1742
      %v1744 = vrot.slane %v1705, %v1743
      %v1746 = vunpack.c.l.s4 1983009808
      %v1747 = vunpack.c.0.s8 %v1746
      %v1748 = vlaneseq
      %v1749 = vshrl.u32 %v1748, 7
      %v1750 = vsub.s32 %v1747, %v1749
      %v1751 = vrot.slane %v1737, %v1750
      %v1752 = vcombine.high %v1744, %v1744
      %v1753 = vcombine.high %v1751, %v1751
      %v1754 = vcombine.high %v1706, %v1706
      %v1756 = vunpack.c.l.s4 1983009808
      %v1757 = vunpack.c.0.s8 %v1756
      %v1758 = vlaneseq
      %v1759 = vshrl.u32 %v1758, 7
      %v1760 = vsub.s32 %v1757, %v1759
      %v1761 = vrot.slane %v1706, %v1760
      %v1763 = vunpack.c.l.s4 1983009808
      %v1764 = vunpack.c.0.s8 %v1763
      %v1765 = vlaneseq
      %v1766 = vshrl.u32 %v1765, 7
      %v1767 = vsub.s32 %v1764, %v1766
      %v1768 = vrot.slane %v1754, %v1767
      %v1769 = vcombine.high %v1761, %v1761
      %v1770 = vcombine.high %v1768, %v1768
      %v1771 = vcombine.high %v1707, %v1707
      %v1773 = vunpack.c.l.s4 1983009808
      %v1774 = vunpack.c.0.s8 %v1773
      %v1775 = vlaneseq
      %v1776 = vshrl.u32 %v1775, 7
      %v1777 = vsub.s32 %v1774, %v1776
      %v1778 = vrot.slane %v1707, %v1777
      %v1780 = vunpack.c.l.s4 1983009808
      %v1781 = vunpack.c.0.s8 %v1780
      %v1782 = vlaneseq
      %v1783 = vshrl.u32 %v1782, 7
      %v1784 = vsub.s32 %v1781, %v1783
      %v1785 = vrot.slane %v1771, %v1784
      %v1786 = vcombine.high %v1778, %v1778
      %v1787 = vcombine.high %v1785, %v1785
      %v1788 = vcombine.high %v1708, %v1708
      %v1790 = vunpack.c.l.s4 1983009808
      %v1791 = vunpack.c.0.s8 %v1790
      %v1792 = vlaneseq
      %v1793 = vshrl.u32 %v1792, 7
      %v1794 = vsub.s32 %v1791, %v1793
      %v1795 = vrot.slane %v1708, %v1794
      %v1797 = vunpack.c.l.s4 1983009808
      %v1798 = vunpack.c.0.s8 %v1797
      %v1799 = vlaneseq
      %v1800 = vshrl.u32 %v1799, 7
      %v1801 = vsub.s32 %v1798, %v1800
      %v1802 = vrot.slane %v1788, %v1801
      %v1803 = vcombine.high %v1795, %v1795
      %v1804 = vcombine.high %v1802, %v1802
      %v1805 = vcombine.high %v1709, %v1709
      %v1807 = vunpack.c.l.s4 1983009808
      %v1808 = vunpack.c.0.s8 %v1807
      %v1809 = vlaneseq
      %v1810 = vshrl.u32 %v1809, 7
      %v1811 = vsub.s32 %v1808, %v1810
      %v1812 = vrot.slane %v1709, %v1811
      %v1814 = vunpack.c.l.s4 1983009808
      %v1815 = vunpack.c.0.s8 %v1814
      %v1816 = vlaneseq
      %v1817 = vshrl.u32 %v1816, 7
      %v1818 = vsub.s32 %v1815, %v1817
      %v1819 = vrot.slane %v1805, %v1818
      %v1820 = vcombine.high %v1812, %v1812
      %v1821 = vcombine.high %v1819, %v1819
      %v1822 = vcombine.high %v1710, %v1710
      %v1824 = vunpack.c.l.s4 1983009808
      %v1825 = vunpack.c.0.s8 %v1824
      %v1826 = vlaneseq
      %v1827 = vshrl.u32 %v1826, 7
      %v1828 = vsub.s32 %v1825, %v1827
      %v1829 = vrot.slane %v1710, %v1828
      %v1831 = vunpack.c.l.s4 1983009808
      %v1832 = vunpack.c.0.s8 %v1831
      %v1833 = vlaneseq
      %v1834 = vshrl.u32 %v1833, 7
      %v1835 = vsub.s32 %v1832, %v1834
      %v1836 = vrot.slane %v1822, %v1835
      %v1837 = vcombine.high %v1829, %v1829
      %v1838 = vcombine.high %v1836, %v1836
      %v1839 = vcombine.high %v1711, %v1711
      %v1841 = vunpack.c.l.s4 1983009808
      %v1842 = vunpack.c.0.s8 %v1841
      %v1843 = vlaneseq
      %v1844 = vshrl.u32 %v1843, 7
      %v1845 = vsub.s32 %v1842, %v1844
      %v1846 = vrot.slane %v1711, %v1845
      %v1848 = vunpack.c.l.s4 1983009808
      %v1849 = vunpack.c.0.s8 %v1848
      %v1850 = vlaneseq
      %v1851 = vshrl.u32 %v1850, 7
      %v1852 = vsub.s32 %v1849, %v1851
      %v1853 = vrot.slane %v1839, %v1852
      %v1854 = vcombine.high %v1846, %v1846
      %v1855 = vcombine.high %v1853, %v1853
      %v1856 = vcombine.high %v1712, %v1712
      %v1858 = vunpack.c.l.s4 1983009808
      %v1859 = vunpack.c.0.s8 %v1858
      %v1860 = vlaneseq
      %v1861 = vshrl.u32 %v1860, 7
      %v1862 = vsub.s32 %v1859, %v1861
      %v1863 = vrot.slane %v1712, %v1862
      %v1865 = vunpack.c.l.s4 1983009808
      %v1866 = vunpack.c.0.s8 %v1865
      %v1867 = vlaneseq
      %v1868 = vshrl.u32 %v1867, 7
      %v1869 = vsub.s32 %v1866, %v1868
      %v1870 = vrot.slane %v1856, %v1869
      %v1871 = vcombine.high %v1863, %v1863
      %v1872 = vcombine.high %v1870, %v1870
      %v1873 = vcombine.high %v1713, %v1713
      %v1875 = vunpack.c.l.s4 1983009808
      %v1876 = vunpack.c.0.s8 %v1875
      %v1877 = vlaneseq
      %v1878 = vshrl.u32 %v1877, 7
      %v1879 = vsub.s32 %v1876, %v1878
      %v1880 = vrot.slane %v1713, %v1879
      %v1882 = vunpack.c.l.s4 1983009808
      %v1883 = vunpack.c.0.s8 %v1882
      %v1884 = vlaneseq
      %v1885 = vshrl.u32 %v1884, 7
      %v1886 = vsub.s32 %v1883, %v1885
      %v1887 = vrot.slane %v1873, %v1886
      %v1888 = vcombine.high %v1880, %v1880
      %v1889 = vcombine.high %v1887, %v1887
      %v1890 = vcombine.high %v1714, %v1714
      %v1892 = vunpack.c.l.s4 1983009808
      %v1893 = vunpack.c.0.s8 %v1892
      %v1894 = vlaneseq
      %v1895 = vshrl.u32 %v1894, 7
      %v1896 = vsub.s32 %v1893, %v1895
      %v1897 = vrot.slane %v1714, %v1896
      %v1899 = vunpack.c.l.s4 1983009808
      %v1900 = vunpack.c.0.s8 %v1899
      %v1901 = vlaneseq
      %v1902 = vshrl.u32 %v1901, 7
      %v1903 = vsub.s32 %v1900, %v1902
      %v1904 = vrot.slane %v1890, %v1903
      %v1905 = vcombine.high %v1897, %v1897
      %v1906 = vcombine.high %v1904, %v1904
      %v1907 = vcombine.high %v1715, %v1715
      %v1909 = vunpack.c.l.s4 1983009808
      %v1910 = vunpack.c.0.s8 %v1909
      %v1911 = vlaneseq
      %v1912 = vshrl.u32 %v1911, 7
      %v1913 = vsub.s32 %v1910, %v1912
      %v1914 = vrot.slane %v1715, %v1913
      %v1916 = vunpack.c.l.s4 1983009808
      %v1917 = vunpack.c.0.s8 %v1916
      %v1918 = vlaneseq
      %v1919 = vshrl.u32 %v1918, 7
      %v1920 = vsub.s32 %v1917, %v1919
      %v1921 = vrot.slane %v1907, %v1920
      %v1922 = vcombine.high %v1914, %v1914
      %v1923 = vcombine.high %v1921, %v1921
      %v1924 = vcombine.high %v1716, %v1716
      %v1926 = vunpack.c.l.s4 1983009808
      %v1927 = vunpack.c.0.s8 %v1926
      %v1928 = vlaneseq
      %v1929 = vshrl.u32 %v1928, 7
      %v1930 = vsub.s32 %v1927, %v1929
      %v1931 = vrot.slane %v1716, %v1930
      %v1933 = vunpack.c.l.s4 1983009808
      %v1934 = vunpack.c.0.s8 %v1933
      %v1935 = vlaneseq
      %v1936 = vshrl.u32 %v1935, 7
      %v1937 = vsub.s32 %v1934, %v1936
      %v1938 = vrot.slane %v1924, %v1937
      %v1939 = vcombine.high %v1931, %v1931
      %v1940 = vcombine.high %v1938, %v1938
      %v1941 = vcombine.high %v1717, %v1717
      %v1943 = vunpack.c.l.s4 1983009808
      %v1944 = vunpack.c.0.s8 %v1943
      %v1945 = vlaneseq
      %v1946 = vshrl.u32 %v1945, 7
      %v1947 = vsub.s32 %v1944, %v1946
      %v1948 = vrot.slane %v1717, %v1947
      %v1950 = vunpack.c.l.s4 1983009808
      %v1951 = vunpack.c.0.s8 %v1950
      %v1952 = vlaneseq
      %v1953 = vshrl.u32 %v1952, 7
      %v1954 = vsub.s32 %v1951, %v1953
      %v1955 = vrot.slane %v1941, %v1954
      %v1956 = vcombine.high %v1948, %v1948
      %v1957 = vcombine.high %v1955, %v1955
      %v1958 = vcombine.high %v1718, %v1718
      %v1960 = vunpack.c.l.s4 1983009808
      %v1961 = vunpack.c.0.s8 %v1960
      %v1962 = vlaneseq
      %v1963 = vshrl.u32 %v1962, 7
      %v1964 = vsub.s32 %v1961, %v1963
      %v1965 = vrot.slane %v1718, %v1964
      %v1967 = vunpack.c.l.s4 1983009808
      %v1968 = vunpack.c.0.s8 %v1967
      %v1969 = vlaneseq
      %v1970 = vshrl.u32 %v1969, 7
      %v1971 = vsub.s32 %v1968, %v1970
      %v1972 = vrot.slane %v1958, %v1971
      %v1973 = vcombine.high %v1965, %v1965
      %v1974 = vcombine.high %v1972, %v1972
      %v1975 = vcombine.high %v1719, %v1719
      %v1977 = vunpack.c.l.s4 1983009808
      %v1978 = vunpack.c.0.s8 %v1977
      %v1979 = vlaneseq
      %v1980 = vshrl.u32 %v1979, 7
      %v1981 = vsub.s32 %v1978, %v1980
      %v1982 = vrot.slane %v1719, %v1981
      %v1984 = vunpack.c.l.s4 1983009808
      %v1985 = vunpack.c.0.s8 %v1984
      %v1986 = vlaneseq
      %v1987 = vshrl.u32 %v1986, 7
      %v1988 = vsub.s32 %v1985, %v1987
      %v1989 = vrot.slane %v1975, %v1988
      %v1990 = vcombine.high %v1982, %v1982
      %v1991 = vcombine.high %v1989, %v1989
      %v1992 = vcombine.high %v1720, %v1720
      %v1994 = vunpack.c.l.s4 1983009808
      %v1995 = vunpack.c.0.s8 %v1994
      %v1996 = vlaneseq
      %v1997 = vshrl.u32 %v1996, 7
      %v1998 = vsub.s32 %v1995, %v1997
      %v1999 = vrot.slane %v1720, %v1998
      %v2001 = vunpack.c.l.s4 1983009808
      %v2002 = vunpack.c.0.s8 %v2001
      %v2003 = vlaneseq
      %v2004 = vshrl.u32 %v2003, 7
      %v2005 = vsub.s32 %v2002, %v2004
      %v2006 = vrot.slane %v1992, %v2005
      %v2007 = vcombine.high %v1999, %v1999
      %v2008 = vcombine.high %v2006, %v2006
      %vm2073 = vcmask 517120
      %v2074 = vsel %vm2073, %v1744, -inf
      %v2075 = vrot.slane %v2074, 4
      %v2076 = vmax.f32 %v2074, %v2075
      %v2077 = vrot.slane %v2076, 2
      %v2078 = vmax.f32 %v2076, %v2077
      %v2079 = vrot.slane %v2078, 1
      %v2080 = vmax.f32 %v2078, %v2079
      %v2081 = vsel %vm2073, %v1752, -inf
      %v2082 = vrot.slane %v2081, 4
      %v2083 = vmax.f32 %v2081, %v2082
      %v2084 = vrot.slane %v2083, 2
      %v2085 = vmax.f32 %v2083, %v2084
      %v2086 = vrot.slane %v2085, 1
      %v2087 = vmax.f32 %v2085, %v2086
      %v2088 = vsel %vm2073, %v1751, -inf
      %v2089 = vrot.slane %v2088, 4
      %v2090 = vmax.f32 %v2088, %v2089
      %v2091 = vrot.slane %v2090, 2
      %v2092 = vmax.f32 %v2090, %v2091
      %v2093 = vrot.slane %v2092, 1
      %v2094 = vmax.f32 %v2092, %v2093
      %v2095 = vsel %vm2073, %v1753, -inf
      %v2096 = vrot.slane %v2095, 4
      %v2097 = vmax.f32 %v2095, %v2096
      %v2098 = vrot.slane %v2097, 2
      %v2099 = vmax.f32 %v2097, %v2098
      %v2100 = vrot.slane %v2099, 1
      %v2101 = vmax.f32 %v2099, %v2100
      %v2102 = vsel %vm2073, %v1761, -inf
      %v2103 = vrot.slane %v2102, 4
      %v2104 = vmax.f32 %v2102, %v2103
      %v2105 = vrot.slane %v2104, 2
      %v2106 = vmax.f32 %v2104, %v2105
      %v2107 = vrot.slane %v2106, 1
      %v2108 = vmax.f32 %v2106, %v2107
      %v2109 = vsel %vm2073, %v1769, -inf
      %v2110 = vrot.slane %v2109, 4
      %v2111 = vmax.f32 %v2109, %v2110
      %v2112 = vrot.slane %v2111, 2
      %v2113 = vmax.f32 %v2111, %v2112
      %v2114 = vrot.slane %v2113, 1
      %v2115 = vmax.f32 %v2113, %v2114
      %v2116 = vsel %vm2073, %v1768, -inf
      %v2117 = vrot.slane %v2116, 4
      %v2118 = vmax.f32 %v2116, %v2117
      %v2119 = vrot.slane %v2118, 2
      %v2120 = vmax.f32 %v2118, %v2119
      %v2121 = vrot.slane %v2120, 1
      %v2122 = vmax.f32 %v2120, %v2121
      %v2123 = vsel %vm2073, %v1770, -inf
      %v2124 = vrot.slane %v2123, 4
      %v2125 = vmax.f32 %v2123, %v2124
      %v2126 = vrot.slane %v2125, 2
      %v2127 = vmax.f32 %v2125, %v2126
      %v2128 = vrot.slane %v2127, 1
      %v2129 = vmax.f32 %v2127, %v2128
      %v2130 = vsel %vm2073, %v1778, -inf
      %v2131 = vrot.slane %v2130, 4
      %v2132 = vmax.f32 %v2130, %v2131
      %v2133 = vrot.slane %v2132, 2
      %v2134 = vmax.f32 %v2132, %v2133
      %v2135 = vrot.slane %v2134, 1
      %v2136 = vmax.f32 %v2134, %v2135
      %v2137 = vsel %vm2073, %v1786, -inf
      %v2138 = vrot.slane %v2137, 4
      %v2139 = vmax.f32 %v2137, %v2138
      %v2140 = vrot.slane %v2139, 2
      %v2141 = vmax.f32 %v2139, %v2140
      %v2142 = vrot.slane %v2141, 1
      %v2143 = vmax.f32 %v2141, %v2142
      %v2144 = vsel %vm2073, %v1785, -inf
      %v2145 = vrot.slane %v2144, 4
      %v2146 = vmax.f32 %v2144, %v2145
      %v2147 = vrot.slane %v2146, 2
      %v2148 = vmax.f32 %v2146, %v2147
      %v2149 = vrot.slane %v2148, 1
      %v2150 = vmax.f32 %v2148, %v2149
      %v2151 = vsel %vm2073, %v1787, -inf
      %v2152 = vrot.slane %v2151, 4
      %v2153 = vmax.f32 %v2151, %v2152
      %v2154 = vrot.slane %v2153, 2
      %v2155 = vmax.f32 %v2153, %v2154
      %v2156 = vrot.slane %v2155, 1
      %v2157 = vmax.f32 %v2155, %v2156
      %v2158 = vsel %vm2073, %v1795, -inf
      %v2159 = vrot.slane %v2158, 4
      %v2160 = vmax.f32 %v2158, %v2159
      %v2161 = vrot.slane %v2160, 2
      %v2162 = vmax.f32 %v2160, %v2161
      %v2163 = vrot.slane %v2162, 1
      %v2164 = vmax.f32 %v2162, %v2163
      %v2165 = vsel %vm2073, %v1803, -inf
      %v2166 = vrot.slane %v2165, 4
      %v2167 = vmax.f32 %v2165, %v2166
      %v2168 = vrot.slane %v2167, 2
      %v2169 = vmax.f32 %v2167, %v2168
      %v2170 = vrot.slane %v2169, 1
      %v2171 = vmax.f32 %v2169, %v2170
      %v2172 = vsel %vm2073, %v1802, -inf
      %v2173 = vrot.slane %v2172, 4
      %v2174 = vmax.f32 %v2172, %v2173
      %v2175 = vrot.slane %v2174, 2
      %v2176 = vmax.f32 %v2174, %v2175
      %v2177 = vrot.slane %v2176, 1
      %v2178 = vmax.f32 %v2176, %v2177
      %v2179 = vsel %vm2073, %v1804, -inf
      %v2180 = vrot.slane %v2179, 4
      %v2181 = vmax.f32 %v2179, %v2180
      %v2182 = vrot.slane %v2181, 2
      %v2183 = vmax.f32 %v2181, %v2182
      %v2184 = vrot.slane %v2183, 1
      %v2185 = vmax.f32 %v2183, %v2184
      %v2186 = vsel %vm2073, %v1812, -inf
      %v2187 = vrot.slane %v2186, 4
      %v2188 = vmax.f32 %v2186, %v2187
      %v2189 = vrot.slane %v2188, 2
      %v2190 = vmax.f32 %v2188, %v2189
      %v2191 = vrot.slane %v2190, 1
      %v2192 = vmax.f32 %v2190, %v2191
      %v2193 = vsel %vm2073, %v1820, -inf
      %v2194 = vrot.slane %v2193, 4
      %v2195 = vmax.f32 %v2193, %v2194
      %v2196 = vrot.slane %v2195, 2
      %v2197 = vmax.f32 %v2195, %v2196
      %v2198 = vrot.slane %v2197, 1
      %v2199 = vmax.f32 %v2197, %v2198
      %v2200 = vsel %vm2073, %v1819, -inf
      %v2201 = vrot.slane %v2200, 4
      %v2202 = vmax.f32 %v2200, %v2201
      %v2203 = vrot.slane %v2202, 2
      %v2204 = vmax.f32 %v2202, %v2203
      %v2205 = vrot.slane %v2204, 1
      %v2206 = vmax.f32 %v2204, %v2205
      %v2207 = vsel %vm2073, %v1821, -inf
      %v2208 = vrot.slane %v2207, 4
      %v2209 = vmax.f32 %v2207, %v2208
      %v2210 = vrot.slane %v2209, 2
      %v2211 = vmax.f32 %v2209, %v2210
      %v2212 = vrot.slane %v2211, 1
      %v2213 = vmax.f32 %v2211, %v2212
      %v2214 = vsel %vm2073, %v1829, -inf
      %v2215 = vrot.slane %v2214, 4
      %v2216 = vmax.f32 %v2214, %v2215
      %v2217 = vrot.slane %v2216, 2
      %v2218 = vmax.f32 %v2216, %v2217
      %v2219 = vrot.slane %v2218, 1
      %v2220 = vmax.f32 %v2218, %v2219
      %v2221 = vsel %vm2073, %v1837, -inf
      %v2222 = vrot.slane %v2221, 4
      %v2223 = vmax.f32 %v2221, %v2222
      %v2224 = vrot.slane %v2223, 2
      %v2225 = vmax.f32 %v2223, %v2224
      %v2226 = vrot.slane %v2225, 1
      %v2227 = vmax.f32 %v2225, %v2226
      %v2228 = vsel %vm2073, %v1836, -inf
      %v2229 = vrot.slane %v2228, 4
      %v2230 = vmax.f32 %v2228, %v2229
      %v2231 = vrot.slane %v2230, 2
      %v2232 = vmax.f32 %v2230, %v2231
      %v2233 = vrot.slane %v2232, 1
      %v2234 = vmax.f32 %v2232, %v2233
      %v2235 = vsel %vm2073, %v1838, -inf
      %v2236 = vrot.slane %v2235, 4
      %v2237 = vmax.f32 %v2235, %v2236
      %v2238 = vrot.slane %v2237, 2
      %v2239 = vmax.f32 %v2237, %v2238
      %v2240 = vrot.slane %v2239, 1
      %v2241 = vmax.f32 %v2239, %v2240
      %v2242 = vsel %vm2073, %v1846, -inf
      %v2243 = vrot.slane %v2242, 4
      %v2244 = vmax.f32 %v2242, %v2243
      %v2245 = vrot.slane %v2244, 2
      %v2246 = vmax.f32 %v2244, %v2245
      %v2247 = vrot.slane %v2246, 1
      %v2248 = vmax.f32 %v2246, %v2247
      %v2249 = vsel %vm2073, %v1854, -inf
      %v2250 = vrot.slane %v2249, 4
      %v2251 = vmax.f32 %v2249, %v2250
      %v2252 = vrot.slane %v2251, 2
      %v2253 = vmax.f32 %v2251, %v2252
      %v2254 = vrot.slane %v2253, 1
      %v2255 = vmax.f32 %v2253, %v2254
      %v2256 = vsel %vm2073, %v1853, -inf
      %v2257 = vrot.slane %v2256, 4
      %v2258 = vmax.f32 %v2256, %v2257
      %v2259 = vrot.slane %v2258, 2
      %v2260 = vmax.f32 %v2258, %v2259
      %v2261 = vrot.slane %v2260, 1
      %v2262 = vmax.f32 %v2260, %v2261
      %v2263 = vsel %vm2073, %v1855, -inf
      %v2264 = vrot.slane %v2263, 4
      %v2265 = vmax.f32 %v2263, %v2264
      %v2266 = vrot.slane %v2265, 2
      %v2267 = vmax.f32 %v2265, %v2266
      %v2268 = vrot.slane %v2267, 1
      %v2269 = vmax.f32 %v2267, %v2268
      %v2270 = vsel %vm2073, %v1863, -inf
      %v2271 = vrot.slane %v2270, 4
      %v2272 = vmax.f32 %v2270, %v2271
      %v2273 = vrot.slane %v2272, 2
      %v2274 = vmax.f32 %v2272, %v2273
      %v2275 = vrot.slane %v2274, 1
      %v2276 = vmax.f32 %v2274, %v2275
      %v2277 = vsel %vm2073, %v1871, -inf
      %v2278 = vrot.slane %v2277, 4
      %v2279 = vmax.f32 %v2277, %v2278
      %v2280 = vrot.slane %v2279, 2
      %v2281 = vmax.f32 %v2279, %v2280
      %v2282 = vrot.slane %v2281, 1
      %v2283 = vmax.f32 %v2281, %v2282
      %v2284 = vsel %vm2073, %v1870, -inf
      %v2285 = vrot.slane %v2284, 4
      %v2286 = vmax.f32 %v2284, %v2285
      %v2287 = vrot.slane %v2286, 2
      %v2288 = vmax.f32 %v2286, %v2287
      %v2289 = vrot.slane %v2288, 1
      %v2290 = vmax.f32 %v2288, %v2289
      %v2291 = vsel %vm2073, %v1872, -inf
      %v2292 = vrot.slane %v2291, 4
      %v2293 = vmax.f32 %v2291, %v2292
      %v2294 = vrot.slane %v2293, 2
      %v2295 = vmax.f32 %v2293, %v2294
      %v2296 = vrot.slane %v2295, 1
      %v2297 = vmax.f32 %v2295, %v2296
      %v2298 = vsel %vm2073, %v1880, -inf
      %v2299 = vrot.slane %v2298, 4
      %v2300 = vmax.f32 %v2298, %v2299
      %v2301 = vrot.slane %v2300, 2
      %v2302 = vmax.f32 %v2300, %v2301
      %v2303 = vrot.slane %v2302, 1
      %v2304 = vmax.f32 %v2302, %v2303
      %v2305 = vsel %vm2073, %v1888, -inf
      %v2306 = vrot.slane %v2305, 4
      %v2307 = vmax.f32 %v2305, %v2306
      %v2308 = vrot.slane %v2307, 2
      %v2309 = vmax.f32 %v2307, %v2308
      %v2310 = vrot.slane %v2309, 1
      %v2311 = vmax.f32 %v2309, %v2310
      %v2312 = vsel %vm2073, %v1887, -inf
      %v2313 = vrot.slane %v2312, 4
      %v2314 = vmax.f32 %v2312, %v2313
      %v2315 = vrot.slane %v2314, 2
      %v2316 = vmax.f32 %v2314, %v2315
      %v2317 = vrot.slane %v2316, 1
      %v2318 = vmax.f32 %v2316, %v2317
      %v2319 = vsel %vm2073, %v1889, -inf
      %v2320 = vrot.slane %v2319, 4
      %v2321 = vmax.f32 %v2319, %v2320
      %v2322 = vrot.slane %v2321, 2
      %v2323 = vmax.f32 %v2321, %v2322
      %v2324 = vrot.slane %v2323, 1
      %v2325 = vmax.f32 %v2323, %v2324
      %v2326 = vsel %vm2073, %v1897, -inf
      %v2327 = vrot.slane %v2326, 4
      %v2328 = vmax.f32 %v2326, %v2327
      %v2329 = vrot.slane %v2328, 2
      %v2330 = vmax.f32 %v2328, %v2329
      %v2331 = vrot.slane %v2330, 1
      %v2332 = vmax.f32 %v2330, %v2331
      %v2333 = vsel %vm2073, %v1905, -inf
      %v2334 = vrot.slane %v2333, 4
      %v2335 = vmax.f32 %v2333, %v2334
      %v2336 = vrot.slane %v2335, 2
      %v2337 = vmax.f32 %v2335, %v2336
      %v2338 = vrot.slane %v2337, 1
      %v2339 = vmax.f32 %v2337, %v2338
      %v2340 = vsel %vm2073, %v1904, -inf
      %v2341 = vrot.slane %v2340, 4
      %v2342 = vmax.f32 %v2340, %v2341
      %v2343 = vrot.slane %v2342, 2
      %v2344 = vmax.f32 %v2342, %v2343
      %v2345 = vrot.slane %v2344, 1
      %v2346 = vmax.f32 %v2344, %v2345
      %v2347 = vsel %vm2073, %v1906, -inf
      %v2348 = vrot.slane %v2347, 4
      %v2349 = vmax.f32 %v2347, %v2348
      %v2350 = vrot.slane %v2349, 2
      %v2351 = vmax.f32 %v2349, %v2350
      %v2352 = vrot.slane %v2351, 1
      %v2353 = vmax.f32 %v2351, %v2352
      %v2354 = vsel %vm2073, %v1914, -inf
      %v2355 = vrot.slane %v2354, 4
      %v2356 = vmax.f32 %v2354, %v2355
      %v2357 = vrot.slane %v2356, 2
      %v2358 = vmax.f32 %v2356, %v2357
      %v2359 = vrot.slane %v2358, 1
      %v2360 = vmax.f32 %v2358, %v2359
      %v2361 = vsel %vm2073, %v1922, -inf
      %v2362 = vrot.slane %v2361, 4
      %v2363 = vmax.f32 %v2361, %v2362
      %v2364 = vrot.slane %v2363, 2
      %v2365 = vmax.f32 %v2363, %v2364
      %v2366 = vrot.slane %v2365, 1
      %v2367 = vmax.f32 %v2365, %v2366
      %v2368 = vsel %vm2073, %v1921, -inf
      %v2369 = vrot.slane %v2368, 4
      %v2370 = vmax.f32 %v2368, %v2369
      %v2371 = vrot.slane %v2370, 2
      %v2372 = vmax.f32 %v2370, %v2371
      %v2373 = vrot.slane %v2372, 1
      %v2374 = vmax.f32 %v2372, %v2373
      %v2375 = vsel %vm2073, %v1923, -inf
      %v2376 = vrot.slane %v2375, 4
      %v2377 = vmax.f32 %v2375, %v2376
      %v2378 = vrot.slane %v2377, 2
      %v2379 = vmax.f32 %v2377, %v2378
      %v2380 = vrot.slane %v2379, 1
      %v2381 = vmax.f32 %v2379, %v2380
      %v2382 = vsel %vm2073, %v1931, -inf
      %v2383 = vrot.slane %v2382, 4
      %v2384 = vmax.f32 %v2382, %v2383
      %v2385 = vrot.slane %v2384, 2
      %v2386 = vmax.f32 %v2384, %v2385
      %v2387 = vrot.slane %v2386, 1
      %v2388 = vmax.f32 %v2386, %v2387
      %v2389 = vsel %vm2073, %v1939, -inf
      %v2390 = vrot.slane %v2389, 4
      %v2391 = vmax.f32 %v2389, %v2390
      %v2392 = vrot.slane %v2391, 2
      %v2393 = vmax.f32 %v2391, %v2392
      %v2394 = vrot.slane %v2393, 1
      %v2395 = vmax.f32 %v2393, %v2394
      %v2396 = vsel %vm2073, %v1938, -inf
      %v2397 = vrot.slane %v2396, 4
      %v2398 = vmax.f32 %v2396, %v2397
      %v2399 = vrot.slane %v2398, 2
      %v2400 = vmax.f32 %v2398, %v2399
      %v2401 = vrot.slane %v2400, 1
      %v2402 = vmax.f32 %v2400, %v2401
      %v2403 = vsel %vm2073, %v1940, -inf
      %v2404 = vrot.slane %v2403, 4
      %v2405 = vmax.f32 %v2403, %v2404
      %v2406 = vrot.slane %v2405, 2
      %v2407 = vmax.f32 %v2405, %v2406
      %v2408 = vrot.slane %v2407, 1
      %v2409 = vmax.f32 %v2407, %v2408
      %v2410 = vsel %vm2073, %v1948, -inf
      %v2411 = vrot.slane %v2410, 4
      %v2412 = vmax.f32 %v2410, %v2411
      %v2413 = vrot.slane %v2412, 2
      %v2414 = vmax.f32 %v2412, %v2413
      %v2415 = vrot.slane %v2414, 1
      %v2416 = vmax.f32 %v2414, %v2415
      %v2417 = vsel %vm2073, %v1956, -inf
      %v2418 = vrot.slane %v2417, 4
      %v2419 = vmax.f32 %v2417, %v2418
      %v2420 = vrot.slane %v2419, 2
      %v2421 = vmax.f32 %v2419, %v2420
      %v2422 = vrot.slane %v2421, 1
      %v2423 = vmax.f32 %v2421, %v2422
      %v2424 = vsel %vm2073, %v1955, -inf
      %v2425 = vrot.slane %v2424, 4
      %v2426 = vmax.f32 %v2424, %v2425
      %v2427 = vrot.slane %v2426, 2
      %v2428 = vmax.f32 %v2426, %v2427
      %v2429 = vrot.slane %v2428, 1
      %v2430 = vmax.f32 %v2428, %v2429
      %v2431 = vsel %vm2073, %v1957, -inf
      %v2432 = vrot.slane %v2431, 4
      %v2433 = vmax.f32 %v2431, %v2432
      %v2434 = vrot.slane %v2433, 2
      %v2435 = vmax.f32 %v2433, %v2434
      %v2436 = vrot.slane %v2435, 1
      %v2437 = vmax.f32 %v2435, %v2436
      %v2438 = vsel %vm2073, %v1965, -inf
      %v2439 = vrot.slane %v2438, 4
      %v2440 = vmax.f32 %v2438, %v2439
      %v2441 = vrot.slane %v2440, 2
      %v2442 = vmax.f32 %v2440, %v2441
      %v2443 = vrot.slane %v2442, 1
      %v2444 = vmax.f32 %v2442, %v2443
      %v2445 = vsel %vm2073, %v1973, -inf
      %v2446 = vrot.slane %v2445, 4
      %v2447 = vmax.f32 %v2445, %v2446
      %v2448 = vrot.slane %v2447, 2
      %v2449 = vmax.f32 %v2447, %v2448
      %v2450 = vrot.slane %v2449, 1
      %v2451 = vmax.f32 %v2449, %v2450
      %v2452 = vsel %vm2073, %v1972, -inf
      %v2453 = vrot.slane %v2452, 4
      %v2454 = vmax.f32 %v2452, %v2453
      %v2455 = vrot.slane %v2454, 2
      %v2456 = vmax.f32 %v2454, %v2455
      %v2457 = vrot.slane %v2456, 1
      %v2458 = vmax.f32 %v2456, %v2457
      %v2459 = vsel %vm2073, %v1974, -inf
      %v2460 = vrot.slane %v2459, 4
      %v2461 = vmax.f32 %v2459, %v2460
      %v2462 = vrot.slane %v2461, 2
      %v2463 = vmax.f32 %v2461, %v2462
      %v2464 = vrot.slane %v2463, 1
      %v2465 = vmax.f32 %v2463, %v2464
      %v2466 = vsel %vm2073, %v1982, -inf
      %v2467 = vrot.slane %v2466, 4
      %v2468 = vmax.f32 %v2466, %v2467
      %v2469 = vrot.slane %v2468, 2
      %v2470 = vmax.f32 %v2468, %v2469
      %v2471 = vrot.slane %v2470, 1
      %v2472 = vmax.f32 %v2470, %v2471
      %v2473 = vsel %vm2073, %v1990, -inf
      %v2474 = vrot.slane %v2473, 4
      %v2475 = vmax.f32 %v2473, %v2474
      %v2476 = vrot.slane %v2475, 2
      %v2477 = vmax.f32 %v2475, %v2476
      %v2478 = vrot.slane %v2477, 1
      %v2479 = vmax.f32 %v2477, %v2478
      %v2480 = vsel %vm2073, %v1989, -inf
      %v2481 = vrot.slane %v2480, 4
      %v2482 = vmax.f32 %v2480, %v2481
      %v2483 = vrot.slane %v2482, 2
      %v2484 = vmax.f32 %v2482, %v2483
      %v2485 = vrot.slane %v2484, 1
      %v2486 = vmax.f32 %v2484, %v2485
      %v2487 = vsel %vm2073, %v1991, -inf
      %v2488 = vrot.slane %v2487, 4
      %v2489 = vmax.f32 %v2487, %v2488
      %v2490 = vrot.slane %v2489, 2
      %v2491 = vmax.f32 %v2489, %v2490
      %v2492 = vrot.slane %v2491, 1
      %v2493 = vmax.f32 %v2491, %v2492
      %v2494 = vsel %vm2073, %v1999, -inf
      %v2495 = vrot.slane %v2494, 4
      %v2496 = vmax.f32 %v2494, %v2495
      %v2497 = vrot.slane %v2496, 2
      %v2498 = vmax.f32 %v2496, %v2497
      %v2499 = vrot.slane %v2498, 1
      %v2500 = vmax.f32 %v2498, %v2499
      %v2501 = vsel %vm2073, %v2007, -inf
      %v2502 = vrot.slane %v2501, 4
      %v2503 = vmax.f32 %v2501, %v2502
      %v2504 = vrot.slane %v2503, 2
      %v2505 = vmax.f32 %v2503, %v2504
      %v2506 = vrot.slane %v2505, 1
      %v2507 = vmax.f32 %v2505, %v2506
      %v2508 = vsel %vm2073, %v2006, -inf
      %v2509 = vrot.slane %v2508, 4
      %v2510 = vmax.f32 %v2508, %v2509
      %v2511 = vrot.slane %v2510, 2
      %v2512 = vmax.f32 %v2510, %v2511
      %v2513 = vrot.slane %v2512, 1
      %v2514 = vmax.f32 %v2512, %v2513
      %v2515 = vsel %vm2073, %v2008, -inf
      %v2516 = vrot.slane %v2515, 4
      %v2517 = vmax.f32 %v2515, %v2516
      %v2518 = vrot.slane %v2517, 2
      %v2519 = vmax.f32 %v2517, %v2518
      %v2520 = vrot.slane %v2519, 1
      %v2521 = vmax.f32 %v2519, %v2520
      %vm2586 = vcmask 1041409
      %v2587 = vsel %vm2586, %v2087, %v2080
      %vm2588 = vcmask 1042434
      %v2589 = vsel %vm2588, %v2094, %v2587
      %vm2590 = vcmask 1043459
      %v2591 = vsel %vm2590, %v2101, %v2589
      %vm2592 = vcmask 1044484
      %v2593 = vsel %vm2592, %v2108, %v2591
      %vm2594 = vcmask 1045509
      %v2595 = vsel %vm2594, %v2115, %v2593
      %vm2596 = vcmask 1046534
      %v2597 = vsel %vm2596, %v2122, %v2595
      %vm2598 = vcmask 1047559
      %v2599 = vsel %vm2598, %v2129, %v2597
      %v2600 = vsel %vm2586, %v2143, %v2136
      %v2601 = vsel %vm2588, %v2150, %v2600
      %v2602 = vsel %vm2590, %v2157, %v2601
      %v2603 = vsel %vm2592, %v2164, %v2602
      %v2604 = vsel %vm2594, %v2171, %v2603
      %v2605 = vsel %vm2596, %v2178, %v2604
      %v2606 = vsel %vm2598, %v2185, %v2605
      %v2607 = vsel %vm2586, %v2199, %v2192
      %v2608 = vsel %vm2588, %v2206, %v2607
      %v2609 = vsel %vm2590, %v2213, %v2608
      %v2610 = vsel %vm2592, %v2220, %v2609
      %v2611 = vsel %vm2594, %v2227, %v2610
      %v2612 = vsel %vm2596, %v2234, %v2611
      %v2613 = vsel %vm2598, %v2241, %v2612
      %v2614 = vsel %vm2586, %v2255, %v2248
      %v2615 = vsel %vm2588, %v2262, %v2614
      %v2616 = vsel %vm2590, %v2269, %v2615
      %v2617 = vsel %vm2592, %v2276, %v2616
      %v2618 = vsel %vm2594, %v2283, %v2617
      %v2619 = vsel %vm2596, %v2290, %v2618
      %v2620 = vsel %vm2598, %v2297, %v2619
      %v2621 = vsel %vm2586, %v2311, %v2304
      %v2622 = vsel %vm2588, %v2318, %v2621
      %v2623 = vsel %vm2590, %v2325, %v2622
      %v2624 = vsel %vm2592, %v2332, %v2623
      %v2625 = vsel %vm2594, %v2339, %v2624
      %v2626 = vsel %vm2596, %v2346, %v2625
      %v2627 = vsel %vm2598, %v2353, %v2626
      %v2628 = vsel %vm2586, %v2367, %v2360
      %v2629 = vsel %vm2588, %v2374, %v2628
      %v2630 = vsel %vm2590, %v2381, %v2629
      %v2631 = vsel %vm2592, %v2388, %v2630
      %v2632 = vsel %vm2594, %v2395, %v2631
      %v2633 = vsel %vm2596, %v2402, %v2632
      %v2634 = vsel %vm2598, %v2409, %v2633
      %v2635 = vsel %vm2586, %v2423, %v2416
      %v2636 = vsel %vm2588, %v2430, %v2635
      %v2637 = vsel %vm2590, %v2437, %v2636
      %v2638 = vsel %vm2592, %v2444, %v2637
      %v2639 = vsel %vm2594, %v2451, %v2638
      %v2640 = vsel %vm2596, %v2458, %v2639
      %v2641 = vsel %vm2598, %v2465, %v2640
      %v2642 = vsel %vm2586, %v2479, %v2472
      %v2643 = vsel %vm2588, %v2486, %v2642
      %v2644 = vsel %vm2590, %v2493, %v2643
      %v2645 = vsel %vm2592, %v2500, %v2644
      %v2646 = vsel %vm2594, %v2507, %v2645
      %v2647 = vsel %vm2596, %v2514, %v2646
      %v2648 = vsel %vm2598, %v2521, %v2647
      %2657 = vst.msk [vmem:[%s316] sm:$0xff] %vm942, %v2599
      %2658 = vst.msk [vmem:[%s316 + $0x8] sm:$0xff] %vm942, %v2606
      %2659 = vst.msk [vmem:[%s316 + $0x10] sm:$0xff] %vm942, %v2613
      %2660 = vst.msk [vmem:[%s316 + $0x18] sm:$0xff] %vm942, %v2620
      %2661 = vst.msk [vmem:[%s316 + $0x20] sm:$0xff] %vm942, %v2627
      %2662 = vst.msk [vmem:[%s316 + $0x28] sm:$0xff] %vm942, %v2634
      %2663 = vst.msk [vmem:[%s316 + $0x30] sm:$0xff] %vm942, %v2641
      %2664 = vst.msk [vmem:[%s316 + $0x38] sm:$0xff] %vm942, %v2648
      %s2665 = smul.u32 8, %s20
      %p2666 = scmp.lt.s32.totalorder %s19, 1
      %s2667 = scalar_select %p2666, %s19, 1
      %p2668 = scmp.lt.s32.totalorder %s2665, 7
      %s2669 = scalar_select %p2668, %s2665, 7
      %s2670 = smul.addr %s2667, 8
      %s2671 = sadd.s32 %s2669, %s2670
      %s2672 = smul.addr %s2671, 8
      %s2673 = scalar_lea.vmem %s4, %s2672
      // Predicated region
      $region37: #{cnn_forward.4} parent=35 // pred_check
        %p2674 = pneg %p149
      $region38: #{cnn_forward.4} parent=35 // pred_check_branch
        %2676 = sbr.rel (%p2674) target = $region40
      $region39: #{cnn_forward.4} parent=35 // pred_region
        %s2677 = smul.u32 8, %s20
      $region40: #{cnn_forward.4} parent=35 // pred_fallthru
        _
    $region36: #{cnn_forward.4} parent=5 // pred_fallthru
      _
    %p2678 = scmp.le.s32.totalorder 2, %s10
    // Predicated region
    $region41: #{cnn_forward.4} parent=5 // pred_check
      %p2679 = pneg %p2678
    $region42: #{cnn_forward.4} parent=5 // pred_check_branch
      %2681 = sbr.rel (%p2679) target = $region44
    $region43: #{cnn_forward.4} parent=5 // pred_region
      %s2682 = ssub.s32 %s10, 2
      // Predicated region
      $region45: #{cnn_forward.4} parent=43 // pred_check
        %p2683 = pneg %p155
      $region46: #{cnn_forward.4} parent=43 // pred_check_branch
        %2685 = sbr.rel (%p2683) target = $region48
      $region47: #{cnn_forward.4} parent=43 // pred_region
        %s2686 = smul.u32 8, %s22
        %p2687 = scmp.lt.s32.totalorder %s21, 1
        %s2688 = scalar_select %p2687, %s21, 1
        %p2689 = scmp.lt.s32.totalorder %s2686, 7
        %s2690 = scalar_select %p2689, %s2686, 7
        %s2691 = smul.addr %s2688, 8
        %s2692 = sadd.s32 %s2690, %s2691
        %s2693 = smul.addr %s2692, 8
        %s2694 = scalar_lea.vmem %s4, %s2693
      $region48: #{cnn_forward.4} parent=43 // pred_fallthru
        _
    $region44: #{cnn_forward.4} parent=5 // pred_fallthru
      _
  $region6: #{cnn_forward.4} parent=0 // loop_footer
    %s14 = sadd.s32 1, %s10
  $region7: #{cnn_forward.4} parent=0 // loop_footer_branch
    %9 = sbr.rel target = $region3
  $region8: #{cnn_forward.4} parent=0 // loop_exit
    _

// kernel: cnn_forward.5
$region0: #{cnn_forward.5}
  #allocation0 [shape = 'u32[]', space=smem, size = 0x4, offset = 0x4, fixed_abs, tag = 'smem constant byte address 0x4 - core index']
  #allocation1 [shape = 'u32[144,128]{1,0:T(1,128)}', space=vmem, size = 0x12000, scoped, tag = 'internal scratch']
  #allocation2 [shape = 'f32[2,2]{1,0:T(2,128)}', space=vmem, size = 0x400, scoped, tag = 'scratch operand']
  %s0 = inlined_call_operand.vmem [shape: f32[2,4096], index: 0, kind: input, shape index: {}]
  %s1 = inlined_call_operand.vmem [shape: f32[2,4096], index: 1, kind: input, shape index: {}]
  %s2 = inlined_call_operand.vmem [shape: f32[1,2], index: 2, kind: input, shape index: {}]
  %s3 = inlined_call_operand.hbm [shape: f32[2,2], index: 3, kind: output, shape index: {}]
  %s4 = sld [smem:[#allocation0]]
  $region30: #{cnn_forward.5} parent=0
    _
  %s6 = ssub.s32 1, %s4
  %s7 = scalar_select 0, %s6, %s4
  $region1: #{cnn_forward.5} parent=0
    #allocation3 [shape = 'u8[1024]{0}', space=vmem, size = 0x400, scoped, tag = 'output window, operand 0, single buffered']
    #allocation4 [shape = 's32[1]{0}', space=sflag, size = 0x4, scoped, tag = 'scoped memory for cnn_forward.5']
    %8 = vsyncpa [#allocation4], 0
    // Predicated region
    $region2: #{cnn_forward.5} parent=1 // pred_check
      _
    $region3: #{cnn_forward.5} parent=1 // pred_check_branch
      %10 = sbr.rel (0) target = $region5
    $region4: #{cnn_forward.5} parent=1 // pred_region
      _
    $region5: #{cnn_forward.5} parent=1 // pred_fallthru
      _
    // Predicated region
    $region6: #{cnn_forward.5} parent=1 // pred_check
      _
    $region7: #{cnn_forward.5} parent=1 // pred_check_branch
      %12 = sbr.rel (0) target = $region9
    $region8: #{cnn_forward.5} parent=1 // pred_region
      _
    $region9: #{cnn_forward.5} parent=1 // pred_fallthru
      _
    // Predicated region
    $region10: #{cnn_forward.5} parent=1 // pred_check
      _
    $region11: #{cnn_forward.5} parent=1 // pred_check_branch
      %14 = sbr.rel (0) target = $region13
    $region12: #{cnn_forward.5} parent=1 // pred_region
      _
    $region13: #{cnn_forward.5} parent=1 // pred_fallthru
      _
    %p15 = scmp.eq.s32.totalorder 0, 0
    // Predicated region
    $region14: #{cnn_forward.5} parent=1 // pred_check
      %p16 = pneg %p15
    $region15: #{cnn_forward.5} parent=1 // pred_check_branch
      %18 = sbr.rel (%p16) target = $region17
    $region16: #{cnn_forward.5} parent=1 // pred_region
      %vm19 = vcmask 9216
      %20 = vst.msk [vmem:[#allocation2] sm:$0x3] %vm19, 0.0
    $region17: #{cnn_forward.5} parent=1 // pred_fallthru
      _
    %v21 = vld [vmem:[#allocation2] sm:$0x3]
    %v22 = vld [vmem:[%s0] sm:$0xff]
    %v23 = vld [vmem:[%s0 + $0x8] sm:$0xff]
    %v24 = vld [vmem:[%s0 + $0x10] sm:$0xff]
    %v25 = vld [vmem:[%s0 + $0x18] sm:$0xff]
    %v26 = vld [vmem:[%s0 + $0x20] sm:$0xff]
    %v27 = vld [vmem:[%s0 + $0x28] sm:$0xff]
    %v28 = vld [vmem:[%s0 + $0x30] sm:$0xff]
    %v29 = vld [vmem:[%s0 + $0x38] sm:$0xff]
    %v30 = vld [vmem:[%s1] sm:$0xff]
    %v31 = vld [vmem:[%s1 + $0x8] sm:$0xff]
    %v32 = vld [vmem:[%s1 + $0x10] sm:$0xff]
    %v33 = vld [vmem:[%s1 + $0x18] sm:$0xff]
    %v34 = vld [vmem:[%s1 + $0x20] sm:$0xff]
    %v35 = vld [vmem:[%s1 + $0x28] sm:$0xff]
    %v36 = vld [vmem:[%s1 + $0x30] sm:$0xff]
    %v37 = vld [vmem:[%s1 + $0x38] sm:$0xff]
    %v46 = vcombine.high %v22, %v22
    %v48 = vunpack.c.l.s4 1983009808
    %v49 = vunpack.c.0.s8 %v48
    %v50 = vlaneseq
    %v51 = vshrl.u32 %v50, 7
    %v52 = vsub.s32 %v49, %v51
    %v53 = vrot.slane %v22, %v52
    %v55 = vunpack.c.l.s4 1983009808
    %v56 = vunpack.c.0.s8 %v55
    %v57 = vlaneseq
    %v58 = vshrl.u32 %v57, 7
    %v59 = vsub.s32 %v56, %v58
    %v60 = vrot.slane %v46, %v59
    %v61 = vcombine.high %v53, %v53
    %v62 = vcombine.high %v60, %v60
    %v63 = vcombine.high %v23, %v23
    %v65 = vunpack.c.l.s4 1983009808
    %v66 = vunpack.c.0.s8 %v65
    %v67 = vlaneseq
    %v68 = vshrl.u32 %v67, 7
    %v69 = vsub.s32 %v66, %v68
    %v70 = vrot.slane %v23, %v69
    %v72 = vunpack.c.l.s4 1983009808
    %v73 = vunpack.c.0.s8 %v72
    %v74 = vlaneseq
    %v75 = vshrl.u32 %v74, 7
    %v76 = vsub.s32 %v73, %v75
    %v77 = vrot.slane %v63, %v76
    %v78 = vcombine.high %v70, %v70
    %v79 = vcombine.high %v77, %v77
    %v80 = vcombine.high %v24, %v24
    %v82 = vunpack.c.l.s4 1983009808
    %v83 = vunpack.c.0.s8 %v82
    %v84 = vlaneseq
    %v85 = vshrl.u32 %v84, 7
    %v86 = vsub.s32 %v83, %v85
    %v87 = vrot.slane %v24, %v86
    %v89 = vunpack.c.l.s4 1983009808
    %v90 = vunpack.c.0.s8 %v89
    %v91 = vlaneseq
    %v92 = vshrl.u32 %v91, 7
    %v93 = vsub.s32 %v90, %v92
    %v94 = vrot.slane %v80, %v93
    %v95 = vcombine.high %v87, %v87
    %v96 = vcombine.high %v94, %v94
    %v97 = vcombine.high %v25, %v25
    %v99 = vunpack.c.l.s4 1983009808
    %v100 = vunpack.c.0.s8 %v99
    %v101 = vlaneseq
    %v102 = vshrl.u32 %v101, 7
    %v103 = vsub.s32 %v100, %v102
    %v104 = vrot.slane %v25, %v103
    %v106 = vunpack.c.l.s4 1983009808
    %v107 = vunpack.c.0.s8 %v106
    %v108 = vlaneseq
    %v109 = vshrl.u32 %v108, 7
    %v110 = vsub.s32 %v107, %v109
    %v111 = vrot.slane %v97, %v110
    %v112 = vcombine.high %v104, %v104
    %v113 = vcombine.high %v111, %v111
    %v114 = vcombine.high %v26, %v26
    %v116 = vunpack.c.l.s4 1983009808
    %v117 = vunpack.c.0.s8 %v116
    %v118 = vlaneseq
    %v119 = vshrl.u32 %v118, 7
    %v120 = vsub.s32 %v117, %v119
    %v121 = vrot.slane %v26, %v120
    %v123 = vunpack.c.l.s4 1983009808
    %v124 = vunpack.c.0.s8 %v123
    %v125 = vlaneseq
    %v126 = vshrl.u32 %v125, 7
    %v127 = vsub.s32 %v124, %v126
    %v128 = vrot.slane %v114, %v127
    %v129 = vcombine.high %v121, %v121
    %v130 = vcombine.high %v128, %v128
    %v131 = vcombine.high %v27, %v27
    %v133 = vunpack.c.l.s4 1983009808
    %v134 = vunpack.c.0.s8 %v133
    %v135 = vlaneseq
    %v136 = vshrl.u32 %v135, 7
    %v137 = vsub.s32 %v134, %v136
    %v138 = vrot.slane %v27, %v137
    %v140 = vunpack.c.l.s4 1983009808
    %v141 = vunpack.c.0.s8 %v140
    %v142 = vlaneseq
    %v143 = vshrl.u32 %v142, 7
    %v144 = vsub.s32 %v141, %v143
    %v145 = vrot.slane %v131, %v144
    %v146 = vcombine.high %v138, %v138
    %v147 = vcombine.high %v145, %v145
    %v148 = vcombine.high %v28, %v28
    %v150 = vunpack.c.l.s4 1983009808
    %v151 = vunpack.c.0.s8 %v150
    %v152 = vlaneseq
    %v153 = vshrl.u32 %v152, 7
    %v154 = vsub.s32 %v151, %v153
    %v155 = vrot.slane %v28, %v154
    %v157 = vunpack.c.l.s4 1983009808
    %v158 = vunpack.c.0.s8 %v157
    %v159 = vlaneseq
    %v160 = vshrl.u32 %v159, 7
    %v161 = vsub.s32 %v158, %v160
    %v162 = vrot.slane %v148, %v161
    %v163 = vcombine.high %v155, %v155
    %v164 = vcombine.high %v162, %v162
    %v165 = vcombine.high %v29, %v29
    %v167 = vunpack.c.l.s4 1983009808
    %v168 = vunpack.c.0.s8 %v167
    %v169 = vlaneseq
    %v170 = vshrl.u32 %v169, 7
    %v171 = vsub.s32 %v168, %v170
    %v172 = vrot.slane %v29, %v171
    %v174 = vunpack.c.l.s4 1983009808
    %v175 = vunpack.c.0.s8 %v174
    %v176 = vlaneseq
    %v177 = vshrl.u32 %v176, 7
    %v178 = vsub.s32 %v175, %v177
    %v179 = vrot.slane %v165, %v178
    %v180 = vcombine.high %v172, %v172
    %v181 = vcombine.high %v179, %v179
    %v222 = vcombine.high %v30, %v30
    %v224 = vunpack.c.l.s4 1983009808
    %v225 = vunpack.c.0.s8 %v224
    %v226 = vlaneseq
    %v227 = vshrl.u32 %v226, 7
    %v228 = vsub.s32 %v225, %v227
    %v229 = vrot.slane %v30, %v228
    %v231 = vunpack.c.l.s4 1983009808
    %v232 = vunpack.c.0.s8 %v231
    %v233 = vlaneseq
    %v234 = vshrl.u32 %v233, 7
    %v235 = vsub.s32 %v232, %v234
    %v236 = vrot.slane %v222, %v235
    %v237 = vcombine.high %v229, %v229
    %v238 = vcombine.high %v236, %v236
    %v239 = vcombine.high %v31, %v31
    %v241 = vunpack.c.l.s4 1983009808
    %v242 = vunpack.c.0.s8 %v241
    %v243 = vlaneseq
    %v244 = vshrl.u32 %v243, 7
    %v245 = vsub.s32 %v242, %v244
    %v246 = vrot.slane %v31, %v245
    %v248 = vunpack.c.l.s4 1983009808
    %v249 = vunpack.c.0.s8 %v248
    %v250 = vlaneseq
    %v251 = vshrl.u32 %v250, 7
    %v252 = vsub.s32 %v249, %v251
    %v253 = vrot.slane %v239, %v252
    %v254 = vcombine.high %v246, %v246
    %v255 = vcombine.high %v253, %v253
    %v256 = vcombine.high %v32, %v32
    %v258 = vunpack.c.l.s4 1983009808
    %v259 = vunpack.c.0.s8 %v258
    %v260 = vlaneseq
    %v261 = vshrl.u32 %v260, 7
    %v262 = vsub.s32 %v259, %v261
    %v263 = vrot.slane %v32, %v262
    %v265 = vunpack.c.l.s4 1983009808
    %v266 = vunpack.c.0.s8 %v265
    %v267 = vlaneseq
    %v268 = vshrl.u32 %v267, 7
    %v269 = vsub.s32 %v266, %v268
    %v270 = vrot.slane %v256, %v269
    %v271 = vcombine.high %v263, %v263
    %v272 = vcombine.high %v270, %v270
    %v273 = vcombine.high %v33, %v33
    %v275 = vunpack.c.l.s4 1983009808
    %v276 = vunpack.c.0.s8 %v275
    %v277 = vlaneseq
    %v278 = vshrl.u32 %v277, 7
    %v279 = vsub.s32 %v276, %v278
    %v280 = vrot.slane %v33, %v279
    %v282 = vunpack.c.l.s4 1983009808
    %v283 = vunpack.c.0.s8 %v282
    %v284 = vlaneseq
    %v285 = vshrl.u32 %v284, 7
    %v286 = vsub.s32 %v283, %v285
    %v287 = vrot.slane %v273, %v286
    %v288 = vcombine.high %v280, %v280
    %v289 = vcombine.high %v287, %v287
    %v290 = vcombine.high %v34, %v34
    %v292 = vunpack.c.l.s4 1983009808
    %v293 = vunpack.c.0.s8 %v292
    %v294 = vlaneseq
    %v295 = vshrl.u32 %v294, 7
    %v296 = vsub.s32 %v293, %v295
    %v297 = vrot.slane %v34, %v296
    %v299 = vunpack.c.l.s4 1983009808
    %v300 = vunpack.c.0.s8 %v299
    %v301 = vlaneseq
    %v302 = vshrl.u32 %v301, 7
    %v303 = vsub.s32 %v300, %v302
    %v304 = vrot.slane %v290, %v303
    %v305 = vcombine.high %v297, %v297
    %v306 = vcombine.high %v304, %v304
    %v307 = vcombine.high %v35, %v35
    %v309 = vunpack.c.l.s4 1983009808
    %v310 = vunpack.c.0.s8 %v309
    %v311 = vlaneseq
    %v312 = vshrl.u32 %v311, 7
    %v313 = vsub.s32 %v310, %v312
    %v314 = vrot.slane %v35, %v313
    %v316 = vunpack.c.l.s4 1983009808
    %v317 = vunpack.c.0.s8 %v316
    %v318 = vlaneseq
    %v319 = vshrl.u32 %v318, 7
    %v320 = vsub.s32 %v317, %v319
    %v321 = vrot.slane %v307, %v320
    %v322 = vcombine.high %v314, %v314
    %v323 = vcombine.high %v321, %v321
    %v324 = vcombine.high %v36, %v36
    %v326 = vunpack.c.l.s4 1983009808
    %v327 = vunpack.c.0.s8 %v326
    %v328 = vlaneseq
    %v329 = vshrl.u32 %v328, 7
    %v330 = vsub.s32 %v327, %v329
    %v331 = vrot.slane %v36, %v330
    %v333 = vunpack.c.l.s4 1983009808
    %v334 = vunpack.c.0.s8 %v333
    %v335 = vlaneseq
    %v336 = vshrl.u32 %v335, 7
    %v337 = vsub.s32 %v334, %v336
    %v338 = vrot.slane %v324, %v337
    %v339 = vcombine.high %v331, %v331
    %v340 = vcombine.high %v338, %v338
    %v341 = vcombine.high %v37, %v37
    %v343 = vunpack.c.l.s4 1983009808
    %v344 = vunpack.c.0.s8 %v343
    %v345 = vlaneseq
    %v346 = vshrl.u32 %v345, 7
    %v347 = vsub.s32 %v344, %v346
    %v348 = vrot.slane %v37, %v347
    %v350 = vunpack.c.l.s4 1983009808
    %v351 = vunpack.c.0.s8 %v350
    %v352 = vlaneseq
    %v353 = vshrl.u32 %v352, 7
    %v354 = vsub.s32 %v351, %v353
    %v355 = vrot.slane %v341, %v354
    %v356 = vcombine.high %v348, %v348
    %v357 = vcombine.high %v355, %v355
    %390 = vmatprep.subr.mxu0 %v237
    %391 = vmatpush1.xpose.msra.mxu0 %v229
    %392 = vmatprep.subr.mxu0 0.0
    %393 = vmatpush1.xpose.msra.mxu0 0.0
    %394 = vmatprep.subr.mxu0 0.0
    %395 = vmatpush1.xpose.msra.mxu0 0.0
    %396 = vmatprep.subr.mxu0 0.0
    %397 = vmatpush1.xpose.msra.mxu0 0.0
    %398 = vmatprep.subr.mxu0 0.0
    %399 = vmatpush1.xpose.msra.mxu0 0.0
    %400 = vmatprep.subr.mxu0 0.0
    %401 = vmatpush1.xpose.msra.mxu0 0.0
    %402 = vmatprep.subr.mxu0 0.0
    %403 = vmatpush1.xpose.msra.mxu0 0.0
    %404 = vmatprep.subr.mxu0 0.0
    %405 = vmatpush1.xpose.msra.mxu0 0.0
    %406 = vmatprep.subr.mxu0 0.0
    %407 = vmatpush1.xpose.msra.mxu0 0.0
    %408 = vmatprep.subr.mxu0 0.0
    %409 = vmatpush1.xpose.msra.mxu0 0.0
    %410 = vmatprep.subr.mxu0 0.0
    %411 = vmatpush1.xpose.msra.mxu0 0.0
    %412 = vmatprep.subr.mxu0 0.0
    %413 = vmatpush1.xpose.msra.mxu0 0.0
    %414 = vmatprep.subr.mxu0 0.0
    %415 = vmatpush1.xpose.msra.mxu0 0.0
    %416 = vmatprep.subr.mxu0 0.0
    %417 = vmatpush1.xpose.msra.mxu0 0.0
    %418 = vmatprep.subr.mxu0 0.0
    %419 = vmatpush1.xpose.msra.mxu0 0.0
    %420 = vmatprep.subr.mxu0 0.0
    %421 = vmatpush1.xpose.msra.mxu0 0.0
    %422 = vmatprep.subr.mxu0 0.0
    %423 = vmatpush1.xpose.msra.mxu0 0.0
    %424 = vmatprep.subr.mxu0 0.0
    %425 = vmatpush1.xpose.msra.mxu0 0.0
    %426 = vmatprep.subr.mxu0 0.0
    %427 = vmatpush1.xpose.msra.mxu0 0.0
    %428 = vmatprep.subr.mxu0 0.0
    %429 = vmatpush1.xpose.msra.mxu0 0.0
    %430 = vmatprep.subr.mxu0 0.0
    %431 = vmatpush1.xpose.msra.mxu0 0.0
    %432 = vmatprep.subr.mxu0 0.0
    %433 = vmatpush1.xpose.msra.mxu0 0.0
    %434 = vmatprep.subr.mxu0 0.0
    %435 = vmatpush1.xpose.msra.mxu0 0.0
    %436 = vmatprep.subr.mxu0 0.0
    %437 = vmatpush1.xpose.msra.mxu0 0.0
    %438 = vmatprep.subr.mxu0 0.0
    %439 = vmatpush1.xpose.msra.mxu0 0.0
    %440 = vmatprep.subr.mxu0 0.0
    %441 = vmatpush1.xpose.msra.mxu0 0.0
    %442 = vmatprep.subr.mxu0 0.0
    %443 = vmatpush1.xpose.msra.mxu0 0.0
    %444 = vmatprep.subr.mxu0 0.0
    %445 = vmatpush1.xpose.msra.mxu0 0.0
    %446 = vmatprep.subr.mxu0 0.0
    %447 = vmatpush1.xpose.msra.mxu0 0.0
    %448 = vmatprep.subr.mxu0 0.0
    %449 = vmatpush1.xpose.msra.mxu0 0.0
    %450 = vmatprep.subr.mxu0 0.0
    %451 = vmatpush1.xpose.msra.mxu0 0.0
    %452 = vmatprep.subr.mxu0 0.0
    %453 = vmatpush1.xpose.msra.mxu0 0.0
    %454 = vmatprep.mubr.f32.mxu0 %v61
    %455 = vmatmul.mubr.f32.gmra.mrb[0].mxu0 %v53
    %v456 = vpop.f32.mrb[0].mxu0
    %v457 = vadd.f32 0.0, %v456
    %v458 = vpop.f32.mrb[0].mxu0
    %459 = vdwg.mxu0
    %460 = vmatprep.subr.mxu0 %v238
    %461 = vmatpush1.xpose.msra.mxu0 %v236
    %462 = vmatprep.subr.mxu0 0.0
    %463 = vmatpush1.xpose.msra.mxu0 0.0
    %464 = vmatprep.subr.mxu0 0.0
    %465 = vmatpush1.xpose.msra.mxu0 0.0
    %466 = vmatprep.subr.mxu0 0.0
    %467 = vmatpush1.xpose.msra.mxu0 0.0
    %468 = vmatprep.subr.mxu0 0.0
    %469 = vmatpush1.xpose.msra.mxu0 0.0
    %470 = vmatprep.subr.mxu0 0.0
    %471 = vmatpush1.xpose.msra.mxu0 0.0
    %472 = vmatprep.subr.mxu0 0.0
    %473 = vmatpush1.xpose.msra.mxu0 0.0
    %474 = vmatprep.subr.mxu0 0.0
    %475 = vmatpush1.xpose.msra.mxu0 0.0
    %476 = vmatprep.subr.mxu0 0.0
    %477 = vmatpush1.xpose.msra.mxu0 0.0
    %478 = vmatprep.subr.mxu0 0.0
    %479 = vmatpush1.xpose.msra.mxu0 0.0
    %480 = vmatprep.subr.mxu0 0.0
    %481 = vmatpush1.xpose.msra.mxu0 0.0
    %482 = vmatprep.subr.mxu0 0.0
    %483 = vmatpush1.xpose.msra.mxu0 0.0
    %484 = vmatprep.subr.mxu0 0.0
    %485 = vmatpush1.xpose.msra.mxu0 0.0
    %486 = vmatprep.subr.mxu0 0.0
    %487 = vmatpush1.xpose.msra.mxu0 0.0
    %488 = vmatprep.subr.mxu0 0.0
    %489 = vmatpush1.xpose.msra.mxu0 0.0
    %490 = vmatprep.subr.mxu0 0.0
    %491 = vmatpush1.xpose.msra.mxu0 0.0
    %492 = vmatprep.subr.mxu0 0.0
    %493 = vmatpush1.xpose.msra.mxu0 0.0
    %494 = vmatprep.subr.mxu0 0.0
    %495 = vmatpush1.xpose.msra.mxu0 0.0
    %496 = vmatprep.subr.mxu0 0.0
    %497 = vmatpush1.xpose.msra.mxu0 0.0
    %498 = vmatprep.subr.mxu0 0.0
    %499 = vmatpush1.xpose.msra.mxu0 0.0
    %500 = vmatprep.subr.mxu0 0.0
    %501 = vmatpush1.xpose.msra.mxu0 0.0
    %502 = vmatprep.subr.mxu0 0.0
    %503 = vmatpush1.xpose.msra.mxu0 0.0
    %504 = vmatprep.subr.mxu0 0.0
    %505 = vmatpush1.xpose.msra.mxu0 0.0
    %506 = vmatprep.subr.mxu0 0.0
    %507 = vmatpush1.xpose.msra.mxu0 0.0
    %508 = vmatprep.subr.mxu0 0.0
    %509 = vmatpush1.xpose.msra.mxu0 0.0
    %510 = vmatprep.subr.mxu0 0.0
    %511 = vmatpush1.xpose.msra.mxu0 0.0
    %512 = vmatprep.subr.mxu0 0.0
    %513 = vmatpush1.xpose.msra.mxu0 0.0
    %514 = vmatprep.subr.mxu0 0.0
    %515 = vmatpush1.xpose.msra.mxu0 0.0
    %516 = vmatprep.subr.mxu0 0.0
    %517 = vmatpush1.xpose.msra.mxu0 0.0
    %518 = vmatprep.subr.mxu0 0.0
    %519 = vmatpush1.xpose.msra.mxu0 0.0
    %520 = vmatprep.subr.mxu0 0.0
    %521 = vmatpush1.xpose.msra.mxu0 0.0
    %522 = vmatprep.subr.mxu0 0.0
    %523 = vmatpush1.xpose.msra.mxu0 0.0
    %524 = vmatprep.mubr.f32.mxu0 %v62
    %525 = vmatmul.mubr.f32.gmra.mrb[0].mxu0 %v60
    %v526 = vpop.f32.mrb[0].mxu0
    %v527 = vadd.f32 %v457, %v526
    %v528 = vpop.f32.mrb[0].mxu0
    %529 = vdwg.mxu0
    %530 = vmatprep.subr.mxu0 %v254
    %531 = vmatpush1.xpose.msra.mxu0 %v246
    %532 = vmatprep.subr.mxu0 0.0
    %533 = vmatpush1.xpose.msra.mxu0 0.0
    %534 = vmatprep.subr.mxu0 0.0
    %535 = vmatpush1.xpose.msra.mxu0 0.0
    %536 = vmatprep.subr.mxu0 0.0
    %537 = vmatpush1.xpose.msra.mxu0 0.0
    %538 = vmatprep.subr.mxu0 0.0
    %539 = vmatpush1.xpose.msra.mxu0 0.0
    %540 = vmatprep.subr.mxu0 0.0
    %541 = vmatpush1.xpose.msra.mxu0 0.0
    %542 = vmatprep.subr.mxu0 0.0
    %543 = vmatpush1.xpose.msra.mxu0 0.0
    %544 = vmatprep.subr.mxu0 0.0
    %545 = vmatpush1.xpose.msra.mxu0 0.0
    %546 = vmatprep.subr.mxu0 0.0
    %547 = vmatpush1.xpose.msra.mxu0 0.0
    %548 = vmatprep.subr.mxu0 0.0
    %549 = vmatpush1.xpose.msra.mxu0 0.0
    %550 = vmatprep.subr.mxu0 0.0
    %551 = vmatpush1.xpose.msra.mxu0 0.0
    %552 = vmatprep.subr.mxu0 0.0
    %553 = vmatpush1.xpose.msra.mxu0 0.0
    %554 = vmatprep.subr.mxu0 0.0
    %555 = vmatpush1.xpose.msra.mxu0 0.0
    %556 = vmatprep.subr.mxu0 0.0
    %557 = vmatpush1.xpose.msra.mxu0 0.0
    %558 = vmatprep.subr.mxu0 0.0
    %559 = vmatpush1.xpose.msra.mxu0 0.0
    %560 = vmatprep.subr.mxu0 0.0
    %561 = vmatpush1.xpose.msra.mxu0 0.0
    %562 = vmatprep.subr.mxu0 0.0
    %563 = vmatpush1.xpose.msra.mxu0 0.0
    %564 = vmatprep.subr.mxu0 0.0
    %565 = vmatpush1.xpose.msra.mxu0 0.0
    %566 = vmatprep.subr.mxu0 0.0
    %567 = vmatpush1.xpose.msra.mxu0 0.0
    %568 = vmatprep.subr.mxu0 0.0
    %569 = vmatpush1.xpose.msra.mxu0 0.0
    %570 = vmatprep.subr.mxu0 0.0
    %571 = vmatpush1.xpose.msra.mxu0 0.0
    %572 = vmatprep.subr.mxu0 0.0
    %573 = vmatpush1.xpose.msra.mxu0 0.0
    %574 = vmatprep.subr.mxu0 0.0
    %575 = vmatpush1.xpose.msra.mxu0 0.0
    %576 = vmatprep.subr.mxu0 0.0
    %577 = vmatpush1.xpose.msra.mxu0 0.0
    %578 = vmatprep.subr.mxu0 0.0
    %579 = vmatpush1.xpose.msra.mxu0 0.0
    %580 = vmatprep.subr.mxu0 0.0
    %581 = vmatpush1.xpose.msra.mxu0 0.0
    %582 = vmatprep.subr.mxu0 0.0
    %583 = vmatpush1.xpose.msra.mxu0 0.0
    %584 = vmatprep.subr.mxu0 0.0
    %585 = vmatpush1.xpose.msra.mxu0 0.0
    %586 = vmatprep.subr.mxu0 0.0
    %587 = vmatpush1.xpose.msra.mxu0 0.0
    %588 = vmatprep.subr.mxu0 0.0
    %589 = vmatpush1.xpose.msra.mxu0 0.0
    %590 = vmatprep.subr.mxu0 0.0
    %591 = vmatpush1.xpose.msra.mxu0 0.0
    %592 = vmatprep.subr.mxu0 0.0
    %593 = vmatpush1.xpose.msra.mxu0 0.0
    %594 = vmatprep.mubr.f32.mxu0 %v78
    %595 = vmatmul.mubr.f32.gmra.mrb[0].mxu0 %v70
    %v596 = vpop.f32.mrb[0].mxu0
    %v597 = vadd.f32 %v527, %v596
    %v598 = vpop.f32.mrb[0].mxu0
    %599 = vdwg.mxu0
    %600 = vmatprep.subr.mxu0 %v255
    %601 = vmatpush1.xpose.msra.mxu0 %v253
    %602 = vmatprep.subr.mxu0 0.0
    %603 = vmatpush1.xpose.msra.mxu0 0.0
    %604 = vmatprep.subr.mxu0 0.0
    %605 = vmatpush1.xpose.msra.mxu0 0.0
    %606 = vmatprep.subr.mxu0 0.0
    %607 = vmatpush1.xpose.msra.mxu0 0.0
    %608 = vmatprep.subr.mxu0 0.0
    %609 = vmatpush1.xpose.msra.mxu0 0.0
    %610 = vmatprep.subr.mxu0 0.0
    %611 = vmatpush1.xpose.msra.mxu0 0.0
    %612 = vmatprep.subr.mxu0 0.0
    %613 = vmatpush1.xpose.msra.mxu0 0.0
    %614 = vmatprep.subr.mxu0 0.0
    %615 = vmatpush1.xpose.msra.mxu0 0.0
    %616 = vmatprep.subr.mxu0 0.0
    %617 = vmatpush1.xpose.msra.mxu0 0.0
    %618 = vmatprep.subr.mxu0 0.0
    %619 = vmatpush1.xpose.msra.mxu0 0.0
    %620 = vmatprep.subr.mxu0 0.0
    %621 = vmatpush1.xpose.msra.mxu0 0.0
    %622 = vmatprep.subr.mxu0 0.0
    %623 = vmatpush1.xpose.msra.mxu0 0.0
    %624 = vmatprep.subr.mxu0 0.0
    %625 = vmatpush1.xpose.msra.mxu0 0.0
    %626 = vmatprep.subr.mxu0 0.0
    %627 = vmatpush1.xpose.msra.mxu0 0.0
    %628 = vmatprep.subr.mxu0 0.0
    %629 = vmatpush1.xpose.msra.mxu0 0.0
    %630 = vmatprep.subr.mxu0 0.0
    %631 = vmatpush1.xpose.msra.mxu0 0.0
    %632 = vmatprep.subr.mxu0 0.0
    %633 = vmatpush1.xpose.msra.mxu0 0.0
    %634 = vmatprep.subr.mxu0 0.0
    %635 = vmatpush1.xpose.msra.mxu0 0.0
    %636 = vmatprep.subr.mxu0 0.0
    %637 = vmatpush1.xpose.msra.mxu0 0.0
    %638 = vmatprep.subr.mxu0 0.0
    %639 = vmatpush1.xpose.msra.mxu0 0.0
    %640 = vmatprep.subr.mxu0 0.0
    %641 = vmatpush1.xpose.msra.mxu0 0.0
    %642 = vmatprep.subr.mxu0 0.0
    %643 = vmatpush1.xpose.msra.mxu0 0.0
    %644 = vmatprep.subr.mxu0 0.0
    %645 = vmatpush1.xpose.msra.mxu0 0.0
    %646 = vmatprep.subr.mxu0 0.0
    %647 = vmatpush1.xpose.msra.mxu0 0.0
    %648 = vmatprep.subr.mxu0 0.0
    %649 = vmatpush1.xpose.msra.mxu0 0.0
    %650 = vmatprep.subr.mxu0 0.0
    %651 = vmatpush1.xpose.msra.mxu0 0.0
    %652 = vmatprep.subr.mxu0 0.0
    %653 = vmatpush1.xpose.msra.mxu0 0.0
    %654 = vmatprep.subr.mxu0 0.0
    %655 = vmatpush1.xpose.msra.mxu0 0.0
    %656 = vmatprep.subr.mxu0 0.0
    %657 = vmatpush1.xpose.msra.mxu0 0.0
    %658 = vmatprep.subr.mxu0 0.0
    %659 = vmatpush1.xpose.msra.mxu0 0.0
    %660 = vmatprep.subr.mxu0 0.0
    %661 = vmatpush1.xpose.msra.mxu0 0.0
    %662 = vmatprep.subr.mxu0 0.0
    %663 = vmatpush1.xpose.msra.mxu0 0.0
    %664 = vmatprep.mubr.f32.mxu0 %v79
    %665 = vmatmul.mubr.f32.gmra.mrb[0].mxu0 %v77
    %v666 = vpop.f32.mrb[0].mxu0
    %v667 = vadd.f32 %v597, %v666
    %v668 = vpop.f32.mrb[0].mxu0
    %669 = vdwg.mxu0
    %670 = vmatprep.subr.mxu0 %v271
    %671 = vmatpush1.xpose.msra.mxu0 %v263
    %672 = vmatprep.subr.mxu0 0.0
    %673 = vmatpush1.xpose.msra.mxu0 0.0
    %674 = vmatprep.subr.mxu0 0.0
    %675 = vmatpush1.xpose.msra.mxu0 0.0
    %676 = vmatprep.subr.mxu0 0.0
    %677 = vmatpush1.xpose.msra.mxu0 0.0
    %678 = vmatprep.subr.mxu0 0.0
    %679 = vmatpush1.xpose.msra.mxu0 0.0
    %680 = vmatprep.subr.mxu0 0.0
    %681 = vmatpush1.xpose.msra.mxu0 0.0
    %682 = vmatprep.subr.mxu0 0.0
    %683 = vmatpush1.xpose.msra.mxu0 0.0
    %684 = vmatprep.subr.mxu0 0.0
    %685 = vmatpush1.xpose.msra.mxu0 0.0
    %686 = vmatprep.subr.mxu0 0.0
    %687 = vmatpush1.xpose.msra.mxu0 0.0
    %688 = vmatprep.subr.mxu0 0.0
    %689 = vmatpush1.xpose.msra.mxu0 0.0
    %690 = vmatprep.subr.mxu0 0.0
    %691 = vmatpush1.xpose.msra.mxu0 0.0
    %692 = vmatprep.subr.mxu0 0.0
    %693 = vmatpush1.xpose.msra.mxu0 0.0
    %694 = vmatprep.subr.mxu0 0.0
    %695 = vmatpush1.xpose.msra.mxu0 0.0
    %696 = vmatprep.subr.mxu0 0.0
    %697 = vmatpush1.xpose.msra.mxu0 0.0
    %698 = vmatprep.subr.mxu0 0.0
    %699 = vmatpush1.xpose.msra.mxu0 0.0
    %700 = vmatprep.subr.mxu0 0.0
    %701 = vmatpush1.xpose.msra.mxu0 0.0
    %702 = vmatprep.subr.mxu0 0.0
    %703 = vmatpush1.xpose.msra.mxu0 0.0
    %704 = vmatprep.subr.mxu0 0.0
    %705 = vmatpush1.xpose.msra.mxu0 0.0
    %706 = vmatprep.subr.mxu0 0.0
    %707 = vmatpush1.xpose.msra.mxu0 0.0
    %708 = vmatprep.subr.mxu0 0.0
    %709 = vmatpush1.xpose.msra.mxu0 0.0
    %710 = vmatprep.subr.mxu0 0.0
    %711 = vmatpush1.xpose.msra.mxu0 0.0
    %712 = vmatprep.subr.mxu0 0.0
    %713 = vmatpush1.xpose.msra.mxu0 0.0
    %714 = vmatprep.subr.mxu0 0.0
    %715 = vmatpush1.xpose.msra.mxu0 0.0
    %716 = vmatprep.subr.mxu0 0.0
    %717 = vmatpush1.xpose.msra.mxu0 0.0
    %718 = vmatprep.subr.mxu0 0.0
    %719 = vmatpush1.xpose.msra.mxu0 0.0
    %720 = vmatprep.subr.mxu0 0.0
    %721 = vmatpush1.xpose.msra.mxu0 0.0
    %722 = vmatprep.subr.mxu0 0.0
    %723 = vmatpush1.xpose.msra.mxu0 0.0
    %724 = vmatprep.subr.mxu0 0.0
    %725 = vmatpush1.xpose.msra.mxu0 0.0
    %726 = vmatprep.subr.mxu0 0.0
    %727 = vmatpush1.xpose.msra.mxu0 0.0
    %728 = vmatprep.subr.mxu0 0.0
    %729 = vmatpush1.xpose.msra.mxu0 0.0
    %730 = vmatprep.subr.mxu0 0.0
    %731 = vmatpush1.xpose.msra.mxu0 0.0
    %732 = vmatprep.subr.mxu0 0.0
    %733 = vmatpush1.xpose.msra.mxu0 0.0
    %734 = vmatprep.mubr.f32.mxu0 %v95
    %735 = vmatmul.mubr.f32.gmra.mrb[0].mxu0 %v87
    %v736 = vpop.f32.mrb[0].mxu0
    %v737 = vadd.f32 %v667, %v736
    %v738 = vpop.f32.mrb[0].mxu0
    %739 = vdwg.mxu0
    %740 = vmatprep.subr.mxu0 %v272
    %741 = vmatpush1.xpose.msra.mxu0 %v270
    %742 = vmatprep.subr.mxu0 0.0
    %743 = vmatpush1.xpose.msra.mxu0 0.0
    %744 = vmatprep.subr.mxu0 0.0
    %745 = vmatpush1.xpose.msra.mxu0 0.0
    %746 = vmatprep.subr.mxu0 0.0
    %747 = vmatpush1.xpose.msra.mxu0 0.0
    %748 = vmatprep.subr.mxu0 0.0
    %749 = vmatpush1.xpose.msra.mxu0 0.0
    %750 = vmatprep.subr.mxu0 0.0
    %751 = vmatpush1.xpose.msra.mxu0 0.0
    %752 = vmatprep.subr.mxu0 0.0
    %753 = vmatpush1.xpose.msra.mxu0 0.0
    %754 = vmatprep.subr.mxu0 0.0
    %755 = vmatpush1.xpose.msra.mxu0 0.0
    %756 = vmatprep.subr.mxu0 0.0
    %757 = vmatpush1.xpose.msra.mxu0 0.0
    %758 = vmatprep.subr.mxu0 0.0
    %759 = vmatpush1.xpose.msra.mxu0 0.0
    %760 = vmatprep.subr.mxu0 0.0
    %761 = vmatpush1.xpose.msra.mxu0 0.0
    %762 = vmatprep.subr.mxu0 0.0
    %763 = vmatpush1.xpose.msra.mxu0 0.0
    %764 = vmatprep.subr.mxu0 0.0
    %765 = vmatpush1.xpose.msra.mxu0 0.0
    %766 = vmatprep.subr.mxu0 0.0
    %767 = vmatpush1.xpose.msra.mxu0 0.0
    %768 = vmatprep.subr.mxu0 0.0
    %769 = vmatpush1.xpose.msra.mxu0 0.0
    %770 = vmatprep.subr.mxu0 0.0
    %771 = vmatpush1.xpose.msra.mxu0 0.0
    %772 = vmatprep.subr.mxu0 0.0
    %773 = vmatpush1.xpose.msra.mxu0 0.0
    %774 = vmatprep.subr.mxu0 0.0
    %775 = vmatpush1.xpose.msra.mxu0 0.0
    %776 = vmatprep.subr.mxu0 0.0
    %777 = vmatpush1.xpose.msra.mxu0 0.0
    %778 = vmatprep.subr.mxu0 0.0
    %779 = vmatpush1.xpose.msra.mxu0 0.0
    %780 = vmatprep.subr.mxu0 0.0
    %781 = vmatpush1.xpose.msra.mxu0 0.0
    %782 = vmatprep.subr.mxu0 0.0
    %783 = vmatpush1.xpose.msra.mxu0 0.0
    %784 = vmatprep.subr.mxu0 0.0
    %785 = vmatpush1.xpose.msra.mxu0 0.0
    %786 = vmatprep.subr.mxu0 0.0
    %787 = vmatpush1.xpose.msra.mxu0 0.0
    %788 = vmatprep.subr.mxu0 0.0
    %789 = vmatpush1.xpose.msra.mxu0 0.0
    %790 = vmatprep.subr.mxu0 0.0
    %791 = vmatpush1.xpose.msra.mxu0 0.0
    %792 = vmatprep.subr.mxu0 0.0
    %793 = vmatpush1.xpose.msra.mxu0 0.0
    %794 = vmatprep.subr.mxu0 0.0
    %795 = vmatpush1.xpose.msra.mxu0 0.0
    %796 = vmatprep.subr.mxu0 0.0
    %797 = vmatpush1.xpose.msra.mxu0 0.0
    %798 = vmatprep.subr.mxu0 0.0
    %799 = vmatpush1.xpose.msra.mxu0 0.0
    %800 = vmatprep.subr.mxu0 0.0
    %801 = vmatpush1.xpose.msra.mxu0 0.0
    %802 = vmatprep.subr.mxu0 0.0
    %803 = vmatpush1.xpose.msra.mxu0 0.0
    %804 = vmatprep.mubr.f32.mxu0 %v96
    %805 = vmatmul.mubr.f32.gmra.mrb[0].mxu0 %v94
    %v806 = vpop.f32.mrb[0].mxu0
    %v807 = vadd.f32 %v737, %v806
    %v808 = vpop.f32.mrb[0].mxu0
    %809 = vdwg.mxu0
    %810 = vmatprep.subr.mxu0 %v288
    %811 = vmatpush1.xpose.msra.mxu0 %v280
    %812 = vmatprep.subr.mxu0 0.0
    %813 = vmatpush1.xpose.msra.mxu0 0.0
    %814 = vmatprep.subr.mxu0 0.0
    %815 = vmatpush1.xpose.msra.mxu0 0.0
    %816 = vmatprep.subr.mxu0 0.0
    %817 = vmatpush1.xpose.msra.mxu0 0.0
    %818 = vmatprep.subr.mxu0 0.0
    %819 = vmatpush1.xpose.msra.mxu0 0.0
    %820 = vmatprep.subr.mxu0 0.0
    %821 = vmatpush1.xpose.msra.mxu0 0.0
    %822 = vmatprep.subr.mxu0 0.0
    %823 = vmatpush1.xpose.msra.mxu0 0.0
    %824 = vmatprep.subr.mxu0 0.0
    %825 = vmatpush1.xpose.msra.mxu0 0.0
    %826 = vmatprep.subr.mxu0 0.0
    %827 = vmatpush1.xpose.msra.mxu0 0.0
    %828 = vmatprep.subr.mxu0 0.0
    %829 = vmatpush1.xpose.msra.mxu0 0.0
    %830 = vmatprep.subr.mxu0 0.0
    %831 = vmatpush1.xpose.msra.mxu0 0.0
    %832 = vmatprep.subr.mxu0 0.0
    %833 = vmatpush1.xpose.msra.mxu0 0.0
    %834 = vmatprep.subr.mxu0 0.0
    %835 = vmatpush1.xpose.msra.mxu0 0.0
    %836 = vmatprep.subr.mxu0 0.0
    %837 = vmatpush1.xpose.msra.mxu0 0.0
    %838 = vmatprep.subr.mxu0 0.0
    %839 = vmatpush1.xpose.msra.mxu0 0.0
    %840 = vmatprep.subr.mxu0 0.0
    %841 = vmatpush1.xpose.msra.mxu0 0.0
    %842 = vmatprep.subr.mxu0 0.0
    %843 = vmatpush1.xpose.msra.mxu0 0.0
    %844 = vmatprep.subr.mxu0 0.0
    %845 = vmatpush1.xpose.msra.mxu0 0.0
    %846 = vmatprep.subr.mxu0 0.0
    %847 = vmatpush1.xpose.msra.mxu0 0.0
    %848 = vmatprep.subr.mxu0 0.0
    %849 = vmatpush1.xpose.msra.mxu0 0.0
    %850 = vmatprep.subr.mxu0 0.0
    %851 = vmatpush1.xpose.msra.mxu0 0.0
    %852 = vmatprep.subr.mxu0 0.0
    %853 = vmatpush1.xpose.msra.mxu0 0.0
    %854 = vmatprep.subr.mxu0 0.0
    %855 = vmatpush1.xpose.msra.mxu0 0.0
    %856 = vmatprep.subr.mxu0 0.0
    %857 = vmatpush1.xpose.msra.mxu0 0.0
    %858 = vmatprep.subr.mxu0 0.0
    %859 = vmatpush1.xpose.msra.mxu0 0.0
    %860 = vmatprep.subr.mxu0 0.0
    %861 = vmatpush1.xpose.msra.mxu0 0.0
    %862 = vmatprep.subr.mxu0 0.0
    %863 = vmatpush1.xpose.msra.mxu0 0.0
    %864 = vmatprep.subr.mxu0 0.0
    %865 = vmatpush1.xpose.msra.mxu0 0.0
    %866 = vmatprep.subr.mxu0 0.0
    %867 = vmatpush1.xpose.msra.mxu0 0.0
    %868 = vmatprep.subr.mxu0 0.0
    %869 = vmatpush1.xpose.msra.mxu0 0.0
    %870 = vmatprep.subr.mxu0 0.0
    %871 = vmatpush1.xpose.msra.mxu0 0.0
    %872 = vmatprep.subr.mxu0 0.0
    %873 = vmatpush1.xpose.msra.mxu0 0.0
    %874 = vmatprep.mubr.f32.mxu0 %v112
    %875 = vmatmul.mubr.f32.gmra.mrb[0].mxu0 %v104
    %v876 = vpop.f32.mrb[0].mxu0
    %v877 = vadd.f32 %v807, %v876
    %v878 = vpop.f32.mrb[0].mxu0
    %879 = vdwg.mxu0
    %880 = vmatprep.subr.mxu0 %v289
    %881 = vmatpush1.xpose.msra.mxu0 %v287
    %882 = vmatprep.subr.mxu0 0.0
    %883 = vmatpush1.xpose.msra.mxu0 0.0
    %884 = vmatprep.subr.mxu0 0.0
    %885 = vmatpush1.xpose.msra.mxu0 0.0
    %886 = vmatprep.subr.mxu0 0.0
    %887 = vmatpush1.xpose.msra.mxu0 0.0
    %888 = vmatprep.subr.mxu0 0.0
    %889 = vmatpush1.xpose.msra.mxu0 0.0
    %890 = vmatprep.subr.mxu0 0.0
    %891 = vmatpush1.xpose.msra.mxu0 0.0
    %892 = vmatprep.subr.mxu0 0.0
    %893 = vmatpush1.xpose.msra.mxu0 0.0
    %894 = vmatprep.subr.mxu0 0.0
    %895 = vmatpush1.xpose.msra.mxu0 0.0
    %896 = vmatprep.subr.mxu0 0.0
    %897 = vmatpush1.xpose.msra.mxu0 0.0
    %898 = vmatprep.subr.mxu0 0.0
    %899 = vmatpush1.xpose.msra.mxu0 0.0
    %900 = vmatprep.subr.mxu0 0.0
    %901 = vmatpush1.xpose.msra.mxu0 0.0
    %902 = vmatprep.subr.mxu0 0.0
    %903 = vmatpush1.xpose.msra.mxu0 0.0
    %904 = vmatprep.subr.mxu0 0.0
    %905 = vmatpush1.xpose.msra.mxu0 0.0
    %906 = vmatprep.subr.mxu0 0.0
    %907 = vmatpush1.xpose.msra.mxu0 0.0
    %908 = vmatprep.subr.mxu0 0.0
    %909 = vmatpush1.xpose.msra.mxu0 0.0
    %910 = vmatprep.subr.mxu0 0.0
    %911 = vmatpush1.xpose.msra.mxu0 0.0
    %912 = vmatprep.subr.mxu0 0.0
    %913 = vmatpush1.xpose.msra.mxu0 0.0
    %914 = vmatprep.subr.mxu0 0.0
    %915 = vmatpush1.xpose.msra.mxu0 0.0
    %916 = vmatprep.subr.mxu0 0.0
    %917 = vmatpush1.xpose.msra.mxu0 0.0
    %918 = vmatprep.subr.mxu0 0.0
    %919 = vmatpush1.xpose.msra.mxu0 0.0
    %920 = vmatprep.subr.mxu0 0.0
    %921 = vmatpush1.xpose.msra.mxu0 0.0
    %922 = vmatprep.subr.mxu0 0.0
    %923 = vmatpush1.xpose.msra.mxu0 0.0
    %924 = vmatprep.subr.mxu0 0.0
    %925 = vmatpush1.xpose.msra.mxu0 0.0
    %926 = vmatprep.subr.mxu0 0.0
    %927 = vmatpush1.xpose.msra.mxu0 0.0
    %928 = vmatprep.subr.mxu0 0.0
    %929 = vmatpush1.xpose.msra.mxu0 0.0
    %930 = vmatprep.subr.mxu0 0.0
    %931 = vmatpush1.xpose.msra.mxu0 0.0
    %932 = vmatprep.subr.mxu0 0.0
    %933 = vmatpush1.xpose.msra.mxu0 0.0
    %934 = vmatprep.subr.mxu0 0.0
    %935 = vmatpush1.xpose.msra.mxu0 0.0
    %936 = vmatprep.subr.mxu0 0.0
    %937 = vmatpush1.xpose.msra.mxu0 0.0
    %938 = vmatprep.subr.mxu0 0.0
    %939 = vmatpush1.xpose.msra.mxu0 0.0
    %940 = vmatprep.subr.mxu0 0.0
    %941 = vmatpush1.xpose.msra.mxu0 0.0
    %942 = vmatprep.subr.mxu0 0.0
    %943 = vmatpush1.xpose.msra.mxu0 0.0
    %944 = vmatprep.mubr.f32.mxu0 %v113
    %945 = vmatmul.mubr.f32.gmra.mrb[0].mxu0 %v111
    %v946 = vpop.f32.mrb[0].mxu0
    %v947 = vadd.f32 %v877, %v946
    %v948 = vpop.f32.mrb[0].mxu0
    %949 = vdwg.mxu0
    %950 = vmatprep.subr.mxu0 %v305
    %951 = vmatpush1.xpose.msra.mxu0 %v297
    %952 = vmatprep.subr.mxu0 0.0
    %953 = vmatpush1.xpose.msra.mxu0 0.0
    %954 = vmatprep.subr.mxu0 0.0
    %955 = vmatpush1.xpose.msra.mxu0 0.0
    %956 = vmatprep.subr.mxu0 0.0
    %957 = vmatpush1.xpose.msra.mxu0 0.0
    %958 = vmatprep.subr.mxu0 0.0
    %959 = vmatpush1.xpose.msra.mxu0 0.0
    %960 = vmatprep.subr.mxu0 0.0
    %961 = vmatpush1.xpose.msra.mxu0 0.0
    %962 = vmatprep.subr.mxu0 0.0
    %963 = vmatpush1.xpose.msra.mxu0 0.0
    %964 = vmatprep.subr.mxu0 0.0
    %965 = vmatpush1.xpose.msra.mxu0 0.0
    %966 = vmatprep.subr.mxu0 0.0
    %967 = vmatpush1.xpose.msra.mxu0 0.0
    %968 = vmatprep.subr.mxu0 0.0
    %969 = vmatpush1.xpose.msra.mxu0 0.0
    %970 = vmatprep.subr.mxu0 0.0
    %971 = vmatpush1.xpose.msra.mxu0 0.0
    %972 = vmatprep.subr.mxu0 0.0
    %973 = vmatpush1.xpose.msra.mxu0 0.0
    %974 = vmatprep.subr.mxu0 0.0
    %975 = vmatpush1.xpose.msra.mxu0 0.0
    %976 = vmatprep.subr.mxu0 0.0
    %977 = vmatpush1.xpose.msra.mxu0 0.0
    %978 = vmatprep.subr.mxu0 0.0
    %979 = vmatpush1.xpose.msra.mxu0 0.0
    %980 = vmatprep.subr.mxu0 0.0
    %981 = vmatpush1.xpose.msra.mxu0 0.0
    %982 = vmatprep.subr.mxu0 0.0
    %983 = vmatpush1.xpose.msra.mxu0 0.0
    %984 = vmatprep.subr.mxu0 0.0
    %985 = vmatpush1.xpose.msra.mxu0 0.0
    %986 = vmatprep.subr.mxu0 0.0
    %987 = vmatpush1.xpose.msra.mxu0 0.0
    %988 = vmatprep.subr.mxu0 0.0
    %989 = vmatpush1.xpose.msra.mxu0 0.0
    %990 = vmatprep.subr.mxu0 0.0
    %991 = vmatpush1.xpose.msra.mxu0 0.0
    %992 = vmatprep.subr.mxu0 0.0
    %993 = vmatpush1.xpose.msra.mxu0 0.0
    %994 = vmatprep.subr.mxu0 0.0
    %995 = vmatpush1.xpose.msra.mxu0 0.0
    %996 = vmatprep.subr.mxu0 0.0
    %997 = vmatpush1.xpose.msra.mxu0 0.0
    %998 = vmatprep.subr.mxu0 0.0
    %999 = vmatpush1.xpose.msra.mxu0 0.0
    %1000 = vmatprep.subr.mxu0 0.0
    %1001 = vmatpush1.xpose.msra.mxu0 0.0
    %1002 = vmatprep.subr.mxu0 0.0
    %1003 = vmatpush1.xpose.msra.mxu0 0.0
    %1004 = vmatprep.subr.mxu0 0.0
    %1005 = vmatpush1.xpose.msra.mxu0 0.0
    %1006 = vmatprep.subr.mxu0 0.0
    %1007 = vmatpush1.xpose.msra.mxu0 0.0
    %1008 = vmatprep.subr.mxu0 0.0
    %1009 = vmatpush1.xpose.msra.mxu0 0.0
    %1010 = vmatprep.subr.mxu0 0.0
    %1011 = vmatpush1.xpose.msra.mxu0 0.0
    %1012 = vmatprep.subr.mxu0 0.0
    %1013 = vmatpush1.xpose.msra.mxu0 0.0
    %1014 = vmatprep.mubr.f32.mxu0 %v129
    %1015 = vmatmul.mubr.f32.gmra.mrb[0].mxu0 %v121
    %v1016 = vpop.f32.mrb[0].mxu0
    %v1017 = vadd.f32 %v947, %v1016
    %v1018 = vpop.f32.mrb[0].mxu0
    %1019 = vdwg.mxu0
    %1020 = vmatprep.subr.mxu0 %v306
    %1021 = vmatpush1.xpose.msra.mxu0 %v304
    %1022 = vmatprep.subr.mxu0 0.0
    %1023 = vmatpush1.xpose.msra.mxu0 0.0
    %1024 = vmatprep.subr.mxu0 0.0
    %1025 = vmatpush1.xpose.msra.mxu0 0.0
    %1026 = vmatprep.subr.mxu0 0.0
    %1027 = vmatpush1.xpose.msra.mxu0 0.0
    %1028 = vmatprep.subr.mxu0 0.0
    %1029 = vmatpush1.xpose.msra.mxu0 0.0
    %1030 = vmatprep.subr.mxu0 0.0
    %1031 = vmatpush1.xpose.msra.mxu0 0.0
    %1032 = vmatprep.subr.mxu0 0.0
    %1033 = vmatpush1.xpose.msra.mxu0 0.0
    %1034 = vmatprep.subr.mxu0 0.0
    %1035 = vmatpush1.xpose.msra.mxu0 0.0
    %1036 = vmatprep.subr.mxu0 0.0
    %1037 = vmatpush1.xpose.msra.mxu0 0.0
    %1038 = vmatprep.subr.mxu0 0.0
    %1039 = vmatpush1.xpose.msra.mxu0 0.0
    %1040 = vmatprep.subr.mxu0 0.0
    %1041 = vmatpush1.xpose.msra.mxu0 0.0
    %1042 = vmatprep.subr.mxu0 0.0
    %1043 = vmatpush1.xpose.msra.mxu0 0.0
    %1044 = vmatprep.subr.mxu0 0.0
    %1045 = vmatpush1.xpose.msra.mxu0 0.0
    %1046 = vmatprep.subr.mxu0 0.0
    %1047 = vmatpush1.xpose.msra.mxu0 0.0
    %1048 = vmatprep.subr.mxu0 0.0
    %1049 = vmatpush1.xpose.msra.mxu0 0.0
    %1050 = vmatprep.subr.mxu0 0.0
    %1051 = vmatpush1.xpose.msra.mxu0 0.0
    %1052 = vmatprep.subr.mxu0 0.0
    %1053 = vmatpush1.xpose.msra.mxu0 0.0
    %1054 = vmatprep.subr.mxu0 0.0
    %1055 = vmatpush1.xpose.msra.mxu0 0.0
    %1056 = vmatprep.subr.mxu0 0.0
    %1057 = vmatpush1.xpose.msra.mxu0 0.0
    %1058 = vmatprep.subr.mxu0 0.0
    %1059 = vmatpush1.xpose.msra.mxu0 0.0
    %1060 = vmatprep.subr.mxu0 0.0
    %1061 = vmatpush1.xpose.msra.mxu0 0.0
    %1062 = vmatprep.subr.mxu0 0.0
    %1063 = vmatpush1.xpose.msra.mxu0 0.0
    %1064 = vmatprep.subr.mxu0 0.0
    %1065 = vmatpush1.xpose.msra.mxu0 0.0
    %1066 = vmatprep.subr.mxu0 0.0
    %1067 = vmatpush1.xpose.msra.mxu0 0.0
    %1068 = vmatprep.subr.mxu0 0.0
    %1069 = vmatpush1.xpose.msra.mxu0 0.0
    %1070 = vmatprep.subr.mxu0 0.0
    %1071 = vmatpush1.xpose.msra.mxu0 0.0
    %1072 = vmatprep.subr.mxu0 0.0
    %1073 = vmatpush1.xpose.msra.mxu0 0.0
    %1074 = vmatprep.subr.mxu0 0.0
    %1075 = vmatpush1.xpose.msra.mxu0 0.0
    %1076 = vmatprep.subr.mxu0 0.0
    %1077 = vmatpush1.xpose.msra.mxu0 0.0
    %1078 = vmatprep.subr.mxu0 0.0
    %1079 = vmatpush1.xpose.msra.mxu0 0.0
    %1080 = vmatprep.subr.mxu0 0.0
    %1081 = vmatpush1.xpose.msra.mxu0 0.0
    %1082 = vmatprep.subr.mxu0 0.0
    %1083 = vmatpush1.xpose.msra.mxu0 0.0
    %1084 = vmatprep.mubr.f32.mxu0 %v130
    %1085 = vmatmul.mubr.f32.gmra.mrb[0].mxu0 %v128
    %v1086 = vpop.f32.mrb[0].mxu0
    %v1087 = vadd.f32 %v1017, %v1086
    %v1088 = vpop.f32.mrb[0].mxu0
    %1089 = vdwg.mxu0
    %1090 = vmatprep.subr.mxu0 %v322
    %1091 = vmatpush1.xpose.msra.mxu0 %v314
    %1092 = vmatprep.subr.mxu0 0.0
    %1093 = vmatpush1.xpose.msra.mxu0 0.0
    %1094 = vmatprep.subr.mxu0 0.0
    %1095 = vmatpush1.xpose.msra.mxu0 0.0
    %1096 = vmatprep.subr.mxu0 0.0
    %1097 = vmatpush1.xpose.msra.mxu0 0.0
    %1098 = vmatprep.subr.mxu0 0.0
    %1099 = vmatpush1.xpose.msra.mxu0 0.0
    %1100 = vmatprep.subr.mxu0 0.0
    %1101 = vmatpush1.xpose.msra.mxu0 0.0
    %1102 = vmatprep.subr.mxu0 0.0
    %1103 = vmatpush1.xpose.msra.mxu0 0.0
    %1104 = vmatprep.subr.mxu0 0.0
    %1105 = vmatpush1.xpose.msra.mxu0 0.0
    %1106 = vmatprep.subr.mxu0 0.0
    %1107 = vmatpush1.xpose.msra.mxu0 0.0
    %1108 = vmatprep.subr.mxu0 0.0
    %1109 = vmatpush1.xpose.msra.mxu0 0.0
    %1110 = vmatprep.subr.mxu0 0.0
    %1111 = vmatpush1.xpose.msra.mxu0 0.0
    %1112 = vmatprep.subr.mxu0 0.0
    %1113 = vmatpush1.xpose.msra.mxu0 0.0
    %1114 = vmatprep.subr.mxu0 0.0
    %1115 = vmatpush1.xpose.msra.mxu0 0.0
    %1116 = vmatprep.subr.mxu0 0.0
    %1117 = vmatpush1.xpose.msra.mxu0 0.0
    %1118 = vmatprep.subr.mxu0 0.0
    %1119 = vmatpush1.xpose.msra.mxu0 0.0
    %1120 = vmatprep.subr.mxu0 0.0
    %1121 = vmatpush1.xpose.msra.mxu0 0.0
    %1122 = vmatprep.subr.mxu0 0.0
    %1123 = vmatpush1.xpose.msra.mxu0 0.0
    %1124 = vmatprep.subr.mxu0 0.0
    %1125 = vmatpush1.xpose.msra.mxu0 0.0
    %1126 = vmatprep.subr.mxu0 0.0
    %1127 = vmatpush1.xpose.msra.mxu0 0.0
    %1128 = vmatprep.subr.mxu0 0.0
    %1129 = vmatpush1.xpose.msra.mxu0 0.0
    %1130 = vmatprep.subr.mxu0 0.0
    %1131 = vmatpush1.xpose.msra.mxu0 0.0
    %1132 = vmatprep.subr.mxu0 0.0
    %1133 = vmatpush1.xpose.msra.mxu0 0.0
    %1134 = vmatprep.subr.mxu0 0.0
    %1135 = vmatpush1.xpose.msra.mxu0 0.0
    %1136 = vmatprep.subr.mxu0 0.0
    %1137 = vmatpush1.xpose.msra.mxu0 0.0
    %1138 = vmatprep.subr.mxu0 0.0
    %1139 = vmatpush1.xpose.msra.mxu0 0.0
    %1140 = vmatprep.subr.mxu0 0.0
    %1141 = vmatpush1.xpose.msra.mxu0 0.0
    %1142 = vmatprep.subr.mxu0 0.0
    %1143 = vmatpush1.xpose.msra.mxu0 0.0
    %1144 = vmatprep.subr.mxu0 0.0
    %1145 = vmatpush1.xpose.msra.mxu0 0.0
    %1146 = vmatprep.subr.mxu0 0.0
    %1147 = vmatpush1.xpose.msra.mxu0 0.0
    %1148 = vmatprep.subr.mxu0 0.0
    %1149 = vmatpush1.xpose.msra.mxu0 0.0
    %1150 = vmatprep.subr.mxu0 0.0
    %1151 = vmatpush1.xpose.msra.mxu0 0.0
    %1152 = vmatprep.subr.mxu0 0.0
    %1153 = vmatpush1.xpose.msra.mxu0 0.0
    %1154 = vmatprep.mubr.f32.mxu0 %v146
    %1155 = vmatmul.mubr.f32.gmra.mrb[0].mxu0 %v138
    %v1156 = vpop.f32.mrb[0].mxu0
    %v1157 = vadd.f32 %v1087, %v1156
    %v1158 = vpop.f32.mrb[0].mxu0
    %1159 = vdwg.mxu0
    %1160 = vmatprep.subr.mxu0 %v323
    %1161 = vmatpush1.xpose.msra.mxu0 %v321
    %1162 = vmatprep.subr.mxu0 0.0
    %1163 = vmatpush1.xpose.msra.mxu0 0.0
    %1164 = vmatprep.subr.mxu0 0.0
    %1165 = vmatpush1.xpose.msra.mxu0 0.0
    %1166 = vmatprep.subr.mxu0 0.0
    %1167 = vmatpush1.xpose.msra.mxu0 0.0
    %1168 = vmatprep.subr.mxu0 0.0
    %1169 = vmatpush1.xpose.msra.mxu0 0.0
    %1170 = vmatprep.subr.mxu0 0.0
    %1171 = vmatpush1.xpose.msra.mxu0 0.0
    %1172 = vmatprep.subr.mxu0 0.0
    %1173 = vmatpush1.xpose.msra.mxu0 0.0
    %1174 = vmatprep.subr.mxu0 0.0
    %1175 = vmatpush1.xpose.msra.mxu0 0.0
    %1176 = vmatprep.subr.mxu0 0.0
    %1177 = vmatpush1.xpose.msra.mxu0 0.0
    %1178 = vmatprep.subr.mxu0 0.0
    %1179 = vmatpush1.xpose.msra.mxu0 0.0
    %1180 = vmatprep.subr.mxu0 0.0
    %1181 = vmatpush1.xpose.msra.mxu0 0.0
    %1182 = vmatprep.subr.mxu0 0.0
    %1183 = vmatpush1.xpose.msra.mxu0 0.0
    %1184 = vmatprep.subr.mxu0 0.0
    %1185 = vmatpush1.xpose.msra.mxu0 0.0
    %1186 = vmatprep.subr.mxu0 0.0
    %1187 = vmatpush1.xpose.msra.mxu0 0.0
    %1188 = vmatprep.subr.mxu0 0.0
    %1189 = vmatpush1.xpose.msra.mxu0 0.0
    %1190 = vmatprep.subr.mxu0 0.0
    %1191 = vmatpush1.xpose.msra.mxu0 0.0
    %1192 = vmatprep.subr.mxu0 0.0
    %1193 = vmatpush1.xpose.msra.mxu0 0.0
    %1194 = vmatprep.subr.mxu0 0.0
    %1195 = vmatpush1.xpose.msra.mxu0 0.0
    %1196 = vmatprep.subr.mxu0 0.0
    %1197 = vmatpush1.xpose.msra.mxu0 0.0
    %1198 = vmatprep.subr.mxu0 0.0
    %1199 = vmatpush1.xpose.msra.mxu0 0.0
    %1200 = vmatprep.subr.mxu0 0.0
    %1201 = vmatpush1.xpose.msra.mxu0 0.0
    %1202 = vmatprep.subr.mxu0 0.0
    %1203 = vmatpush1.xpose.msra.mxu0 0.0
    %1204 = vmatprep.subr.mxu0 0.0
    %1205 = vmatpush1.xpose.msra.mxu0 0.0
    %1206 = vmatprep.subr.mxu0 0.0
    %1207 = vmatpush1.xpose.msra.mxu0 0.0
    %1208 = vmatprep.subr.mxu0 0.0
    %1209 = vmatpush1.xpose.msra.mxu0 0.0
    %1210 = vmatprep.subr.mxu0 0.0
    %1211 = vmatpush1.xpose.msra.mxu0 0.0
    %1212 = vmatprep.subr.mxu0 0.0
    %1213 = vmatpush1.xpose.msra.mxu0 0.0
    %1214 = vmatprep.subr.mxu0 0.0
    %1215 = vmatpush1.xpose.msra.mxu0 0.0
    %1216 = vmatprep.subr.mxu0 0.0
    %1217 = vmatpush1.xpose.msra.mxu0 0.0
    %1218 = vmatprep.subr.mxu0 0.0
    %1219 = vmatpush1.xpose.msra.mxu0 0.0
    %1220 = vmatprep.subr.mxu0 0.0
    %1221 = vmatpush1.xpose.msra.mxu0 0.0
    %1222 = vmatprep.subr.mxu0 0.0
    %1223 = vmatpush1.xpose.msra.mxu0 0.0
    %1224 = vmatprep.mubr.f32.mxu0 %v147
    %1225 = vmatmul.mubr.f32.gmra.mrb[0].mxu0 %v145
    %v1226 = vpop.f32.mrb[0].mxu0
    %v1227 = vadd.f32 %v1157, %v1226
    %v1228 = vpop.f32.mrb[0].mxu0
    %1229 = vdwg.mxu0
    %1230 = vmatprep.subr.mxu0 %v339
    %1231 = vmatpush1.xpose.msra.mxu0 %v331
    %1232 = vmatprep.subr.mxu0 0.0
    %1233 = vmatpush1.xpose.msra.mxu0 0.0
    %1234 = vmatprep.subr.mxu0 0.0
    %1235 = vmatpush1.xpose.msra.mxu0 0.0
    %1236 = vmatprep.subr.mxu0 0.0
    %1237 = vmatpush1.xpose.msra.mxu0 0.0
    %1238 = vmatprep.subr.mxu0 0.0
    %1239 = vmatpush1.xpose.msra.mxu0 0.0
    %1240 = vmatprep.subr.mxu0 0.0
    %1241 = vmatpush1.xpose.msra.mxu0 0.0
    %1242 = vmatprep.subr.mxu0 0.0
    %1243 = vmatpush1.xpose.msra.mxu0 0.0
    %1244 = vmatprep.subr.mxu0 0.0
    %1245 = vmatpush1.xpose.msra.mxu0 0.0
    %1246 = vmatprep.subr.mxu0 0.0
    %1247 = vmatpush1.xpose.msra.mxu0 0.0
    %1248 = vmatprep.subr.mxu0 0.0
    %1249 = vmatpush1.xpose.msra.mxu0 0.0
    %1250 = vmatprep.subr.mxu0 0.0
    %1251 = vmatpush1.xpose.msra.mxu0 0.0
    %1252 = vmatprep.subr.mxu0 0.0
    %1253 = vmatpush1.xpose.msra.mxu0 0.0
    %1254 = vmatprep.subr.mxu0 0.0
    %1255 = vmatpush1.xpose.msra.mxu0 0.0
    %1256 = vmatprep.subr.mxu0 0.0
    %1257 = vmatpush1.xpose.msra.mxu0 0.0
    %1258 = vmatprep.subr.mxu0 0.0
    %1259 = vmatpush1.xpose.msra.mxu0 0.0
    %1260 = vmatprep.subr.mxu0 0.0
    %1261 = vmatpush1.xpose.msra.mxu0 0.0
    %1262 = vmatprep.subr.mxu0 0.0
    %1263 = vmatpush1.xpose.msra.mxu0 0.0
    %1264 = vmatprep.subr.mxu0 0.0
    %1265 = vmatpush1.xpose.msra.mxu0 0.0
    %1266 = vmatprep.subr.mxu0 0.0
    %1267 = vmatpush1.xpose.msra.mxu0 0.0
    %1268 = vmatprep.subr.mxu0 0.0
    %1269 = vmatpush1.xpose.msra.mxu0 0.0
    %1270 = vmatprep.subr.mxu0 0.0
    %1271 = vmatpush1.xpose.msra.mxu0 0.0
    %1272 = vmatprep.subr.mxu0 0.0
    %1273 = vmatpush1.xpose.msra.mxu0 0.0
    %1274 = vmatprep.subr.mxu0 0.0
    %1275 = vmatpush1.xpose.msra.mxu0 0.0
    %1276 = vmatprep.subr.mxu0 0.0
    %1277 = vmatpush1.xpose.msra.mxu0 0.0
    %1278 = vmatprep.subr.mxu0 0.0
    %1279 = vmatpush1.xpose.msra.mxu0 0.0
    %1280 = vmatprep.subr.mxu0 0.0
    %1281 = vmatpush1.xpose.msra.mxu0 0.0
    %1282 = vmatprep.subr.mxu0 0.0
    %1283 = vmatpush1.xpose.msra.mxu0 0.0
    %1284 = vmatprep.subr.mxu0 0.0
    %1285 = vmatpush1.xpose.msra.mxu0 0.0
    %1286 = vmatprep.subr.mxu0 0.0
    %1287 = vmatpush1.xpose.msra.mxu0 0.0
    %1288 = vmatprep.subr.mxu0 0.0
    %1289 = vmatpush1.xpose.msra.mxu0 0.0
    %1290 = vmatprep.subr.mxu0 0.0
    %1291 = vmatpush1.xpose.msra.mxu0 0.0
    %1292 = vmatprep.subr.mxu0 0.0
    %1293 = vmatpush1.xpose.msra.mxu0 0.0
    %1294 = vmatprep.mubr.f32.mxu0 %v163
    %1295 = vmatmul.mubr.f32.gmra.mrb[0].mxu0 %v155
    %v1296 = vpop.f32.mrb[0].mxu0
    %v1297 = vadd.f32 %v1227, %v1296
    %v1298 = vpop.f32.mrb[0].mxu0
    %1299 = vdwg.mxu0
    %1300 = vmatprep.subr.mxu0 %v340
    %1301 = vmatpush1.xpose.msra.mxu0 %v338
    %1302 = vmatprep.subr.mxu0 0.0
    %1303 = vmatpush1.xpose.msra.mxu0 0.0
    %1304 = vmatprep.subr.mxu0 0.0
    %1305 = vmatpush1.xpose.msra.mxu0 0.0
    %1306 = vmatprep.subr.mxu0 0.0
    %1307 = vmatpush1.xpose.msra.mxu0 0.0
    %1308 = vmatprep.subr.mxu0 0.0
    %1309 = vmatpush1.xpose.msra.mxu0 0.0
    %1310 = vmatprep.subr.mxu0 0.0
    %1311 = vmatpush1.xpose.msra.mxu0 0.0
    %1312 = vmatprep.subr.mxu0 0.0
    %1313 = vmatpush1.xpose.msra.mxu0 0.0
    %1314 = vmatprep.subr.mxu0 0.0
    %1315 = vmatpush1.xpose.msra.mxu0 0.0
    %1316 = vmatprep.subr.mxu0 0.0
    %1317 = vmatpush1.xpose.msra.mxu0 0.0
    %1318 = vmatprep.subr.mxu0 0.0
    %1319 = vmatpush1.xpose.msra.mxu0 0.0
    %1320 = vmatprep.subr.mxu0 0.0
    %1321 = vmatpush1.xpose.msra.mxu0 0.0
    %1322 = vmatprep.subr.mxu0 0.0
    %1323 = vmatpush1.xpose.msra.mxu0 0.0
    %1324 = vmatprep.subr.mxu0 0.0
    %1325 = vmatpush1.xpose.msra.mxu0 0.0
    %1326 = vmatprep.subr.mxu0 0.0
    %1327 = vmatpush1.xpose.msra.mxu0 0.0
    %1328 = vmatprep.subr.mxu0 0.0
    %1329 = vmatpush1.xpose.msra.mxu0 0.0
    %1330 = vmatprep.subr.mxu0 0.0
    %1331 = vmatpush1.xpose.msra.mxu0 0.0
    %1332 = vmatprep.subr.mxu0 0.0
    %1333 = vmatpush1.xpose.msra.mxu0 0.0
    %1334 = vmatprep.subr.mxu0 0.0
    %1335 = vmatpush1.xpose.msra.mxu0 0.0
    %1336 = vmatprep.subr.mxu0 0.0
    %1337 = vmatpush1.xpose.msra.mxu0 0.0
    %1338 = vmatprep.subr.mxu0 0.0
    %1339 = vmatpush1.xpose.msra.mxu0 0.0
    %1340 = vmatprep.subr.mxu0 0.0
    %1341 = vmatpush1.xpose.msra.mxu0 0.0
    %1342 = vmatprep.subr.mxu0 0.0
    %1343 = vmatpush1.xpose.msra.mxu0 0.0
    %1344 = vmatprep.subr.mxu0 0.0
    %1345 = vmatpush1.xpose.msra.mxu0 0.0
    %1346 = vmatprep.subr.mxu0 0.0
    %1347 = vmatpush1.xpose.msra.mxu0 0.0
    %1348 = vmatprep.subr.mxu0 0.0
    %1349 = vmatpush1.xpose.msra.mxu0 0.0
    %1350 = vmatprep.subr.mxu0 0.0
    %1351 = vmatpush1.xpose.msra.mxu0 0.0
    %1352 = vmatprep.subr.mxu0 0.0
    %1353 = vmatpush1.xpose.msra.mxu0 0.0
    %1354 = vmatprep.subr.mxu0 0.0
    %1355 = vmatpush1.xpose.msra.mxu0 0.0
    %1356 = vmatprep.subr.mxu0 0.0
    %1357 = vmatpush1.xpose.msra.mxu0 0.0
    %1358 = vmatprep.subr.mxu0 0.0
    %1359 = vmatpush1.xpose.msra.mxu0 0.0
    %1360 = vmatprep.subr.mxu0 0.0
    %1361 = vmatpush1.xpose.msra.mxu0 0.0
    %1362 = vmatprep.subr.mxu0 0.0
    %1363 = vmatpush1.xpose.msra.mxu0 0.0
    %1364 = vmatprep.mubr.f32.mxu0 %v164
    %1365 = vmatmul.mubr.f32.gmra.mrb[0].mxu0 %v162
    %v1366 = vpop.f32.mrb[0].mxu0
    %v1367 = vadd.f32 %v1297, %v1366
    %v1368 = vpop.f32.mrb[0].mxu0
    %1369 = vdwg.mxu0
    %1370 = vmatprep.subr.mxu0 %v356
    %1371 = vmatpush1.xpose.msra.mxu0 %v348
    %1372 = vmatprep.subr.mxu0 0.0
    %1373 = vmatpush1.xpose.msra.mxu0 0.0
    %1374 = vmatprep.subr.mxu0 0.0
    %1375 = vmatpush1.xpose.msra.mxu0 0.0
    %1376 = vmatprep.subr.mxu0 0.0
    %1377 = vmatpush1.xpose.msra.mxu0 0.0
    %1378 = vmatprep.subr.mxu0 0.0
    %1379 = vmatpush1.xpose.msra.mxu0 0.0
    %1380 = vmatprep.subr.mxu0 0.0
    %1381 = vmatpush1.xpose.msra.mxu0 0.0
    %1382 = vmatprep.subr.mxu0 0.0
    %1383 = vmatpush1.xpose.msra.mxu0 0.0
    %1384 = vmatprep.subr.mxu0 0.0
    %1385 = vmatpush1.xpose.msra.mxu0 0.0
    %1386 = vmatprep.subr.mxu0 0.0
    %1387 = vmatpush1.xpose.msra.mxu0 0.0
    %1388 = vmatprep.subr.mxu0 0.0
    %1389 = vmatpush1.xpose.msra.mxu0 0.0
    %1390 = vmatprep.subr.mxu0 0.0
    %1391 = vmatpush1.xpose.msra.mxu0 0.0
    %1392 = vmatprep.subr.mxu0 0.0
    %1393 = vmatpush1.xpose.msra.mxu0 0.0
    %1394 = vmatprep.subr.mxu0 0.0
    %1395 = vmatpush1.xpose.msra.mxu0 0.0
    %1396 = vmatprep.subr.mxu0 0.0
    %1397 = vmatpush1.xpose.msra.mxu0 0.0
    %1398 = vmatprep.subr.mxu0 0.0
    %1399 = vmatpush1.xpose.msra.mxu0 0.0
    %1400 = vmatprep.subr.mxu0 0.0
    %1401 = vmatpush1.xpose.msra.mxu0 0.0
    %1402 = vmatprep.subr.mxu0 0.0
    %1403 = vmatpush1.xpose.msra.mxu0 0.0
    %1404 = vmatprep.subr.mxu0 0.0
    %1405 = vmatpush1.xpose.msra.mxu0 0.0
    %1406 = vmatprep.subr.mxu0 0.0
    %1407 = vmatpush1.xpose.msra.mxu0 0.0
    %1408 = vmatprep.subr.mxu0 0.0
    %1409 = vmatpush1.xpose.msra.mxu0 0.0
    %1410 = vmatprep.subr.mxu0 0.0
    %1411 = vmatpush1.xpose.msra.mxu0 0.0
    %1412 = vmatprep.subr.mxu0 0.0
    %1413 = vmatpush1.xpose.msra.mxu0 0.0
    %1414 = vmatprep.subr.mxu0 0.0
    %1415 = vmatpush1.xpose.msra.mxu0 0.0
    %1416 = vmatprep.subr.mxu0 0.0
    %1417 = vmatpush1.xpose.msra.mxu0 0.0
    %1418 = vmatprep.subr.mxu0 0.0
    %1419 = vmatpush1.xpose.msra.mxu0 0.0
    %1420 = vmatprep.subr.mxu0 0.0
    %1421 = vmatpush1.xpose.msra.mxu0 0.0
    %1422 = vmatprep.subr.mxu0 0.0
    %1423 = vmatpush1.xpose.msra.mxu0 0.0
    %1424 = vmatprep.subr.mxu0 0.0
    %1425 = vmatpush1.xpose.msra.mxu0 0.0
    %1426 = vmatprep.subr.mxu0 0.0
    %1427 = vmatpush1.xpose.msra.mxu0 0.0
    %1428 = vmatprep.subr.mxu0 0.0
    %1429 = vmatpush1.xpose.msra.mxu0 0.0
    %1430 = vmatprep.subr.mxu0 0.0
    %1431 = vmatpush1.xpose.msra.mxu0 0.0
    %1432 = vmatprep.subr.mxu0 0.0
    %1433 = vmatpush1.xpose.msra.mxu0 0.0
    %1434 = vmatprep.mubr.f32.mxu0 %v180
    %1435 = vmatmul.mubr.f32.gmra.mrb[0].mxu0 %v172
    %v1436 = vpop.f32.mrb[0].mxu0
    %v1437 = vadd.f32 %v1367, %v1436
    %v1438 = vpop.f32.mrb[0].mxu0
    %1439 = vdwg.mxu0
    %1440 = vmatprep.subr.mxu0 %v357
    %1441 = vmatpush1.xpose.msra.mxu0 %v355
    %1442 = vmatprep.subr.mxu0 0.0
    %1443 = vmatpush1.xpose.msra.mxu0 0.0
    %1444 = vmatprep.subr.mxu0 0.0
    %1445 = vmatpush1.xpose.msra.mxu0 0.0
    %1446 = vmatprep.subr.mxu0 0.0
    %1447 = vmatpush1.xpose.msra.mxu0 0.0
    %1448 = vmatprep.subr.mxu0 0.0
    %1449 = vmatpush1.xpose.msra.mxu0 0.0
    %1450 = vmatprep.subr.mxu0 0.0
    %1451 = vmatpush1.xpose.msra.mxu0 0.0
    %1452 = vmatprep.subr.mxu0 0.0
    %1453 = vmatpush1.xpose.msra.mxu0 0.0
    %1454 = vmatprep.subr.mxu0 0.0
    %1455 = vmatpush1.xpose.msra.mxu0 0.0
    %1456 = vmatprep.subr.mxu0 0.0
    %1457 = vmatpush1.xpose.msra.mxu0 0.0
    %1458 = vmatprep.subr.mxu0 0.0
    %1459 = vmatpush1.xpose.msra.mxu0 0.0
    %1460 = vmatprep.subr.mxu0 0.0
    %1461 = vmatpush1.xpose.msra.mxu0 0.0
    %1462 = vmatprep.subr.mxu0 0.0
    %1463 = vmatpush1.xpose.msra.mxu0 0.0
    %1464 = vmatprep.subr.mxu0 0.0
    %1465 = vmatpush1.xpose.msra.mxu0 0.0
    %1466 = vmatprep.subr.mxu0 0.0
    %1467 = vmatpush1.xpose.msra.mxu0 0.0
    %1468 = vmatprep.subr.mxu0 0.0
    %1469 = vmatpush1.xpose.msra.mxu0 0.0
    %1470 = vmatprep.subr.mxu0 0.0
    %1471 = vmatpush1.xpose.msra.mxu0 0.0
    %1472 = vmatprep.subr.mxu0 0.0
    %1473 = vmatpush1.xpose.msra.mxu0 0.0
    %1474 = vmatprep.subr.mxu0 0.0
    %1475 = vmatpush1.xpose.msra.mxu0 0.0
    %1476 = vmatprep.subr.mxu0 0.0
    %1477 = vmatpush1.xpose.msra.mxu0 0.0
    %1478 = vmatprep.subr.mxu0 0.0
    %1479 = vmatpush1.xpose.msra.mxu0 0.0
    %1480 = vmatprep.subr.mxu0 0.0
    %1481 = vmatpush1.xpose.msra.mxu0 0.0
    %1482 = vmatprep.subr.mxu0 0.0
    %1483 = vmatpush1.xpose.msra.mxu0 0.0
    %1484 = vmatprep.subr.mxu0 0.0
    %1485 = vmatpush1.xpose.msra.mxu0 0.0
    %1486 = vmatprep.subr.mxu0 0.0
    %1487 = vmatpush1.xpose.msra.mxu0 0.0
    %1488 = vmatprep.subr.mxu0 0.0
    %1489 = vmatpush1.xpose.msra.mxu0 0.0
    %1490 = vmatprep.subr.mxu0 0.0
    %1491 = vmatpush1.xpose.msra.mxu0 0.0
    %1492 = vmatprep.subr.mxu0 0.0
    %1493 = vmatpush1.xpose.msra.mxu0 0.0
    %1494 = vmatprep.subr.mxu0 0.0
    %1495 = vmatpush1.xpose.msra.mxu0 0.0
    %1496 = vmatprep.subr.mxu0 0.0
    %1497 = vmatpush1.xpose.msra.mxu0 0.0
    %1498 = vmatprep.subr.mxu0 0.0
    %1499 = vmatpush1.xpose.msra.mxu0 0.0
    %1500 = vmatprep.subr.mxu0 0.0
    %1501 = vmatpush1.xpose.msra.mxu0 0.0
    %1502 = vmatprep.subr.mxu0 0.0
    %1503 = vmatpush1.xpose.msra.mxu0 0.0
    %1504 = vmatprep.mubr.f32.mxu0 %v181
    %1505 = vmatmul.mubr.f32.gmra.mrb[0].mxu0 %v179
    %v1506 = vpop.f32.mrb[0].mxu0
    %v1507 = vadd.f32 %v1437, %v1506
    %v1508 = vpop.f32.mrb[0].mxu0
    %1509 = vdwg.mxu0
    %v1510 = vadd.f32 %v21, %v1507
    %vm1511 = vcmask 9216
    %1512 = vst.msk [vmem:[#allocation2] sm:$0x3] %vm1511, %v1510
    // Predicated region
    $region18: #{cnn_forward.5} parent=1 // pred_check
      %p1513 = pneg %p15
    $region19: #{cnn_forward.5} parent=1 // pred_check_branch
      %1515 = sbr.rel (%p1513) target = $region21
    $region20: #{cnn_forward.5} parent=1 // pred_region
      %v1516 = vld [vmem:[#allocation2] sm:$0x3]
      %v1517 = vld [vmem:[%s2] sm:$0x1]
      %v1519 = vlaneseq
      %v1520 = vshrl.u32 %v1519, 7
      %v1521 = vsub.s32 0, %v1520
      %v1522 = vrot.slane %v1517, %v1521
      %v1524 = vadd.f32 %v1516, %v1522
      %1525 = vst.msk [vmem:[#allocation3] sm:$0x3] %vm1511, %v1524
    $region21: #{cnn_forward.5} parent=1 // pred_fallthru
      _
    // Predicated region
    $region22: #{cnn_forward.5} parent=1 // pred_check
      _
    $region23: #{cnn_forward.5} parent=1 // pred_check_branch
      %1527 = sbr.rel (0) target = $region25
    $region24: #{cnn_forward.5} parent=1 // pred_region
      %s1529 = ssub.s32 32, 32
      %1530 = vsyncadd [#allocation4], %s1529
      %s1532 = sshll.u32 [#allocation3], 4
      %s1533 = int_to_ptr.vmem [resolvable:$true] %s1532
      %1535 = dma.vmem_to_hbm [thread:$0]  %s1533, 32, %s3, [#allocation4]
    $region25: #{cnn_forward.5} parent=1 // pred_fallthru
      _
    // Predicated region
    $region26: #{cnn_forward.5} parent=1 // pred_check
      _
    $region27: #{cnn_forward.5} parent=1 // pred_check_branch
      %1537 = sbr.rel (0) target = $region29
    $region28: #{cnn_forward.5} parent=1 // pred_region
      %1538 = dma.done [#allocation4], 32
    $region29: #{cnn_forward.5} parent=1 // pred_fallthru
      _
    %1539 = vsyncpa [#allocation4], 1

</llo_original>
